<compile_context>
chip_gen: v5e
topology: v5e:2x2
jax: 0.10.0
libtpu: 0.0.40
codegen_flags: <defaults>
</compile_context>

<pallas_src>
import functools

import jax
import jax.numpy as jnp
from jax import lax
from jax.experimental import pallas as pl
from jax.experimental.pallas import tpu as pltpu

MM_DTYPE = jnp.bfloat16          # matmul operand dtype (f32 accumulation)
ACT_DTYPE = jnp.bfloat16         # inter-block activation dtype in HBM
BN_EPS = 1e-5
VMEM_LIMIT = 32 * 1024 * 1024    # safe scoped-VMEM budget on v5e/v6e/v7x


# ----------------------------------------------------------------------------
# Fused residual-block kernel (single pallas_call, whole batch in VMEM)
# ----------------------------------------------------------------------------
def _residual_block_kernel(*refs, s2d, sc_conv, n, h, w, cx, c_orig, cout,
                           k1, eps):
    """refs = (x, bn1_g, bn1_b, w1, b1, bn2_g, bn2_b, w2, b2, [sc_w, sc_b],
               out, xp1, acc1, xp2, acc2)

    x   : (n, h, w, cx)  block input; if s2d it is the space-to-depth form of
          the original (n, 2h, 2w, c_orig) input (cx == 4 * c_orig).
    w1  : (k1*k1*cx, cout) bf16 tap-major (stride-2 3x3 already folded to 2x2).
    w2  : (9*cout, cout)   bf16 tap-major.
    out : (n, h, w, cout).
    """
    x_ref = refs[0]
    g1_ref, be1_ref = refs[1], refs[2]
    w1_ref, b1_ref = refs[3], refs[4]
    g2_ref, be2_ref = refs[5], refs[6]
    w2_ref, b2_ref = refs[7], refs[8]
    idx = 9
    if sc_conv:
        scw_ref, scb_ref = refs[idx], refs[idx + 1]
        idx += 2
    o_ref = refs[idx]
    xp1_ref, acc1_ref, xp2_ref, acc2_ref = refs[idx + 1:idx + 5]

    m = n * h * w

    # ---- load the whole (possibly space-to-depth) input once, as f32 ----
    x2 = x_ref[...].astype(jnp.float32).reshape(m, cx)

    # ---- BatchNorm1: batch statistics (training mode, biased variance) ----
    s1 = jnp.sum(x2, axis=0, keepdims=True)
    q1 = jnp.sum(x2 * x2, axis=0, keepdims=True)
    if s2d:
        # the 4 spatial phases of one original channel share statistics
        s1 = (s1[:, 0:c_orig] + s1[:, c_orig:2 * c_orig]
              + s1[:, 2 * c_orig:3 * c_orig] + s1[:, 3 * c_orig:4 * c_orig])
        q1 = (q1[:, 0:c_orig] + q1[:, c_orig:2 * c_orig]
              + q1[:, 2 * c_orig:3 * c_orig] + q1[:, 3 * c_orig:4 * c_orig])
    inv_m1 = 1.0 / float(4 * m if s2d else m)
    mean1 = s1 * inv_m1
    var1 = q1 * inv_m1 - mean1 * mean1
    scale1 = g1_ref[...] * lax.rsqrt(var1 + eps)
    shift1 = be1_ref[...] - mean1 * scale1
    if s2d:
        scale1 = jnp.concatenate([scale1] * 4, axis=1)
        shift1 = jnp.concatenate([shift1] * 4, axis=1)

    xn = jnp.maximum(x2 * scale1 + shift1, 0.0)          # BN1 + ReLU

    # ---- conv1: k1 x k1, stride 1, direct conv with VMEM f32 accumulator ----
    # (scratch zero is only the 1-pixel halo worth of bytes here; negligible)
    xp1_ref[...] = jnp.zeros_like(xp1_ref)
    xp1_ref[:, 1:1 + h, 1:1 + w, :] = xn.reshape(n, h, w, cx)
    acc1_ref[...] = jnp.zeros_like(acc1_ref)
    for kh in range(k1):
        for kw in range(k1):
            a = xp1_ref[:, kh:kh + h, kw:kw + w, :].reshape(m, cx)
            t = kh * k1 + kw
            wk = w1_ref[t * cx:(t + 1) * cx, :]
            acc1_ref[...] += jnp.dot(a.astype(MM_DTYPE), wk,
                                     preferred_element_type=jnp.float32)
    h1 = acc1_ref[...] + b1_ref[...]                     # (m, cout)

    # ---- BatchNorm2 (batch stats) + ReLU ----
    s2 = jnp.sum(h1, axis=0, keepdims=True)
    q2 = jnp.sum(h1 * h1, axis=0, keepdims=True)
    inv_m2 = 1.0 / float(m)
    mean2 = s2 * inv_m2
    var2 = q2 * inv_m2 - mean2 * mean2
    scale2 = g2_ref[...] * lax.rsqrt(var2 + eps)
    shift2 = be2_ref[...] - mean2 * scale2
    hn = jnp.maximum(h1 * scale2 + shift2, 0.0)

    # ---- conv2: 3x3, stride 1, pad 1 ----
    xp2_ref[...] = jnp.zeros_like(xp2_ref)
    xp2_ref[:, 1:1 + h, 1:1 + w, :] = hn.reshape(n, h, w, cout)
    acc2_ref[...] = jnp.zeros_like(acc2_ref)
    for kh in range(3):
        for kw in range(3):
            a = xp2_ref[:, kh:kh + h, kw:kw + w, :].reshape(m, cout)
            t = kh * 3 + kw
            wk = w2_ref[t * cout:(t + 1) * cout, :]
            acc2_ref[...] += jnp.dot(a.astype(MM_DTYPE), wk,
                                     preferred_element_type=jnp.float32)
    out = acc2_ref[...] + b2_ref[...]

    # ---- shortcut on the raw block input, fused into the epilogue ----
    if sc_conv:
        # stride-2 1x1 conv == 1x1 conv on phase-(0,0) channels of the s2d input
        xs = x2[:, 0:c_orig] if s2d else x2
        sc = jnp.dot(xs.astype(MM_DTYPE), scw_ref[...],
                     preferred_element_type=jnp.float32) + scb_ref[...]
    else:
        sc = x2                                          # identity (cx == cout)
    out = out + sc
    o_ref[...] = out.reshape(n, h, w, cout).astype(o_ref.dtype)


# ----------------------------------------------------------------------------
# Wrapper: one pallas_call per residual block
# ----------------------------------------------------------------------------
def _space_to_depth(x):
    """(N,H,W,C) -> (N,H/2,W/2,4C); channel blocks ordered (row-phase, col-phase)."""
    n, hh, ww, c = x.shape
    x = x.reshape(n, hh // 2, 2, ww // 2, 2, c)
    x = jnp.transpose(x, (0, 1, 3, 2, 4, 5))
    return x.reshape(n, hh // 2, ww // 2, 4 * c)


def _residual_block(x, p, cfg, out_dtype):
    downsample = cfg["downsample"]
    identity = cfg["identity"]
    cout = cfg["cout"]

    if downsample:
        assert x.shape[1] % 2 == 0 and x.shape[2] % 2 == 0
        x = _space_to_depth(x)            # compact XLA layout transform (KBs)
        k1 = 2
        c_orig = x.shape[3] // 4
    else:
        k1 = 3
        c_orig = x.shape[3]

    n, h, w, cx = x.shape
    m = n * h * w

    inputs = [x, p["bn1_g"], p["bn1_b"], p["w1"], p["b1"],
              p["bn2_g"], p["bn2_b"], p["w2"], p["b2"]]
    if not identity:
        inputs += [p["sc_w"], p["sc_b"]]

    kernel = functools.partial(
        _residual_block_kernel, s2d=downsample, sc_conv=not identity,
        n=n, h=h, w=w, cx=cx, c_orig=c_orig, cout=cout, k1=k1, eps=BN_EPS)

    vmem = pl.BlockSpec(memory_space=pltpu.MemorySpace.VMEM)
    return pl.pallas_call(
        kernel,
        out_shape=jax.ShapeDtypeStruct((n, h, w, cout), out_dtype),
        in_specs=[vmem] * len(inputs),
        out_specs=vmem,
        scratch_shapes=[
            pltpu.VMEM((n, h + k1 - 1, w + k1 - 1, cx), jnp.float32),  # conv1 pad
            pltpu.VMEM((m, cout), jnp.float32),                        # conv1 acc
            pltpu.VMEM((n, h + 2, w + 2, cout), jnp.float32),          # conv2 pad
            pltpu.VMEM((m, cout), jnp.float32),                        # conv2 acc
        ],
        compiler_params=pltpu.CompilerParams(vmem_limit_bytes=VMEM_LIMIT),
    )(*inputs)


# ----------------------------------------------------------------------------
# Parameters (arrays only) + static architecture config
# ----------------------------------------------------------------------------
def _kaiming(key, shape, fan_in):
    return jax.random.normal(key, shape, jnp.float32) * (2.0 / fan_in) ** 0.5


def _quant(w):
    # round once to bf16 so kernel (bf16) and reference (f32) use identical values
    return w.astype(MM_DTYPE).astype(jnp.float32)


def _s2d_weight(w):
    """3x3 / stride-2 / pad-1 weights -> equivalent 2x2 / stride-1 weights over
    the space-to-depth input (which gets a zero pad of 1 on top/left only)."""
    c, co = w.shape[2], w.shape[3]
    remap = {0: (0, 1), 1: (1, 0), 2: (1, 1)}   # orig tap -> (2x2 tap, phase)
    w2 = jnp.zeros((2, 2, 4, c, co), w.dtype)
    for kh in range(3):
        kh2, p = remap[kh]
        for kw in range(3):
            kw2, q = remap[kw]
            w2 = w2.at[kh2, kw2, p * 2 + q].set(w[kh, kw])
    return w2.reshape(2, 2, 4 * c, co)


def make_resnet_stage(key, cin, cout, num_blocks, downsample=True):
    """Matches ResNetStage(Cin, Cout, num_blocks, downsample, block=ResidualBlock)."""
    io = [(cin, cout, downsample)] + [(cout, cout, False)] * (num_blocks - 1)
    params, ref_params, config = [], [], []
    for ci, co, ds in io:
        key, *ks = jax.random.split(key, 11)
        g1 = 1.0 + 0.1 * jax.random.normal(ks[0], (ci,), jnp.float32)
        be1 = 0.05 * jax.random.normal(ks[1], (ci,), jnp.float32)
        w1 = _quant(_kaiming(ks[2], (3, 3, ci, co), 9 * ci))
        b1 = 0.05 * jax.random.normal(ks[3], (co,), jnp.float32)
        g2 = 1.0 + 0.1 * jax.random.normal(ks[4], (co,), jnp.float32)
        be2 = 0.05 * jax.random.normal(ks[5], (co,), jnp.float32)
        w2 = _quant(_kaiming(ks[6], (3, 3, co, co), 9 * co))
        b2 = 0.05 * jax.random.normal(ks[7], (co,), jnp.float32)
        identity = (ci == co) and (not ds)

        # kernel weights: tap-major, bf16, stride-2 form pre-folded (static)
        w1k = _s2d_weight(w1).reshape(16 * ci, co) if ds else w1.reshape(9 * ci, co)
        p = {"bn1_g": g1.reshape(1, ci), "bn1_b": be1.reshape(1, ci),
             "w1": w1k.astype(MM_DTYPE), "b1": b1.reshape(1, co),
             "bn2_g": g2.reshape(1, co), "bn2_b": be2.reshape(1, co),
             "w2": w2.reshape(9 * co, co).astype(MM_DTYPE),
             "b2": b2.reshape(1, co)}
        rp = {"bn1_g": g1, "bn1_b": be1, "w1": w1, "b1": b1,
              "bn2_g": g2, "bn2_b": be2, "w2": w2, "b2": b2}
        if not identity:
            wsc = _quant(_kaiming(ks[8], (1, 1, ci, co), ci))
            bsc = 0.05 * jax.random.normal(ks[9], (co,), jnp.float32)
            p["sc_w"] = wsc.reshape(ci, co).astype(MM_DTYPE)
            p["sc_b"] = bsc.reshape(1, co)
            rp["sc_w"], rp["sc_b"] = wsc, bsc
        params.append(p)
        ref_params.append(rp)
        config.append({"downsample": ds, "identity": identity, "cout": co})
    return params, ref_params, config


# ----------------------------------------------------------------------------
# Forward (config is static / closed over; params is an array-only pytree)
# ----------------------------------------------------------------------------
def build_stage_forward(config):
    n_blocks = len(config)

    def forward(x_nchw, params):
        x = jnp.transpose(x_nchw, (0, 2, 3, 1))              # NCHW -> NHWC
        for bi, (p, cfg) in enumerate(zip(params, config)):
            out_dtype = jnp.float32 if bi == n_blocks - 1 else ACT_DTYPE
            x = _residual_block(x, p, cfg, out_dtype)
        return jnp.transpose(x, (0, 3, 1, 2))                 # back to NCHW

    return forward


# ----------------------------------------------------------------------------
# Pure-JAX reference (training-mode BN, same bf16-rounded weights)
# ----------------------------------------------------------------------------
def reference_stage(x_nchw, ref_params, config, eps=BN_EPS):
    dn = ("NHWC", "HWIO", "NHWC")
    x = jnp.transpose(x_nchw, (0, 2, 3, 1))
    for rp, cfg in zip(ref_params, config):
        s = 2 if cfg["downsample"] else 1
        mean = jnp.mean(x, axis=(0, 1, 2))
        var = jnp.var(x, axis=(0, 1, 2))
        xn = jnp.maximum((x - mean) * lax.rsqrt(var + eps) * rp["bn1_g"]
                         + rp["bn1_b"], 0.0)
        h = lax.conv_general_dilated(xn, rp["w1"], (s, s), [(1, 1), (1, 1)],
                                     dimension_numbers=dn) + rp["b1"]
        mean2 = jnp.mean(h, axis=(0, 1, 2))
        var2 = jnp.var(h, axis=(0, 1, 2))
        hn = jnp.maximum((h - mean2) * lax.rsqrt(var2 + eps) * rp["bn2_g"]
                         + rp["bn2_b"], 0.0)
        out = lax.conv_general_dilated(hn, rp["w2"], (1, 1), [(1, 1), (1, 1)],
                                       dimension_numbers=dn) + rp["b2"]
        if cfg["identity"]:
            sc = x
        else:
            sc = lax.conv_general_dilated(x, rp["sc_w"], (s, s),
                                          [(0, 0), (0, 0)],
                                          dimension_numbers=dn) + rp["sc_b"]
        x = out + sc
    return jnp.transpose(x, (0, 3, 1, 2))


# ----------------------------------------------------------------------------
if __name__ == "__main__":
    key = jax.random.PRNGKey(0)
    kx, kp = jax.random.split(key)

    # ResNetStage(Cin=8, Cout=16, num_blocks=2, downsample=True):
    #   block 0: ResidualBlock(8, 16, downsample=True) -> 1x1/stride-2 shortcut
    #   block 1: ResidualBlock(16, 16)                 -> Identity shortcut
    Cin, Cout, num_blocks = 8, 16, 2
    params, ref_params, config = make_resnet_stage(kp, Cin, Cout, num_blocks,
                                                   downsample=True)

    x = jax.random.normal(kx, (2, Cin, 16, 16), jnp.float32)   # PyTorch NCHW

    fwd = jax.jit(build_stage_forward(config))
    out = jax.block_until_ready(fwd(x, params))
    assert out.shape == (2, Cout, 8, 8), out.shape
    assert bool(jnp.all(jnp.isfinite(out)))

    ref = jax.block_until_ready(
        jax.jit(lambda xx, rp: reference_stage(xx, rp, config))(x, ref_params))
    err = float(jnp.max(jnp.abs(out - ref)))
    scale = float(jnp.max(jnp.abs(ref)))
    assert err <= 0.05 * scale + 0.05, f"mismatch: max|diff|={err}, scale={scale}"

    print("KERNEL_OK")
</pallas_src>

<mosaic_0001>
module attributes {stable_mosaic.version = 11 : i64} {
  func.func @_residual_block_kernel(%arg0: memref<2x8x8x16xbf16, #tpu.memory_space<vmem>>, %arg1: memref<1x16xf32, #tpu.memory_space<vmem>>, %arg2: memref<1x16xf32, #tpu.memory_space<vmem>>, %arg3: memref<144x16xbf16, #tpu.memory_space<vmem>>, %arg4: memref<1x16xf32, #tpu.memory_space<vmem>>, %arg5: memref<1x16xf32, #tpu.memory_space<vmem>>, %arg6: memref<1x16xf32, #tpu.memory_space<vmem>>, %arg7: memref<144x16xbf16, #tpu.memory_space<vmem>>, %arg8: memref<1x16xf32, #tpu.memory_space<vmem>>, %arg9: memref<2x8x8x16xf32, #tpu.memory_space<vmem>>, %arg10: memref<2x10x10x16xf32, #tpu.memory_space<vmem>>, %arg11: memref<128x16xf32, #tpu.memory_space<vmem>>, %arg12: memref<2x10x10x16xf32, #tpu.memory_space<vmem>>, %arg13: memref<128x16xf32, #tpu.memory_space<vmem>>) attributes {dimension_semantics = [], scalar_prefetch = 0 : i64, scratch_operands = 4 : i64, tpu.core_type = #tpu.core_type<tc>} {
    %c0 = arith.constant 0 : index
    %c0_0 = arith.constant 0 : index
    %c0_1 = arith.constant 0 : index
    %c0_2 = arith.constant 0 : index
    %0 = vector.load %arg0[%c0, %c0_0, %c0_1, %c0_2] : memref<2x8x8x16xbf16, #tpu.memory_space<vmem>>, vector<2x8x8x16xbf16>
    %1 = arith.extf %0 : vector<2x8x8x16xbf16> to vector<2x8x8x16xf32>
    %2 = vector.shape_cast %1 : vector<2x8x8x16xf32> to vector<128x16xf32>
    %cst = arith.constant dense<0.000000e+00> : vector<16xf32>
    %3 = vector.multi_reduction <add>, %2, %cst [0] : vector<128x16xf32> to vector<16xf32>
    %4 = vector.shape_cast %3 : vector<16xf32> to vector<1x16xf32>
    %5 = arith.mulf %2, %2 : vector<128x16xf32>
    %cst_3 = arith.constant dense<0.000000e+00> : vector<16xf32>
    %6 = vector.multi_reduction <add>, %5, %cst_3 [0] : vector<128x16xf32> to vector<16xf32>
    %7 = vector.shape_cast %6 : vector<16xf32> to vector<1x16xf32>
    %cst_4 = arith.constant 7.812500e-03 : f32
    %8 = vector.broadcast %cst_4 : f32 to vector<1x16xf32>
    %9 = arith.mulf %4, %8 : vector<1x16xf32>
    %cst_5 = arith.constant 7.812500e-03 : f32
    %10 = vector.broadcast %cst_5 : f32 to vector<1x16xf32>
    %11 = arith.mulf %7, %10 : vector<1x16xf32>
    %12 = arith.mulf %9, %9 : vector<1x16xf32>
    %13 = arith.subf %11, %12 : vector<1x16xf32>
    %c0_6 = arith.constant 0 : index
    %c0_7 = arith.constant 0 : index
    %14 = vector.load %arg1[%c0_6, %c0_7] : memref<1x16xf32, #tpu.memory_space<vmem>>, vector<1x16xf32>
    %cst_8 = arith.constant 9.99999974E-6 : f32
    %15 = vector.broadcast %cst_8 : f32 to vector<1x16xf32>
    %16 = arith.addf %13, %15 : vector<1x16xf32>
    %17 = math.rsqrt %16 : vector<1x16xf32>
    %18 = arith.mulf %14, %17 : vector<1x16xf32>
    %c0_9 = arith.constant 0 : index
    %c0_10 = arith.constant 0 : index
    %19 = vector.load %arg2[%c0_9, %c0_10] : memref<1x16xf32, #tpu.memory_space<vmem>>, vector<1x16xf32>
    %20 = arith.mulf %9, %18 : vector<1x16xf32>
    %21 = arith.subf %19, %20 : vector<1x16xf32>
    %22 = vector.broadcast %18 : vector<1x16xf32> to vector<128x16xf32>
    %23 = arith.mulf %2, %22 : vector<128x16xf32>
    %24 = vector.broadcast %21 : vector<1x16xf32> to vector<128x16xf32>
    %25 = arith.addf %23, %24 : vector<128x16xf32>
    %cst_11 = arith.constant 0.000000e+00 : f32
    %26 = vector.broadcast %cst_11 : f32 to vector<128x16xf32>
    %27 = arith.maximumf %25, %26 : vector<128x16xf32>
    %cst_12 = arith.constant 0.000000e+00 : f32
    %28 = vector.broadcast %cst_12 : f32 to vector<2x10x10x16xf32>
    %c0_13 = arith.constant 0 : index
    %c0_14 = arith.constant 0 : index
    %c0_15 = arith.constant 0 : index
    %c0_16 = arith.constant 0 : index
    %29 = vector.load %arg10[%c0_13, %c0_14, %c0_15, %c0_16] : memref<2x10x10x16xf32, #tpu.memory_space<vmem>>, vector<2x10x10x16xf32>
    tpu.vector_store %arg10[%c0_13, %c0_14, %c0_15, %c0_16], %28 {strides = array<i32>} : memref<2x10x10x16xf32, #tpu.memory_space<vmem>>, vector<2x10x10x16xf32>,
    %30 = vector.shape_cast %27 : vector<128x16xf32> to vector<2x8x8x16xf32>
    %c0_17 = arith.constant 0 : index
    %c1 = arith.constant 1 : index
    %c1_18 = arith.constant 1 : index
    %c0_19 = arith.constant 0 : index
    %31 = vector.load %arg10[%c0_17, %c1, %c1_18, %c0_19] : memref<2x10x10x16xf32, #tpu.memory_space<vmem>>, vector<2x8x8x16xf32>
    tpu.vector_store %arg10[%c0_17, %c1, %c1_18, %c0_19], %30 {strides = array<i32>} : memref<2x10x10x16xf32, #tpu.memory_space<vmem>>, vector<2x8x8x16xf32>,
    %cst_20 = arith.constant 0.000000e+00 : f32
    %32 = vector.broadcast %cst_20 : f32 to vector<128x16xf32>
    %c0_21 = arith.constant 0 : index
    %c0_22 = arith.constant 0 : index
    %33 = vector.load %arg11[%c0_21, %c0_22] : memref<128x16xf32, #tpu.memory_space<vmem>>, vector<128x16xf32>
    tpu.vector_store %arg11[%c0_21, %c0_22], %32 {strides = array<i32>} : memref<128x16xf32, #tpu.memory_space<vmem>>, vector<128x16xf32>,
    %c0_23 = arith.constant 0 : index
    %c0_24 = arith.constant 0 : index
    %c0_25 = arith.constant 0 : index
    %c0_26 = arith.constant 0 : index
    %34 = vector.load %arg10[%c0_23, %c0_24, %c0_25, %c0_26] : memref<2x10x10x16xf32, #tpu.memory_space<vmem>>, vector<2x8x8x16xf32>
    %35 = vector.shape_cast %34 : vector<2x8x8x16xf32> to vector<128x16xf32>
    %c0_27 = arith.constant 0 : index
    %c0_28 = arith.constant 0 : index
    %36 = vector.load %arg3[%c0_27, %c0_28] : memref<144x16xbf16, #tpu.memory_space<vmem>>, vector<16x16xbf16>
    %c0_29 = arith.constant 0 : index
    %c0_30 = arith.constant 0 : index
    %37 = vector.load %arg11[%c0_29, %c0_30] : memref<128x16xf32, #tpu.memory_space<vmem>>, vector<128x16xf32>
    %38 = arith.truncf %35 : vector<128x16xf32> to vector<128x16xbf16>
    %cst_31 = arith.constant dense<0.000000e+00> : vector<128x16xf32>
    %39 = tpu.matmul %38, %36, %cst_31 {dimension_numbers = #tpu.dot_dimension_numbers<[1], [0], [0], [1], [0, 0, 1, 1], [], []>} : vector<128x16xbf16>, vector<16x16xbf16>, vector<128x16xf32> -> vector<128x16xf32>
    %40 = arith.addf %37, %39 : vector<128x16xf32>
    %c0_32 = arith.constant 0 : index
    %c0_33 = arith.constant 0 : index
    %41 = vector.load %arg11[%c0_32, %c0_33] : memref<128x16xf32, #tpu.memory_space<vmem>>, vector<128x16xf32>
    tpu.vector_store %arg11[%c0_32, %c0_33], %40 {strides = array<i32>} : memref<128x16xf32, #tpu.memory_space<vmem>>, vector<128x16xf32>,
    %c0_34 = arith.constant 0 : index
    %c0_35 = arith.constant 0 : index
    %c1_36 = arith.constant 1 : index
    %c0_37 = arith.constant 0 : index
    %42 = vector.load %arg10[%c0_34, %c0_35, %c1_36, %c0_37] : memref<2x10x10x16xf32, #tpu.memory_space<vmem>>, vector<2x8x8x16xf32>
    %43 = vector.shape_cast %42 : vector<2x8x8x16xf32> to vector<128x16xf32>
    %c16 = arith.constant 16 : index
    %c0_38 = arith.constant 0 : index
    %44 = vector.load %arg3[%c16, %c0_38] : memref<144x16xbf16, #tpu.memory_space<vmem>>, vector<16x16xbf16>
    %c0_39 = arith.constant 0 : index
    %c0_40 = arith.constant 0 : index
    %45 = vector.load %arg11[%c0_39, %c0_40] : memref<128x16xf32, #tpu.memory_space<vmem>>, vector<128x16xf32>
    %46 = arith.truncf %43 : vector<128x16xf32> to vector<128x16xbf16>
    %cst_41 = arith.constant dense<0.000000e+00> : vector<128x16xf32>
    %47 = tpu.matmul %46, %44, %cst_41 {dimension_numbers = #tpu.dot_dimension_numbers<[1], [0], [0], [1], [0, 0, 1, 1], [], []>} : vector<128x16xbf16>, vector<16x16xbf16>, vector<128x16xf32> -> vector<128x16xf32>
    %48 = arith.addf %45, %47 : vector<128x16xf32>
    %c0_42 = arith.constant 0 : index
    %c0_43 = arith.constant 0 : index
    %49 = vector.load %arg11[%c0_42, %c0_43] : memref<128x16xf32, #tpu.memory_space<vmem>>, vector<128x16xf32>
    tpu.vector_store %arg11[%c0_42, %c0_43], %48 {strides = array<i32>} : memref<128x16xf32, #tpu.memory_space<vmem>>, vector<128x16xf32>,
    %c0_44 = arith.constant 0 : index
    %c0_45 = arith.constant 0 : index
    %c2 = arith.constant 2 : index
    %c0_46 = arith.constant 0 : index
    %50 = vector.load %arg10[%c0_44, %c0_45, %c2, %c0_46] : memref<2x10x10x16xf32, #tpu.memory_space<vmem>>, vector<2x8x8x16xf32>
    %51 = vector.shape_cast %50 : vector<2x8x8x16xf32> to vector<128x16xf32>
    %c32 = arith.constant 32 : index
    %c0_47 = arith.constant 0 : index
    %52 = vector.load %arg3[%c32, %c0_47] : memref<144x16xbf16, #tpu.memory_space<vmem>>, vector<16x16xbf16>
    %c0_48 = arith.constant 0 : index
    %c0_49 = arith.constant 0 : index
    %53 = vector.load %arg11[%c0_48, %c0_49] : memref<128x16xf32, #tpu.memory_space<vmem>>, vector<128x16xf32>
    %54 = arith.truncf %51 : vector<128x16xf32> to vector<128x16xbf16>
    %cst_50 = arith.constant dense<0.000000e+00> : vector<128x16xf32>
    %55 = tpu.matmul %54, %52, %cst_50 {dimension_numbers = #tpu.dot_dimension_numbers<[1], [0], [0], [1], [0, 0, 1, 1], [], []>} : vector<128x16xbf16>, vector<16x16xbf16>, vector<128x16xf32> -> vector<128x16xf32>
    %56 = arith.addf %53, %55 : vector<128x16xf32>
    %c0_51 = arith.constant 0 : index
    %c0_52 = arith.constant 0 : index
    %57 = vector.load %arg11[%c0_51, %c0_52] : memref<128x16xf32, #tpu.memory_space<vmem>>, vector<128x16xf32>
    tpu.vector_store %arg11[%c0_51, %c0_52], %56 {strides = array<i32>} : memref<128x16xf32, #tpu.memory_space<vmem>>, vector<128x16xf32>,
    %c0_53 = arith.constant 0 : index
    %c1_54 = arith.constant 1 : index
    %c0_55 = arith.constant 0 : index
    %c0_56 = arith.constant 0 : index
    %58 = vector.load %arg10[%c0_53, %c1_54, %c0_55, %c0_56] : memref<2x10x10x16xf32, #tpu.memory_space<vmem>>, vector<2x8x8x16xf32>
    %59 = vector.shape_cast %58 : vector<2x8x8x16xf32> to vector<128x16xf32>
    %c48 = arith.constant 48 : index
    %c0_57 = arith.constant 0 : index
    %60 = vector.load %arg3[%c48, %c0_57] : memref<144x16xbf16, #tpu.memory_space<vmem>>, vector<16x16xbf16>
    %c0_58 = arith.constant 0 : index
    %c0_59 = arith.constant 0 : index
    %61 = vector.load %arg11[%c0_58, %c0_59] : memref<128x16xf32, #tpu.memory_space<vmem>>, vector<128x16xf32>
    %62 = arith.truncf %59 : vector<128x16xf32> to vector<128x16xbf16>
    %cst_60 = arith.constant dense<0.000000e+00> : vector<128x16xf32>
    %63 = tpu.matmul %62, %60, %cst_60 {dimension_numbers = #tpu.dot_dimension_numbers<[1], [0], [0], [1], [0, 0, 1, 1], [], []>} : vector<128x16xbf16>, vector<16x16xbf16>, vector<128x16xf32> -> vector<128x16xf32>
    %64 = arith.addf %61, %63 : vector<128x16xf32>
    %c0_61 = arith.constant 0 : index
    %c0_62 = arith.constant 0 : index
    %65 = vector.load %arg11[%c0_61, %c0_62] : memref<128x16xf32, #tpu.memory_space<vmem>>, vector<128x16xf32>
    tpu.vector_store %arg11[%c0_61, %c0_62], %64 {strides = array<i32>} : memref<128x16xf32, #tpu.memory_space<vmem>>, vector<128x16xf32>,
    %c0_63 = arith.constant 0 : index
    %c1_64 = arith.constant 1 : index
    %c1_65 = arith.constant 1 : index
    %c0_66 = arith.constant 0 : index
    %66 = vector.load %arg10[%c0_63, %c1_64, %c1_65, %c0_66] : memref<2x10x10x16xf32, #tpu.memory_space<vmem>>, vector<2x8x8x16xf32>
    %67 = vector.shape_cast %66 : vector<2x8x8x16xf32> to vector<128x16xf32>
    %c64 = arith.constant 64 : index
    %c0_67 = arith.constant 0 : index
    %68 = vector.load %arg3[%c64, %c0_67] : memref<144x16xbf16, #tpu.memory_space<vmem>>, vector<16x16xbf16>
    %c0_68 = arith.constant 0 : index
    %c0_69 = arith.constant 0 : index
    %69 = vector.load %arg11[%c0_68, %c0_69] : memref<128x16xf32, #tpu.memory_space<vmem>>, vector<128x16xf32>
    %70 = arith.truncf %67 : vector<128x16xf32> to vector<128x16xbf16>
    %cst_70 = arith.constant dense<0.000000e+00> : vector<128x16xf32>
    %71 = tpu.matmul %70, %68, %cst_70 {dimension_numbers = #tpu.dot_dimension_numbers<[1], [0], [0], [1], [0, 0, 1, 1], [], []>} : vector<128x16xbf16>, vector<16x16xbf16>, vector<128x16xf32> -> vector<128x16xf32>
    %72 = arith.addf %69, %71 : vector<128x16xf32>
    %c0_71 = arith.constant 0 : index
    %c0_72 = arith.constant 0 : index
    %73 = vector.load %arg11[%c0_71, %c0_72] : memref<128x16xf32, #tpu.memory_space<vmem>>, vector<128x16xf32>
    tpu.vector_store %arg11[%c0_71, %c0_72], %72 {strides = array<i32>} : memref<128x16xf32, #tpu.memory_space<vmem>>, vector<128x16xf32>,
    %c0_73 = arith.constant 0 : index
    %c1_74 = arith.constant 1 : index
    %c2_75 = arith.constant 2 : index
    %c0_76 = arith.constant 0 : index
    %74 = vector.load %arg10[%c0_73, %c1_74, %c2_75, %c0_76] : memref<2x10x10x16xf32, #tpu.memory_space<vmem>>, vector<2x8x8x16xf32>
    %75 = vector.shape_cast %74 : vector<2x8x8x16xf32> to vector<128x16xf32>
    %c80 = arith.constant 80 : index
    %c0_77 = arith.constant 0 : index
    %76 = vector.load %arg3[%c80, %c0_77] : memref<144x16xbf16, #tpu.memory_space<vmem>>, vector<16x16xbf16>
    %c0_78 = arith.constant 0 : index
    %c0_79 = arith.constant 0 : index
    %77 = vector.load %arg11[%c0_78, %c0_79] : memref<128x16xf32, #tpu.memory_space<vmem>>, vector<128x16xf32>
    %78 = arith.truncf %75 : vector<128x16xf32> to vector<128x16xbf16>
    %cst_80 = arith.constant dense<0.000000e+00> : vector<128x16xf32>
    %79 = tpu.matmul %78, %76, %cst_80 {dimension_numbers = #tpu.dot_dimension_numbers<[1], [0], [0], [1], [0, 0, 1, 1], [], []>} : vector<128x16xbf16>, vector<16x16xbf16>, vector<128x16xf32> -> vector<128x16xf32>
    %80 = arith.addf %77, %79 : vector<128x16xf32>
    %c0_81 = arith.constant 0 : index
    %c0_82 = arith.constant 0 : index
    %81 = vector.load %arg11[%c0_81, %c0_82] : memref<128x16xf32, #tpu.memory_space<vmem>>, vector<128x16xf32>
    tpu.vector_store %arg11[%c0_81, %c0_82], %80 {strides = array<i32>} : memref<128x16xf32, #tpu.memory_space<vmem>>, vector<128x16xf32>,
    %c0_83 = arith.constant 0 : index
    %c2_84 = arith.constant 2 : index
    %c0_85 = arith.constant 0 : index
    %c0_86 = arith.constant 0 : index
    %82 = vector.load %arg10[%c0_83, %c2_84, %c0_85, %c0_86] : memref<2x10x10x16xf32, #tpu.memory_space<vmem>>, vector<2x8x8x16xf32>
    %83 = vector.shape_cast %82 : vector<2x8x8x16xf32> to vector<128x16xf32>
    %c96 = arith.constant 96 : index
    %c0_87 = arith.constant 0 : index
    %84 = vector.load %arg3[%c96, %c0_87] : memref<144x16xbf16, #tpu.memory_space<vmem>>, vector<16x16xbf16>
    %c0_88 = arith.constant 0 : index
    %c0_89 = arith.constant 0 : index
    %85 = vector.load %arg11[%c0_88, %c0_89] : memref<128x16xf32, #tpu.memory_space<vmem>>, vector<128x16xf32>
    %86 = arith.truncf %83 : vector<128x16xf32> to vector<128x16xbf16>
    %cst_90 = arith.constant dense<0.000000e+00> : vector<128x16xf32>
    %87 = tpu.matmul %86, %84, %cst_90 {dimension_numbers = #tpu.dot_dimension_numbers<[1], [0], [0], [1], [0, 0, 1, 1], [], []>} : vector<128x16xbf16>, vector<16x16xbf16>, vector<128x16xf32> -> vector<128x16xf32>
    %88 = arith.addf %85, %87 : vector<128x16xf32>
    %c0_91 = arith.constant 0 : index
    %c0_92 = arith.constant 0 : index
    %89 = vector.load %arg11[%c0_91, %c0_92] : memref<128x16xf32, #tpu.memory_space<vmem>>, vector<128x16xf32>
    tpu.vector_store %arg11[%c0_91, %c0_92], %88 {strides = array<i32>} : memref<128x16xf32, #tpu.memory_space<vmem>>, vector<128x16xf32>,
    %c0_93 = arith.constant 0 : index
    %c2_94 = arith.constant 2 : index
    %c1_95 = arith.constant 1 : index
    %c0_96 = arith.constant 0 : index
    %90 = vector.load %arg10[%c0_93, %c2_94, %c1_95, %c0_96] : memref<2x10x10x16xf32, #tpu.memory_space<vmem>>, vector<2x8x8x16xf32>
    %91 = vector.shape_cast %90 : vector<2x8x8x16xf32> to vector<128x16xf32>
    %c112 = arith.constant 112 : index
    %c0_97 = arith.constant 0 : index
    %92 = vector.load %arg3[%c112, %c0_97] : memref<144x16xbf16, #tpu.memory_space<vmem>>, vector<16x16xbf16>
    %c0_98 = arith.constant 0 : index
    %c0_99 = arith.constant 0 : index
    %93 = vector.load %arg11[%c0_98, %c0_99] : memref<128x16xf32, #tpu.memory_space<vmem>>, vector<128x16xf32>
    %94 = arith.truncf %91 : vector<128x16xf32> to vector<128x16xbf16>
    %cst_100 = arith.constant dense<0.000000e+00> : vector<128x16xf32>
    %95 = tpu.matmul %94, %92, %cst_100 {dimension_numbers = #tpu.dot_dimension_numbers<[1], [0], [0], [1], [0, 0, 1, 1], [], []>} : vector<128x16xbf16>, vector<16x16xbf16>, vector<128x16xf32> -> vector<128x16xf32>
    %96 = arith.addf %93, %95 : vector<128x16xf32>
    %c0_101 = arith.constant 0 : index
    %c0_102 = arith.constant 0 : index
    %97 = vector.load %arg11[%c0_101, %c0_102] : memref<128x16xf32, #tpu.memory_space<vmem>>, vector<128x16xf32>
    tpu.vector_store %arg11[%c0_101, %c0_102], %96 {strides = array<i32>} : memref<128x16xf32, #tpu.memory_space<vmem>>, vector<128x16xf32>,
    %c0_103 = arith.constant 0 : index
    %c2_104 = arith.constant 2 : index
    %c2_105 = arith.constant 2 : index
    %c0_106 = arith.constant 0 : index
    %98 = vector.load %arg10[%c0_103, %c2_104, %c2_105, %c0_106] : memref<2x10x10x16xf32, #tpu.memory_space<vmem>>, vector<2x8x8x16xf32>
    %99 = vector.shape_cast %98 : vector<2x8x8x16xf32> to vector<128x16xf32>
    %c128 = arith.constant 128 : index
    %c0_107 = arith.constant 0 : index
    %100 = vector.load %arg3[%c128, %c0_107] : memref<144x16xbf16, #tpu.memory_space<vmem>>, vector<16x16xbf16>
    %c0_108 = arith.constant 0 : index
    %c0_109 = arith.constant 0 : index
    %101 = vector.load %arg11[%c0_108, %c0_109] : memref<128x16xf32, #tpu.memory_space<vmem>>, vector<128x16xf32>
    %102 = arith.truncf %99 : vector<128x16xf32> to vector<128x16xbf16>
    %cst_110 = arith.constant dense<0.000000e+00> : vector<128x16xf32>
    %103 = tpu.matmul %102, %100, %cst_110 {dimension_numbers = #tpu.dot_dimension_numbers<[1], [0], [0], [1], [0, 0, 1, 1], [], []>} : vector<128x16xbf16>, vector<16x16xbf16>, vector<128x16xf32> -> vector<128x16xf32>
    %104 = arith.addf %101, %103 : vector<128x16xf32>
    %c0_111 = arith.constant 0 : index
    %c0_112 = arith.constant 0 : index
    %105 = vector.load %arg11[%c0_111, %c0_112] : memref<128x16xf32, #tpu.memory_space<vmem>>, vector<128x16xf32>
    tpu.vector_store %arg11[%c0_111, %c0_112], %104 {strides = array<i32>} : memref<128x16xf32, #tpu.memory_space<vmem>>, vector<128x16xf32>,
    %c0_113 = arith.constant 0 : index
    %c0_114 = arith.constant 0 : index
    %106 = vector.load %arg11[%c0_113, %c0_114] : memref<128x16xf32, #tpu.memory_space<vmem>>, vector<128x16xf32>
    %c0_115 = arith.constant 0 : index
    %c0_116 = arith.constant 0 : index
    %107 = vector.load %arg4[%c0_115, %c0_116] : memref<1x16xf32, #tpu.memory_space<vmem>>, vector<1x16xf32>
    %108 = vector.broadcast %107 : vector<1x16xf32> to vector<128x16xf32>
    %109 = arith.addf %106, %108 : vector<128x16xf32>
    %cst_117 = arith.constant dense<0.000000e+00> : vector<16xf32>
    %110 = vector.multi_reduction <add>, %109, %cst_117 [0] : vector<128x16xf32> to vector<16xf32>
    %111 = vector.shape_cast %110 : vector<16xf32> to vector<1x16xf32>
    %112 = arith.mulf %109, %109 : vector<128x16xf32>
    %cst_118 = arith.constant dense<0.000000e+00> : vector<16xf32>
    %113 = vector.multi_reduction <add>, %112, %cst_118 [0] : vector<128x16xf32> to vector<16xf32>
    %114 = vector.shape_cast %113 : vector<16xf32> to vector<1x16xf32>
    %cst_119 = arith.constant 7.812500e-03 : f32
    %115 = vector.broadcast %cst_119 : f32 to vector<1x16xf32>
    %116 = arith.mulf %111, %115 : vector<1x16xf32>
    %cst_120 = arith.constant 7.812500e-03 : f32
    %117 = vector.broadcast %cst_120 : f32 to vector<1x16xf32>
    %118 = arith.mulf %114, %117 : vector<1x16xf32>
    %119 = arith.mulf %116, %116 : vector<1x16xf32>
    %120 = arith.subf %118, %119 : vector<1x16xf32>
    %c0_121 = arith.constant 0 : index
    %c0_122 = arith.constant 0 : index
    %121 = vector.load %arg5[%c0_121, %c0_122] : memref<1x16xf32, #tpu.memory_space<vmem>>, vector<1x16xf32>
    %cst_123 = arith.constant 9.99999974E-6 : f32
    %122 = vector.broadcast %cst_123 : f32 to vector<1x16xf32>
    %123 = arith.addf %120, %122 : vector<1x16xf32>
    %124 = math.rsqrt %123 : vector<1x16xf32>
    %125 = arith.mulf %121, %124 : vector<1x16xf32>
    %c0_124 = arith.constant 0 : index
    %c0_125 = arith.constant 0 : index
    %126 = vector.load %arg6[%c0_124, %c0_125] : memref<1x16xf32, #tpu.memory_space<vmem>>, vector<1x16xf32>
    %127 = arith.mulf %116, %125 : vector<1x16xf32>
    %128 = arith.subf %126, %127 : vector<1x16xf32>
    %129 = vector.broadcast %125 : vector<1x16xf32> to vector<128x16xf32>
    %130 = arith.mulf %109, %129 : vector<128x16xf32>
    %131 = vector.broadcast %128 : vector<1x16xf32> to vector<128x16xf32>
    %132 = arith.addf %130, %131 : vector<128x16xf32>
    %cst_126 = arith.constant 0.000000e+00 : f32
    %133 = vector.broadcast %cst_126 : f32 to vector<128x16xf32>
    %134 = arith.maximumf %132, %133 : vector<128x16xf32>
    %cst_127 = arith.constant 0.000000e+00 : f32
    %135 = vector.broadcast %cst_127 : f32 to vector<2x10x10x16xf32>
    %c0_128 = arith.constant 0 : index
    %c0_129 = arith.constant 0 : index
    %c0_130 = arith.constant 0 : index
    %c0_131 = arith.constant 0 : index
    %136 = vector.load %arg12[%c0_128, %c0_129, %c0_130, %c0_131] : memref<2x10x10x16xf32, #tpu.memory_space<vmem>>, vector<2x10x10x16xf32>
    tpu.vector_store %arg12[%c0_128, %c0_129, %c0_130, %c0_131], %135 {strides = array<i32>} : memref<2x10x10x16xf32, #tpu.memory_space<vmem>>, vector<2x10x10x16xf32>,
    %137 = vector.shape_cast %134 : vector<128x16xf32> to vector<2x8x8x16xf32>
    %c0_132 = arith.constant 0 : index
    %c1_133 = arith.constant 1 : index
    %c1_134 = arith.constant 1 : index
    %c0_135 = arith.constant 0 : index
    %138 = vector.load %arg12[%c0_132, %c1_133, %c1_134, %c0_135] : memref<2x10x10x16xf32, #tpu.memory_space<vmem>>, vector<2x8x8x16xf32>
    tpu.vector_store %arg12[%c0_132, %c1_133, %c1_134, %c0_135], %137 {strides = array<i32>} : memref<2x10x10x16xf32, #tpu.memory_space<vmem>>, vector<2x8x8x16xf32>,
    %cst_136 = arith.constant 0.000000e+00 : f32
    %139 = vector.broadcast %cst_136 : f32 to vector<128x16xf32>
    %c0_137 = arith.constant 0 : index
    %c0_138 = arith.constant 0 : index
    %140 = vector.load %arg13[%c0_137, %c0_138] : memref<128x16xf32, #tpu.memory_space<vmem>>, vector<128x16xf32>
    tpu.vector_store %arg13[%c0_137, %c0_138], %139 {strides = array<i32>} : memref<128x16xf32, #tpu.memory_space<vmem>>, vector<128x16xf32>,
    %c0_139 = arith.constant 0 : index
    %c0_140 = arith.constant 0 : index
    %c0_141 = arith.constant 0 : index
    %c0_142 = arith.constant 0 : index
    %141 = vector.load %arg12[%c0_139, %c0_140, %c0_141, %c0_142] : memref<2x10x10x16xf32, #tpu.memory_space<vmem>>, vector<2x8x8x16xf32>
    %142 = vector.shape_cast %141 : vector<2x8x8x16xf32> to vector<128x16xf32>
    %c0_143 = arith.constant 0 : index
    %c0_144 = arith.constant 0 : index
    %143 = vector.load %arg7[%c0_143, %c0_144] : memref<144x16xbf16, #tpu.memory_space<vmem>>, vector<16x16xbf16>
    %c0_145 = arith.constant 0 : index
    %c0_146 = arith.constant 0 : index
    %144 = vector.load %arg13[%c0_145, %c0_146] : memref<128x16xf32, #tpu.memory_space<vmem>>, vector<128x16xf32>
    %145 = arith.truncf %142 : vector<128x16xf32> to vector<128x16xbf16>
    %cst_147 = arith.constant dense<0.000000e+00> : vector<128x16xf32>
    %146 = tpu.matmul %145, %143, %cst_147 {dimension_numbers = #tpu.dot_dimension_numbers<[1], [0], [0], [1], [0, 0, 1, 1], [], []>} : vector<128x16xbf16>, vector<16x16xbf16>, vector<128x16xf32> -> vector<128x16xf32>
    %147 = arith.addf %144, %146 : vector<128x16xf32>
    %c0_148 = arith.constant 0 : index
    %c0_149 = arith.constant 0 : index
    %148 = vector.load %arg13[%c0_148, %c0_149] : memref<128x16xf32, #tpu.memory_space<vmem>>, vector<128x16xf32>
    tpu.vector_store %arg13[%c0_148, %c0_149], %147 {strides = array<i32>} : memref<128x16xf32, #tpu.memory_space<vmem>>, vector<128x16xf32>,
    %c0_150 = arith.constant 0 : index
    %c0_151 = arith.constant 0 : index
    %c1_152 = arith.constant 1 : index
    %c0_153 = arith.constant 0 : index
    %149 = vector.load %arg12[%c0_150, %c0_151, %c1_152, %c0_153] : memref<2x10x10x16xf32, #tpu.memory_space<vmem>>, vector<2x8x8x16xf32>
    %150 = vector.shape_cast %149 : vector<2x8x8x16xf32> to vector<128x16xf32>
    %c16_154 = arith.constant 16 : index
    %c0_155 = arith.constant 0 : index
    %151 = vector.load %arg7[%c16_154, %c0_155] : memref<144x16xbf16, #tpu.memory_space<vmem>>, vector<16x16xbf16>
    %c0_156 = arith.constant 0 : index
    %c0_157 = arith.constant 0 : index
    %152 = vector.load %arg13[%c0_156, %c0_157] : memref<128x16xf32, #tpu.memory_space<vmem>>, vector<128x16xf32>
    %153 = arith.truncf %150 : vector<128x16xf32> to vector<128x16xbf16>
    %cst_158 = arith.constant dense<0.000000e+00> : vector<128x16xf32>
    %154 = tpu.matmul %153, %151, %cst_158 {dimension_numbers = #tpu.dot_dimension_numbers<[1], [0], [0], [1], [0, 0, 1, 1], [], []>} : vector<128x16xbf16>, vector<16x16xbf16>, vector<128x16xf32> -> vector<128x16xf32>
    %155 = arith.addf %152, %154 : vector<128x16xf32>
    %c0_159 = arith.constant 0 : index
    %c0_160 = arith.constant 0 : index
    %156 = vector.load %arg13[%c0_159, %c0_160] : memref<128x16xf32, #tpu.memory_space<vmem>>, vector<128x16xf32>
    tpu.vector_store %arg13[%c0_159, %c0_160], %155 {strides = array<i32>} : memref<128x16xf32, #tpu.memory_space<vmem>>, vector<128x16xf32>,
    %c0_161 = arith.constant 0 : index
    %c0_162 = arith.constant 0 : index
    %c2_163 = arith.constant 2 : index
    %c0_164 = arith.constant 0 : index
    %157 = vector.load %arg12[%c0_161, %c0_162, %c2_163, %c0_164] : memref<2x10x10x16xf32, #tpu.memory_space<vmem>>, vector<2x8x8x16xf32>
    %158 = vector.shape_cast %157 : vector<2x8x8x16xf32> to vector<128x16xf32>
    %c32_165 = arith.constant 32 : index
    %c0_166 = arith.constant 0 : index
    %159 = vector.load %arg7[%c32_165, %c0_166] : memref<144x16xbf16, #tpu.memory_space<vmem>>, vector<16x16xbf16>
    %c0_167 = arith.constant 0 : index
    %c0_168 = arith.constant 0 : index
    %160 = vector.load %arg13[%c0_167, %c0_168] : memref<128x16xf32, #tpu.memory_space<vmem>>, vector<128x16xf32>
    %161 = arith.truncf %158 : vector<128x16xf32> to vector<128x16xbf16>
    %cst_169 = arith.constant dense<0.000000e+00> : vector<128x16xf32>
    %162 = tpu.matmul %161, %159, %cst_169 {dimension_numbers = #tpu.dot_dimension_numbers<[1], [0], [0], [1], [0, 0, 1, 1], [], []>} : vector<128x16xbf16>, vector<16x16xbf16>, vector<128x16xf32> -> vector<128x16xf32>
    %163 = arith.addf %160, %162 : vector<128x16xf32>
    %c0_170 = arith.constant 0 : index
    %c0_171 = arith.constant 0 : index
    %164 = vector.load %arg13[%c0_170, %c0_171] : memref<128x16xf32, #tpu.memory_space<vmem>>, vector<128x16xf32>
    tpu.vector_store %arg13[%c0_170, %c0_171], %163 {strides = array<i32>} : memref<128x16xf32, #tpu.memory_space<vmem>>, vector<128x16xf32>,
    %c0_172 = arith.constant 0 : index
    %c1_173 = arith.constant 1 : index
    %c0_174 = arith.constant 0 : index
    %c0_175 = arith.constant 0 : index
    %165 = vector.load %arg12[%c0_172, %c1_173, %c0_174, %c0_175] : memref<2x10x10x16xf32, #tpu.memory_space<vmem>>, vector<2x8x8x16xf32>
    %166 = vector.shape_cast %165 : vector<2x8x8x16xf32> to vector<128x16xf32>
    %c48_176 = arith.constant 48 : index
    %c0_177 = arith.constant 0 : index
    %167 = vector.load %arg7[%c48_176, %c0_177] : memref<144x16xbf16, #tpu.memory_space<vmem>>, vector<16x16xbf16>
    %c0_178 = arith.constant 0 : index
    %c0_179 = arith.constant 0 : index
    %168 = vector.load %arg13[%c0_178, %c0_179] : memref<128x16xf32, #tpu.memory_space<vmem>>, vector<128x16xf32>
    %169 = arith.truncf %166 : vector<128x16xf32> to vector<128x16xbf16>
    %cst_180 = arith.constant dense<0.000000e+00> : vector<128x16xf32>
    %170 = tpu.matmul %169, %167, %cst_180 {dimension_numbers = #tpu.dot_dimension_numbers<[1], [0], [0], [1], [0, 0, 1, 1], [], []>} : vector<128x16xbf16>, vector<16x16xbf16>, vector<128x16xf32> -> vector<128x16xf32>
    %171 = arith.addf %168, %170 : vector<128x16xf32>
    %c0_181 = arith.constant 0 : index
    %c0_182 = arith.constant 0 : index
    %172 = vector.load %arg13[%c0_181, %c0_182] : memref<128x16xf32, #tpu.memory_space<vmem>>, vector<128x16xf32>
    tpu.vector_store %arg13[%c0_181, %c0_182], %171 {strides = array<i32>} : memref<128x16xf32, #tpu.memory_space<vmem>>, vector<128x16xf32>,
    %c0_183 = arith.constant 0 : index
    %c1_184 = arith.constant 1 : index
    %c1_185 = arith.constant 1 : index
    %c0_186 = arith.constant 0 : index
    %173 = vector.load %arg12[%c0_183, %c1_184, %c1_185, %c0_186] : memref<2x10x10x16xf32, #tpu.memory_space<vmem>>, vector<2x8x8x16xf32>
    %174 = vector.shape_cast %173 : vector<2x8x8x16xf32> to vector<128x16xf32>
    %c64_187 = arith.constant 64 : index
    %c0_188 = arith.constant 0 : index
    %175 = vector.load %arg7[%c64_187, %c0_188] : memref<144x16xbf16, #tpu.memory_space<vmem>>, vector<16x16xbf16>
    %c0_189 = arith.constant 0 : index
    %c0_190 = arith.constant 0 : index
    %176 = vector.load %arg13[%c0_189, %c0_190] : memref<128x16xf32, #tpu.memory_space<vmem>>, vector<128x16xf32>
    %177 = arith.truncf %174 : vector<128x16xf32> to vector<128x16xbf16>
    %cst_191 = arith.constant dense<0.000000e+00> : vector<128x16xf32>
    %178 = tpu.matmul %177, %175, %cst_191 {dimension_numbers = #tpu.dot_dimension_numbers<[1], [0], [0], [1], [0, 0, 1, 1], [], []>} : vector<128x16xbf16>, vector<16x16xbf16>, vector<128x16xf32> -> vector<128x16xf32>
    %179 = arith.addf %176, %178 : vector<128x16xf32>
    %c0_192 = arith.constant 0 : index
    %c0_193 = arith.constant 0 : index
    %180 = vector.load %arg13[%c0_192, %c0_193] : memref<128x16xf32, #tpu.memory_space<vmem>>, vector<128x16xf32>
    tpu.vector_store %arg13[%c0_192, %c0_193], %179 {strides = array<i32>} : memref<128x16xf32, #tpu.memory_space<vmem>>, vector<128x16xf32>,
    %c0_194 = arith.constant 0 : index
    %c1_195 = arith.constant 1 : index
    %c2_196 = arith.constant 2 : index
    %c0_197 = arith.constant 0 : index
    %181 = vector.load %arg12[%c0_194, %c1_195, %c2_196, %c0_197] : memref<2x10x10x16xf32, #tpu.memory_space<vmem>>, vector<2x8x8x16xf32>
    %182 = vector.shape_cast %181 : vector<2x8x8x16xf32> to vector<128x16xf32>
    %c80_198 = arith.constant 80 : index
    %c0_199 = arith.constant 0 : index
    %183 = vector.load %arg7[%c80_198, %c0_199] : memref<144x16xbf16, #tpu.memory_space<vmem>>, vector<16x16xbf16>
    %c0_200 = arith.constant 0 : index
    %c0_201 = arith.constant 0 : index
    %184 = vector.load %arg13[%c0_200, %c0_201] : memref<128x16xf32, #tpu.memory_space<vmem>>, vector<128x16xf32>
    %185 = arith.truncf %182 : vector<128x16xf32> to vector<128x16xbf16>
    %cst_202 = arith.constant dense<0.000000e+00> : vector<128x16xf32>
    %186 = tpu.matmul %185, %183, %cst_202 {dimension_numbers = #tpu.dot_dimension_numbers<[1], [0], [0], [1], [0, 0, 1, 1], [], []>} : vector<128x16xbf16>, vector<16x16xbf16>, vector<128x16xf32> -> vector<128x16xf32>
    %187 = arith.addf %184, %186 : vector<128x16xf32>
    %c0_203 = arith.constant 0 : index
    %c0_204 = arith.constant 0 : index
    %188 = vector.load %arg13[%c0_203, %c0_204] : memref<128x16xf32, #tpu.memory_space<vmem>>, vector<128x16xf32>
    tpu.vector_store %arg13[%c0_203, %c0_204], %187 {strides = array<i32>} : memref<128x16xf32, #tpu.memory_space<vmem>>, vector<128x16xf32>,
    %c0_205 = arith.constant 0 : index
    %c2_206 = arith.constant 2 : index
    %c0_207 = arith.constant 0 : index
    %c0_208 = arith.constant 0 : index
    %189 = vector.load %arg12[%c0_205, %c2_206, %c0_207, %c0_208] : memref<2x10x10x16xf32, #tpu.memory_space<vmem>>, vector<2x8x8x16xf32>
    %190 = vector.shape_cast %189 : vector<2x8x8x16xf32> to vector<128x16xf32>
    %c96_209 = arith.constant 96 : index
    %c0_210 = arith.constant 0 : index
    %191 = vector.load %arg7[%c96_209, %c0_210] : memref<144x16xbf16, #tpu.memory_space<vmem>>, vector<16x16xbf16>
    %c0_211 = arith.constant 0 : index
    %c0_212 = arith.constant 0 : index
    %192 = vector.load %arg13[%c0_211, %c0_212] : memref<128x16xf32, #tpu.memory_space<vmem>>, vector<128x16xf32>
    %193 = arith.truncf %190 : vector<128x16xf32> to vector<128x16xbf16>
    %cst_213 = arith.constant dense<0.000000e+00> : vector<128x16xf32>
    %194 = tpu.matmul %193, %191, %cst_213 {dimension_numbers = #tpu.dot_dimension_numbers<[1], [0], [0], [1], [0, 0, 1, 1], [], []>} : vector<128x16xbf16>, vector<16x16xbf16>, vector<128x16xf32> -> vector<128x16xf32>
    %195 = arith.addf %192, %194 : vector<128x16xf32>
    %c0_214 = arith.constant 0 : index
    %c0_215 = arith.constant 0 : index
    %196 = vector.load %arg13[%c0_214, %c0_215] : memref<128x16xf32, #tpu.memory_space<vmem>>, vector<128x16xf32>
    tpu.vector_store %arg13[%c0_214, %c0_215], %195 {strides = array<i32>} : memref<128x16xf32, #tpu.memory_space<vmem>>, vector<128x16xf32>,
    %c0_216 = arith.constant 0 : index
    %c2_217 = arith.constant 2 : index
    %c1_218 = arith.constant 1 : index
    %c0_219 = arith.constant 0 : index
    %197 = vector.load %arg12[%c0_216, %c2_217, %c1_218, %c0_219] : memref<2x10x10x16xf32, #tpu.memory_space<vmem>>, vector<2x8x8x16xf32>
    %198 = vector.shape_cast %197 : vector<2x8x8x16xf32> to vector<128x16xf32>
    %c112_220 = arith.constant 112 : index
    %c0_221 = arith.constant 0 : index
    %199 = vector.load %arg7[%c112_220, %c0_221] : memref<144x16xbf16, #tpu.memory_space<vmem>>, vector<16x16xbf16>
    %c0_222 = arith.constant 0 : index
    %c0_223 = arith.constant 0 : index
    %200 = vector.load %arg13[%c0_222, %c0_223] : memref<128x16xf32, #tpu.memory_space<vmem>>, vector<128x16xf32>
    %201 = arith.truncf %198 : vector<128x16xf32> to vector<128x16xbf16>
    %cst_224 = arith.constant dense<0.000000e+00> : vector<128x16xf32>
    %202 = tpu.matmul %201, %199, %cst_224 {dimension_numbers = #tpu.dot_dimension_numbers<[1], [0], [0], [1], [0, 0, 1, 1], [], []>} : vector<128x16xbf16>, vector<16x16xbf16>, vector<128x16xf32> -> vector<128x16xf32>
    %203 = arith.addf %200, %202 : vector<128x16xf32>
    %c0_225 = arith.constant 0 : index
    %c0_226 = arith.constant 0 : index
    %204 = vector.load %arg13[%c0_225, %c0_226] : memref<128x16xf32, #tpu.memory_space<vmem>>, vector<128x16xf32>
    tpu.vector_store %arg13[%c0_225, %c0_226], %203 {strides = array<i32>} : memref<128x16xf32, #tpu.memory_space<vmem>>, vector<128x16xf32>,
    %c0_227 = arith.constant 0 : index
    %c2_228 = arith.constant 2 : index
    %c2_229 = arith.constant 2 : index
    %c0_230 = arith.constant 0 : index
    %205 = vector.load %arg12[%c0_227, %c2_228, %c2_229, %c0_230] : memref<2x10x10x16xf32, #tpu.memory_space<vmem>>, vector<2x8x8x16xf32>
    %206 = vector.shape_cast %205 : vector<2x8x8x16xf32> to vector<128x16xf32>
    %c128_231 = arith.constant 128 : index
    %c0_232 = arith.constant 0 : index
    %207 = vector.load %arg7[%c128_231, %c0_232] : memref<144x16xbf16, #tpu.memory_space<vmem>>, vector<16x16xbf16>
    %c0_233 = arith.constant 0 : index
    %c0_234 = arith.constant 0 : index
    %208 = vector.load %arg13[%c0_233, %c0_234] : memref<128x16xf32, #tpu.memory_space<vmem>>, vector<128x16xf32>
    %209 = arith.truncf %206 : vector<128x16xf32> to vector<128x16xbf16>
    %cst_235 = arith.constant dense<0.000000e+00> : vector<128x16xf32>
    %210 = tpu.matmul %209, %207, %cst_235 {dimension_numbers = #tpu.dot_dimension_numbers<[1], [0], [0], [1], [0, 0, 1, 1], [], []>} : vector<128x16xbf16>, vector<16x16xbf16>, vector<128x16xf32> -> vector<128x16xf32>
    %211 = arith.addf %208, %210 : vector<128x16xf32>
    %c0_236 = arith.constant 0 : index
    %c0_237 = arith.constant 0 : index
    %212 = vector.load %arg13[%c0_236, %c0_237] : memref<128x16xf32, #tpu.memory_space<vmem>>, vector<128x16xf32>
    tpu.vector_store %arg13[%c0_236, %c0_237], %211 {strides = array<i32>} : memref<128x16xf32, #tpu.memory_space<vmem>>, vector<128x16xf32>,
    %c0_238 = arith.constant 0 : index
    %c0_239 = arith.constant 0 : index
    %213 = vector.load %arg13[%c0_238, %c0_239] : memref<128x16xf32, #tpu.memory_space<vmem>>, vector<128x16xf32>
    %c0_240 = arith.constant 0 : index
    %c0_241 = arith.constant 0 : index
    %214 = vector.load %arg8[%c0_240, %c0_241] : memref<1x16xf32, #tpu.memory_space<vmem>>, vector<1x16xf32>
    %215 = vector.broadcast %214 : vector<1x16xf32> to vector<128x16xf32>
    %216 = arith.addf %213, %215 : vector<128x16xf32>
    %217 = arith.addf %216, %2 : vector<128x16xf32>
    %218 = vector.shape_cast %217 : vector<128x16xf32> to vector<2x8x8x16xf32>
    %c0_242 = arith.constant 0 : index
    %c0_243 = arith.constant 0 : index
    %c0_244 = arith.constant 0 : index
    %c0_245 = arith.constant 0 : index
    %219 = vector.load %arg9[%c0_242, %c0_243, %c0_244, %c0_245] : memref<2x8x8x16xf32, #tpu.memory_space<vmem>>, vector<2x8x8x16xf32>
    tpu.vector_store %arg9[%c0_242, %c0_243, %c0_244, %c0_245], %218 {strides = array<i32>} : memref<2x8x8x16xf32, #tpu.memory_space<vmem>>, vector<2x8x8x16xf32>,
    return
  }
}

module attributes {stable_mosaic.version = 11 : i64} {
  func.func @_residual_block_kernel(%arg0: memref<2x8x8x32xf32, #tpu.memory_space<vmem>>, %arg1: memref<1x8xf32, #tpu.memory_space<vmem>>, %arg2: memref<1x8xf32, #tpu.memory_space<vmem>>, %arg3: memref<128x16xbf16, #tpu.memory_space<vmem>>, %arg4: memref<1x16xf32, #tpu.memory_space<vmem>>, %arg5: memref<1x16xf32, #tpu.memory_space<vmem>>, %arg6: memref<1x16xf32, #tpu.memory_space<vmem>>, %arg7: memref<144x16xbf16, #tpu.memory_space<vmem>>, %arg8: memref<1x16xf32, #tpu.memory_space<vmem>>, %arg9: memref<8x16xbf16, #tpu.memory_space<vmem>>, %arg10: memref<1x16xf32, #tpu.memory_space<vmem>>, %arg11: memref<2x8x8x16xbf16, #tpu.memory_space<vmem>>, %arg12: memref<2x9x9x32xf32, #tpu.memory_space<vmem>>, %arg13: memref<128x16xf32, #tpu.memory_space<vmem>>, %arg14: memref<2x10x10x16xf32, #tpu.memory_space<vmem>>, %arg15: memref<128x16xf32, #tpu.memory_space<vmem>>) attributes {dimension_semantics = [], scalar_prefetch = 0 : i64, scratch_operands = 4 : i64, tpu.core_type = #tpu.core_type<tc>} {
    %c0 = arith.constant 0 : index
    %c0_0 = arith.constant 0 : index
    %c0_1 = arith.constant 0 : index
    %c0_2 = arith.constant 0 : index
    %0 = vector.load %arg0[%c0, %c0_0, %c0_1, %c0_2] : memref<2x8x8x32xf32, #tpu.memory_space<vmem>>, vector<2x8x8x32xf32>
    %1 = vector.shape_cast %0 : vector<2x8x8x32xf32> to vector<128x32xf32>
    %cst = arith.constant dense<0.000000e+00> : vector<32xf32>
    %2 = vector.multi_reduction <add>, %1, %cst [0] : vector<128x32xf32> to vector<32xf32>
    %3 = vector.shape_cast %2 : vector<32xf32> to vector<1x32xf32>
    %4 = arith.mulf %1, %1 : vector<128x32xf32>
    %cst_3 = arith.constant dense<0.000000e+00> : vector<32xf32>
    %5 = vector.multi_reduction <add>, %4, %cst_3 [0] : vector<128x32xf32> to vector<32xf32>
    %6 = vector.shape_cast %5 : vector<32xf32> to vector<1x32xf32>
    %7 = vector.extract_strided_slice %3 {offsets = [0, 0], sizes = [1, 8], strides = [1, 1]} : vector<1x32xf32> to vector<1x8xf32>
    %8 = vector.extract_strided_slice %3 {offsets = [0, 8], sizes = [1, 8], strides = [1, 1]} : vector<1x32xf32> to vector<1x8xf32>
    %9 = arith.addf %7, %8 : vector<1x8xf32>
    %10 = vector.extract_strided_slice %3 {offsets = [0, 16], sizes = [1, 8], strides = [1, 1]} : vector<1x32xf32> to vector<1x8xf32>
    %11 = arith.addf %9, %10 : vector<1x8xf32>
    %12 = vector.extract_strided_slice %3 {offsets = [0, 24], sizes = [1, 8], strides = [1, 1]} : vector<1x32xf32> to vector<1x8xf32>
    %13 = arith.addf %11, %12 : vector<1x8xf32>
    %14 = vector.extract_strided_slice %6 {offsets = [0, 0], sizes = [1, 8], strides = [1, 1]} : vector<1x32xf32> to vector<1x8xf32>
    %15 = vector.extract_strided_slice %6 {offsets = [0, 8], sizes = [1, 8], strides = [1, 1]} : vector<1x32xf32> to vector<1x8xf32>
    %16 = arith.addf %14, %15 : vector<1x8xf32>
    %17 = vector.extract_strided_slice %6 {offsets = [0, 16], sizes = [1, 8], strides = [1, 1]} : vector<1x32xf32> to vector<1x8xf32>
    %18 = arith.addf %16, %17 : vector<1x8xf32>
    %19 = vector.extract_strided_slice %6 {offsets = [0, 24], sizes = [1, 8], strides = [1, 1]} : vector<1x32xf32> to vector<1x8xf32>
    %20 = arith.addf %18, %19 : vector<1x8xf32>
    %cst_4 = arith.constant 0.001953125 : f32
    %21 = vector.broadcast %cst_4 : f32 to vector<1x8xf32>
    %22 = arith.mulf %13, %21 : vector<1x8xf32>
    %cst_5 = arith.constant 0.001953125 : f32
    %23 = vector.broadcast %cst_5 : f32 to vector<1x8xf32>
    %24 = arith.mulf %20, %23 : vector<1x8xf32>
    %25 = arith.mulf %22, %22 : vector<1x8xf32>
    %26 = arith.subf %24, %25 : vector<1x8xf32>
    %c0_6 = arith.constant 0 : index
    %c0_7 = arith.constant 0 : index
    %27 = vector.load %arg1[%c0_6, %c0_7] : memref<1x8xf32, #tpu.memory_space<vmem>>, vector<1x8xf32>
    %cst_8 = arith.constant 9.99999974E-6 : f32
    %28 = vector.broadcast %cst_8 : f32 to vector<1x8xf32>
    %29 = arith.addf %26, %28 : vector<1x8xf32>
    %30 = math.rsqrt %29 : vector<1x8xf32>
    %31 = arith.mulf %27, %30 : vector<1x8xf32>
    %c0_9 = arith.constant 0 : index
    %c0_10 = arith.constant 0 : index
    %32 = vector.load %arg2[%c0_9, %c0_10] : memref<1x8xf32, #tpu.memory_space<vmem>>, vector<1x8xf32>
    %33 = arith.mulf %22, %31 : vector<1x8xf32>
    %34 = arith.subf %32, %33 : vector<1x8xf32>
    %35 = tpu.concatenate %31, %31, %31, %31 in 1 : vector<1x8xf32>, vector<1x8xf32>, vector<1x8xf32>, vector<1x8xf32> -> vector<1x32xf32>
    %36 = tpu.concatenate %34, %34, %34, %34 in 1 : vector<1x8xf32>, vector<1x8xf32>, vector<1x8xf32>, vector<1x8xf32> -> vector<1x32xf32>
    %37 = vector.broadcast %35 : vector<1x32xf32> to vector<128x32xf32>
    %38 = arith.mulf %1, %37 : vector<128x32xf32>
    %39 = vector.broadcast %36 : vector<1x32xf32> to vector<128x32xf32>
    %40 = arith.addf %38, %39 : vector<128x32xf32>
    %cst_11 = arith.constant 0.000000e+00 : f32
    %41 = vector.broadcast %cst_11 : f32 to vector<128x32xf32>
    %42 = arith.maximumf %40, %41 : vector<128x32xf32>
    %cst_12 = arith.constant 0.000000e+00 : f32
    %43 = vector.broadcast %cst_12 : f32 to vector<2x9x9x32xf32>
    %c0_13 = arith.constant 0 : index
    %c0_14 = arith.constant 0 : index
    %c0_15 = arith.constant 0 : index
    %c0_16 = arith.constant 0 : index
    %44 = vector.load %arg12[%c0_13, %c0_14, %c0_15, %c0_16] : memref<2x9x9x32xf32, #tpu.memory_space<vmem>>, vector<2x9x9x32xf32>
    tpu.vector_store %arg12[%c0_13, %c0_14, %c0_15, %c0_16], %43 {strides = array<i32>} : memref<2x9x9x32xf32, #tpu.memory_space<vmem>>, vector<2x9x9x32xf32>,
    %45 = vector.shape_cast %42 : vector<128x32xf32> to vector<2x8x8x32xf32>
    %c0_17 = arith.constant 0 : index
    %c1 = arith.constant 1 : index
    %c1_18 = arith.constant 1 : index
    %c0_19 = arith.constant 0 : index
    %46 = vector.load %arg12[%c0_17, %c1, %c1_18, %c0_19] : memref<2x9x9x32xf32, #tpu.memory_space<vmem>>, vector<2x8x8x32xf32>
    tpu.vector_store %arg12[%c0_17, %c1, %c1_18, %c0_19], %45 {strides = array<i32>} : memref<2x9x9x32xf32, #tpu.memory_space<vmem>>, vector<2x8x8x32xf32>,
    %cst_20 = arith.constant 0.000000e+00 : f32
    %47 = vector.broadcast %cst_20 : f32 to vector<128x16xf32>
    %c0_21 = arith.constant 0 : index
    %c0_22 = arith.constant 0 : index
    %48 = vector.load %arg13[%c0_21, %c0_22] : memref<128x16xf32, #tpu.memory_space<vmem>>, vector<128x16xf32>
    tpu.vector_store %arg13[%c0_21, %c0_22], %47 {strides = array<i32>} : memref<128x16xf32, #tpu.memory_space<vmem>>, vector<128x16xf32>,
    %c0_23 = arith.constant 0 : index
    %c0_24 = arith.constant 0 : index
    %c0_25 = arith.constant 0 : index
    %c0_26 = arith.constant 0 : index
    %49 = vector.load %arg12[%c0_23, %c0_24, %c0_25, %c0_26] : memref<2x9x9x32xf32, #tpu.memory_space<vmem>>, vector<2x8x8x32xf32>
    %50 = vector.shape_cast %49 : vector<2x8x8x32xf32> to vector<128x32xf32>
    %c0_27 = arith.constant 0 : index
    %c0_28 = arith.constant 0 : index
    %51 = vector.load %arg3[%c0_27, %c0_28] : memref<128x16xbf16, #tpu.memory_space<vmem>>, vector<32x16xbf16>
    %c0_29 = arith.constant 0 : index
    %c0_30 = arith.constant 0 : index
    %52 = vector.load %arg13[%c0_29, %c0_30] : memref<128x16xf32, #tpu.memory_space<vmem>>, vector<128x16xf32>
    %53 = arith.truncf %50 : vector<128x32xf32> to vector<128x32xbf16>
    %cst_31 = arith.constant dense<0.000000e+00> : vector<128x16xf32>
    %54 = tpu.matmul %53, %51, %cst_31 {dimension_numbers = #tpu.dot_dimension_numbers<[1], [0], [0], [1], [0, 0, 1, 1], [], []>} : vector<128x32xbf16>, vector<32x16xbf16>, vector<128x16xf32> -> vector<128x16xf32>
    %55 = arith.addf %52, %54 : vector<128x16xf32>
    %c0_32 = arith.constant 0 : index
    %c0_33 = arith.constant 0 : index
    %56 = vector.load %arg13[%c0_32, %c0_33] : memref<128x16xf32, #tpu.memory_space<vmem>>, vector<128x16xf32>
    tpu.vector_store %arg13[%c0_32, %c0_33], %55 {strides = array<i32>} : memref<128x16xf32, #tpu.memory_space<vmem>>, vector<128x16xf32>,
    %c0_34 = arith.constant 0 : index
    %c0_35 = arith.constant 0 : index
    %c1_36 = arith.constant 1 : index
    %c0_37 = arith.constant 0 : index
    %57 = vector.load %arg12[%c0_34, %c0_35, %c1_36, %c0_37] : memref<2x9x9x32xf32, #tpu.memory_space<vmem>>, vector<2x8x8x32xf32>
    %58 = vector.shape_cast %57 : vector<2x8x8x32xf32> to vector<128x32xf32>
    %c32 = arith.constant 32 : index
    %c0_38 = arith.constant 0 : index
    %59 = vector.load %arg3[%c32, %c0_38] : memref<128x16xbf16, #tpu.memory_space<vmem>>, vector<32x16xbf16>
    %c0_39 = arith.constant 0 : index
    %c0_40 = arith.constant 0 : index
    %60 = vector.load %arg13[%c0_39, %c0_40] : memref<128x16xf32, #tpu.memory_space<vmem>>, vector<128x16xf32>
    %61 = arith.truncf %58 : vector<128x32xf32> to vector<128x32xbf16>
    %cst_41 = arith.constant dense<0.000000e+00> : vector<128x16xf32>
    %62 = tpu.matmul %61, %59, %cst_41 {dimension_numbers = #tpu.dot_dimension_numbers<[1], [0], [0], [1], [0, 0, 1, 1], [], []>} : vector<128x32xbf16>, vector<32x16xbf16>, vector<128x16xf32> -> vector<128x16xf32>
    %63 = arith.addf %60, %62 : vector<128x16xf32>
    %c0_42 = arith.constant 0 : index
    %c0_43 = arith.constant 0 : index
    %64 = vector.load %arg13[%c0_42, %c0_43] : memref<128x16xf32, #tpu.memory_space<vmem>>, vector<128x16xf32>
    tpu.vector_store %arg13[%c0_42, %c0_43], %63 {strides = array<i32>} : memref<128x16xf32, #tpu.memory_space<vmem>>, vector<128x16xf32>,
    %c0_44 = arith.constant 0 : index
    %c1_45 = arith.constant 1 : index
    %c0_46 = arith.constant 0 : index
    %c0_47 = arith.constant 0 : index
    %65 = vector.load %arg12[%c0_44, %c1_45, %c0_46, %c0_47] : memref<2x9x9x32xf32, #tpu.memory_space<vmem>>, vector<2x8x8x32xf32>
    %66 = vector.shape_cast %65 : vector<2x8x8x32xf32> to vector<128x32xf32>
    %c64 = arith.constant 64 : index
    %c0_48 = arith.constant 0 : index
    %67 = vector.load %arg3[%c64, %c0_48] : memref<128x16xbf16, #tpu.memory_space<vmem>>, vector<32x16xbf16>
    %c0_49 = arith.constant 0 : index
    %c0_50 = arith.constant 0 : index
    %68 = vector.load %arg13[%c0_49, %c0_50] : memref<128x16xf32, #tpu.memory_space<vmem>>, vector<128x16xf32>
    %69 = arith.truncf %66 : vector<128x32xf32> to vector<128x32xbf16>
    %cst_51 = arith.constant dense<0.000000e+00> : vector<128x16xf32>
    %70 = tpu.matmul %69, %67, %cst_51 {dimension_numbers = #tpu.dot_dimension_numbers<[1], [0], [0], [1], [0, 0, 1, 1], [], []>} : vector<128x32xbf16>, vector<32x16xbf16>, vector<128x16xf32> -> vector<128x16xf32>
    %71 = arith.addf %68, %70 : vector<128x16xf32>
    %c0_52 = arith.constant 0 : index
    %c0_53 = arith.constant 0 : index
    %72 = vector.load %arg13[%c0_52, %c0_53] : memref<128x16xf32, #tpu.memory_space<vmem>>, vector<128x16xf32>
    tpu.vector_store %arg13[%c0_52, %c0_53], %71 {strides = array<i32>} : memref<128x16xf32, #tpu.memory_space<vmem>>, vector<128x16xf32>,
    %c0_54 = arith.constant 0 : index
    %c1_55 = arith.constant 1 : index
    %c1_56 = arith.constant 1 : index
    %c0_57 = arith.constant 0 : index
    %73 = vector.load %arg12[%c0_54, %c1_55, %c1_56, %c0_57] : memref<2x9x9x32xf32, #tpu.memory_space<vmem>>, vector<2x8x8x32xf32>
    %74 = vector.shape_cast %73 : vector<2x8x8x32xf32> to vector<128x32xf32>
    %c96 = arith.constant 96 : index
    %c0_58 = arith.constant 0 : index
    %75 = vector.load %arg3[%c96, %c0_58] : memref<128x16xbf16, #tpu.memory_space<vmem>>, vector<32x16xbf16>
    %c0_59 = arith.constant 0 : index
    %c0_60 = arith.constant 0 : index
    %76 = vector.load %arg13[%c0_59, %c0_60] : memref<128x16xf32, #tpu.memory_space<vmem>>, vector<128x16xf32>
    %77 = arith.truncf %74 : vector<128x32xf32> to vector<128x32xbf16>
    %cst_61 = arith.constant dense<0.000000e+00> : vector<128x16xf32>
    %78 = tpu.matmul %77, %75, %cst_61 {dimension_numbers = #tpu.dot_dimension_numbers<[1], [0], [0], [1], [0, 0, 1, 1], [], []>} : vector<128x32xbf16>, vector<32x16xbf16>, vector<128x16xf32> -> vector<128x16xf32>
    %79 = arith.addf %76, %78 : vector<128x16xf32>
    %c0_62 = arith.constant 0 : index
    %c0_63 = arith.constant 0 : index
    %80 = vector.load %arg13[%c0_62, %c0_63] : memref<128x16xf32, #tpu.memory_space<vmem>>, vector<128x16xf32>
    tpu.vector_store %arg13[%c0_62, %c0_63], %79 {strides = array<i32>} : memref<128x16xf32, #tpu.memory_space<vmem>>, vector<128x16xf32>,
    %c0_64 = arith.constant 0 : index
    %c0_65 = arith.constant 0 : index
    %81 = vector.load %arg13[%c0_64, %c0_65] : memref<128x16xf32, #tpu.memory_space<vmem>>, vector<128x16xf32>
    %c0_66 = arith.constant 0 : index
    %c0_67 = arith.constant 0 : index
    %82 = vector.load %arg4[%c0_66, %c0_67] : memref<1x16xf32, #tpu.memory_space<vmem>>, vector<1x16xf32>
    %83 = vector.broadcast %82 : vector<1x16xf32> to vector<128x16xf32>
    %84 = arith.addf %81, %83 : vector<128x16xf32>
    %cst_68 = arith.constant dense<0.000000e+00> : vector<16xf32>
    %85 = vector.multi_reduction <add>, %84, %cst_68 [0] : vector<128x16xf32> to vector<16xf32>
    %86 = vector.shape_cast %85 : vector<16xf32> to vector<1x16xf32>
    %87 = arith.mulf %84, %84 : vector<128x16xf32>
    %cst_69 = arith.constant dense<0.000000e+00> : vector<16xf32>
    %88 = vector.multi_reduction <add>, %87, %cst_69 [0] : vector<128x16xf32> to vector<16xf32>
    %89 = vector.shape_cast %88 : vector<16xf32> to vector<1x16xf32>
    %cst_70 = arith.constant 7.812500e-03 : f32
    %90 = vector.broadcast %cst_70 : f32 to vector<1x16xf32>
    %91 = arith.mulf %86, %90 : vector<1x16xf32>
    %cst_71 = arith.constant 7.812500e-03 : f32
    %92 = vector.broadcast %cst_71 : f32 to vector<1x16xf32>
    %93 = arith.mulf %89, %92 : vector<1x16xf32>
    %94 = arith.mulf %91, %91 : vector<1x16xf32>
    %95 = arith.subf %93, %94 : vector<1x16xf32>
    %c0_72 = arith.constant 0 : index
    %c0_73 = arith.constant 0 : index
    %96 = vector.load %arg5[%c0_72, %c0_73] : memref<1x16xf32, #tpu.memory_space<vmem>>, vector<1x16xf32>
    %cst_74 = arith.constant 9.99999974E-6 : f32
    %97 = vector.broadcast %cst_74 : f32 to vector<1x16xf32>
    %98 = arith.addf %95, %97 : vector<1x16xf32>
    %99 = math.rsqrt %98 : vector<1x16xf32>
    %100 = arith.mulf %96, %99 : vector<1x16xf32>
    %c0_75 = arith.constant 0 : index
    %c0_76 = arith.constant 0 : index
    %101 = vector.load %arg6[%c0_75, %c0_76] : memref<1x16xf32, #tpu.memory_space<vmem>>, vector<1x16xf32>
    %102 = arith.mulf %91, %100 : vector<1x16xf32>
    %103 = arith.subf %101, %102 : vector<1x16xf32>
    %104 = vector.broadcast %100 : vector<1x16xf32> to vector<128x16xf32>
    %105 = arith.mulf %84, %104 : vector<128x16xf32>
    %106 = vector.broadcast %103 : vector<1x16xf32> to vector<128x16xf32>
    %107 = arith.addf %105, %106 : vector<128x16xf32>
    %cst_77 = arith.constant 0.000000e+00 : f32
    %108 = vector.broadcast %cst_77 : f32 to vector<128x16xf32>
    %109 = arith.maximumf %107, %108 : vector<128x16xf32>
    %cst_78 = arith.constant 0.000000e+00 : f32
    %110 = vector.broadcast %cst_78 : f32 to vector<2x10x10x16xf32>
    %c0_79 = arith.constant 0 : index
    %c0_80 = arith.constant 0 : index
    %c0_81 = arith.constant 0 : index
    %c0_82 = arith.constant 0 : index
    %111 = vector.load %arg14[%c0_79, %c0_80, %c0_81, %c0_82] : memref<2x10x10x16xf32, #tpu.memory_space<vmem>>, vector<2x10x10x16xf32>
    tpu.vector_store %arg14[%c0_79, %c0_80, %c0_81, %c0_82], %110 {strides = array<i32>} : memref<2x10x10x16xf32, #tpu.memory_space<vmem>>, vector<2x10x10x16xf32>,
    %112 = vector.shape_cast %109 : vector<128x16xf32> to vector<2x8x8x16xf32>
    %c0_83 = arith.constant 0 : index
    %c1_84 = arith.constant 1 : index
    %c1_85 = arith.constant 1 : index
    %c0_86 = arith.constant 0 : index
    %113 = vector.load %arg14[%c0_83, %c1_84, %c1_85, %c0_86] : memref<2x10x10x16xf32, #tpu.memory_space<vmem>>, vector<2x8x8x16xf32>
    tpu.vector_store %arg14[%c0_83, %c1_84, %c1_85, %c0_86], %112 {strides = array<i32>} : memref<2x10x10x16xf32, #tpu.memory_space<vmem>>, vector<2x8x8x16xf32>,
    %cst_87 = arith.constant 0.000000e+00 : f32
    %114 = vector.broadcast %cst_87 : f32 to vector<128x16xf32>
    %c0_88 = arith.constant 0 : index
    %c0_89 = arith.constant 0 : index
    %115 = vector.load %arg15[%c0_88, %c0_89] : memref<128x16xf32, #tpu.memory_space<vmem>>, vector<128x16xf32>
    tpu.vector_store %arg15[%c0_88, %c0_89], %114 {strides = array<i32>} : memref<128x16xf32, #tpu.memory_space<vmem>>, vector<128x16xf32>,
    %c0_90 = arith.constant 0 : index
    %c0_91 = arith.constant 0 : index
    %c0_92 = arith.constant 0 : index
    %c0_93 = arith.constant 0 : index
    %116 = vector.load %arg14[%c0_90, %c0_91, %c0_92, %c0_93] : memref<2x10x10x16xf32, #tpu.memory_space<vmem>>, vector<2x8x8x16xf32>
    %117 = vector.shape_cast %116 : vector<2x8x8x16xf32> to vector<128x16xf32>
    %c0_94 = arith.constant 0 : index
    %c0_95 = arith.constant 0 : index
    %118 = vector.load %arg7[%c0_94, %c0_95] : memref<144x16xbf16, #tpu.memory_space<vmem>>, vector<16x16xbf16>
    %c0_96 = arith.constant 0 : index
    %c0_97 = arith.constant 0 : index
    %119 = vector.load %arg15[%c0_96, %c0_97] : memref<128x16xf32, #tpu.memory_space<vmem>>, vector<128x16xf32>
    %120 = arith.truncf %117 : vector<128x16xf32> to vector<128x16xbf16>
    %cst_98 = arith.constant dense<0.000000e+00> : vector<128x16xf32>
    %121 = tpu.matmul %120, %118, %cst_98 {dimension_numbers = #tpu.dot_dimension_numbers<[1], [0], [0], [1], [0, 0, 1, 1], [], []>} : vector<128x16xbf16>, vector<16x16xbf16>, vector<128x16xf32> -> vector<128x16xf32>
    %122 = arith.addf %119, %121 : vector<128x16xf32>
    %c0_99 = arith.constant 0 : index
    %c0_100 = arith.constant 0 : index
    %123 = vector.load %arg15[%c0_99, %c0_100] : memref<128x16xf32, #tpu.memory_space<vmem>>, vector<128x16xf32>
    tpu.vector_store %arg15[%c0_99, %c0_100], %122 {strides = array<i32>} : memref<128x16xf32, #tpu.memory_space<vmem>>, vector<128x16xf32>,
    %c0_101 = arith.constant 0 : index
    %c0_102 = arith.constant 0 : index
    %c1_103 = arith.constant 1 : index
    %c0_104 = arith.constant 0 : index
    %124 = vector.load %arg14[%c0_101, %c0_102, %c1_103, %c0_104] : memref<2x10x10x16xf32, #tpu.memory_space<vmem>>, vector<2x8x8x16xf32>
    %125 = vector.shape_cast %124 : vector<2x8x8x16xf32> to vector<128x16xf32>
    %c16 = arith.constant 16 : index
    %c0_105 = arith.constant 0 : index
    %126 = vector.load %arg7[%c16, %c0_105] : memref<144x16xbf16, #tpu.memory_space<vmem>>, vector<16x16xbf16>
    %c0_106 = arith.constant 0 : index
    %c0_107 = arith.constant 0 : index
    %127 = vector.load %arg15[%c0_106, %c0_107] : memref<128x16xf32, #tpu.memory_space<vmem>>, vector<128x16xf32>
    %128 = arith.truncf %125 : vector<128x16xf32> to vector<128x16xbf16>
    %cst_108 = arith.constant dense<0.000000e+00> : vector<128x16xf32>
    %129 = tpu.matmul %128, %126, %cst_108 {dimension_numbers = #tpu.dot_dimension_numbers<[1], [0], [0], [1], [0, 0, 1, 1], [], []>} : vector<128x16xbf16>, vector<16x16xbf16>, vector<128x16xf32> -> vector<128x16xf32>
    %130 = arith.addf %127, %129 : vector<128x16xf32>
    %c0_109 = arith.constant 0 : index
    %c0_110 = arith.constant 0 : index
    %131 = vector.load %arg15[%c0_109, %c0_110] : memref<128x16xf32, #tpu.memory_space<vmem>>, vector<128x16xf32>
    tpu.vector_store %arg15[%c0_109, %c0_110], %130 {strides = array<i32>} : memref<128x16xf32, #tpu.memory_space<vmem>>, vector<128x16xf32>,
    %c0_111 = arith.constant 0 : index
    %c0_112 = arith.constant 0 : index
    %c2 = arith.constant 2 : index
    %c0_113 = arith.constant 0 : index
    %132 = vector.load %arg14[%c0_111, %c0_112, %c2, %c0_113] : memref<2x10x10x16xf32, #tpu.memory_space<vmem>>, vector<2x8x8x16xf32>
    %133 = vector.shape_cast %132 : vector<2x8x8x16xf32> to vector<128x16xf32>
    %c32_114 = arith.constant 32 : index
    %c0_115 = arith.constant 0 : index
    %134 = vector.load %arg7[%c32_114, %c0_115] : memref<144x16xbf16, #tpu.memory_space<vmem>>, vector<16x16xbf16>
    %c0_116 = arith.constant 0 : index
    %c0_117 = arith.constant 0 : index
    %135 = vector.load %arg15[%c0_116, %c0_117] : memref<128x16xf32, #tpu.memory_space<vmem>>, vector<128x16xf32>
    %136 = arith.truncf %133 : vector<128x16xf32> to vector<128x16xbf16>
    %cst_118 = arith.constant dense<0.000000e+00> : vector<128x16xf32>
    %137 = tpu.matmul %136, %134, %cst_118 {dimension_numbers = #tpu.dot_dimension_numbers<[1], [0], [0], [1], [0, 0, 1, 1], [], []>} : vector<128x16xbf16>, vector<16x16xbf16>, vector<128x16xf32> -> vector<128x16xf32>
    %138 = arith.addf %135, %137 : vector<128x16xf32>
    %c0_119 = arith.constant 0 : index
    %c0_120 = arith.constant 0 : index
    %139 = vector.load %arg15[%c0_119, %c0_120] : memref<128x16xf32, #tpu.memory_space<vmem>>, vector<128x16xf32>
    tpu.vector_store %arg15[%c0_119, %c0_120], %138 {strides = array<i32>} : memref<128x16xf32, #tpu.memory_space<vmem>>, vector<128x16xf32>,
    %c0_121 = arith.constant 0 : index
    %c1_122 = arith.constant 1 : index
    %c0_123 = arith.constant 0 : index
    %c0_124 = arith.constant 0 : index
    %140 = vector.load %arg14[%c0_121, %c1_122, %c0_123, %c0_124] : memref<2x10x10x16xf32, #tpu.memory_space<vmem>>, vector<2x8x8x16xf32>
    %141 = vector.shape_cast %140 : vector<2x8x8x16xf32> to vector<128x16xf32>
    %c48 = arith.constant 48 : index
    %c0_125 = arith.constant 0 : index
    %142 = vector.load %arg7[%c48, %c0_125] : memref<144x16xbf16, #tpu.memory_space<vmem>>, vector<16x16xbf16>
    %c0_126 = arith.constant 0 : index
    %c0_127 = arith.constant 0 : index
    %143 = vector.load %arg15[%c0_126, %c0_127] : memref<128x16xf32, #tpu.memory_space<vmem>>, vector<128x16xf32>
    %144 = arith.truncf %141 : vector<128x16xf32> to vector<128x16xbf16>
    %cst_128 = arith.constant dense<0.000000e+00> : vector<128x16xf32>
    %145 = tpu.matmul %144, %142, %cst_128 {dimension_numbers = #tpu.dot_dimension_numbers<[1], [0], [0], [1], [0, 0, 1, 1], [], []>} : vector<128x16xbf16>, vector<16x16xbf16>, vector<128x16xf32> -> vector<128x16xf32>
    %146 = arith.addf %143, %145 : vector<128x16xf32>
    %c0_129 = arith.constant 0 : index
    %c0_130 = arith.constant 0 : index
    %147 = vector.load %arg15[%c0_129, %c0_130] : memref<128x16xf32, #tpu.memory_space<vmem>>, vector<128x16xf32>
    tpu.vector_store %arg15[%c0_129, %c0_130], %146 {strides = array<i32>} : memref<128x16xf32, #tpu.memory_space<vmem>>, vector<128x16xf32>,
    %c0_131 = arith.constant 0 : index
    %c1_132 = arith.constant 1 : index
    %c1_133 = arith.constant 1 : index
    %c0_134 = arith.constant 0 : index
    %148 = vector.load %arg14[%c0_131, %c1_132, %c1_133, %c0_134] : memref<2x10x10x16xf32, #tpu.memory_space<vmem>>, vector<2x8x8x16xf32>
    %149 = vector.shape_cast %148 : vector<2x8x8x16xf32> to vector<128x16xf32>
    %c64_135 = arith.constant 64 : index
    %c0_136 = arith.constant 0 : index
    %150 = vector.load %arg7[%c64_135, %c0_136] : memref<144x16xbf16, #tpu.memory_space<vmem>>, vector<16x16xbf16>
    %c0_137 = arith.constant 0 : index
    %c0_138 = arith.constant 0 : index
    %151 = vector.load %arg15[%c0_137, %c0_138] : memref<128x16xf32, #tpu.memory_space<vmem>>, vector<128x16xf32>
    %152 = arith.truncf %149 : vector<128x16xf32> to vector<128x16xbf16>
    %cst_139 = arith.constant dense<0.000000e+00> : vector<128x16xf32>
    %153 = tpu.matmul %152, %150, %cst_139 {dimension_numbers = #tpu.dot_dimension_numbers<[1], [0], [0], [1], [0, 0, 1, 1], [], []>} : vector<128x16xbf16>, vector<16x16xbf16>, vector<128x16xf32> -> vector<128x16xf32>
    %154 = arith.addf %151, %153 : vector<128x16xf32>
    %c0_140 = arith.constant 0 : index
    %c0_141 = arith.constant 0 : index
    %155 = vector.load %arg15[%c0_140, %c0_141] : memref<128x16xf32, #tpu.memory_space<vmem>>, vector<128x16xf32>
    tpu.vector_store %arg15[%c0_140, %c0_141], %154 {strides = array<i32>} : memref<128x16xf32, #tpu.memory_space<vmem>>, vector<128x16xf32>,
    %c0_142 = arith.constant 0 : index
    %c1_143 = arith.constant 1 : index
    %c2_144 = arith.constant 2 : index
    %c0_145 = arith.constant 0 : index
    %156 = vector.load %arg14[%c0_142, %c1_143, %c2_144, %c0_145] : memref<2x10x10x16xf32, #tpu.memory_space<vmem>>, vector<2x8x8x16xf32>
    %157 = vector.shape_cast %156 : vector<2x8x8x16xf32> to vector<128x16xf32>
    %c80 = arith.constant 80 : index
    %c0_146 = arith.constant 0 : index
    %158 = vector.load %arg7[%c80, %c0_146] : memref<144x16xbf16, #tpu.memory_space<vmem>>, vector<16x16xbf16>
    %c0_147 = arith.constant 0 : index
    %c0_148 = arith.constant 0 : index
    %159 = vector.load %arg15[%c0_147, %c0_148] : memref<128x16xf32, #tpu.memory_space<vmem>>, vector<128x16xf32>
    %160 = arith.truncf %157 : vector<128x16xf32> to vector<128x16xbf16>
    %cst_149 = arith.constant dense<0.000000e+00> : vector<128x16xf32>
    %161 = tpu.matmul %160, %158, %cst_149 {dimension_numbers = #tpu.dot_dimension_numbers<[1], [0], [0], [1], [0, 0, 1, 1], [], []>} : vector<128x16xbf16>, vector<16x16xbf16>, vector<128x16xf32> -> vector<128x16xf32>
    %162 = arith.addf %159, %161 : vector<128x16xf32>
    %c0_150 = arith.constant 0 : index
    %c0_151 = arith.constant 0 : index
    %163 = vector.load %arg15[%c0_150, %c0_151] : memref<128x16xf32, #tpu.memory_space<vmem>>, vector<128x16xf32>
    tpu.vector_store %arg15[%c0_150, %c0_151], %162 {strides = array<i32>} : memref<128x16xf32, #tpu.memory_space<vmem>>, vector<128x16xf32>,
    %c0_152 = arith.constant 0 : index
    %c2_153 = arith.constant 2 : index
    %c0_154 = arith.constant 0 : index
    %c0_155 = arith.constant 0 : index
    %164 = vector.load %arg14[%c0_152, %c2_153, %c0_154, %c0_155] : memref<2x10x10x16xf32, #tpu.memory_space<vmem>>, vector<2x8x8x16xf32>
    %165 = vector.shape_cast %164 : vector<2x8x8x16xf32> to vector<128x16xf32>
    %c96_156 = arith.constant 96 : index
    %c0_157 = arith.constant 0 : index
    %166 = vector.load %arg7[%c96_156, %c0_157] : memref<144x16xbf16, #tpu.memory_space<vmem>>, vector<16x16xbf16>
    %c0_158 = arith.constant 0 : index
    %c0_159 = arith.constant 0 : index
    %167 = vector.load %arg15[%c0_158, %c0_159] : memref<128x16xf32, #tpu.memory_space<vmem>>, vector<128x16xf32>
    %168 = arith.truncf %165 : vector<128x16xf32> to vector<128x16xbf16>
    %cst_160 = arith.constant dense<0.000000e+00> : vector<128x16xf32>
    %169 = tpu.matmul %168, %166, %cst_160 {dimension_numbers = #tpu.dot_dimension_numbers<[1], [0], [0], [1], [0, 0, 1, 1], [], []>} : vector<128x16xbf16>, vector<16x16xbf16>, vector<128x16xf32> -> vector<128x16xf32>
    %170 = arith.addf %167, %169 : vector<128x16xf32>
    %c0_161 = arith.constant 0 : index
    %c0_162 = arith.constant 0 : index
    %171 = vector.load %arg15[%c0_161, %c0_162] : memref<128x16xf32, #tpu.memory_space<vmem>>, vector<128x16xf32>
    tpu.vector_store %arg15[%c0_161, %c0_162], %170 {strides = array<i32>} : memref<128x16xf32, #tpu.memory_space<vmem>>, vector<128x16xf32>,
    %c0_163 = arith.constant 0 : index
    %c2_164 = arith.constant 2 : index
    %c1_165 = arith.constant 1 : index
    %c0_166 = arith.constant 0 : index
    %172 = vector.load %arg14[%c0_163, %c2_164, %c1_165, %c0_166] : memref<2x10x10x16xf32, #tpu.memory_space<vmem>>, vector<2x8x8x16xf32>
    %173 = vector.shape_cast %172 : vector<2x8x8x16xf32> to vector<128x16xf32>
    %c112 = arith.constant 112 : index
    %c0_167 = arith.constant 0 : index
    %174 = vector.load %arg7[%c112, %c0_167] : memref<144x16xbf16, #tpu.memory_space<vmem>>, vector<16x16xbf16>
    %c0_168 = arith.constant 0 : index
    %c0_169 = arith.constant 0 : index
    %175 = vector.load %arg15[%c0_168, %c0_169] : memref<128x16xf32, #tpu.memory_space<vmem>>, vector<128x16xf32>
    %176 = arith.truncf %173 : vector<128x16xf32> to vector<128x16xbf16>
    %cst_170 = arith.constant dense<0.000000e+00> : vector<128x16xf32>
    %177 = tpu.matmul %176, %174, %cst_170 {dimension_numbers = #tpu.dot_dimension_numbers<[1], [0], [0], [1], [0, 0, 1, 1], [], []>} : vector<128x16xbf16>, vector<16x16xbf16>, vector<128x16xf32> -> vector<128x16xf32>
    %178 = arith.addf %175, %177 : vector<128x16xf32>
    %c0_171 = arith.constant 0 : index
    %c0_172 = arith.constant 0 : index
    %179 = vector.load %arg15[%c0_171, %c0_172] : memref<128x16xf32, #tpu.memory_space<vmem>>, vector<128x16xf32>
    tpu.vector_store %arg15[%c0_171, %c0_172], %178 {strides = array<i32>} : memref<128x16xf32, #tpu.memory_space<vmem>>, vector<128x16xf32>,
    %c0_173 = arith.constant 0 : index
    %c2_174 = arith.constant 2 : index
    %c2_175 = arith.constant 2 : index
    %c0_176 = arith.constant 0 : index
    %180 = vector.load %arg14[%c0_173, %c2_174, %c2_175, %c0_176] : memref<2x10x10x16xf32, #tpu.memory_space<vmem>>, vector<2x8x8x16xf32>
    %181 = vector.shape_cast %180 : vector<2x8x8x16xf32> to vector<128x16xf32>
    %c128 = arith.constant 128 : index
    %c0_177 = arith.constant 0 : index
    %182 = vector.load %arg7[%c128, %c0_177] : memref<144x16xbf16, #tpu.memory_space<vmem>>, vector<16x16xbf16>
    %c0_178 = arith.constant 0 : index
    %c0_179 = arith.constant 0 : index
    %183 = vector.load %arg15[%c0_178, %c0_179] : memref<128x16xf32, #tpu.memory_space<vmem>>, vector<128x16xf32>
    %184 = arith.truncf %181 : vector<128x16xf32> to vector<128x16xbf16>
    %cst_180 = arith.constant dense<0.000000e+00> : vector<128x16xf32>
    %185 = tpu.matmul %184, %182, %cst_180 {dimension_numbers = #tpu.dot_dimension_numbers<[1], [0], [0], [1], [0, 0, 1, 1], [], []>} : vector<128x16xbf16>, vector<16x16xbf16>, vector<128x16xf32> -> vector<128x16xf32>
    %186 = arith.addf %183, %185 : vector<128x16xf32>
    %c0_181 = arith.constant 0 : index
    %c0_182 = arith.constant 0 : index
    %187 = vector.load %arg15[%c0_181, %c0_182] : memref<128x16xf32, #tpu.memory_space<vmem>>, vector<128x16xf32>
    tpu.vector_store %arg15[%c0_181, %c0_182], %186 {strides = array<i32>} : memref<128x16xf32, #tpu.memory_space<vmem>>, vector<128x16xf32>,
    %c0_183 = arith.constant 0 : index
    %c0_184 = arith.constant 0 : index
    %188 = vector.load %arg15[%c0_183, %c0_184] : memref<128x16xf32, #tpu.memory_space<vmem>>, vector<128x16xf32>
    %c0_185 = arith.constant 0 : index
    %c0_186 = arith.constant 0 : index
    %189 = vector.load %arg8[%c0_185, %c0_186] : memref<1x16xf32, #tpu.memory_space<vmem>>, vector<1x16xf32>
    %190 = vector.broadcast %189 : vector<1x16xf32> to vector<128x16xf32>
    %191 = arith.addf %188, %190 : vector<128x16xf32>
    %192 = vector.extract_strided_slice %1 {offsets = [0, 0], sizes = [128, 8], strides = [1, 1]} : vector<128x32xf32> to vector<128x8xf32>
    %193 = arith.truncf %192 : vector<128x8xf32> to vector<128x8xbf16>
    %c0_187 = arith.constant 0 : index
    %c0_188 = arith.constant 0 : index
    %194 = vector.load %arg9[%c0_187, %c0_188] : memref<8x16xbf16, #tpu.memory_space<vmem>>, vector<8x16xbf16>
    %cst_189 = arith.constant dense<0.000000e+00> : vector<128x16xf32>
    %195 = tpu.matmul %193, %194, %cst_189 {dimension_numbers = #tpu.dot_dimension_numbers<[1], [0], [0], [1], [0, 0, 1, 1], [], []>} : vector<128x8xbf16>, vector<8x16xbf16>, vector<128x16xf32> -> vector<128x16xf32>
    %c0_190 = arith.constant 0 : index
    %c0_191 = arith.constant 0 : index
    %196 = vector.load %arg10[%c0_190, %c0_191] : memref<1x16xf32, #tpu.memory_space<vmem>>, vector<1x16xf32>
    %197 = vector.broadcast %196 : vector<1x16xf32> to vector<128x16xf32>
    %198 = arith.addf %195, %197 : vector<128x16xf32>
    %199 = arith.addf %191, %198 : vector<128x16xf32>
    %200 = vector.shape_cast %199 : vector<128x16xf32> to vector<2x8x8x16xf32>
    %201 = arith.truncf %200 : vector<2x8x8x16xf32> to vector<2x8x8x16xbf16>
    %c0_192 = arith.constant 0 : index
    %c0_193 = arith.constant 0 : index
    %c0_194 = arith.constant 0 : index
    %c0_195 = arith.constant 0 : index
    %202 = vector.load %arg11[%c0_192, %c0_193, %c0_194, %c0_195] : memref<2x8x8x16xbf16, #tpu.memory_space<vmem>>, vector<2x8x8x16xbf16>
    tpu.vector_store %arg11[%c0_192, %c0_193, %c0_194, %c0_195], %201 {strides = array<i32>} : memref<2x8x8x16xbf16, #tpu.memory_space<vmem>>, vector<2x8x8x16xbf16>,
    return
  }
}

</mosaic_0001>

<llo_original>
// kernel: forward.2
$region0: #{forward.2}
  #allocation0 [shape = 'u32[]', space=smem, size = 0x4, offset = 0x4, fixed_abs, tag = 'smem constant byte address 0x4 - core index']
  #allocation1 [shape = 'u32[72,128]{1,0:T(1,128)}', space=vmem, size = 0x9000, scoped, tag = 'internal scratch']
  #allocation2 [shape = 'f32[2,9,9,32]{3,2,1,0:T(8,128)}', space=vmem, size = 0x24000, scoped, tag = 'scratch operand']
  #allocation3 [shape = 'f32[128,16]{1,0:T(8,128)}', space=vmem, size = 0x10000, scoped, tag = 'scratch operand']
  #allocation4 [shape = 'f32[2,10,10,16]{3,2,1,0:T(8,128)}', space=vmem, size = 0x28000, scoped, tag = 'scratch operand']
  #allocation5 [shape = 'f32[128,16]{1,0:T(8,128)}', space=vmem, size = 0x10000, scoped, tag = 'scratch operand']
  %s0 = inlined_call_operand.vmem [shape: f32[2,8,8,32], index: 0, kind: input, shape index: {}]
  %s1 = inlined_call_operand.vmem [shape: f32[1,8], index: 1, kind: input, shape index: {}]
  %s2 = inlined_call_operand.vmem [shape: f32[1,8], index: 2, kind: input, shape index: {}]
  %s3 = inlined_call_operand.vmem [shape: bf16[128,16], index: 3, kind: input, shape index: {}]
  %s4 = inlined_call_operand.vmem [shape: f32[1,16], index: 4, kind: input, shape index: {}]
  %s5 = inlined_call_operand.vmem [shape: f32[1,16], index: 5, kind: input, shape index: {}]
  %s6 = inlined_call_operand.vmem [shape: f32[1,16], index: 6, kind: input, shape index: {}]
  %s7 = inlined_call_operand.vmem [shape: bf16[144,16], index: 7, kind: input, shape index: {}]
  %s8 = inlined_call_operand.vmem [shape: f32[1,16], index: 8, kind: input, shape index: {}]
  %s9 = inlined_call_operand.vmem [shape: bf16[8,16], index: 9, kind: input, shape index: {}]
  %s10 = inlined_call_operand.vmem [shape: f32[1,16], index: 10, kind: input, shape index: {}]
  %s11 = inlined_call_operand.vmem [shape: bf16[2,8,8,16], index: 11, kind: output, shape index: {}]
  %s12 = sld [smem:[#allocation0]]
  $region54: #{forward.2} parent=0
    _
  %s14 = ssub.s32 1, %s12
  %s15 = scalar_select 0, %s14, %s12
  // Predicated region
  $region2: #{forward.2} parent=0 // pred_check
    _
  $region3: #{forward.2} parent=0 // pred_check_branch
    %17 = sbr.rel (0) target = $region5
  $region4: #{forward.2} parent=0 // pred_region
    _
  $region5: #{forward.2} parent=0 // pred_fallthru
    _
  // Predicated region
  $region6: #{forward.2} parent=0 // pred_check
    _
  $region7: #{forward.2} parent=0 // pred_check_branch
    %19 = sbr.rel (0) target = $region9
  $region8: #{forward.2} parent=0 // pred_region
    _
  $region9: #{forward.2} parent=0 // pred_fallthru
    _
  // Predicated region
  $region10: #{forward.2} parent=0 // pred_check
    _
  $region11: #{forward.2} parent=0 // pred_check_branch
    %21 = sbr.rel (0) target = $region13
  $region12: #{forward.2} parent=0 // pred_region
    _
  $region13: #{forward.2} parent=0 // pred_fallthru
    _
  // Predicated region
  $region14: #{forward.2} parent=0 // pred_check
    _
  $region15: #{forward.2} parent=0 // pred_check_branch
    %23 = sbr.rel (0) target = $region17
  $region16: #{forward.2} parent=0 // pred_region
    _
  $region17: #{forward.2} parent=0 // pred_fallthru
    _
  // Predicated region
  $region18: #{forward.2} parent=0 // pred_check
    _
  $region19: #{forward.2} parent=0 // pred_check_branch
    %25 = sbr.rel (0) target = $region21
  $region20: #{forward.2} parent=0 // pred_region
    _
  $region21: #{forward.2} parent=0 // pred_fallthru
    _
  // Predicated region
  $region22: #{forward.2} parent=0 // pred_check
    _
  $region23: #{forward.2} parent=0 // pred_check_branch
    %27 = sbr.rel (0) target = $region25
  $region24: #{forward.2} parent=0 // pred_region
    _
  $region25: #{forward.2} parent=0 // pred_fallthru
    _
  // Predicated region
  $region26: #{forward.2} parent=0 // pred_check
    _
  $region27: #{forward.2} parent=0 // pred_check_branch
    %29 = sbr.rel (0) target = $region29
  $region28: #{forward.2} parent=0 // pred_region
    _
  $region29: #{forward.2} parent=0 // pred_fallthru
    _
  // Predicated region
  $region30: #{forward.2} parent=0 // pred_check
    _
  $region31: #{forward.2} parent=0 // pred_check_branch
    %31 = sbr.rel (0) target = $region33
  $region32: #{forward.2} parent=0 // pred_region
    _
  $region33: #{forward.2} parent=0 // pred_fallthru
    _
  // Predicated region
  $region34: #{forward.2} parent=0 // pred_check
    _
  $region35: #{forward.2} parent=0 // pred_check_branch
    %33 = sbr.rel (0) target = $region37
  $region36: #{forward.2} parent=0 // pred_region
    _
  $region37: #{forward.2} parent=0 // pred_fallthru
    _
  // Predicated region
  $region38: #{forward.2} parent=0 // pred_check
    _
  $region39: #{forward.2} parent=0 // pred_check_branch
    %35 = sbr.rel (0) target = $region41
  $region40: #{forward.2} parent=0 // pred_region
    _
  $region41: #{forward.2} parent=0 // pred_fallthru
    _
  // Predicated region
  $region42: #{forward.2} parent=0 // pred_check
    _
  $region43: #{forward.2} parent=0 // pred_check_branch
    %37 = sbr.rel (0) target = $region45
  $region44: #{forward.2} parent=0 // pred_region
    _
  $region45: #{forward.2} parent=0 // pred_fallthru
    _
  %v39 = vld [vmem:[%s0] sm:$0xff]
  %v40 = vld [vmem:[%s0 + $0x8] sm:$0xff]
  %v41 = vld [vmem:[%s0 + $0x10] sm:$0xff]
  %v42 = vld [vmem:[%s0 + $0x18] sm:$0xff]
  %v43 = vld [vmem:[%s0 + $0x20] sm:$0xff]
  %v44 = vld [vmem:[%s0 + $0x28] sm:$0xff]
  %v45 = vld [vmem:[%s0 + $0x30] sm:$0xff]
  %v46 = vld [vmem:[%s0 + $0x38] sm:$0xff]
  %v47 = vld [vmem:[%s0 + $0x40] sm:$0xff]
  %v48 = vld [vmem:[%s0 + $0x48] sm:$0xff]
  %v49 = vld [vmem:[%s0 + $0x50] sm:$0xff]
  %v50 = vld [vmem:[%s0 + $0x58] sm:$0xff]
  %v51 = vld [vmem:[%s0 + $0x60] sm:$0xff]
  %v52 = vld [vmem:[%s0 + $0x68] sm:$0xff]
  %v53 = vld [vmem:[%s0 + $0x70] sm:$0xff]
  %v54 = vld [vmem:[%s0 + $0x78] sm:$0xff]
  %vm55 = vcmask 261120
  %v56 = vsel %vm55, %v39, 0.0
  %v57 = vsel %vm55, %v40, 0.0
  %v58 = vadd.f32 %v56, %v57
  %v59 = vsel %vm55, %v41, 0.0
  %v60 = vadd.f32 %v58, %v59
  %v61 = vsel %vm55, %v42, 0.0
  %v62 = vadd.f32 %v60, %v61
  %v63 = vsel %vm55, %v43, 0.0
  %v64 = vadd.f32 %v62, %v63
  %v65 = vsel %vm55, %v44, 0.0
  %v66 = vadd.f32 %v64, %v65
  %v67 = vsel %vm55, %v45, 0.0
  %v68 = vadd.f32 %v66, %v67
  %v69 = vsel %vm55, %v46, 0.0
  %v70 = vadd.f32 %v68, %v69
  %v71 = vsel %vm55, %v47, 0.0
  %v72 = vadd.f32 %v70, %v71
  %v73 = vsel %vm55, %v48, 0.0
  %v74 = vadd.f32 %v72, %v73
  %v75 = vsel %vm55, %v49, 0.0
  %v76 = vadd.f32 %v74, %v75
  %v77 = vsel %vm55, %v50, 0.0
  %v78 = vadd.f32 %v76, %v77
  %v79 = vsel %vm55, %v51, 0.0
  %v80 = vadd.f32 %v78, %v79
  %v81 = vsel %vm55, %v52, 0.0
  %v82 = vadd.f32 %v80, %v81
  %v83 = vsel %vm55, %v53, 0.0
  %v84 = vadd.f32 %v82, %v83
  %v85 = vsel %vm55, %v54, 0.0
  %v86 = vadd.f32 %v84, %v85
  %v87 = vrot.slane %v86, 4
  %v88 = vadd.f32 %v86, %v87
  %v89 = vrot.slane %v88, 2
  %v90 = vadd.f32 %v88, %v89
  %v91 = vrot.slane %v90, 1
  %v92 = vadd.f32 %v90, %v91
  %v93 = vmul.f32 %v39, %v39
  %v94 = vmul.f32 %v40, %v40
  %v95 = vmul.f32 %v41, %v41
  %v96 = vmul.f32 %v42, %v42
  %v97 = vmul.f32 %v43, %v43
  %v98 = vmul.f32 %v44, %v44
  %v99 = vmul.f32 %v45, %v45
  %v100 = vmul.f32 %v46, %v46
  %v101 = vmul.f32 %v47, %v47
  %v102 = vmul.f32 %v48, %v48
  %v103 = vmul.f32 %v49, %v49
  %v104 = vmul.f32 %v50, %v50
  %v105 = vmul.f32 %v51, %v51
  %v106 = vmul.f32 %v52, %v52
  %v107 = vmul.f32 %v53, %v53
  %v108 = vmul.f32 %v54, %v54
  %v109 = vsel %vm55, %v93, 0.0
  %v110 = vsel %vm55, %v94, 0.0
  %v111 = vadd.f32 %v109, %v110
  %v112 = vsel %vm55, %v95, 0.0
  %v113 = vadd.f32 %v111, %v112
  %v114 = vsel %vm55, %v96, 0.0
  %v115 = vadd.f32 %v113, %v114
  %v116 = vsel %vm55, %v97, 0.0
  %v117 = vadd.f32 %v115, %v116
  %v118 = vsel %vm55, %v98, 0.0
  %v119 = vadd.f32 %v117, %v118
  %v120 = vsel %vm55, %v99, 0.0
  %v121 = vadd.f32 %v119, %v120
  %v122 = vsel %vm55, %v100, 0.0
  %v123 = vadd.f32 %v121, %v122
  %v124 = vsel %vm55, %v101, 0.0
  %v125 = vadd.f32 %v123, %v124
  %v126 = vsel %vm55, %v102, 0.0
  %v127 = vadd.f32 %v125, %v126
  %v128 = vsel %vm55, %v103, 0.0
  %v129 = vadd.f32 %v127, %v128
  %v130 = vsel %vm55, %v104, 0.0
  %v131 = vadd.f32 %v129, %v130
  %v132 = vsel %vm55, %v105, 0.0
  %v133 = vadd.f32 %v131, %v132
  %v134 = vsel %vm55, %v106, 0.0
  %v135 = vadd.f32 %v133, %v134
  %v136 = vsel %vm55, %v107, 0.0
  %v137 = vadd.f32 %v135, %v136
  %v138 = vsel %vm55, %v108, 0.0
  %v139 = vadd.f32 %v137, %v138
  %v140 = vrot.slane %v139, 4
  %v141 = vadd.f32 %v139, %v140
  %v142 = vrot.slane %v141, 2
  %v143 = vadd.f32 %v141, %v142
  %v144 = vrot.slane %v143, 1
  %v145 = vadd.f32 %v143, %v144
  %147 = vrot.lane.b32.xlu0 %v92, 120
  %v148 = vpop.permute.xlu0 %147
  %v150 = vadd.f32 %v92, %v148
  %151 = vrot.lane.b32.xlu0 %v92, 112
  %v152 = vpop.permute.xlu0 %151
  %v154 = vadd.f32 %v150, %v152
  %155 = vrot.lane.b32.xlu0 %v92, 104
  %v156 = vpop.permute.xlu0 %155
  %v158 = vadd.f32 %v154, %v156
  %160 = vrot.lane.b32.xlu0 %v145, 120
  %v161 = vpop.permute.xlu0 %160
  %v163 = vadd.f32 %v145, %v161
  %164 = vrot.lane.b32.xlu0 %v145, 112
  %v165 = vpop.permute.xlu0 %164
  %v167 = vadd.f32 %v163, %v165
  %168 = vrot.lane.b32.xlu0 %v145, 104
  %v169 = vpop.permute.xlu0 %168
  %v171 = vadd.f32 %v167, %v169
  %v172 = vmul.f32 %v158, 0.001953125
  %v173 = vmul.f32 %v171, 0.001953125
  %v174 = vmul.f32 %v172, %v172
  %v175 = vsub.f32 %v173, %v174
  %v176 = vld [vmem:[%s1] sm:$0x1]
  %v177 = vadd.f32 %v175, 1e-05
  %v178 = vrsqrt.pop %v177
  %v179 = vmul.f32 %v178, %v177
  %v180 = vmul.f32 %v179, %v178
  %v181 = vmul.f32 0.5, %v180
  %v182 = vsub.f32 1.5, %v181
  %v183 = vmul.f32 %v178, %v182
  %vm184 = vweird.f32 %v177
  %vm185 = vweird.f32 %v178
  %vm186 = vmor %vm184, %vm185
  %v187 = vsel %vm186, %v178, %v183
  %v188 = vmul.f32 %v176, %v187
  %v189 = vld [vmem:[%s2] sm:$0x1]
  %v190 = vmul.f32 %v172, %v188
  %v191 = vsub.f32 %v189, %v190
  %v193 = vperm.slane %v188, 0
  %194 = vrot.lane.b32.xlu0 %v193, 8
  %v195 = vpop.permute.xlu0 %194
  %197 = vrot.lane.b32.xlu0 %v193, 16
  %v198 = vpop.permute.xlu0 %197
  %200 = vrot.lane.b32.xlu0 %v193, 24
  %v201 = vpop.permute.xlu0 %200
  %vm203 = vcmask 64512
  %v204 = vsel %vm203, %v188, %v195
  %vm205 = vcmask 130048
  %v206 = vsel %vm205, %v204, %v198
  %vm207 = vcmask 195584
  %v208 = vsel %vm207, %v206, %v201
  %v210 = vperm.slane %v191, 0
  %211 = vrot.lane.b32.xlu0 %v210, 8
  %v212 = vpop.permute.xlu0 %211
  %214 = vrot.lane.b32.xlu0 %v210, 16
  %v215 = vpop.permute.xlu0 %214
  %217 = vrot.lane.b32.xlu0 %v210, 24
  %v218 = vpop.permute.xlu0 %217
  %v220 = vsel %vm203, %v191, %v212
  %v221 = vsel %vm205, %v220, %v215
  %v222 = vsel %vm207, %v221, %v218
  %v223 = vperm.slane %v208, 0
  %v224 = vmul.f32 %v39, %v223
  %v225 = vmul.f32 %v40, %v223
  %v226 = vmul.f32 %v41, %v223
  %v227 = vmul.f32 %v42, %v223
  %v228 = vmul.f32 %v43, %v223
  %v229 = vmul.f32 %v44, %v223
  %v230 = vmul.f32 %v45, %v223
  %v231 = vmul.f32 %v46, %v223
  %v232 = vmul.f32 %v47, %v223
  %v233 = vmul.f32 %v48, %v223
  %v234 = vmul.f32 %v49, %v223
  %v235 = vmul.f32 %v50, %v223
  %v236 = vmul.f32 %v51, %v223
  %v237 = vmul.f32 %v52, %v223
  %v238 = vmul.f32 %v53, %v223
  %v239 = vmul.f32 %v54, %v223
  %v240 = vperm.slane %v222, 0
  %v241 = vadd.f32 %v224, %v240
  %v242 = vadd.f32 %v225, %v240
  %v243 = vadd.f32 %v226, %v240
  %v244 = vadd.f32 %v227, %v240
  %v245 = vadd.f32 %v228, %v240
  %v246 = vadd.f32 %v229, %v240
  %v247 = vadd.f32 %v230, %v240
  %v248 = vadd.f32 %v231, %v240
  %v249 = vadd.f32 %v232, %v240
  %v250 = vadd.f32 %v233, %v240
  %v251 = vadd.f32 %v234, %v240
  %v252 = vadd.f32 %v235, %v240
  %v253 = vadd.f32 %v236, %v240
  %v254 = vadd.f32 %v237, %v240
  %v255 = vadd.f32 %v238, %v240
  %v256 = vadd.f32 %v239, %v240
  %v257 = vmax.f32 %v241, 0.0
  %v258 = vmax.f32 %v242, 0.0
  %v259 = vmax.f32 %v243, 0.0
  %v260 = vmax.f32 %v244, 0.0
  %v261 = vmax.f32 %v245, 0.0
  %v262 = vmax.f32 %v246, 0.0
  %v263 = vmax.f32 %v247, 0.0
  %v264 = vmax.f32 %v248, 0.0
  %v265 = vmax.f32 %v249, 0.0
  %v266 = vmax.f32 %v250, 0.0
  %v267 = vmax.f32 %v251, 0.0
  %v268 = vmax.f32 %v252, 0.0
  %v269 = vmax.f32 %v253, 0.0
  %v270 = vmax.f32 %v254, 0.0
  %v271 = vmax.f32 %v255, 0.0
  %v272 = vmax.f32 %v256, 0.0
  %273 = vst.msk [vmem:[#allocation2] sm:$0xff] %vm55, 0.0
  %vm274 = vcmask 253952
  %275 = vst.msk [vmem:[#allocation2 + $0x8] sm:$0x1] %vm274, 0.0
  %276 = vst.msk [vmem:[#allocation2 + $0x10] sm:$0xff] %vm55, 0.0
  %277 = vst.msk [vmem:[#allocation2 + $0x18] sm:$0x1] %vm274, 0.0
  %278 = vst.msk [vmem:[#allocation2 + $0x20] sm:$0xff] %vm55, 0.0
  %279 = vst.msk [vmem:[#allocation2 + $0x28] sm:$0x1] %vm274, 0.0
  %280 = vst.msk [vmem:[#allocation2 + $0x30] sm:$0xff] %vm55, 0.0
  %281 = vst.msk [vmem:[#allocation2 + $0x38] sm:$0x1] %vm274, 0.0
  %282 = vst.msk [vmem:[#allocation2 + $0x40] sm:$0xff] %vm55, 0.0
  %283 = vst.msk [vmem:[#allocation2 + $0x48] sm:$0x1] %vm274, 0.0
  %284 = vst.msk [vmem:[#allocation2 + $0x50] sm:$0xff] %vm55, 0.0
  %285 = vst.msk [vmem:[#allocation2 + $0x58] sm:$0x1] %vm274, 0.0
  %286 = vst.msk [vmem:[#allocation2 + $0x60] sm:$0xff] %vm55, 0.0
  %287 = vst.msk [vmem:[#allocation2 + $0x68] sm:$0x1] %vm274, 0.0
  %288 = vst.msk [vmem:[#allocation2 + $0x70] sm:$0xff] %vm55, 0.0
  %289 = vst.msk [vmem:[#allocation2 + $0x78] sm:$0x1] %vm274, 0.0
  %290 = vst.msk [vmem:[#allocation2 + $0x80] sm:$0xff] %vm55, 0.0
  %291 = vst.msk [vmem:[#allocation2 + $0x88] sm:$0x1] %vm274, 0.0
  %292 = vst.msk [vmem:[#allocation2 + $0x90] sm:$0xff] %vm55, 0.0
  %293 = vst.msk [vmem:[#allocation2 + $0x98] sm:$0x1] %vm274, 0.0
  %294 = vst.msk [vmem:[#allocation2 + $0xa0] sm:$0xff] %vm55, 0.0
  %295 = vst.msk [vmem:[#allocation2 + $0xa8] sm:$0x1] %vm274, 0.0
  %296 = vst.msk [vmem:[#allocation2 + $0xb0] sm:$0xff] %vm55, 0.0
  %297 = vst.msk [vmem:[#allocation2 + $0xb8] sm:$0x1] %vm274, 0.0
  %298 = vst.msk [vmem:[#allocation2 + $0xc0] sm:$0xff] %vm55, 0.0
  %299 = vst.msk [vmem:[#allocation2 + $0xc8] sm:$0x1] %vm274, 0.0
  %300 = vst.msk [vmem:[#allocation2 + $0xd0] sm:$0xff] %vm55, 0.0
  %301 = vst.msk [vmem:[#allocation2 + $0xd8] sm:$0x1] %vm274, 0.0
  %302 = vst.msk [vmem:[#allocation2 + $0xe0] sm:$0xff] %vm55, 0.0
  %303 = vst.msk [vmem:[#allocation2 + $0xe8] sm:$0x1] %vm274, 0.0
  %304 = vst.msk [vmem:[#allocation2 + $0xf0] sm:$0xff] %vm55, 0.0
  %305 = vst.msk [vmem:[#allocation2 + $0xf8] sm:$0x1] %vm274, 0.0
  %306 = vst.msk [vmem:[#allocation2 + $0x100] sm:$0xff] %vm55, 0.0
  %307 = vst.msk [vmem:[#allocation2 + $0x108] sm:$0x1] %vm274, 0.0
  %308 = vst.msk [vmem:[#allocation2 + $0x110] sm:$0xff] %vm55, 0.0
  %309 = vst.msk [vmem:[#allocation2 + $0x118] sm:$0x1] %vm274, 0.0
  %s310 = scalar_lea.vmem [#allocation2], 16
  %311 = vst.msk [vmem:[%s310 + $0x1] sm:$0xff] %vm55, %v257
  %312 = vst.msk [vmem:[%s310 + $0x11] sm:$0xff] %vm55, %v258
  %313 = vst.msk [vmem:[%s310 + $0x21] sm:$0xff] %vm55, %v259
  %314 = vst.msk [vmem:[%s310 + $0x31] sm:$0xff] %vm55, %v260
  %315 = vst.msk [vmem:[%s310 + $0x41] sm:$0xff] %vm55, %v261
  %316 = vst.msk [vmem:[%s310 + $0x51] sm:$0xff] %vm55, %v262
  %317 = vst.msk [vmem:[%s310 + $0x61] sm:$0xff] %vm55, %v263
  %318 = vst.msk [vmem:[%s310 + $0x71] sm:$0xff] %vm55, %v264
  %319 = vst.msk [vmem:[%s310 + $0x91] sm:$0xff] %vm55, %v265
  %320 = vst.msk [vmem:[%s310 + $0xa1] sm:$0xff] %vm55, %v266
  %321 = vst.msk [vmem:[%s310 + $0xb1] sm:$0xff] %vm55, %v267
  %322 = vst.msk [vmem:[%s310 + $0xc1] sm:$0xff] %vm55, %v268
  %323 = vst.msk [vmem:[%s310 + $0xd1] sm:$0xff] %vm55, %v269
  %324 = vst.msk [vmem:[%s310 + $0xe1] sm:$0xff] %vm55, %v270
  %325 = vst.msk [vmem:[%s310 + $0xf1] sm:$0xff] %vm55, %v271
  %326 = vst.msk [vmem:[%s310 + $0x101] sm:$0xff] %vm55, %v272
  %327 = vst.msk [vmem:[#allocation3] sm:$0xff] %vm205, 0.0
  %328 = vst.msk [vmem:[#allocation3 + $0x8] sm:$0xff] %vm205, 0.0
  %329 = vst.msk [vmem:[#allocation3 + $0x10] sm:$0xff] %vm205, 0.0
  %330 = vst.msk [vmem:[#allocation3 + $0x18] sm:$0xff] %vm205, 0.0
  %331 = vst.msk [vmem:[#allocation3 + $0x20] sm:$0xff] %vm205, 0.0
  %332 = vst.msk [vmem:[#allocation3 + $0x28] sm:$0xff] %vm205, 0.0
  %333 = vst.msk [vmem:[#allocation3 + $0x30] sm:$0xff] %vm205, 0.0
  %334 = vst.msk [vmem:[#allocation3 + $0x38] sm:$0xff] %vm205, 0.0
  %335 = vst.msk [vmem:[#allocation3 + $0x40] sm:$0xff] %vm205, 0.0
  %336 = vst.msk [vmem:[#allocation3 + $0x48] sm:$0xff] %vm205, 0.0
  %337 = vst.msk [vmem:[#allocation3 + $0x50] sm:$0xff] %vm205, 0.0
  %338 = vst.msk [vmem:[#allocation3 + $0x58] sm:$0xff] %vm205, 0.0
  %339 = vst.msk [vmem:[#allocation3 + $0x60] sm:$0xff] %vm205, 0.0
  %340 = vst.msk [vmem:[#allocation3 + $0x68] sm:$0xff] %vm205, 0.0
  %341 = vst.msk [vmem:[#allocation3 + $0x70] sm:$0xff] %vm205, 0.0
  %342 = vst.msk [vmem:[#allocation3 + $0x78] sm:$0xff] %vm205, 0.0
  %v343 = vld [vmem:[#allocation2] sm:$0xff]
  %v344 = vld [vmem:[#allocation2 + $0x10] sm:$0xff]
  %v345 = vld [vmem:[#allocation2 + $0x20] sm:$0xff]
  %v346 = vld [vmem:[#allocation2 + $0x30] sm:$0xff]
  %v347 = vld [vmem:[#allocation2 + $0x40] sm:$0xff]
  %v348 = vld [vmem:[#allocation2 + $0x50] sm:$0xff]
  %v349 = vld [vmem:[#allocation2 + $0x60] sm:$0xff]
  %v350 = vld [vmem:[#allocation2 + $0x70] sm:$0xff]
  %v351 = vld [vmem:[#allocation2 + $0x90] sm:$0xff]
  %v352 = vld [vmem:[#allocation2 + $0xa0] sm:$0xff]
  %v353 = vld [vmem:[#allocation2 + $0xb0] sm:$0xff]
  %v354 = vld [vmem:[#allocation2 + $0xc0] sm:$0xff]
  %v355 = vld [vmem:[#allocation2 + $0xd0] sm:$0xff]
  %v356 = vld [vmem:[#allocation2 + $0xe0] sm:$0xff]
  %v357 = vld [vmem:[#allocation2 + $0xf0] sm:$0xff]
  %v358 = vld [vmem:[#allocation2 + $0x100] sm:$0xff]
  %v359 = vld [vmem:[%s3] sm:$0xf]
  %v360 = vld [vmem:[%s3 + $0x4] sm:$0xf]
  %v361 = vld [vmem:[%s3 + $0x8] sm:$0xf]
  %v362 = vld [vmem:[%s3 + $0xc] sm:$0xf]
  %v363 = vld [vmem:[#allocation3] sm:$0xff]
  %v364 = vld [vmem:[#allocation3 + $0x8] sm:$0xff]
  %v365 = vld [vmem:[#allocation3 + $0x10] sm:$0xff]
  %v366 = vld [vmem:[#allocation3 + $0x18] sm:$0xff]
  %v367 = vld [vmem:[#allocation3 + $0x20] sm:$0xff]
  %v368 = vld [vmem:[#allocation3 + $0x28] sm:$0xff]
  %v369 = vld [vmem:[#allocation3 + $0x30] sm:$0xff]
  %v370 = vld [vmem:[#allocation3 + $0x38] sm:$0xff]
  %v371 = vld [vmem:[#allocation3 + $0x40] sm:$0xff]
  %v372 = vld [vmem:[#allocation3 + $0x48] sm:$0xff]
  %v373 = vld [vmem:[#allocation3 + $0x50] sm:$0xff]
  %v374 = vld [vmem:[#allocation3 + $0x58] sm:$0xff]
  %v375 = vld [vmem:[#allocation3 + $0x60] sm:$0xff]
  %v376 = vld [vmem:[#allocation3 + $0x68] sm:$0xff]
  %v377 = vld [vmem:[#allocation3 + $0x70] sm:$0xff]
  %v378 = vld [vmem:[#allocation3 + $0x78] sm:$0xff]
  %v379 = vpack.c.bf16 %v344, %v343
  %v380 = vpack.c.bf16 %v346, %v345
  %v381 = vpack.c.bf16 %v348, %v347
  %v382 = vpack.c.bf16 %v350, %v349
  %v383 = vpack.c.bf16 %v352, %v351
  %v384 = vpack.c.bf16 %v354, %v353
  %v385 = vpack.c.bf16 %v356, %v355
  %v386 = vpack.c.bf16 %v358, %v357
  %v391 = vunpack.c.l.b16 %v359
  %v392 = vunpack.c.l.b16 %v360
  %v393 = vunpack.c.l.b16 %v361
  %v394 = vunpack.c.l.b16 %v362
  %v395 = vpack.c.b16 %v392, %v391
  %v396 = vpack.c.b16 %v394, %v393
  %v400 = vsel %vm55, %v379, 0
  %v403 = vsel %vm55, %v380, 0
  %v406 = vsel %vm55, %v381, 0
  %v409 = vsel %vm55, %v382, 0
  %v412 = vsel %vm55, %v383, 0
  %v415 = vsel %vm55, %v384, 0
  %v418 = vsel %vm55, %v385, 0
  %v421 = vsel %vm55, %v386, 0
  %423 = vmatpush.bf16.msra.mxu0 0
  %424 = vmatpush.bf16.msra.mxu0 0
  %425 = vmatpush.bf16.msra.mxu0 0
  %426 = vmatpush.bf16.msra.mxu0 0
  %427 = vmatpush.bf16.msra.mxu0 0
  %428 = vmatpush.bf16.msra.mxu0 0
  %429 = vmatpush.bf16.msra.mxu0 %v396
  %430 = vmatpush.bf16.msra.mxu0 %v395
  %431 = vmatmul.bf16.gmra.mxu0 %v400
  %v432 = vpop.f32.mrf.mxu0
  %v433 = vadd.f32 0.0, %v432
  %v434 = vpop.f32.mrf.mxu0
  %v435 = vadd.f32 0.0, %v434
  %436 = vmatmul.bf16.gmra.mxu0 %v403
  %v437 = vpop.f32.mrf.mxu0
  %v438 = vadd.f32 0.0, %v437
  %v439 = vpop.f32.mrf.mxu0
  %v440 = vadd.f32 0.0, %v439
  %441 = vmatmul.bf16.gmra.mxu0 %v406
  %v442 = vpop.f32.mrf.mxu0
  %v443 = vadd.f32 0.0, %v442
  %v444 = vpop.f32.mrf.mxu0
  %v445 = vadd.f32 0.0, %v444
  %446 = vmatmul.bf16.gmra.mxu0 %v409
  %v447 = vpop.f32.mrf.mxu0
  %v448 = vadd.f32 0.0, %v447
  %v449 = vpop.f32.mrf.mxu0
  %v450 = vadd.f32 0.0, %v449
  %451 = vmatmul.bf16.gmra.mxu0 %v412
  %v452 = vpop.f32.mrf.mxu0
  %v453 = vadd.f32 0.0, %v452
  %v454 = vpop.f32.mrf.mxu0
  %v455 = vadd.f32 0.0, %v454
  %456 = vmatmul.bf16.gmra.mxu0 %v415
  %v457 = vpop.f32.mrf.mxu0
  %v458 = vadd.f32 0.0, %v457
  %v459 = vpop.f32.mrf.mxu0
  %v460 = vadd.f32 0.0, %v459
  %461 = vmatmul.bf16.gmra.mxu0 %v418
  %v462 = vpop.f32.mrf.mxu0
  %v463 = vadd.f32 0.0, %v462
  %v464 = vpop.f32.mrf.mxu0
  %v465 = vadd.f32 0.0, %v464
  %466 = vmatmul.bf16.gmra.mxu0 %v421
  %v467 = vpop.f32.mrf.mxu0
  %v468 = vadd.f32 0.0, %v467
  %v469 = vpop.f32.mrf.mxu0
  %v470 = vadd.f32 0.0, %v469
  %471 = vdwg.mxu0
  %v472 = vadd.f32 %v363, %v433
  %v473 = vadd.f32 %v364, %v435
  %v474 = vadd.f32 %v365, %v438
  %v475 = vadd.f32 %v366, %v440
  %v476 = vadd.f32 %v367, %v443
  %v477 = vadd.f32 %v368, %v445
  %v478 = vadd.f32 %v369, %v448
  %v479 = vadd.f32 %v370, %v450
  %v480 = vadd.f32 %v371, %v453
  %v481 = vadd.f32 %v372, %v455
  %v482 = vadd.f32 %v373, %v458
  %v483 = vadd.f32 %v374, %v460
  %v484 = vadd.f32 %v375, %v463
  %v485 = vadd.f32 %v376, %v465
  %v486 = vadd.f32 %v377, %v468
  %v487 = vadd.f32 %v378, %v470
  %488 = vst.msk [vmem:[#allocation3] sm:$0xff] %vm205, %v472
  %489 = vst.msk [vmem:[#allocation3 + $0x8] sm:$0xff] %vm205, %v473
  %490 = vst.msk [vmem:[#allocation3 + $0x10] sm:$0xff] %vm205, %v474
  %491 = vst.msk [vmem:[#allocation3 + $0x18] sm:$0xff] %vm205, %v475
  %492 = vst.msk [vmem:[#allocation3 + $0x20] sm:$0xff] %vm205, %v476
  %493 = vst.msk [vmem:[#allocation3 + $0x28] sm:$0xff] %vm205, %v477
  %494 = vst.msk [vmem:[#allocation3 + $0x30] sm:$0xff] %vm205, %v478
  %495 = vst.msk [vmem:[#allocation3 + $0x38] sm:$0xff] %vm205, %v479
  %496 = vst.msk [vmem:[#allocation3 + $0x40] sm:$0xff] %vm205, %v480
  %497 = vst.msk [vmem:[#allocation3 + $0x48] sm:$0xff] %vm205, %v481
  %498 = vst.msk [vmem:[#allocation3 + $0x50] sm:$0xff] %vm205, %v482
  %499 = vst.msk [vmem:[#allocation3 + $0x58] sm:$0xff] %vm205, %v483
  %500 = vst.msk [vmem:[#allocation3 + $0x60] sm:$0xff] %vm205, %v484
  %501 = vst.msk [vmem:[#allocation3 + $0x68] sm:$0xff] %vm205, %v485
  %502 = vst.msk [vmem:[#allocation3 + $0x70] sm:$0xff] %vm205, %v486
  %503 = vst.msk [vmem:[#allocation3 + $0x78] sm:$0xff] %vm205, %v487
  %v504 = vld [vmem:[#allocation2 + $0x1] sm:$0xff]
  %v505 = vld [vmem:[#allocation2 + $0x11] sm:$0xff]
  %v506 = vld [vmem:[#allocation2 + $0x21] sm:$0xff]
  %v507 = vld [vmem:[#allocation2 + $0x31] sm:$0xff]
  %v508 = vld [vmem:[#allocation2 + $0x41] sm:$0xff]
  %v509 = vld [vmem:[#allocation2 + $0x51] sm:$0xff]
  %v510 = vld [vmem:[#allocation2 + $0x61] sm:$0xff]
  %v511 = vld [vmem:[#allocation2 + $0x71] sm:$0xff]
  %v512 = vld [vmem:[#allocation2 + $0x91] sm:$0xff]
  %v513 = vld [vmem:[#allocation2 + $0xa1] sm:$0xff]
  %v514 = vld [vmem:[#allocation2 + $0xb1] sm:$0xff]
  %v515 = vld [vmem:[#allocation2 + $0xc1] sm:$0xff]
  %v516 = vld [vmem:[#allocation2 + $0xd1] sm:$0xff]
  %v517 = vld [vmem:[#allocation2 + $0xe1] sm:$0xff]
  %v518 = vld [vmem:[#allocation2 + $0xf1] sm:$0xff]
  %v519 = vld [vmem:[#allocation2 + $0x101] sm:$0xff]
  %v520 = vld [vmem:[%s3 + $0x10] sm:$0xf]
  %v521 = vld [vmem:[%s3 + $0x14] sm:$0xf]
  %v522 = vld [vmem:[%s3 + $0x18] sm:$0xf]
  %v523 = vld [vmem:[%s3 + $0x1c] sm:$0xf]
  %v524 = vld [vmem:[#allocation3] sm:$0xff]
  %v525 = vld [vmem:[#allocation3 + $0x8] sm:$0xff]
  %v526 = vld [vmem:[#allocation3 + $0x10] sm:$0xff]
  %v527 = vld [vmem:[#allocation3 + $0x18] sm:$0xff]
  %v528 = vld [vmem:[#allocation3 + $0x20] sm:$0xff]
  %v529 = vld [vmem:[#allocation3 + $0x28] sm:$0xff]
  %v530 = vld [vmem:[#allocation3 + $0x30] sm:$0xff]
  %v531 = vld [vmem:[#allocation3 + $0x38] sm:$0xff]
  %v532 = vld [vmem:[#allocation3 + $0x40] sm:$0xff]
  %v533 = vld [vmem:[#allocation3 + $0x48] sm:$0xff]
  %v534 = vld [vmem:[#allocation3 + $0x50] sm:$0xff]
  %v535 = vld [vmem:[#allocation3 + $0x58] sm:$0xff]
  %v536 = vld [vmem:[#allocation3 + $0x60] sm:$0xff]
  %v537 = vld [vmem:[#allocation3 + $0x68] sm:$0xff]
  %v538 = vld [vmem:[#allocation3 + $0x70] sm:$0xff]
  %v539 = vld [vmem:[#allocation3 + $0x78] sm:$0xff]
  %v540 = vpack.c.bf16 %v505, %v504
  %v541 = vpack.c.bf16 %v507, %v506
  %v542 = vpack.c.bf16 %v509, %v508
  %v543 = vpack.c.bf16 %v511, %v510
  %v544 = vpack.c.bf16 %v513, %v512
  %v545 = vpack.c.bf16 %v515, %v514
  %v546 = vpack.c.bf16 %v517, %v516
  %v547 = vpack.c.bf16 %v519, %v518
  %v552 = vunpack.c.l.b16 %v520
  %v553 = vunpack.c.l.b16 %v521
  %v554 = vunpack.c.l.b16 %v522
  %v555 = vunpack.c.l.b16 %v523
  %v556 = vpack.c.b16 %v553, %v552
  %v557 = vpack.c.b16 %v555, %v554
  %v561 = vsel %vm55, %v540, 0
  %v564 = vsel %vm55, %v541, 0
  %v567 = vsel %vm55, %v542, 0
  %v570 = vsel %vm55, %v543, 0
  %v573 = vsel %vm55, %v544, 0
  %v576 = vsel %vm55, %v545, 0
  %v579 = vsel %vm55, %v546, 0
  %v582 = vsel %vm55, %v547, 0
  %584 = vmatpush.bf16.msra.mxu0 0
  %585 = vmatpush.bf16.msra.mxu0 0
  %586 = vmatpush.bf16.msra.mxu0 0
  %587 = vmatpush.bf16.msra.mxu0 0
  %588 = vmatpush.bf16.msra.mxu0 0
  %589 = vmatpush.bf16.msra.mxu0 0
  %590 = vmatpush.bf16.msra.mxu0 %v557
  %591 = vmatpush.bf16.msra.mxu0 %v556
  %592 = vmatmul.bf16.gmra.mxu0 %v561
  %v593 = vpop.f32.mrf.mxu0
  %v594 = vadd.f32 0.0, %v593
  %v595 = vpop.f32.mrf.mxu0
  %v596 = vadd.f32 0.0, %v595
  %597 = vmatmul.bf16.gmra.mxu0 %v564
  %v598 = vpop.f32.mrf.mxu0
  %v599 = vadd.f32 0.0, %v598
  %v600 = vpop.f32.mrf.mxu0
  %v601 = vadd.f32 0.0, %v600
  %602 = vmatmul.bf16.gmra.mxu0 %v567
  %v603 = vpop.f32.mrf.mxu0
  %v604 = vadd.f32 0.0, %v603
  %v605 = vpop.f32.mrf.mxu0
  %v606 = vadd.f32 0.0, %v605
  %607 = vmatmul.bf16.gmra.mxu0 %v570
  %v608 = vpop.f32.mrf.mxu0
  %v609 = vadd.f32 0.0, %v608
  %v610 = vpop.f32.mrf.mxu0
  %v611 = vadd.f32 0.0, %v610
  %612 = vmatmul.bf16.gmra.mxu0 %v573
  %v613 = vpop.f32.mrf.mxu0
  %v614 = vadd.f32 0.0, %v613
  %v615 = vpop.f32.mrf.mxu0
  %v616 = vadd.f32 0.0, %v615
  %617 = vmatmul.bf16.gmra.mxu0 %v576
  %v618 = vpop.f32.mrf.mxu0
  %v619 = vadd.f32 0.0, %v618
  %v620 = vpop.f32.mrf.mxu0
  %v621 = vadd.f32 0.0, %v620
  %622 = vmatmul.bf16.gmra.mxu0 %v579
  %v623 = vpop.f32.mrf.mxu0
  %v624 = vadd.f32 0.0, %v623
  %v625 = vpop.f32.mrf.mxu0
  %v626 = vadd.f32 0.0, %v625
  %627 = vmatmul.bf16.gmra.mxu0 %v582
  %v628 = vpop.f32.mrf.mxu0
  %v629 = vadd.f32 0.0, %v628
  %v630 = vpop.f32.mrf.mxu0
  %v631 = vadd.f32 0.0, %v630
  %632 = vdwg.mxu0
  %v633 = vadd.f32 %v524, %v594
  %v634 = vadd.f32 %v525, %v596
  %v635 = vadd.f32 %v526, %v599
  %v636 = vadd.f32 %v527, %v601
  %v637 = vadd.f32 %v528, %v604
  %v638 = vadd.f32 %v529, %v606
  %v639 = vadd.f32 %v530, %v609
  %v640 = vadd.f32 %v531, %v611
  %v641 = vadd.f32 %v532, %v614
  %v642 = vadd.f32 %v533, %v616
  %v643 = vadd.f32 %v534, %v619
  %v644 = vadd.f32 %v535, %v621
  %v645 = vadd.f32 %v536, %v624
  %v646 = vadd.f32 %v537, %v626
  %v647 = vadd.f32 %v538, %v629
  %v648 = vadd.f32 %v539, %v631
  %649 = vst.msk [vmem:[#allocation3] sm:$0xff] %vm205, %v633
  %650 = vst.msk [vmem:[#allocation3 + $0x8] sm:$0xff] %vm205, %v634
  %651 = vst.msk [vmem:[#allocation3 + $0x10] sm:$0xff] %vm205, %v635
  %652 = vst.msk [vmem:[#allocation3 + $0x18] sm:$0xff] %vm205, %v636
  %653 = vst.msk [vmem:[#allocation3 + $0x20] sm:$0xff] %vm205, %v637
  %654 = vst.msk [vmem:[#allocation3 + $0x28] sm:$0xff] %vm205, %v638
  %655 = vst.msk [vmem:[#allocation3 + $0x30] sm:$0xff] %vm205, %v639
  %656 = vst.msk [vmem:[#allocation3 + $0x38] sm:$0xff] %vm205, %v640
  %657 = vst.msk [vmem:[#allocation3 + $0x40] sm:$0xff] %vm205, %v641
  %658 = vst.msk [vmem:[#allocation3 + $0x48] sm:$0xff] %vm205, %v642
  %659 = vst.msk [vmem:[#allocation3 + $0x50] sm:$0xff] %vm205, %v643
  %660 = vst.msk [vmem:[#allocation3 + $0x58] sm:$0xff] %vm205, %v644
  %661 = vst.msk [vmem:[#allocation3 + $0x60] sm:$0xff] %vm205, %v645
  %662 = vst.msk [vmem:[#allocation3 + $0x68] sm:$0xff] %vm205, %v646
  %663 = vst.msk [vmem:[#allocation3 + $0x70] sm:$0xff] %vm205, %v647
  %664 = vst.msk [vmem:[#allocation3 + $0x78] sm:$0xff] %vm205, %v648
  %v665 = vld [vmem:[%s310] sm:$0xff]
  %v666 = vld [vmem:[%s310 + $0x10] sm:$0xff]
  %v667 = vld [vmem:[%s310 + $0x20] sm:$0xff]
  %v668 = vld [vmem:[%s310 + $0x30] sm:$0xff]
  %v669 = vld [vmem:[%s310 + $0x40] sm:$0xff]
  %v670 = vld [vmem:[%s310 + $0x50] sm:$0xff]
  %v671 = vld [vmem:[%s310 + $0x60] sm:$0xff]
  %v672 = vld [vmem:[%s310 + $0x70] sm:$0xff]
  %v673 = vld [vmem:[%s310 + $0x90] sm:$0xff]
  %v674 = vld [vmem:[%s310 + $0xa0] sm:$0xff]
  %v675 = vld [vmem:[%s310 + $0xb0] sm:$0xff]
  %v676 = vld [vmem:[%s310 + $0xc0] sm:$0xff]
  %v677 = vld [vmem:[%s310 + $0xd0] sm:$0xff]
  %v678 = vld [vmem:[%s310 + $0xe0] sm:$0xff]
  %v679 = vld [vmem:[%s310 + $0xf0] sm:$0xff]
  %v680 = vld [vmem:[%s310 + $0x100] sm:$0xff]
  %v681 = vld [vmem:[%s3 + $0x20] sm:$0xf]
  %v682 = vld [vmem:[%s3 + $0x24] sm:$0xf]
  %v683 = vld [vmem:[%s3 + $0x28] sm:$0xf]
  %v684 = vld [vmem:[%s3 + $0x2c] sm:$0xf]
  %v685 = vld [vmem:[#allocation3] sm:$0xff]
  %v686 = vld [vmem:[#allocation3 + $0x8] sm:$0xff]
  %v687 = vld [vmem:[#allocation3 + $0x10] sm:$0xff]
  %v688 = vld [vmem:[#allocation3 + $0x18] sm:$0xff]
  %v689 = vld [vmem:[#allocation3 + $0x20] sm:$0xff]
  %v690 = vld [vmem:[#allocation3 + $0x28] sm:$0xff]
  %v691 = vld [vmem:[#allocation3 + $0x30] sm:$0xff]
  %v692 = vld [vmem:[#allocation3 + $0x38] sm:$0xff]
  %v693 = vld [vmem:[#allocation3 + $0x40] sm:$0xff]
  %v694 = vld [vmem:[#allocation3 + $0x48] sm:$0xff]
  %v695 = vld [vmem:[#allocation3 + $0x50] sm:$0xff]
  %v696 = vld [vmem:[#allocation3 + $0x58] sm:$0xff]
  %v697 = vld [vmem:[#allocation3 + $0x60] sm:$0xff]
  %v698 = vld [vmem:[#allocation3 + $0x68] sm:$0xff]
  %v699 = vld [vmem:[#allocation3 + $0x70] sm:$0xff]
  %v700 = vld [vmem:[#allocation3 + $0x78] sm:$0xff]
  %v701 = vpack.c.bf16 %v666, %v665
  %v702 = vpack.c.bf16 %v668, %v667
  %v703 = vpack.c.bf16 %v670, %v669
  %v704 = vpack.c.bf16 %v672, %v671
  %v705 = vpack.c.bf16 %v674, %v673
  %v706 = vpack.c.bf16 %v676, %v675
  %v707 = vpack.c.bf16 %v678, %v677
  %v708 = vpack.c.bf16 %v680, %v679
  %v713 = vunpack.c.l.b16 %v681
  %v714 = vunpack.c.l.b16 %v682
  %v715 = vunpack.c.l.b16 %v683
  %v716 = vunpack.c.l.b16 %v684
  %v717 = vpack.c.b16 %v714, %v713
  %v718 = vpack.c.b16 %v716, %v715
  %v722 = vsel %vm55, %v701, 0
  %v725 = vsel %vm55, %v702, 0
  %v728 = vsel %vm55, %v703, 0
  %v731 = vsel %vm55, %v704, 0
  %v734 = vsel %vm55, %v705, 0
  %v737 = vsel %vm55, %v706, 0
  %v740 = vsel %vm55, %v707, 0
  %v743 = vsel %vm55, %v708, 0
  %745 = vmatpush.bf16.msra.mxu0 0
  %746 = vmatpush.bf16.msra.mxu0 0
  %747 = vmatpush.bf16.msra.mxu0 0
  %748 = vmatpush.bf16.msra.mxu0 0
  %749 = vmatpush.bf16.msra.mxu0 0
  %750 = vmatpush.bf16.msra.mxu0 0
  %751 = vmatpush.bf16.msra.mxu0 %v718
  %752 = vmatpush.bf16.msra.mxu0 %v717
  %753 = vmatmul.bf16.gmra.mxu0 %v722
  %v754 = vpop.f32.mrf.mxu0
  %v755 = vadd.f32 0.0, %v754
  %v756 = vpop.f32.mrf.mxu0
  %v757 = vadd.f32 0.0, %v756
  %758 = vmatmul.bf16.gmra.mxu0 %v725
  %v759 = vpop.f32.mrf.mxu0
  %v760 = vadd.f32 0.0, %v759
  %v761 = vpop.f32.mrf.mxu0
  %v762 = vadd.f32 0.0, %v761
  %763 = vmatmul.bf16.gmra.mxu0 %v728
  %v764 = vpop.f32.mrf.mxu0
  %v765 = vadd.f32 0.0, %v764
  %v766 = vpop.f32.mrf.mxu0
  %v767 = vadd.f32 0.0, %v766
  %768 = vmatmul.bf16.gmra.mxu0 %v731
  %v769 = vpop.f32.mrf.mxu0
  %v770 = vadd.f32 0.0, %v769
  %v771 = vpop.f32.mrf.mxu0
  %v772 = vadd.f32 0.0, %v771
  %773 = vmatmul.bf16.gmra.mxu0 %v734
  %v774 = vpop.f32.mrf.mxu0
  %v775 = vadd.f32 0.0, %v774
  %v776 = vpop.f32.mrf.mxu0
  %v777 = vadd.f32 0.0, %v776
  %778 = vmatmul.bf16.gmra.mxu0 %v737
  %v779 = vpop.f32.mrf.mxu0
  %v780 = vadd.f32 0.0, %v779
  %v781 = vpop.f32.mrf.mxu0
  %v782 = vadd.f32 0.0, %v781
  %783 = vmatmul.bf16.gmra.mxu0 %v740
  %v784 = vpop.f32.mrf.mxu0
  %v785 = vadd.f32 0.0, %v784
  %v786 = vpop.f32.mrf.mxu0
  %v787 = vadd.f32 0.0, %v786
  %788 = vmatmul.bf16.gmra.mxu0 %v743
  %v789 = vpop.f32.mrf.mxu0
  %v790 = vadd.f32 0.0, %v789
  %v791 = vpop.f32.mrf.mxu0
  %v792 = vadd.f32 0.0, %v791
  %793 = vdwg.mxu0
  %v794 = vadd.f32 %v685, %v755
  %v795 = vadd.f32 %v686, %v757
  %v796 = vadd.f32 %v687, %v760
  %v797 = vadd.f32 %v688, %v762
  %v798 = vadd.f32 %v689, %v765
  %v799 = vadd.f32 %v690, %v767
  %v800 = vadd.f32 %v691, %v770
  %v801 = vadd.f32 %v692, %v772
  %v802 = vadd.f32 %v693, %v775
  %v803 = vadd.f32 %v694, %v777
  %v804 = vadd.f32 %v695, %v780
  %v805 = vadd.f32 %v696, %v782
  %v806 = vadd.f32 %v697, %v785
  %v807 = vadd.f32 %v698, %v787
  %v808 = vadd.f32 %v699, %v790
  %v809 = vadd.f32 %v700, %v792
  %810 = vst.msk [vmem:[#allocation3] sm:$0xff] %vm205, %v794
  %811 = vst.msk [vmem:[#allocation3 + $0x8] sm:$0xff] %vm205, %v795
  %812 = vst.msk [vmem:[#allocation3 + $0x10] sm:$0xff] %vm205, %v796
  %813 = vst.msk [vmem:[#allocation3 + $0x18] sm:$0xff] %vm205, %v797
  %814 = vst.msk [vmem:[#allocation3 + $0x20] sm:$0xff] %vm205, %v798
  %815 = vst.msk [vmem:[#allocation3 + $0x28] sm:$0xff] %vm205, %v799
  %816 = vst.msk [vmem:[#allocation3 + $0x30] sm:$0xff] %vm205, %v800
  %817 = vst.msk [vmem:[#allocation3 + $0x38] sm:$0xff] %vm205, %v801
  %818 = vst.msk [vmem:[#allocation3 + $0x40] sm:$0xff] %vm205, %v802
  %819 = vst.msk [vmem:[#allocation3 + $0x48] sm:$0xff] %vm205, %v803
  %820 = vst.msk [vmem:[#allocation3 + $0x50] sm:$0xff] %vm205, %v804
  %821 = vst.msk [vmem:[#allocation3 + $0x58] sm:$0xff] %vm205, %v805
  %822 = vst.msk [vmem:[#allocation3 + $0x60] sm:$0xff] %vm205, %v806
  %823 = vst.msk [vmem:[#allocation3 + $0x68] sm:$0xff] %vm205, %v807
  %824 = vst.msk [vmem:[#allocation3 + $0x70] sm:$0xff] %vm205, %v808
  %825 = vst.msk [vmem:[#allocation3 + $0x78] sm:$0xff] %vm205, %v809
  %v826 = vld [vmem:[%s310 + $0x1] sm:$0xff]
  %v827 = vld [vmem:[%s310 + $0x11] sm:$0xff]
  %v828 = vld [vmem:[%s310 + $0x21] sm:$0xff]
  %v829 = vld [vmem:[%s310 + $0x31] sm:$0xff]
  %v830 = vld [vmem:[%s310 + $0x41] sm:$0xff]
  %v831 = vld [vmem:[%s310 + $0x51] sm:$0xff]
  %v832 = vld [vmem:[%s310 + $0x61] sm:$0xff]
  %v833 = vld [vmem:[%s310 + $0x71] sm:$0xff]
  %v834 = vld [vmem:[%s310 + $0x91] sm:$0xff]
  %v835 = vld [vmem:[%s310 + $0xa1] sm:$0xff]
  %v836 = vld [vmem:[%s310 + $0xb1] sm:$0xff]
  %v837 = vld [vmem:[%s310 + $0xc1] sm:$0xff]
  %v838 = vld [vmem:[%s310 + $0xd1] sm:$0xff]
  %v839 = vld [vmem:[%s310 + $0xe1] sm:$0xff]
  %v840 = vld [vmem:[%s310 + $0xf1] sm:$0xff]
  %v841 = vld [vmem:[%s310 + $0x101] sm:$0xff]
  %v842 = vld [vmem:[%s3 + $0x30] sm:$0xf]
  %v843 = vld [vmem:[%s3 + $0x34] sm:$0xf]
  %v844 = vld [vmem:[%s3 + $0x38] sm:$0xf]
  %v845 = vld [vmem:[%s3 + $0x3c] sm:$0xf]
  %v846 = vld [vmem:[#allocation3] sm:$0xff]
  %v847 = vld [vmem:[#allocation3 + $0x8] sm:$0xff]
  %v848 = vld [vmem:[#allocation3 + $0x10] sm:$0xff]
  %v849 = vld [vmem:[#allocation3 + $0x18] sm:$0xff]
  %v850 = vld [vmem:[#allocation3 + $0x20] sm:$0xff]
  %v851 = vld [vmem:[#allocation3 + $0x28] sm:$0xff]
  %v852 = vld [vmem:[#allocation3 + $0x30] sm:$0xff]
  %v853 = vld [vmem:[#allocation3 + $0x38] sm:$0xff]
  %v854 = vld [vmem:[#allocation3 + $0x40] sm:$0xff]
  %v855 = vld [vmem:[#allocation3 + $0x48] sm:$0xff]
  %v856 = vld [vmem:[#allocation3 + $0x50] sm:$0xff]
  %v857 = vld [vmem:[#allocation3 + $0x58] sm:$0xff]
  %v858 = vld [vmem:[#allocation3 + $0x60] sm:$0xff]
  %v859 = vld [vmem:[#allocation3 + $0x68] sm:$0xff]
  %v860 = vld [vmem:[#allocation3 + $0x70] sm:$0xff]
  %v861 = vld [vmem:[#allocation3 + $0x78] sm:$0xff]
  %v862 = vpack.c.bf16 %v827, %v826
  %v863 = vpack.c.bf16 %v829, %v828
  %v864 = vpack.c.bf16 %v831, %v830
  %v865 = vpack.c.bf16 %v833, %v832
  %v866 = vpack.c.bf16 %v835, %v834
  %v867 = vpack.c.bf16 %v837, %v836
  %v868 = vpack.c.bf16 %v839, %v838
  %v869 = vpack.c.bf16 %v841, %v840
  %v874 = vunpack.c.l.b16 %v842
  %v875 = vunpack.c.l.b16 %v843
  %v876 = vunpack.c.l.b16 %v844
  %v877 = vunpack.c.l.b16 %v845
  %v878 = vpack.c.b16 %v875, %v874
  %v879 = vpack.c.b16 %v877, %v876
  %v883 = vsel %vm55, %v862, 0
  %v886 = vsel %vm55, %v863, 0
  %v889 = vsel %vm55, %v864, 0
  %v892 = vsel %vm55, %v865, 0
  %v895 = vsel %vm55, %v866, 0
  %v898 = vsel %vm55, %v867, 0
  %v901 = vsel %vm55, %v868, 0
  %v904 = vsel %vm55, %v869, 0
  %906 = vmatpush.bf16.msra.mxu0 0
  %907 = vmatpush.bf16.msra.mxu0 0
  %908 = vmatpush.bf16.msra.mxu0 0
  %909 = vmatpush.bf16.msra.mxu0 0
  %910 = vmatpush.bf16.msra.mxu0 0
  %911 = vmatpush.bf16.msra.mxu0 0
  %912 = vmatpush.bf16.msra.mxu0 %v879
  %913 = vmatpush.bf16.msra.mxu0 %v878
  %914 = vmatmul.bf16.gmra.mxu0 %v883
  %v915 = vpop.f32.mrf.mxu0
  %v916 = vadd.f32 0.0, %v915
  %v917 = vpop.f32.mrf.mxu0
  %v918 = vadd.f32 0.0, %v917
  %919 = vmatmul.bf16.gmra.mxu0 %v886
  %v920 = vpop.f32.mrf.mxu0
  %v921 = vadd.f32 0.0, %v920
  %v922 = vpop.f32.mrf.mxu0
  %v923 = vadd.f32 0.0, %v922
  %924 = vmatmul.bf16.gmra.mxu0 %v889
  %v925 = vpop.f32.mrf.mxu0
  %v926 = vadd.f32 0.0, %v925
  %v927 = vpop.f32.mrf.mxu0
  %v928 = vadd.f32 0.0, %v927
  %929 = vmatmul.bf16.gmra.mxu0 %v892
  %v930 = vpop.f32.mrf.mxu0
  %v931 = vadd.f32 0.0, %v930
  %v932 = vpop.f32.mrf.mxu0
  %v933 = vadd.f32 0.0, %v932
  %934 = vmatmul.bf16.gmra.mxu0 %v895
  %v935 = vpop.f32.mrf.mxu0
  %v936 = vadd.f32 0.0, %v935
  %v937 = vpop.f32.mrf.mxu0
  %v938 = vadd.f32 0.0, %v937
  %939 = vmatmul.bf16.gmra.mxu0 %v898
  %v940 = vpop.f32.mrf.mxu0
  %v941 = vadd.f32 0.0, %v940
  %v942 = vpop.f32.mrf.mxu0
  %v943 = vadd.f32 0.0, %v942
  %944 = vmatmul.bf16.gmra.mxu0 %v901
  %v945 = vpop.f32.mrf.mxu0
  %v946 = vadd.f32 0.0, %v945
  %v947 = vpop.f32.mrf.mxu0
  %v948 = vadd.f32 0.0, %v947
  %949 = vmatmul.bf16.gmra.mxu0 %v904
  %v950 = vpop.f32.mrf.mxu0
  %v951 = vadd.f32 0.0, %v950
  %v952 = vpop.f32.mrf.mxu0
  %v953 = vadd.f32 0.0, %v952
  %954 = vdwg.mxu0
  %v955 = vadd.f32 %v846, %v916
  %v956 = vadd.f32 %v847, %v918
  %v957 = vadd.f32 %v848, %v921
  %v958 = vadd.f32 %v849, %v923
  %v959 = vadd.f32 %v850, %v926
  %v960 = vadd.f32 %v851, %v928
  %v961 = vadd.f32 %v852, %v931
  %v962 = vadd.f32 %v853, %v933
  %v963 = vadd.f32 %v854, %v936
  %v964 = vadd.f32 %v855, %v938
  %v965 = vadd.f32 %v856, %v941
  %v966 = vadd.f32 %v857, %v943
  %v967 = vadd.f32 %v858, %v946
  %v968 = vadd.f32 %v859, %v948
  %v969 = vadd.f32 %v860, %v951
  %v970 = vadd.f32 %v861, %v953
  %971 = vst.msk [vmem:[#allocation3] sm:$0xff] %vm205, %v955
  %972 = vst.msk [vmem:[#allocation3 + $0x8] sm:$0xff] %vm205, %v956
  %973 = vst.msk [vmem:[#allocation3 + $0x10] sm:$0xff] %vm205, %v957
  %974 = vst.msk [vmem:[#allocation3 + $0x18] sm:$0xff] %vm205, %v958
  %975 = vst.msk [vmem:[#allocation3 + $0x20] sm:$0xff] %vm205, %v959
  %976 = vst.msk [vmem:[#allocation3 + $0x28] sm:$0xff] %vm205, %v960
  %977 = vst.msk [vmem:[#allocation3 + $0x30] sm:$0xff] %vm205, %v961
  %978 = vst.msk [vmem:[#allocation3 + $0x38] sm:$0xff] %vm205, %v962
  %979 = vst.msk [vmem:[#allocation3 + $0x40] sm:$0xff] %vm205, %v963
  %980 = vst.msk [vmem:[#allocation3 + $0x48] sm:$0xff] %vm205, %v964
  %981 = vst.msk [vmem:[#allocation3 + $0x50] sm:$0xff] %vm205, %v965
  %982 = vst.msk [vmem:[#allocation3 + $0x58] sm:$0xff] %vm205, %v966
  %983 = vst.msk [vmem:[#allocation3 + $0x60] sm:$0xff] %vm205, %v967
  %984 = vst.msk [vmem:[#allocation3 + $0x68] sm:$0xff] %vm205, %v968
  %985 = vst.msk [vmem:[#allocation3 + $0x70] sm:$0xff] %vm205, %v969
  %986 = vst.msk [vmem:[#allocation3 + $0x78] sm:$0xff] %vm205, %v970
  %v987 = vld [vmem:[#allocation3] sm:$0xff]
  %v988 = vld [vmem:[#allocation3 + $0x8] sm:$0xff]
  %v989 = vld [vmem:[#allocation3 + $0x10] sm:$0xff]
  %v990 = vld [vmem:[#allocation3 + $0x18] sm:$0xff]
  %v991 = vld [vmem:[#allocation3 + $0x20] sm:$0xff]
  %v992 = vld [vmem:[#allocation3 + $0x28] sm:$0xff]
  %v993 = vld [vmem:[#allocation3 + $0x30] sm:$0xff]
  %v994 = vld [vmem:[#allocation3 + $0x38] sm:$0xff]
  %v995 = vld [vmem:[#allocation3 + $0x40] sm:$0xff]
  %v996 = vld [vmem:[#allocation3 + $0x48] sm:$0xff]
  %v997 = vld [vmem:[#allocation3 + $0x50] sm:$0xff]
  %v998 = vld [vmem:[#allocation3 + $0x58] sm:$0xff]
  %v999 = vld [vmem:[#allocation3 + $0x60] sm:$0xff]
  %v1000 = vld [vmem:[#allocation3 + $0x68] sm:$0xff]
  %v1001 = vld [vmem:[#allocation3 + $0x70] sm:$0xff]
  %v1002 = vld [vmem:[#allocation3 + $0x78] sm:$0xff]
  %v1003 = vld [vmem:[%s4] sm:$0x1]
  %v1005 = vperm.slane %v1003, 0
  %v1007 = vadd.f32 %v987, %v1005
  %v1008 = vadd.f32 %v988, %v1005
  %v1009 = vadd.f32 %v989, %v1005
  %v1010 = vadd.f32 %v990, %v1005
  %v1011 = vadd.f32 %v991, %v1005
  %v1012 = vadd.f32 %v992, %v1005
  %v1013 = vadd.f32 %v993, %v1005
  %v1014 = vadd.f32 %v994, %v1005
  %v1015 = vadd.f32 %v995, %v1005
  %v1016 = vadd.f32 %v996, %v1005
  %v1017 = vadd.f32 %v997, %v1005
  %v1018 = vadd.f32 %v998, %v1005
  %v1019 = vadd.f32 %v999, %v1005
  %v1020 = vadd.f32 %v1000, %v1005
  %v1021 = vadd.f32 %v1001, %v1005
  %v1022 = vadd.f32 %v1002, %v1005
  %v1023 = vsel %vm205, %v1007, 0.0
  %v1024 = vsel %vm205, %v1008, 0.0
  %v1025 = vadd.f32 %v1023, %v1024
  %v1026 = vsel %vm205, %v1009, 0.0
  %v1027 = vadd.f32 %v1025, %v1026
  %v1028 = vsel %vm205, %v1010, 0.0
  %v1029 = vadd.f32 %v1027, %v1028
  %v1030 = vsel %vm205, %v1011, 0.0
  %v1031 = vadd.f32 %v1029, %v1030
  %v1032 = vsel %vm205, %v1012, 0.0
  %v1033 = vadd.f32 %v1031, %v1032
  %v1034 = vsel %vm205, %v1013, 0.0
  %v1035 = vadd.f32 %v1033, %v1034
  %v1036 = vsel %vm205, %v1014, 0.0
  %v1037 = vadd.f32 %v1035, %v1036
  %v1038 = vsel %vm205, %v1015, 0.0
  %v1039 = vadd.f32 %v1037, %v1038
  %v1040 = vsel %vm205, %v1016, 0.0
  %v1041 = vadd.f32 %v1039, %v1040
  %v1042 = vsel %vm205, %v1017, 0.0
  %v1043 = vadd.f32 %v1041, %v1042
  %v1044 = vsel %vm205, %v1018, 0.0
  %v1045 = vadd.f32 %v1043, %v1044
  %v1046 = vsel %vm205, %v1019, 0.0
  %v1047 = vadd.f32 %v1045, %v1046
  %v1048 = vsel %vm205, %v1020, 0.0
  %v1049 = vadd.f32 %v1047, %v1048
  %v1050 = vsel %vm205, %v1021, 0.0
  %v1051 = vadd.f32 %v1049, %v1050
  %v1052 = vsel %vm205, %v1022, 0.0
  %v1053 = vadd.f32 %v1051, %v1052
  %v1054 = vrot.slane %v1053, 4
  %v1055 = vadd.f32 %v1053, %v1054
  %v1056 = vrot.slane %v1055, 2
  %v1057 = vadd.f32 %v1055, %v1056
  %v1058 = vrot.slane %v1057, 1
  %v1059 = vadd.f32 %v1057, %v1058
  %v1060 = vmul.f32 %v1007, %v1007
  %v1061 = vmul.f32 %v1008, %v1008
  %v1062 = vmul.f32 %v1009, %v1009
  %v1063 = vmul.f32 %v1010, %v1010
  %v1064 = vmul.f32 %v1011, %v1011
  %v1065 = vmul.f32 %v1012, %v1012
  %v1066 = vmul.f32 %v1013, %v1013
  %v1067 = vmul.f32 %v1014, %v1014
  %v1068 = vmul.f32 %v1015, %v1015
  %v1069 = vmul.f32 %v1016, %v1016
  %v1070 = vmul.f32 %v1017, %v1017
  %v1071 = vmul.f32 %v1018, %v1018
  %v1072 = vmul.f32 %v1019, %v1019
  %v1073 = vmul.f32 %v1020, %v1020
  %v1074 = vmul.f32 %v1021, %v1021
  %v1075 = vmul.f32 %v1022, %v1022
  %v1076 = vsel %vm205, %v1060, 0.0
  %v1077 = vsel %vm205, %v1061, 0.0
  %v1078 = vadd.f32 %v1076, %v1077
  %v1079 = vsel %vm205, %v1062, 0.0
  %v1080 = vadd.f32 %v1078, %v1079
  %v1081 = vsel %vm205, %v1063, 0.0
  %v1082 = vadd.f32 %v1080, %v1081
  %v1083 = vsel %vm205, %v1064, 0.0
  %v1084 = vadd.f32 %v1082, %v1083
  %v1085 = vsel %vm205, %v1065, 0.0
  %v1086 = vadd.f32 %v1084, %v1085
  %v1087 = vsel %vm205, %v1066, 0.0
  %v1088 = vadd.f32 %v1086, %v1087
  %v1089 = vsel %vm205, %v1067, 0.0
  %v1090 = vadd.f32 %v1088, %v1089
  %v1091 = vsel %vm205, %v1068, 0.0
  %v1092 = vadd.f32 %v1090, %v1091
  %v1093 = vsel %vm205, %v1069, 0.0
  %v1094 = vadd.f32 %v1092, %v1093
  %v1095 = vsel %vm205, %v1070, 0.0
  %v1096 = vadd.f32 %v1094, %v1095
  %v1097 = vsel %vm205, %v1071, 0.0
  %v1098 = vadd.f32 %v1096, %v1097
  %v1099 = vsel %vm205, %v1072, 0.0
  %v1100 = vadd.f32 %v1098, %v1099
  %v1101 = vsel %vm205, %v1073, 0.0
  %v1102 = vadd.f32 %v1100, %v1101
  %v1103 = vsel %vm205, %v1074, 0.0
  %v1104 = vadd.f32 %v1102, %v1103
  %v1105 = vsel %vm205, %v1075, 0.0
  %v1106 = vadd.f32 %v1104, %v1105
  %v1107 = vrot.slane %v1106, 4
  %v1108 = vadd.f32 %v1106, %v1107
  %v1109 = vrot.slane %v1108, 2
  %v1110 = vadd.f32 %v1108, %v1109
  %v1111 = vrot.slane %v1110, 1
  %v1112 = vadd.f32 %v1110, %v1111
  %v1113 = vmul.f32 %v1059, 0.0078125
  %v1114 = vmul.f32 %v1112, 0.0078125
  %v1115 = vmul.f32 %v1113, %v1113
  %v1116 = vsub.f32 %v1114, %v1115
  %v1117 = vld [vmem:[%s5] sm:$0x1]
  %v1118 = vadd.f32 %v1116, 1e-05
  %v1119 = vrsqrt.pop %v1118
  %v1120 = vmul.f32 %v1119, %v1118
  %v1121 = vmul.f32 %v1120, %v1119
  %v1122 = vmul.f32 0.5, %v1121
  %v1123 = vsub.f32 1.5, %v1122
  %v1124 = vmul.f32 %v1119, %v1123
  %vm1125 = vweird.f32 %v1118
  %vm1126 = vweird.f32 %v1119
  %vm1127 = vmor %vm1125, %vm1126
  %v1128 = vsel %vm1127, %v1119, %v1124
  %v1129 = vmul.f32 %v1117, %v1128
  %v1130 = vld [vmem:[%s6] sm:$0x1]
  %v1131 = vmul.f32 %v1113, %v1129
  %v1132 = vsub.f32 %v1130, %v1131
  %v1134 = vperm.slane %v1129, 0
  %v1136 = vmul.f32 %v1007, %v1134
  %v1137 = vmul.f32 %v1008, %v1134
  %v1138 = vmul.f32 %v1009, %v1134
  %v1139 = vmul.f32 %v1010, %v1134
  %v1140 = vmul.f32 %v1011, %v1134
  %v1141 = vmul.f32 %v1012, %v1134
  %v1142 = vmul.f32 %v1013, %v1134
  %v1143 = vmul.f32 %v1014, %v1134
  %v1144 = vmul.f32 %v1015, %v1134
  %v1145 = vmul.f32 %v1016, %v1134
  %v1146 = vmul.f32 %v1017, %v1134
  %v1147 = vmul.f32 %v1018, %v1134
  %v1148 = vmul.f32 %v1019, %v1134
  %v1149 = vmul.f32 %v1020, %v1134
  %v1150 = vmul.f32 %v1021, %v1134
  %v1151 = vmul.f32 %v1022, %v1134
  %v1153 = vperm.slane %v1132, 0
  %v1155 = vadd.f32 %v1136, %v1153
  %v1156 = vadd.f32 %v1137, %v1153
  %v1157 = vadd.f32 %v1138, %v1153
  %v1158 = vadd.f32 %v1139, %v1153
  %v1159 = vadd.f32 %v1140, %v1153
  %v1160 = vadd.f32 %v1141, %v1153
  %v1161 = vadd.f32 %v1142, %v1153
  %v1162 = vadd.f32 %v1143, %v1153
  %v1163 = vadd.f32 %v1144, %v1153
  %v1164 = vadd.f32 %v1145, %v1153
  %v1165 = vadd.f32 %v1146, %v1153
  %v1166 = vadd.f32 %v1147, %v1153
  %v1167 = vadd.f32 %v1148, %v1153
  %v1168 = vadd.f32 %v1149, %v1153
  %v1169 = vadd.f32 %v1150, %v1153
  %v1170 = vadd.f32 %v1151, %v1153
  %v1171 = vmax.f32 %v1155, 0.0
  %v1172 = vmax.f32 %v1156, 0.0
  %v1173 = vmax.f32 %v1157, 0.0
  %v1174 = vmax.f32 %v1158, 0.0
  %v1175 = vmax.f32 %v1159, 0.0
  %v1176 = vmax.f32 %v1160, 0.0
  %v1177 = vmax.f32 %v1161, 0.0
  %v1178 = vmax.f32 %v1162, 0.0
  %v1179 = vmax.f32 %v1163, 0.0
  %v1180 = vmax.f32 %v1164, 0.0
  %v1181 = vmax.f32 %v1165, 0.0
  %v1182 = vmax.f32 %v1166, 0.0
  %v1183 = vmax.f32 %v1167, 0.0
  %v1184 = vmax.f32 %v1168, 0.0
  %v1185 = vmax.f32 %v1169, 0.0
  %v1186 = vmax.f32 %v1170, 0.0
  %1187 = vst.msk [vmem:[#allocation4] sm:$0xff] %vm205, 0.0
  %vm1188 = vcmask 123904
  %1189 = vst.msk [vmem:[#allocation4 + $0x8] sm:$0x3] %vm1188, 0.0
  %1190 = vst.msk [vmem:[#allocation4 + $0x10] sm:$0xff] %vm205, 0.0
  %1191 = vst.msk [vmem:[#allocation4 + $0x18] sm:$0x3] %vm1188, 0.0
  %1192 = vst.msk [vmem:[#allocation4 + $0x20] sm:$0xff] %vm205, 0.0
  %1193 = vst.msk [vmem:[#allocation4 + $0x28] sm:$0x3] %vm1188, 0.0
  %1194 = vst.msk [vmem:[#allocation4 + $0x30] sm:$0xff] %vm205, 0.0
  %1195 = vst.msk [vmem:[#allocation4 + $0x38] sm:$0x3] %vm1188, 0.0
  %1196 = vst.msk [vmem:[#allocation4 + $0x40] sm:$0xff] %vm205, 0.0
  %1197 = vst.msk [vmem:[#allocation4 + $0x48] sm:$0x3] %vm1188, 0.0
  %1198 = vst.msk [vmem:[#allocation4 + $0x50] sm:$0xff] %vm205, 0.0
  %1199 = vst.msk [vmem:[#allocation4 + $0x58] sm:$0x3] %vm1188, 0.0
  %1200 = vst.msk [vmem:[#allocation4 + $0x60] sm:$0xff] %vm205, 0.0
  %1201 = vst.msk [vmem:[#allocation4 + $0x68] sm:$0x3] %vm1188, 0.0
  %1202 = vst.msk [vmem:[#allocation4 + $0x70] sm:$0xff] %vm205, 0.0
  %1203 = vst.msk [vmem:[#allocation4 + $0x78] sm:$0x3] %vm1188, 0.0
  %1204 = vst.msk [vmem:[#allocation4 + $0x80] sm:$0xff] %vm205, 0.0
  %1205 = vst.msk [vmem:[#allocation4 + $0x88] sm:$0x3] %vm1188, 0.0
  %1206 = vst.msk [vmem:[#allocation4 + $0x90] sm:$0xff] %vm205, 0.0
  %1207 = vst.msk [vmem:[#allocation4 + $0x98] sm:$0x3] %vm1188, 0.0
  %1208 = vst.msk [vmem:[#allocation4 + $0xa0] sm:$0xff] %vm205, 0.0
  %1209 = vst.msk [vmem:[#allocation4 + $0xa8] sm:$0x3] %vm1188, 0.0
  %1210 = vst.msk [vmem:[#allocation4 + $0xb0] sm:$0xff] %vm205, 0.0
  %1211 = vst.msk [vmem:[#allocation4 + $0xb8] sm:$0x3] %vm1188, 0.0
  %1212 = vst.msk [vmem:[#allocation4 + $0xc0] sm:$0xff] %vm205, 0.0
  %1213 = vst.msk [vmem:[#allocation4 + $0xc8] sm:$0x3] %vm1188, 0.0
  %1214 = vst.msk [vmem:[#allocation4 + $0xd0] sm:$0xff] %vm205, 0.0
  %1215 = vst.msk [vmem:[#allocation4 + $0xd8] sm:$0x3] %vm1188, 0.0
  %1216 = vst.msk [vmem:[#allocation4 + $0xe0] sm:$0xff] %vm205, 0.0
  %1217 = vst.msk [vmem:[#allocation4 + $0xe8] sm:$0x3] %vm1188, 0.0
  %1218 = vst.msk [vmem:[#allocation4 + $0xf0] sm:$0xff] %vm205, 0.0
  %1219 = vst.msk [vmem:[#allocation4 + $0xf8] sm:$0x3] %vm1188, 0.0
  %1220 = vst.msk [vmem:[#allocation4 + $0x100] sm:$0xff] %vm205, 0.0
  %1221 = vst.msk [vmem:[#allocation4 + $0x108] sm:$0x3] %vm1188, 0.0
  %1222 = vst.msk [vmem:[#allocation4 + $0x110] sm:$0xff] %vm205, 0.0
  %1223 = vst.msk [vmem:[#allocation4 + $0x118] sm:$0x3] %vm1188, 0.0
  %1224 = vst.msk [vmem:[#allocation4 + $0x120] sm:$0xff] %vm205, 0.0
  %1225 = vst.msk [vmem:[#allocation4 + $0x128] sm:$0x3] %vm1188, 0.0
  %1226 = vst.msk [vmem:[#allocation4 + $0x130] sm:$0xff] %vm205, 0.0
  %1227 = vst.msk [vmem:[#allocation4 + $0x138] sm:$0x3] %vm1188, 0.0
  %s1228 = scalar_lea.vmem [#allocation4], 16
  %1229 = vst.msk [vmem:[%s1228 + $0x1] sm:$0xff] %vm205, %v1171
  %1230 = vst.msk [vmem:[%s1228 + $0x11] sm:$0xff] %vm205, %v1172
  %1231 = vst.msk [vmem:[%s1228 + $0x21] sm:$0xff] %vm205, %v1173
  %1232 = vst.msk [vmem:[%s1228 + $0x31] sm:$0xff] %vm205, %v1174
  %1233 = vst.msk [vmem:[%s1228 + $0x41] sm:$0xff] %vm205, %v1175
  %1234 = vst.msk [vmem:[%s1228 + $0x51] sm:$0xff] %vm205, %v1176
  %1235 = vst.msk [vmem:[%s1228 + $0x61] sm:$0xff] %vm205, %v1177
  %1236 = vst.msk [vmem:[%s1228 + $0x71] sm:$0xff] %vm205, %v1178
  %1237 = vst.msk [vmem:[%s1228 + $0xa1] sm:$0xff] %vm205, %v1179
  %1238 = vst.msk [vmem:[%s1228 + $0xb1] sm:$0xff] %vm205, %v1180
  %1239 = vst.msk [vmem:[%s1228 + $0xc1] sm:$0xff] %vm205, %v1181
  %1240 = vst.msk [vmem:[%s1228 + $0xd1] sm:$0xff] %vm205, %v1182
  %1241 = vst.msk [vmem:[%s1228 + $0xe1] sm:$0xff] %vm205, %v1183
  %1242 = vst.msk [vmem:[%s1228 + $0xf1] sm:$0xff] %vm205, %v1184
  %1243 = vst.msk [vmem:[%s1228 + $0x101] sm:$0xff] %vm205, %v1185
  %1244 = vst.msk [vmem:[%s1228 + $0x111] sm:$0xff] %vm205, %v1186
  %1245 = vst.msk [vmem:[#allocation5] sm:$0xff] %vm205, 0.0
  %1246 = vst.msk [vmem:[#allocation5 + $0x8] sm:$0xff] %vm205, 0.0
  %1247 = vst.msk [vmem:[#allocation5 + $0x10] sm:$0xff] %vm205, 0.0
  %1248 = vst.msk [vmem:[#allocation5 + $0x18] sm:$0xff] %vm205, 0.0
  %1249 = vst.msk [vmem:[#allocation5 + $0x20] sm:$0xff] %vm205, 0.0
  %1250 = vst.msk [vmem:[#allocation5 + $0x28] sm:$0xff] %vm205, 0.0
  %1251 = vst.msk [vmem:[#allocation5 + $0x30] sm:$0xff] %vm205, 0.0
  %1252 = vst.msk [vmem:[#allocation5 + $0x38] sm:$0xff] %vm205, 0.0
  %1253 = vst.msk [vmem:[#allocation5 + $0x40] sm:$0xff] %vm205, 0.0
  %1254 = vst.msk [vmem:[#allocation5 + $0x48] sm:$0xff] %vm205, 0.0
  %1255 = vst.msk [vmem:[#allocation5 + $0x50] sm:$0xff] %vm205, 0.0
  %1256 = vst.msk [vmem:[#allocation5 + $0x58] sm:$0xff] %vm205, 0.0
  %1257 = vst.msk [vmem:[#allocation5 + $0x60] sm:$0xff] %vm205, 0.0
  %1258 = vst.msk [vmem:[#allocation5 + $0x68] sm:$0xff] %vm205, 0.0
  %1259 = vst.msk [vmem:[#allocation5 + $0x70] sm:$0xff] %vm205, 0.0
  %1260 = vst.msk [vmem:[#allocation5 + $0x78] sm:$0xff] %vm205, 0.0
  %v1261 = vld [vmem:[#allocation4] sm:$0xff]
  %v1262 = vld [vmem:[#allocation4 + $0x10] sm:$0xff]
  %v1263 = vld [vmem:[#allocation4 + $0x20] sm:$0xff]
  %v1264 = vld [vmem:[#allocation4 + $0x30] sm:$0xff]
  %v1265 = vld [vmem:[#allocation4 + $0x40] sm:$0xff]
  %v1266 = vld [vmem:[#allocation4 + $0x50] sm:$0xff]
  %v1267 = vld [vmem:[#allocation4 + $0x60] sm:$0xff]
  %v1268 = vld [vmem:[#allocation4 + $0x70] sm:$0xff]
  %v1269 = vld [vmem:[#allocation4 + $0xa0] sm:$0xff]
  %v1270 = vld [vmem:[#allocation4 + $0xb0] sm:$0xff]
  %v1271 = vld [vmem:[#allocation4 + $0xc0] sm:$0xff]
  %v1272 = vld [vmem:[#allocation4 + $0xd0] sm:$0xff]
  %v1273 = vld [vmem:[#allocation4 + $0xe0] sm:$0xff]
  %v1274 = vld [vmem:[#allocation4 + $0xf0] sm:$0xff]
  %v1275 = vld [vmem:[#allocation4 + $0x100] sm:$0xff]
  %v1276 = vld [vmem:[#allocation4 + $0x110] sm:$0xff]
  %v1277 = vld [vmem:[%s7] sm:$0xf]
  %v1278 = vld [vmem:[%s7 + $0x4] sm:$0xf]
  %v1279 = vld [vmem:[#allocation5] sm:$0xff]
  %v1280 = vld [vmem:[#allocation5 + $0x8] sm:$0xff]
  %v1281 = vld [vmem:[#allocation5 + $0x10] sm:$0xff]
  %v1282 = vld [vmem:[#allocation5 + $0x18] sm:$0xff]
  %v1283 = vld [vmem:[#allocation5 + $0x20] sm:$0xff]
  %v1284 = vld [vmem:[#allocation5 + $0x28] sm:$0xff]
  %v1285 = vld [vmem:[#allocation5 + $0x30] sm:$0xff]
  %v1286 = vld [vmem:[#allocation5 + $0x38] sm:$0xff]
  %v1287 = vld [vmem:[#allocation5 + $0x40] sm:$0xff]
  %v1288 = vld [vmem:[#allocation5 + $0x48] sm:$0xff]
  %v1289 = vld [vmem:[#allocation5 + $0x50] sm:$0xff]
  %v1290 = vld [vmem:[#allocation5 + $0x58] sm:$0xff]
  %v1291 = vld [vmem:[#allocation5 + $0x60] sm:$0xff]
  %v1292 = vld [vmem:[#allocation5 + $0x68] sm:$0xff]
  %v1293 = vld [vmem:[#allocation5 + $0x70] sm:$0xff]
  %v1294 = vld [vmem:[#allocation5 + $0x78] sm:$0xff]
  %v1295 = vpack.c.bf16 %v1262, %v1261
  %v1296 = vpack.c.bf16 %v1264, %v1263
  %v1297 = vpack.c.bf16 %v1266, %v1265
  %v1298 = vpack.c.bf16 %v1268, %v1267
  %v1299 = vpack.c.bf16 %v1270, %v1269
  %v1300 = vpack.c.bf16 %v1272, %v1271
  %v1301 = vpack.c.bf16 %v1274, %v1273
  %v1302 = vpack.c.bf16 %v1276, %v1275
  %v1305 = vunpack.c.l.b16 %v1277
  %v1306 = vunpack.c.l.b16 %v1278
  %v1307 = vpack.c.b16 %v1306, %v1305
  %v1310 = vsel %vm205, %v1295, 0
  %v1313 = vsel %vm205, %v1296, 0
  %v1316 = vsel %vm205, %v1297, 0
  %v1319 = vsel %vm205, %v1298, 0
  %v1322 = vsel %vm205, %v1299, 0
  %v1325 = vsel %vm205, %v1300, 0
  %v1328 = vsel %vm205, %v1301, 0
  %v1331 = vsel %vm205, %v1302, 0
  %1333 = vmatpush.bf16.msra.mxu0 0
  %1334 = vmatpush.bf16.msra.mxu0 0
  %1335 = vmatpush.bf16.msra.mxu0 0
  %1336 = vmatpush.bf16.msra.mxu0 0
  %1337 = vmatpush.bf16.msra.mxu0 0
  %1338 = vmatpush.bf16.msra.mxu0 0
  %1339 = vmatpush.bf16.msra.mxu0 0
  %1340 = vmatpush.bf16.msra.mxu0 %v1307
  %1341 = vmatmul.bf16.gmra.mxu0 %v1310
  %v1342 = vpop.f32.mrf.mxu0
  %v1343 = vadd.f32 0.0, %v1342
  %v1344 = vpop.f32.mrf.mxu0
  %v1345 = vadd.f32 0.0, %v1344
  %1346 = vmatmul.bf16.gmra.mxu0 %v1313
  %v1347 = vpop.f32.mrf.mxu0
  %v1348 = vadd.f32 0.0, %v1347
  %v1349 = vpop.f32.mrf.mxu0
  %v1350 = vadd.f32 0.0, %v1349
  %1351 = vmatmul.bf16.gmra.mxu0 %v1316
  %v1352 = vpop.f32.mrf.mxu0
  %v1353 = vadd.f32 0.0, %v1352
  %v1354 = vpop.f32.mrf.mxu0
  %v1355 = vadd.f32 0.0, %v1354
  %1356 = vmatmul.bf16.gmra.mxu0 %v1319
  %v1357 = vpop.f32.mrf.mxu0
  %v1358 = vadd.f32 0.0, %v1357
  %v1359 = vpop.f32.mrf.mxu0
  %v1360 = vadd.f32 0.0, %v1359
  %1361 = vmatmul.bf16.gmra.mxu0 %v1322
  %v1362 = vpop.f32.mrf.mxu0
  %v1363 = vadd.f32 0.0, %v1362
  %v1364 = vpop.f32.mrf.mxu0
  %v1365 = vadd.f32 0.0, %v1364
  %1366 = vmatmul.bf16.gmra.mxu0 %v1325
  %v1367 = vpop.f32.mrf.mxu0
  %v1368 = vadd.f32 0.0, %v1367
  %v1369 = vpop.f32.mrf.mxu0
  %v1370 = vadd.f32 0.0, %v1369
  %1371 = vmatmul.bf16.gmra.mxu0 %v1328
  %v1372 = vpop.f32.mrf.mxu0
  %v1373 = vadd.f32 0.0, %v1372
  %v1374 = vpop.f32.mrf.mxu0
  %v1375 = vadd.f32 0.0, %v1374
  %1376 = vmatmul.bf16.gmra.mxu0 %v1331
  %v1377 = vpop.f32.mrf.mxu0
  %v1378 = vadd.f32 0.0, %v1377
  %v1379 = vpop.f32.mrf.mxu0
  %v1380 = vadd.f32 0.0, %v1379
  %1381 = vdwg.mxu0
  %v1382 = vadd.f32 %v1279, %v1343
  %v1383 = vadd.f32 %v1280, %v1345
  %v1384 = vadd.f32 %v1281, %v1348
  %v1385 = vadd.f32 %v1282, %v1350
  %v1386 = vadd.f32 %v1283, %v1353
  %v1387 = vadd.f32 %v1284, %v1355
  %v1388 = vadd.f32 %v1285, %v1358
  %v1389 = vadd.f32 %v1286, %v1360
  %v1390 = vadd.f32 %v1287, %v1363
  %v1391 = vadd.f32 %v1288, %v1365
  %v1392 = vadd.f32 %v1289, %v1368
  %v1393 = vadd.f32 %v1290, %v1370
  %v1394 = vadd.f32 %v1291, %v1373
  %v1395 = vadd.f32 %v1292, %v1375
  %v1396 = vadd.f32 %v1293, %v1378
  %v1397 = vadd.f32 %v1294, %v1380
  %1398 = vst.msk [vmem:[#allocation5] sm:$0xff] %vm205, %v1382
  %1399 = vst.msk [vmem:[#allocation5 + $0x8] sm:$0xff] %vm205, %v1383
  %1400 = vst.msk [vmem:[#allocation5 + $0x10] sm:$0xff] %vm205, %v1384
  %1401 = vst.msk [vmem:[#allocation5 + $0x18] sm:$0xff] %vm205, %v1385
  %1402 = vst.msk [vmem:[#allocation5 + $0x20] sm:$0xff] %vm205, %v1386
  %1403 = vst.msk [vmem:[#allocation5 + $0x28] sm:$0xff] %vm205, %v1387
  %1404 = vst.msk [vmem:[#allocation5 + $0x30] sm:$0xff] %vm205, %v1388
  %1405 = vst.msk [vmem:[#allocation5 + $0x38] sm:$0xff] %vm205, %v1389
  %1406 = vst.msk [vmem:[#allocation5 + $0x40] sm:$0xff] %vm205, %v1390
  %1407 = vst.msk [vmem:[#allocation5 + $0x48] sm:$0xff] %vm205, %v1391
  %1408 = vst.msk [vmem:[#allocation5 + $0x50] sm:$0xff] %vm205, %v1392
  %1409 = vst.msk [vmem:[#allocation5 + $0x58] sm:$0xff] %vm205, %v1393
  %1410 = vst.msk [vmem:[#allocation5 + $0x60] sm:$0xff] %vm205, %v1394
  %1411 = vst.msk [vmem:[#allocation5 + $0x68] sm:$0xff] %vm205, %v1395
  %1412 = vst.msk [vmem:[#allocation5 + $0x70] sm:$0xff] %vm205, %v1396
  %1413 = vst.msk [vmem:[#allocation5 + $0x78] sm:$0xff] %vm205, %v1397
  %v1414 = vld [vmem:[#allocation4 + $0x1] sm:$0xff]
  %v1415 = vld [vmem:[#allocation4 + $0x11] sm:$0xff]
  %v1416 = vld [vmem:[#allocation4 + $0x21] sm:$0xff]
  %v1417 = vld [vmem:[#allocation4 + $0x31] sm:$0xff]
  %v1418 = vld [vmem:[#allocation4 + $0x41] sm:$0xff]
  %v1419 = vld [vmem:[#allocation4 + $0x51] sm:$0xff]
  %v1420 = vld [vmem:[#allocation4 + $0x61] sm:$0xff]
  %v1421 = vld [vmem:[#allocation4 + $0x71] sm:$0xff]
  %v1422 = vld [vmem:[#allocation4 + $0xa1] sm:$0xff]
  %v1423 = vld [vmem:[#allocation4 + $0xb1] sm:$0xff]
  %v1424 = vld [vmem:[#allocation4 + $0xc1] sm:$0xff]
  %v1425 = vld [vmem:[#allocation4 + $0xd1] sm:$0xff]
  %v1426 = vld [vmem:[#allocation4 + $0xe1] sm:$0xff]
  %v1427 = vld [vmem:[#allocation4 + $0xf1] sm:$0xff]
  %v1428 = vld [vmem:[#allocation4 + $0x101] sm:$0xff]
  %v1429 = vld [vmem:[#allocation4 + $0x111] sm:$0xff]
  %v1430 = vld [vmem:[%s7 + $0x8] sm:$0xf]
  %v1431 = vld [vmem:[%s7 + $0xc] sm:$0xf]
  %v1432 = vld [vmem:[#allocation5] sm:$0xff]
  %v1433 = vld [vmem:[#allocation5 + $0x8] sm:$0xff]
  %v1434 = vld [vmem:[#allocation5 + $0x10] sm:$0xff]
  %v1435 = vld [vmem:[#allocation5 + $0x18] sm:$0xff]
  %v1436 = vld [vmem:[#allocation5 + $0x20] sm:$0xff]
  %v1437 = vld [vmem:[#allocation5 + $0x28] sm:$0xff]
  %v1438 = vld [vmem:[#allocation5 + $0x30] sm:$0xff]
  %v1439 = vld [vmem:[#allocation5 + $0x38] sm:$0xff]
  %v1440 = vld [vmem:[#allocation5 + $0x40] sm:$0xff]
  %v1441 = vld [vmem:[#allocation5 + $0x48] sm:$0xff]
  %v1442 = vld [vmem:[#allocation5 + $0x50] sm:$0xff]
  %v1443 = vld [vmem:[#allocation5 + $0x58] sm:$0xff]
  %v1444 = vld [vmem:[#allocation5 + $0x60] sm:$0xff]
  %v1445 = vld [vmem:[#allocation5 + $0x68] sm:$0xff]
  %v1446 = vld [vmem:[#allocation5 + $0x70] sm:$0xff]
  %v1447 = vld [vmem:[#allocation5 + $0x78] sm:$0xff]
  %v1448 = vpack.c.bf16 %v1415, %v1414
  %v1449 = vpack.c.bf16 %v1417, %v1416
  %v1450 = vpack.c.bf16 %v1419, %v1418
  %v1451 = vpack.c.bf16 %v1421, %v1420
  %v1452 = vpack.c.bf16 %v1423, %v1422
  %v1453 = vpack.c.bf16 %v1425, %v1424
  %v1454 = vpack.c.bf16 %v1427, %v1426
  %v1455 = vpack.c.bf16 %v1429, %v1428
  %v1458 = vunpack.c.l.b16 %v1430
  %v1459 = vunpack.c.l.b16 %v1431
  %v1460 = vpack.c.b16 %v1459, %v1458
  %v1463 = vsel %vm205, %v1448, 0
  %v1466 = vsel %vm205, %v1449, 0
  %v1469 = vsel %vm205, %v1450, 0
  %v1472 = vsel %vm205, %v1451, 0
  %v1475 = vsel %vm205, %v1452, 0
  %v1478 = vsel %vm205, %v1453, 0
  %v1481 = vsel %vm205, %v1454, 0
  %v1484 = vsel %vm205, %v1455, 0
  %1486 = vmatpush.bf16.msra.mxu0 0
  %1487 = vmatpush.bf16.msra.mxu0 0
  %1488 = vmatpush.bf16.msra.mxu0 0
  %1489 = vmatpush.bf16.msra.mxu0 0
  %1490 = vmatpush.bf16.msra.mxu0 0
  %1491 = vmatpush.bf16.msra.mxu0 0
  %1492 = vmatpush.bf16.msra.mxu0 0
  %1493 = vmatpush.bf16.msra.mxu0 %v1460
  %1494 = vmatmul.bf16.gmra.mxu0 %v1463
  %v1495 = vpop.f32.mrf.mxu0
  %v1496 = vadd.f32 0.0, %v1495
  %v1497 = vpop.f32.mrf.mxu0
  %v1498 = vadd.f32 0.0, %v1497
  %1499 = vmatmul.bf16.gmra.mxu0 %v1466
  %v1500 = vpop.f32.mrf.mxu0
  %v1501 = vadd.f32 0.0, %v1500
  %v1502 = vpop.f32.mrf.mxu0
  %v1503 = vadd.f32 0.0, %v1502
  %1504 = vmatmul.bf16.gmra.mxu0 %v1469
  %v1505 = vpop.f32.mrf.mxu0
  %v1506 = vadd.f32 0.0, %v1505
  %v1507 = vpop.f32.mrf.mxu0
  %v1508 = vadd.f32 0.0, %v1507
  %1509 = vmatmul.bf16.gmra.mxu0 %v1472
  %v1510 = vpop.f32.mrf.mxu0
  %v1511 = vadd.f32 0.0, %v1510
  %v1512 = vpop.f32.mrf.mxu0
  %v1513 = vadd.f32 0.0, %v1512
  %1514 = vmatmul.bf16.gmra.mxu0 %v1475
  %v1515 = vpop.f32.mrf.mxu0
  %v1516 = vadd.f32 0.0, %v1515
  %v1517 = vpop.f32.mrf.mxu0
  %v1518 = vadd.f32 0.0, %v1517
  %1519 = vmatmul.bf16.gmra.mxu0 %v1478
  %v1520 = vpop.f32.mrf.mxu0
  %v1521 = vadd.f32 0.0, %v1520
  %v1522 = vpop.f32.mrf.mxu0
  %v1523 = vadd.f32 0.0, %v1522
  %1524 = vmatmul.bf16.gmra.mxu0 %v1481
  %v1525 = vpop.f32.mrf.mxu0
  %v1526 = vadd.f32 0.0, %v1525
  %v1527 = vpop.f32.mrf.mxu0
  %v1528 = vadd.f32 0.0, %v1527
  %1529 = vmatmul.bf16.gmra.mxu0 %v1484
  %v1530 = vpop.f32.mrf.mxu0
  %v1531 = vadd.f32 0.0, %v1530
  %v1532 = vpop.f32.mrf.mxu0
  %v1533 = vadd.f32 0.0, %v1532
  %1534 = vdwg.mxu0
  %v1535 = vadd.f32 %v1432, %v1496
  %v1536 = vadd.f32 %v1433, %v1498
  %v1537 = vadd.f32 %v1434, %v1501
  %v1538 = vadd.f32 %v1435, %v1503
  %v1539 = vadd.f32 %v1436, %v1506
  %v1540 = vadd.f32 %v1437, %v1508
  %v1541 = vadd.f32 %v1438, %v1511
  %v1542 = vadd.f32 %v1439, %v1513
  %v1543 = vadd.f32 %v1440, %v1516
  %v1544 = vadd.f32 %v1441, %v1518
  %v1545 = vadd.f32 %v1442, %v1521
  %v1546 = vadd.f32 %v1443, %v1523
  %v1547 = vadd.f32 %v1444, %v1526
  %v1548 = vadd.f32 %v1445, %v1528
  %v1549 = vadd.f32 %v1446, %v1531
  %v1550 = vadd.f32 %v1447, %v1533
  %1551 = vst.msk [vmem:[#allocation5] sm:$0xff] %vm205, %v1535
  %1552 = vst.msk [vmem:[#allocation5 + $0x8] sm:$0xff] %vm205, %v1536
  %1553 = vst.msk [vmem:[#allocation5 + $0x10] sm:$0xff] %vm205, %v1537
  %1554 = vst.msk [vmem:[#allocation5 + $0x18] sm:$0xff] %vm205, %v1538
  %1555 = vst.msk [vmem:[#allocation5 + $0x20] sm:$0xff] %vm205, %v1539
  %1556 = vst.msk [vmem:[#allocation5 + $0x28] sm:$0xff] %vm205, %v1540
  %1557 = vst.msk [vmem:[#allocation5 + $0x30] sm:$0xff] %vm205, %v1541
  %1558 = vst.msk [vmem:[#allocation5 + $0x38] sm:$0xff] %vm205, %v1542
  %1559 = vst.msk [vmem:[#allocation5 + $0x40] sm:$0xff] %vm205, %v1543
  %1560 = vst.msk [vmem:[#allocation5 + $0x48] sm:$0xff] %vm205, %v1544
  %1561 = vst.msk [vmem:[#allocation5 + $0x50] sm:$0xff] %vm205, %v1545
  %1562 = vst.msk [vmem:[#allocation5 + $0x58] sm:$0xff] %vm205, %v1546
  %1563 = vst.msk [vmem:[#allocation5 + $0x60] sm:$0xff] %vm205, %v1547
  %1564 = vst.msk [vmem:[#allocation5 + $0x68] sm:$0xff] %vm205, %v1548
  %1565 = vst.msk [vmem:[#allocation5 + $0x70] sm:$0xff] %vm205, %v1549
  %1566 = vst.msk [vmem:[#allocation5 + $0x78] sm:$0xff] %vm205, %v1550
  %v1567 = vld [vmem:[#allocation4 + $0x2] sm:$0xff]
  %v1568 = vld [vmem:[#allocation4 + $0x12] sm:$0xff]
  %v1569 = vld [vmem:[#allocation4 + $0x22] sm:$0xff]
  %v1570 = vld [vmem:[#allocation4 + $0x32] sm:$0xff]
  %v1571 = vld [vmem:[#allocation4 + $0x42] sm:$0xff]
  %v1572 = vld [vmem:[#allocation4 + $0x52] sm:$0xff]
  %v1573 = vld [vmem:[#allocation4 + $0x62] sm:$0xff]
  %v1574 = vld [vmem:[#allocation4 + $0x72] sm:$0xff]
  %v1575 = vld [vmem:[#allocation4 + $0xa2] sm:$0xff]
  %v1576 = vld [vmem:[#allocation4 + $0xb2] sm:$0xff]
  %v1577 = vld [vmem:[#allocation4 + $0xc2] sm:$0xff]
  %v1578 = vld [vmem:[#allocation4 + $0xd2] sm:$0xff]
  %v1579 = vld [vmem:[#allocation4 + $0xe2] sm:$0xff]
  %v1580 = vld [vmem:[#allocation4 + $0xf2] sm:$0xff]
  %v1581 = vld [vmem:[#allocation4 + $0x102] sm:$0xff]
  %v1582 = vld [vmem:[#allocation4 + $0x112] sm:$0xff]
  %v1583 = vld [vmem:[%s7 + $0x10] sm:$0xf]
  %v1584 = vld [vmem:[%s7 + $0x14] sm:$0xf]
  %v1585 = vld [vmem:[#allocation5] sm:$0xff]
  %v1586 = vld [vmem:[#allocation5 + $0x8] sm:$0xff]
  %v1587 = vld [vmem:[#allocation5 + $0x10] sm:$0xff]
  %v1588 = vld [vmem:[#allocation5 + $0x18] sm:$0xff]
  %v1589 = vld [vmem:[#allocation5 + $0x20] sm:$0xff]
  %v1590 = vld [vmem:[#allocation5 + $0x28] sm:$0xff]
  %v1591 = vld [vmem:[#allocation5 + $0x30] sm:$0xff]
  %v1592 = vld [vmem:[#allocation5 + $0x38] sm:$0xff]
  %v1593 = vld [vmem:[#allocation5 + $0x40] sm:$0xff]
  %v1594 = vld [vmem:[#allocation5 + $0x48] sm:$0xff]
  %v1595 = vld [vmem:[#allocation5 + $0x50] sm:$0xff]
  %v1596 = vld [vmem:[#allocation5 + $0x58] sm:$0xff]
  %v1597 = vld [vmem:[#allocation5 + $0x60] sm:$0xff]
  %v1598 = vld [vmem:[#allocation5 + $0x68] sm:$0xff]
  %v1599 = vld [vmem:[#allocation5 + $0x70] sm:$0xff]
  %v1600 = vld [vmem:[#allocation5 + $0x78] sm:$0xff]
  %v1601 = vpack.c.bf16 %v1568, %v1567
  %v1602 = vpack.c.bf16 %v1570, %v1569
  %v1603 = vpack.c.bf16 %v1572, %v1571
  %v1604 = vpack.c.bf16 %v1574, %v1573
  %v1605 = vpack.c.bf16 %v1576, %v1575
  %v1606 = vpack.c.bf16 %v1578, %v1577
  %v1607 = vpack.c.bf16 %v1580, %v1579
  %v1608 = vpack.c.bf16 %v1582, %v1581
  %v1611 = vunpack.c.l.b16 %v1583
  %v1612 = vunpack.c.l.b16 %v1584
  %v1613 = vpack.c.b16 %v1612, %v1611
  %v1616 = vsel %vm205, %v1601, 0
  %v1619 = vsel %vm205, %v1602, 0
  %v1622 = vsel %vm205, %v1603, 0
  %v1625 = vsel %vm205, %v1604, 0
  %v1628 = vsel %vm205, %v1605, 0
  %v1631 = vsel %vm205, %v1606, 0
  %v1634 = vsel %vm205, %v1607, 0
  %v1637 = vsel %vm205, %v1608, 0
  %1639 = vmatpush.bf16.msra.mxu0 0
  %1640 = vmatpush.bf16.msra.mxu0 0
  %1641 = vmatpush.bf16.msra.mxu0 0
  %1642 = vmatpush.bf16.msra.mxu0 0
  %1643 = vmatpush.bf16.msra.mxu0 0
  %1644 = vmatpush.bf16.msra.mxu0 0
  %1645 = vmatpush.bf16.msra.mxu0 0
  %1646 = vmatpush.bf16.msra.mxu0 %v1613
  %1647 = vmatmul.bf16.gmra.mxu0 %v1616
  %v1648 = vpop.f32.mrf.mxu0
  %v1649 = vadd.f32 0.0, %v1648
  %v1650 = vpop.f32.mrf.mxu0
  %v1651 = vadd.f32 0.0, %v1650
  %1652 = vmatmul.bf16.gmra.mxu0 %v1619
  %v1653 = vpop.f32.mrf.mxu0
  %v1654 = vadd.f32 0.0, %v1653
  %v1655 = vpop.f32.mrf.mxu0
  %v1656 = vadd.f32 0.0, %v1655
  %1657 = vmatmul.bf16.gmra.mxu0 %v1622
  %v1658 = vpop.f32.mrf.mxu0
  %v1659 = vadd.f32 0.0, %v1658
  %v1660 = vpop.f32.mrf.mxu0
  %v1661 = vadd.f32 0.0, %v1660
  %1662 = vmatmul.bf16.gmra.mxu0 %v1625
  %v1663 = vpop.f32.mrf.mxu0
  %v1664 = vadd.f32 0.0, %v1663
  %v1665 = vpop.f32.mrf.mxu0
  %v1666 = vadd.f32 0.0, %v1665
  %1667 = vmatmul.bf16.gmra.mxu0 %v1628
  %v1668 = vpop.f32.mrf.mxu0
  %v1669 = vadd.f32 0.0, %v1668
  %v1670 = vpop.f32.mrf.mxu0
  %v1671 = vadd.f32 0.0, %v1670
  %1672 = vmatmul.bf16.gmra.mxu0 %v1631
  %v1673 = vpop.f32.mrf.mxu0
  %v1674 = vadd.f32 0.0, %v1673
  %v1675 = vpop.f32.mrf.mxu0
  %v1676 = vadd.f32 0.0, %v1675
  %1677 = vmatmul.bf16.gmra.mxu0 %v1634
  %v1678 = vpop.f32.mrf.mxu0
  %v1679 = vadd.f32 0.0, %v1678
  %v1680 = vpop.f32.mrf.mxu0
  %v1681 = vadd.f32 0.0, %v1680
  %1682 = vmatmul.bf16.gmra.mxu0 %v1637
  %v1683 = vpop.f32.mrf.mxu0
  %v1684 = vadd.f32 0.0, %v1683
  %v1685 = vpop.f32.mrf.mxu0
  %v1686 = vadd.f32 0.0, %v1685
  %1687 = vdwg.mxu0
  %v1688 = vadd.f32 %v1585, %v1649
  %v1689 = vadd.f32 %v1586, %v1651
  %v1690 = vadd.f32 %v1587, %v1654
  %v1691 = vadd.f32 %v1588, %v1656
  %v1692 = vadd.f32 %v1589, %v1659
  %v1693 = vadd.f32 %v1590, %v1661
  %v1694 = vadd.f32 %v1591, %v1664
  %v1695 = vadd.f32 %v1592, %v1666
  %v1696 = vadd.f32 %v1593, %v1669
  %v1697 = vadd.f32 %v1594, %v1671
  %v1698 = vadd.f32 %v1595, %v1674
  %v1699 = vadd.f32 %v1596, %v1676
  %v1700 = vadd.f32 %v1597, %v1679
  %v1701 = vadd.f32 %v1598, %v1681
  %v1702 = vadd.f32 %v1599, %v1684
  %v1703 = vadd.f32 %v1600, %v1686
  %1704 = vst.msk [vmem:[#allocation5] sm:$0xff] %vm205, %v1688
  %1705 = vst.msk [vmem:[#allocation5 + $0x8] sm:$0xff] %vm205, %v1689
  %1706 = vst.msk [vmem:[#allocation5 + $0x10] sm:$0xff] %vm205, %v1690
  %1707 = vst.msk [vmem:[#allocation5 + $0x18] sm:$0xff] %vm205, %v1691
  %1708 = vst.msk [vmem:[#allocation5 + $0x20] sm:$0xff] %vm205, %v1692
  %1709 = vst.msk [vmem:[#allocation5 + $0x28] sm:$0xff] %vm205, %v1693
  %1710 = vst.msk [vmem:[#allocation5 + $0x30] sm:$0xff] %vm205, %v1694
  %1711 = vst.msk [vmem:[#allocation5 + $0x38] sm:$0xff] %vm205, %v1695
  %1712 = vst.msk [vmem:[#allocation5 + $0x40] sm:$0xff] %vm205, %v1696
  %1713 = vst.msk [vmem:[#allocation5 + $0x48] sm:$0xff] %vm205, %v1697
  %1714 = vst.msk [vmem:[#allocation5 + $0x50] sm:$0xff] %vm205, %v1698
  %1715 = vst.msk [vmem:[#allocation5 + $0x58] sm:$0xff] %vm205, %v1699
  %1716 = vst.msk [vmem:[#allocation5 + $0x60] sm:$0xff] %vm205, %v1700
  %1717 = vst.msk [vmem:[#allocation5 + $0x68] sm:$0xff] %vm205, %v1701
  %1718 = vst.msk [vmem:[#allocation5 + $0x70] sm:$0xff] %vm205, %v1702
  %1719 = vst.msk [vmem:[#allocation5 + $0x78] sm:$0xff] %vm205, %v1703
  %v1720 = vld [vmem:[%s1228] sm:$0xff]
  %v1721 = vld [vmem:[%s1228 + $0x10] sm:$0xff]
  %v1722 = vld [vmem:[%s1228 + $0x20] sm:$0xff]
  %v1723 = vld [vmem:[%s1228 + $0x30] sm:$0xff]
  %v1724 = vld [vmem:[%s1228 + $0x40] sm:$0xff]
  %v1725 = vld [vmem:[%s1228 + $0x50] sm:$0xff]
  %v1726 = vld [vmem:[%s1228 + $0x60] sm:$0xff]
  %v1727 = vld [vmem:[%s1228 + $0x70] sm:$0xff]
  %v1728 = vld [vmem:[%s1228 + $0xa0] sm:$0xff]
  %v1729 = vld [vmem:[%s1228 + $0xb0] sm:$0xff]
  %v1730 = vld [vmem:[%s1228 + $0xc0] sm:$0xff]
  %v1731 = vld [vmem:[%s1228 + $0xd0] sm:$0xff]
  %v1732 = vld [vmem:[%s1228 + $0xe0] sm:$0xff]
  %v1733 = vld [vmem:[%s1228 + $0xf0] sm:$0xff]
  %v1734 = vld [vmem:[%s1228 + $0x100] sm:$0xff]
  %v1735 = vld [vmem:[%s1228 + $0x110] sm:$0xff]
  %v1736 = vld [vmem:[%s7 + $0x18] sm:$0xf]
  %v1737 = vld [vmem:[%s7 + $0x1c] sm:$0xf]
  %v1738 = vld [vmem:[#allocation5] sm:$0xff]
  %v1739 = vld [vmem:[#allocation5 + $0x8] sm:$0xff]
  %v1740 = vld [vmem:[#allocation5 + $0x10] sm:$0xff]
  %v1741 = vld [vmem:[#allocation5 + $0x18] sm:$0xff]
  %v1742 = vld [vmem:[#allocation5 + $0x20] sm:$0xff]
  %v1743 = vld [vmem:[#allocation5 + $0x28] sm:$0xff]
  %v1744 = vld [vmem:[#allocation5 + $0x30] sm:$0xff]
  %v1745 = vld [vmem:[#allocation5 + $0x38] sm:$0xff]
  %v1746 = vld [vmem:[#allocation5 + $0x40] sm:$0xff]
  %v1747 = vld [vmem:[#allocation5 + $0x48] sm:$0xff]
  %v1748 = vld [vmem:[#allocation5 + $0x50] sm:$0xff]
  %v1749 = vld [vmem:[#allocation5 + $0x58] sm:$0xff]
  %v1750 = vld [vmem:[#allocation5 + $0x60] sm:$0xff]
  %v1751 = vld [vmem:[#allocation5 + $0x68] sm:$0xff]
  %v1752 = vld [vmem:[#allocation5 + $0x70] sm:$0xff]
  %v1753 = vld [vmem:[#allocation5 + $0x78] sm:$0xff]
  %v1754 = vpack.c.bf16 %v1721, %v1720
  %v1755 = vpack.c.bf16 %v1723, %v1722
  %v1756 = vpack.c.bf16 %v1725, %v1724
  %v1757 = vpack.c.bf16 %v1727, %v1726
  %v1758 = vpack.c.bf16 %v1729, %v1728
  %v1759 = vpack.c.bf16 %v1731, %v1730
  %v1760 = vpack.c.bf16 %v1733, %v1732
  %v1761 = vpack.c.bf16 %v1735, %v1734
  %v1764 = vunpack.c.l.b16 %v1736
  %v1765 = vunpack.c.l.b16 %v1737
  %v1766 = vpack.c.b16 %v1765, %v1764
  %v1769 = vsel %vm205, %v1754, 0
  %v1772 = vsel %vm205, %v1755, 0
  %v1775 = vsel %vm205, %v1756, 0
  %v1778 = vsel %vm205, %v1757, 0
  %v1781 = vsel %vm205, %v1758, 0
  %v1784 = vsel %vm205, %v1759, 0
  %v1787 = vsel %vm205, %v1760, 0
  %v1790 = vsel %vm205, %v1761, 0
  %1792 = vmatpush.bf16.msra.mxu0 0
  %1793 = vmatpush.bf16.msra.mxu0 0
  %1794 = vmatpush.bf16.msra.mxu0 0
  %1795 = vmatpush.bf16.msra.mxu0 0
  %1796 = vmatpush.bf16.msra.mxu0 0
  %1797 = vmatpush.bf16.msra.mxu0 0
  %1798 = vmatpush.bf16.msra.mxu0 0
  %1799 = vmatpush.bf16.msra.mxu0 %v1766
  %1800 = vmatmul.bf16.gmra.mxu0 %v1769
  %v1801 = vpop.f32.mrf.mxu0
  %v1802 = vadd.f32 0.0, %v1801
  %v1803 = vpop.f32.mrf.mxu0
  %v1804 = vadd.f32 0.0, %v1803
  %1805 = vmatmul.bf16.gmra.mxu0 %v1772
  %v1806 = vpop.f32.mrf.mxu0
  %v1807 = vadd.f32 0.0, %v1806
  %v1808 = vpop.f32.mrf.mxu0
  %v1809 = vadd.f32 0.0, %v1808
  %1810 = vmatmul.bf16.gmra.mxu0 %v1775
  %v1811 = vpop.f32.mrf.mxu0
  %v1812 = vadd.f32 0.0, %v1811
  %v1813 = vpop.f32.mrf.mxu0
  %v1814 = vadd.f32 0.0, %v1813
  %1815 = vmatmul.bf16.gmra.mxu0 %v1778
  %v1816 = vpop.f32.mrf.mxu0
  %v1817 = vadd.f32 0.0, %v1816
  %v1818 = vpop.f32.mrf.mxu0
  %v1819 = vadd.f32 0.0, %v1818
  %1820 = vmatmul.bf16.gmra.mxu0 %v1781
  %v1821 = vpop.f32.mrf.mxu0
  %v1822 = vadd.f32 0.0, %v1821
  %v1823 = vpop.f32.mrf.mxu0
  %v1824 = vadd.f32 0.0, %v1823
  %1825 = vmatmul.bf16.gmra.mxu0 %v1784
  %v1826 = vpop.f32.mrf.mxu0
  %v1827 = vadd.f32 0.0, %v1826
  %v1828 = vpop.f32.mrf.mxu0
  %v1829 = vadd.f32 0.0, %v1828
  %1830 = vmatmul.bf16.gmra.mxu0 %v1787
  %v1831 = vpop.f32.mrf.mxu0
  %v1832 = vadd.f32 0.0, %v1831
  %v1833 = vpop.f32.mrf.mxu0
  %v1834 = vadd.f32 0.0, %v1833
  %1835 = vmatmul.bf16.gmra.mxu0 %v1790
  %v1836 = vpop.f32.mrf.mxu0
  %v1837 = vadd.f32 0.0, %v1836
  %v1838 = vpop.f32.mrf.mxu0
  %v1839 = vadd.f32 0.0, %v1838
  %1840 = vdwg.mxu0
  %v1841 = vadd.f32 %v1738, %v1802
  %v1842 = vadd.f32 %v1739, %v1804
  %v1843 = vadd.f32 %v1740, %v1807
  %v1844 = vadd.f32 %v1741, %v1809
  %v1845 = vadd.f32 %v1742, %v1812
  %v1846 = vadd.f32 %v1743, %v1814
  %v1847 = vadd.f32 %v1744, %v1817
  %v1848 = vadd.f32 %v1745, %v1819
  %v1849 = vadd.f32 %v1746, %v1822
  %v1850 = vadd.f32 %v1747, %v1824
  %v1851 = vadd.f32 %v1748, %v1827
  %v1852 = vadd.f32 %v1749, %v1829
  %v1853 = vadd.f32 %v1750, %v1832
  %v1854 = vadd.f32 %v1751, %v1834
  %v1855 = vadd.f32 %v1752, %v1837
  %v1856 = vadd.f32 %v1753, %v1839
  %1857 = vst.msk [vmem:[#allocation5] sm:$0xff] %vm205, %v1841
  %1858 = vst.msk [vmem:[#allocation5 + $0x8] sm:$0xff] %vm205, %v1842
  %1859 = vst.msk [vmem:[#allocation5 + $0x10] sm:$0xff] %vm205, %v1843
  %1860 = vst.msk [vmem:[#allocation5 + $0x18] sm:$0xff] %vm205, %v1844
  %1861 = vst.msk [vmem:[#allocation5 + $0x20] sm:$0xff] %vm205, %v1845
  %1862 = vst.msk [vmem:[#allocation5 + $0x28] sm:$0xff] %vm205, %v1846
  %1863 = vst.msk [vmem:[#allocation5 + $0x30] sm:$0xff] %vm205, %v1847
  %1864 = vst.msk [vmem:[#allocation5 + $0x38] sm:$0xff] %vm205, %v1848
  %1865 = vst.msk [vmem:[#allocation5 + $0x40] sm:$0xff] %vm205, %v1849
  %1866 = vst.msk [vmem:[#allocation5 + $0x48] sm:$0xff] %vm205, %v1850
  %1867 = vst.msk [vmem:[#allocation5 + $0x50] sm:$0xff] %vm205, %v1851
  %1868 = vst.msk [vmem:[#allocation5 + $0x58] sm:$0xff] %vm205, %v1852
  %1869 = vst.msk [vmem:[#allocation5 + $0x60] sm:$0xff] %vm205, %v1853
  %1870 = vst.msk [vmem:[#allocation5 + $0x68] sm:$0xff] %vm205, %v1854
  %1871 = vst.msk [vmem:[#allocation5 + $0x70] sm:$0xff] %vm205, %v1855
  %1872 = vst.msk [vmem:[#allocation5 + $0x78] sm:$0xff] %vm205, %v1856
  %v1873 = vld [vmem:[%s1228 + $0x1] sm:$0xff]
  %v1874 = vld [vmem:[%s1228 + $0x11] sm:$0xff]
  %v1875 = vld [vmem:[%s1228 + $0x21] sm:$0xff]
  %v1876 = vld [vmem:[%s1228 + $0x31] sm:$0xff]
  %v1877 = vld [vmem:[%s1228 + $0x41] sm:$0xff]
  %v1878 = vld [vmem:[%s1228 + $0x51] sm:$0xff]
  %v1879 = vld [vmem:[%s1228 + $0x61] sm:$0xff]
  %v1880 = vld [vmem:[%s1228 + $0x71] sm:$0xff]
  %v1881 = vld [vmem:[%s1228 + $0xa1] sm:$0xff]
  %v1882 = vld [vmem:[%s1228 + $0xb1] sm:$0xff]
  %v1883 = vld [vmem:[%s1228 + $0xc1] sm:$0xff]
  %v1884 = vld [vmem:[%s1228 + $0xd1] sm:$0xff]
  %v1885 = vld [vmem:[%s1228 + $0xe1] sm:$0xff]
  %v1886 = vld [vmem:[%s1228 + $0xf1] sm:$0xff]
  %v1887 = vld [vmem:[%s1228 + $0x101] sm:$0xff]
  %v1888 = vld [vmem:[%s1228 + $0x111] sm:$0xff]
  %v1889 = vld [vmem:[%s7 + $0x20] sm:$0xf]
  %v1890 = vld [vmem:[%s7 + $0x24] sm:$0xf]
  %v1891 = vld [vmem:[#allocation5] sm:$0xff]
  %v1892 = vld [vmem:[#allocation5 + $0x8] sm:$0xff]
  %v1893 = vld [vmem:[#allocation5 + $0x10] sm:$0xff]
  %v1894 = vld [vmem:[#allocation5 + $0x18] sm:$0xff]
  %v1895 = vld [vmem:[#allocation5 + $0x20] sm:$0xff]
  %v1896 = vld [vmem:[#allocation5 + $0x28] sm:$0xff]
  %v1897 = vld [vmem:[#allocation5 + $0x30] sm:$0xff]
  %v1898 = vld [vmem:[#allocation5 + $0x38] sm:$0xff]
  %v1899 = vld [vmem:[#allocation5 + $0x40] sm:$0xff]
  %v1900 = vld [vmem:[#allocation5 + $0x48] sm:$0xff]
  %v1901 = vld [vmem:[#allocation5 + $0x50] sm:$0xff]
  %v1902 = vld [vmem:[#allocation5 + $0x58] sm:$0xff]
  %v1903 = vld [vmem:[#allocation5 + $0x60] sm:$0xff]
  %v1904 = vld [vmem:[#allocation5 + $0x68] sm:$0xff]
  %v1905 = vld [vmem:[#allocation5 + $0x70] sm:$0xff]
  %v1906 = vld [vmem:[#allocation5 + $0x78] sm:$0xff]
  %v1907 = vpack.c.bf16 %v1874, %v1873
  %v1908 = vpack.c.bf16 %v1876, %v1875
  %v1909 = vpack.c.bf16 %v1878, %v1877
  %v1910 = vpack.c.bf16 %v1880, %v1879
  %v1911 = vpack.c.bf16 %v1882, %v1881
  %v1912 = vpack.c.bf16 %v1884, %v1883
  %v1913 = vpack.c.bf16 %v1886, %v1885
  %v1914 = vpack.c.bf16 %v1888, %v1887
  %v1917 = vunpack.c.l.b16 %v1889
  %v1918 = vunpack.c.l.b16 %v1890
  %v1919 = vpack.c.b16 %v1918, %v1917
  %v1922 = vsel %vm205, %v1907, 0
  %v1925 = vsel %vm205, %v1908, 0
  %v1928 = vsel %vm205, %v1909, 0
  %v1931 = vsel %vm205, %v1910, 0
  %v1934 = vsel %vm205, %v1911, 0
  %v1937 = vsel %vm205, %v1912, 0
  %v1940 = vsel %vm205, %v1913, 0
  %v1943 = vsel %vm205, %v1914, 0
  %1945 = vmatpush.bf16.msra.mxu0 0
  %1946 = vmatpush.bf16.msra.mxu0 0
  %1947 = vmatpush.bf16.msra.mxu0 0
  %1948 = vmatpush.bf16.msra.mxu0 0
  %1949 = vmatpush.bf16.msra.mxu0 0
  %1950 = vmatpush.bf16.msra.mxu0 0
  %1951 = vmatpush.bf16.msra.mxu0 0
  %1952 = vmatpush.bf16.msra.mxu0 %v1919
  %1953 = vmatmul.bf16.gmra.mxu0 %v1922
  %v1954 = vpop.f32.mrf.mxu0
  %v1955 = vadd.f32 0.0, %v1954
  %v1956 = vpop.f32.mrf.mxu0
  %v1957 = vadd.f32 0.0, %v1956
  %1958 = vmatmul.bf16.gmra.mxu0 %v1925
  %v1959 = vpop.f32.mrf.mxu0
  %v1960 = vadd.f32 0.0, %v1959
  %v1961 = vpop.f32.mrf.mxu0
  %v1962 = vadd.f32 0.0, %v1961
  %1963 = vmatmul.bf16.gmra.mxu0 %v1928
  %v1964 = vpop.f32.mrf.mxu0
  %v1965 = vadd.f32 0.0, %v1964
  %v1966 = vpop.f32.mrf.mxu0
  %v1967 = vadd.f32 0.0, %v1966
  %1968 = vmatmul.bf16.gmra.mxu0 %v1931
  %v1969 = vpop.f32.mrf.mxu0
  %v1970 = vadd.f32 0.0, %v1969
  %v1971 = vpop.f32.mrf.mxu0
  %v1972 = vadd.f32 0.0, %v1971
  %1973 = vmatmul.bf16.gmra.mxu0 %v1934
  %v1974 = vpop.f32.mrf.mxu0
  %v1975 = vadd.f32 0.0, %v1974
  %v1976 = vpop.f32.mrf.mxu0
  %v1977 = vadd.f32 0.0, %v1976
  %1978 = vmatmul.bf16.gmra.mxu0 %v1937
  %v1979 = vpop.f32.mrf.mxu0
  %v1980 = vadd.f32 0.0, %v1979
  %v1981 = vpop.f32.mrf.mxu0
  %v1982 = vadd.f32 0.0, %v1981
  %1983 = vmatmul.bf16.gmra.mxu0 %v1940
  %v1984 = vpop.f32.mrf.mxu0
  %v1985 = vadd.f32 0.0, %v1984
  %v1986 = vpop.f32.mrf.mxu0
  %v1987 = vadd.f32 0.0, %v1986
  %1988 = vmatmul.bf16.gmra.mxu0 %v1943
  %v1989 = vpop.f32.mrf.mxu0
  %v1990 = vadd.f32 0.0, %v1989
  %v1991 = vpop.f32.mrf.mxu0
  %v1992 = vadd.f32 0.0, %v1991
  %1993 = vdwg.mxu0
  %v1994 = vadd.f32 %v1891, %v1955
  %v1995 = vadd.f32 %v1892, %v1957
  %v1996 = vadd.f32 %v1893, %v1960
  %v1997 = vadd.f32 %v1894, %v1962
  %v1998 = vadd.f32 %v1895, %v1965
  %v1999 = vadd.f32 %v1896, %v1967
  %v2000 = vadd.f32 %v1897, %v1970
  %v2001 = vadd.f32 %v1898, %v1972
  %v2002 = vadd.f32 %v1899, %v1975
  %v2003 = vadd.f32 %v1900, %v1977
  %v2004 = vadd.f32 %v1901, %v1980
  %v2005 = vadd.f32 %v1902, %v1982
  %v2006 = vadd.f32 %v1903, %v1985
  %v2007 = vadd.f32 %v1904, %v1987
  %v2008 = vadd.f32 %v1905, %v1990
  %v2009 = vadd.f32 %v1906, %v1992
  %2010 = vst.msk [vmem:[#allocation5] sm:$0xff] %vm205, %v1994
  %2011 = vst.msk [vmem:[#allocation5 + $0x8] sm:$0xff] %vm205, %v1995
  %2012 = vst.msk [vmem:[#allocation5 + $0x10] sm:$0xff] %vm205, %v1996
  %2013 = vst.msk [vmem:[#allocation5 + $0x18] sm:$0xff] %vm205, %v1997
  %2014 = vst.msk [vmem:[#allocation5 + $0x20] sm:$0xff] %vm205, %v1998
  %2015 = vst.msk [vmem:[#allocation5 + $0x28] sm:$0xff] %vm205, %v1999
  %2016 = vst.msk [vmem:[#allocation5 + $0x30] sm:$0xff] %vm205, %v2000
  %2017 = vst.msk [vmem:[#allocation5 + $0x38] sm:$0xff] %vm205, %v2001
  %2018 = vst.msk [vmem:[#allocation5 + $0x40] sm:$0xff] %vm205, %v2002
  %2019 = vst.msk [vmem:[#allocation5 + $0x48] sm:$0xff] %vm205, %v2003
  %2020 = vst.msk [vmem:[#allocation5 + $0x50] sm:$0xff] %vm205, %v2004
  %2021 = vst.msk [vmem:[#allocation5 + $0x58] sm:$0xff] %vm205, %v2005
  %2022 = vst.msk [vmem:[#allocation5 + $0x60] sm:$0xff] %vm205, %v2006
  %2023 = vst.msk [vmem:[#allocation5 + $0x68] sm:$0xff] %vm205, %v2007
  %2024 = vst.msk [vmem:[#allocation5 + $0x70] sm:$0xff] %vm205, %v2008
  %2025 = vst.msk [vmem:[#allocation5 + $0x78] sm:$0xff] %vm205, %v2009
  %v2026 = vld [vmem:[%s1228 + $0x2] sm:$0xff]
  %v2027 = vld [vmem:[%s1228 + $0x12] sm:$0xff]
  %v2028 = vld [vmem:[%s1228 + $0x22] sm:$0xff]
  %v2029 = vld [vmem:[%s1228 + $0x32] sm:$0xff]
  %v2030 = vld [vmem:[%s1228 + $0x42] sm:$0xff]
  %v2031 = vld [vmem:[%s1228 + $0x52] sm:$0xff]
  %v2032 = vld [vmem:[%s1228 + $0x62] sm:$0xff]
  %v2033 = vld [vmem:[%s1228 + $0x72] sm:$0xff]
  %v2034 = vld [vmem:[%s1228 + $0xa2] sm:$0xff]
  %v2035 = vld [vmem:[%s1228 + $0xb2] sm:$0xff]
  %v2036 = vld [vmem:[%s1228 + $0xc2] sm:$0xff]
  %v2037 = vld [vmem:[%s1228 + $0xd2] sm:$0xff]
  %v2038 = vld [vmem:[%s1228 + $0xe2] sm:$0xff]
  %v2039 = vld [vmem:[%s1228 + $0xf2] sm:$0xff]
  %v2040 = vld [vmem:[%s1228 + $0x102] sm:$0xff]
  %v2041 = vld [vmem:[%s1228 + $0x112] sm:$0xff]
  %v2042 = vld [vmem:[%s7 + $0x28] sm:$0xf]
  %v2043 = vld [vmem:[%s7 + $0x2c] sm:$0xf]
  %v2044 = vld [vmem:[#allocation5] sm:$0xff]
  %v2045 = vld [vmem:[#allocation5 + $0x8] sm:$0xff]
  %v2046 = vld [vmem:[#allocation5 + $0x10] sm:$0xff]
  %v2047 = vld [vmem:[#allocation5 + $0x18] sm:$0xff]
  %v2048 = vld [vmem:[#allocation5 + $0x20] sm:$0xff]
  %v2049 = vld [vmem:[#allocation5 + $0x28] sm:$0xff]
  %v2050 = vld [vmem:[#allocation5 + $0x30] sm:$0xff]
  %v2051 = vld [vmem:[#allocation5 + $0x38] sm:$0xff]
  %v2052 = vld [vmem:[#allocation5 + $0x40] sm:$0xff]
  %v2053 = vld [vmem:[#allocation5 + $0x48] sm:$0xff]
  %v2054 = vld [vmem:[#allocation5 + $0x50] sm:$0xff]
  %v2055 = vld [vmem:[#allocation5 + $0x58] sm:$0xff]
  %v2056 = vld [vmem:[#allocation5 + $0x60] sm:$0xff]
  %v2057 = vld [vmem:[#allocation5 + $0x68] sm:$0xff]
  %v2058 = vld [vmem:[#allocation5 + $0x70] sm:$0xff]
  %v2059 = vld [vmem:[#allocation5 + $0x78] sm:$0xff]
  %v2060 = vpack.c.bf16 %v2027, %v2026
  %v2061 = vpack.c.bf16 %v2029, %v2028
  %v2062 = vpack.c.bf16 %v2031, %v2030
  %v2063 = vpack.c.bf16 %v2033, %v2032
  %v2064 = vpack.c.bf16 %v2035, %v2034
  %v2065 = vpack.c.bf16 %v2037, %v2036
  %v2066 = vpack.c.bf16 %v2039, %v2038
  %v2067 = vpack.c.bf16 %v2041, %v2040
  %v2070 = vunpack.c.l.b16 %v2042
  %v2071 = vunpack.c.l.b16 %v2043
  %v2072 = vpack.c.b16 %v2071, %v2070
  %v2075 = vsel %vm205, %v2060, 0
  %v2078 = vsel %vm205, %v2061, 0
  %v2081 = vsel %vm205, %v2062, 0
  %v2084 = vsel %vm205, %v2063, 0
  %v2087 = vsel %vm205, %v2064, 0
  %v2090 = vsel %vm205, %v2065, 0
  %v2093 = vsel %vm205, %v2066, 0
  %v2096 = vsel %vm205, %v2067, 0
  %2098 = vmatpush.bf16.msra.mxu0 0
  %2099 = vmatpush.bf16.msra.mxu0 0
  %2100 = vmatpush.bf16.msra.mxu0 0
  %2101 = vmatpush.bf16.msra.mxu0 0
  %2102 = vmatpush.bf16.msra.mxu0 0
  %2103 = vmatpush.bf16.msra.mxu0 0
  %2104 = vmatpush.bf16.msra.mxu0 0
  %2105 = vmatpush.bf16.msra.mxu0 %v2072
  %2106 = vmatmul.bf16.gmra.mxu0 %v2075
  %v2107 = vpop.f32.mrf.mxu0
  %v2108 = vadd.f32 0.0, %v2107
  %v2109 = vpop.f32.mrf.mxu0
  %v2110 = vadd.f32 0.0, %v2109
  %2111 = vmatmul.bf16.gmra.mxu0 %v2078
  %v2112 = vpop.f32.mrf.mxu0
  %v2113 = vadd.f32 0.0, %v2112
  %v2114 = vpop.f32.mrf.mxu0
  %v2115 = vadd.f32 0.0, %v2114
  %2116 = vmatmul.bf16.gmra.mxu0 %v2081
  %v2117 = vpop.f32.mrf.mxu0
  %v2118 = vadd.f32 0.0, %v2117
  %v2119 = vpop.f32.mrf.mxu0
  %v2120 = vadd.f32 0.0, %v2119
  %2121 = vmatmul.bf16.gmra.mxu0 %v2084
  %v2122 = vpop.f32.mrf.mxu0
  %v2123 = vadd.f32 0.0, %v2122
  %v2124 = vpop.f32.mrf.mxu0
  %v2125 = vadd.f32 0.0, %v2124
  %2126 = vmatmul.bf16.gmra.mxu0 %v2087
  %v2127 = vpop.f32.mrf.mxu0
  %v2128 = vadd.f32 0.0, %v2127
  %v2129 = vpop.f32.mrf.mxu0
  %v2130 = vadd.f32 0.0, %v2129
  %2131 = vmatmul.bf16.gmra.mxu0 %v2090
  %v2132 = vpop.f32.mrf.mxu0
  %v2133 = vadd.f32 0.0, %v2132
  %v2134 = vpop.f32.mrf.mxu0
  %v2135 = vadd.f32 0.0, %v2134
  %2136 = vmatmul.bf16.gmra.mxu0 %v2093
  %v2137 = vpop.f32.mrf.mxu0
  %v2138 = vadd.f32 0.0, %v2137
  %v2139 = vpop.f32.mrf.mxu0
  %v2140 = vadd.f32 0.0, %v2139
  %2141 = vmatmul.bf16.gmra.mxu0 %v2096
  %v2142 = vpop.f32.mrf.mxu0
  %v2143 = vadd.f32 0.0, %v2142
  %v2144 = vpop.f32.mrf.mxu0
  %v2145 = vadd.f32 0.0, %v2144
  %2146 = vdwg.mxu0
  %v2147 = vadd.f32 %v2044, %v2108
  %v2148 = vadd.f32 %v2045, %v2110
  %v2149 = vadd.f32 %v2046, %v2113
  %v2150 = vadd.f32 %v2047, %v2115
  %v2151 = vadd.f32 %v2048, %v2118
  %v2152 = vadd.f32 %v2049, %v2120
  %v2153 = vadd.f32 %v2050, %v2123
  %v2154 = vadd.f32 %v2051, %v2125
  %v2155 = vadd.f32 %v2052, %v2128
  %v2156 = vadd.f32 %v2053, %v2130
  %v2157 = vadd.f32 %v2054, %v2133
  %v2158 = vadd.f32 %v2055, %v2135
  %v2159 = vadd.f32 %v2056, %v2138
  %v2160 = vadd.f32 %v2057, %v2140
  %v2161 = vadd.f32 %v2058, %v2143
  %v2162 = vadd.f32 %v2059, %v2145
  %2163 = vst.msk [vmem:[#allocation5] sm:$0xff] %vm205, %v2147
  %2164 = vst.msk [vmem:[#allocation5 + $0x8] sm:$0xff] %vm205, %v2148
  %2165 = vst.msk [vmem:[#allocation5 + $0x10] sm:$0xff] %vm205, %v2149
  %2166 = vst.msk [vmem:[#allocation5 + $0x18] sm:$0xff] %vm205, %v2150
  %2167 = vst.msk [vmem:[#allocation5 + $0x20] sm:$0xff] %vm205, %v2151
  %2168 = vst.msk [vmem:[#allocation5 + $0x28] sm:$0xff] %vm205, %v2152
  %2169 = vst.msk [vmem:[#allocation5 + $0x30] sm:$0xff] %vm205, %v2153
  %2170 = vst.msk [vmem:[#allocation5 + $0x38] sm:$0xff] %vm205, %v2154
  %2171 = vst.msk [vmem:[#allocation5 + $0x40] sm:$0xff] %vm205, %v2155
  %2172 = vst.msk [vmem:[#allocation5 + $0x48] sm:$0xff] %vm205, %v2156
  %2173 = vst.msk [vmem:[#allocation5 + $0x50] sm:$0xff] %vm205, %v2157
  %2174 = vst.msk [vmem:[#allocation5 + $0x58] sm:$0xff] %vm205, %v2158
  %2175 = vst.msk [vmem:[#allocation5 + $0x60] sm:$0xff] %vm205, %v2159
  %2176 = vst.msk [vmem:[#allocation5 + $0x68] sm:$0xff] %vm205, %v2160
  %2177 = vst.msk [vmem:[#allocation5 + $0x70] sm:$0xff] %vm205, %v2161
  %2178 = vst.msk [vmem:[#allocation5 + $0x78] sm:$0xff] %vm205, %v2162
  %s2179 = scalar_lea.vmem [#allocation4], 32
  %v2180 = vld [vmem:[%s2179] sm:$0xff]
  %v2181 = vld [vmem:[%s2179 + $0x10] sm:$0xff]
  %v2182 = vld [vmem:[%s2179 + $0x20] sm:$0xff]
  %v2183 = vld [vmem:[%s2179 + $0x30] sm:$0xff]
  %v2184 = vld [vmem:[%s2179 + $0x40] sm:$0xff]
  %v2185 = vld [vmem:[%s2179 + $0x50] sm:$0xff]
  %v2186 = vld [vmem:[%s2179 + $0x60] sm:$0xff]
  %v2187 = vld [vmem:[%s2179 + $0x70] sm:$0xff]
  %v2188 = vld [vmem:[%s2179 + $0xa0] sm:$0xff]
  %v2189 = vld [vmem:[%s2179 + $0xb0] sm:$0xff]
  %v2190 = vld [vmem:[%s2179 + $0xc0] sm:$0xff]
  %v2191 = vld [vmem:[%s2179 + $0xd0] sm:$0xff]
  %v2192 = vld [vmem:[%s2179 + $0xe0] sm:$0xff]
  %v2193 = vld [vmem:[%s2179 + $0xf0] sm:$0xff]
  %v2194 = vld [vmem:[%s2179 + $0x100] sm:$0xff]
  %v2195 = vld [vmem:[%s2179 + $0x110] sm:$0xff]
  %v2196 = vld [vmem:[%s7 + $0x30] sm:$0xf]
  %v2197 = vld [vmem:[%s7 + $0x34] sm:$0xf]
  %v2198 = vld [vmem:[#allocation5] sm:$0xff]
  %v2199 = vld [vmem:[#allocation5 + $0x8] sm:$0xff]
  %v2200 = vld [vmem:[#allocation5 + $0x10] sm:$0xff]
  %v2201 = vld [vmem:[#allocation5 + $0x18] sm:$0xff]
  %v2202 = vld [vmem:[#allocation5 + $0x20] sm:$0xff]
  %v2203 = vld [vmem:[#allocation5 + $0x28] sm:$0xff]
  %v2204 = vld [vmem:[#allocation5 + $0x30] sm:$0xff]
  %v2205 = vld [vmem:[#allocation5 + $0x38] sm:$0xff]
  %v2206 = vld [vmem:[#allocation5 + $0x40] sm:$0xff]
  %v2207 = vld [vmem:[#allocation5 + $0x48] sm:$0xff]
  %v2208 = vld [vmem:[#allocation5 + $0x50] sm:$0xff]
  %v2209 = vld [vmem:[#allocation5 + $0x58] sm:$0xff]
  %v2210 = vld [vmem:[#allocation5 + $0x60] sm:$0xff]
  %v2211 = vld [vmem:[#allocation5 + $0x68] sm:$0xff]
  %v2212 = vld [vmem:[#allocation5 + $0x70] sm:$0xff]
  %v2213 = vld [vmem:[#allocation5 + $0x78] sm:$0xff]
  %v2214 = vpack.c.bf16 %v2181, %v2180
  %v2215 = vpack.c.bf16 %v2183, %v2182
  %v2216 = vpack.c.bf16 %v2185, %v2184
  %v2217 = vpack.c.bf16 %v2187, %v2186
  %v2218 = vpack.c.bf16 %v2189, %v2188
  %v2219 = vpack.c.bf16 %v2191, %v2190
  %v2220 = vpack.c.bf16 %v2193, %v2192
  %v2221 = vpack.c.bf16 %v2195, %v2194
  %v2224 = vunpack.c.l.b16 %v2196
  %v2225 = vunpack.c.l.b16 %v2197
  %v2226 = vpack.c.b16 %v2225, %v2224
  %v2229 = vsel %vm205, %v2214, 0
  %v2232 = vsel %vm205, %v2215, 0
  %v2235 = vsel %vm205, %v2216, 0
  %v2238 = vsel %vm205, %v2217, 0
  %v2241 = vsel %vm205, %v2218, 0
  %v2244 = vsel %vm205, %v2219, 0
  %v2247 = vsel %vm205, %v2220, 0
  %v2250 = vsel %vm205, %v2221, 0
  %2252 = vmatpush.bf16.msra.mxu0 0
  %2253 = vmatpush.bf16.msra.mxu0 0
  %2254 = vmatpush.bf16.msra.mxu0 0
  %2255 = vmatpush.bf16.msra.mxu0 0
  %2256 = vmatpush.bf16.msra.mxu0 0
  %2257 = vmatpush.bf16.msra.mxu0 0
  %2258 = vmatpush.bf16.msra.mxu0 0
  %2259 = vmatpush.bf16.msra.mxu0 %v2226
  %2260 = vmatmul.bf16.gmra.mxu0 %v2229
  %v2261 = vpop.f32.mrf.mxu0
  %v2262 = vadd.f32 0.0, %v2261
  %v2263 = vpop.f32.mrf.mxu0
  %v2264 = vadd.f32 0.0, %v2263
  %2265 = vmatmul.bf16.gmra.mxu0 %v2232
  %v2266 = vpop.f32.mrf.mxu0
  %v2267 = vadd.f32 0.0, %v2266
  %v2268 = vpop.f32.mrf.mxu0
  %v2269 = vadd.f32 0.0, %v2268
  %2270 = vmatmul.bf16.gmra.mxu0 %v2235
  %v2271 = vpop.f32.mrf.mxu0
  %v2272 = vadd.f32 0.0, %v2271
  %v2273 = vpop.f32.mrf.mxu0
  %v2274 = vadd.f32 0.0, %v2273
  %2275 = vmatmul.bf16.gmra.mxu0 %v2238
  %v2276 = vpop.f32.mrf.mxu0
  %v2277 = vadd.f32 0.0, %v2276
  %v2278 = vpop.f32.mrf.mxu0
  %v2279 = vadd.f32 0.0, %v2278
  %2280 = vmatmul.bf16.gmra.mxu0 %v2241
  %v2281 = vpop.f32.mrf.mxu0
  %v2282 = vadd.f32 0.0, %v2281
  %v2283 = vpop.f32.mrf.mxu0
  %v2284 = vadd.f32 0.0, %v2283
  %2285 = vmatmul.bf16.gmra.mxu0 %v2244
  %v2286 = vpop.f32.mrf.mxu0
  %v2287 = vadd.f32 0.0, %v2286
  %v2288 = vpop.f32.mrf.mxu0
  %v2289 = vadd.f32 0.0, %v2288
  %2290 = vmatmul.bf16.gmra.mxu0 %v2247
  %v2291 = vpop.f32.mrf.mxu0
  %v2292 = vadd.f32 0.0, %v2291
  %v2293 = vpop.f32.mrf.mxu0
  %v2294 = vadd.f32 0.0, %v2293
  %2295 = vmatmul.bf16.gmra.mxu0 %v2250
  %v2296 = vpop.f32.mrf.mxu0
  %v2297 = vadd.f32 0.0, %v2296
  %v2298 = vpop.f32.mrf.mxu0
  %v2299 = vadd.f32 0.0, %v2298
  %2300 = vdwg.mxu0
  %v2301 = vadd.f32 %v2198, %v2262
  %v2302 = vadd.f32 %v2199, %v2264
  %v2303 = vadd.f32 %v2200, %v2267
  %v2304 = vadd.f32 %v2201, %v2269
  %v2305 = vadd.f32 %v2202, %v2272
  %v2306 = vadd.f32 %v2203, %v2274
  %v2307 = vadd.f32 %v2204, %v2277
  %v2308 = vadd.f32 %v2205, %v2279
  %v2309 = vadd.f32 %v2206, %v2282
  %v2310 = vadd.f32 %v2207, %v2284
  %v2311 = vadd.f32 %v2208, %v2287
  %v2312 = vadd.f32 %v2209, %v2289
  %v2313 = vadd.f32 %v2210, %v2292
  %v2314 = vadd.f32 %v2211, %v2294
  %v2315 = vadd.f32 %v2212, %v2297
  %v2316 = vadd.f32 %v2213, %v2299
  %2317 = vst.msk [vmem:[#allocation5] sm:$0xff] %vm205, %v2301
  %2318 = vst.msk [vmem:[#allocation5 + $0x8] sm:$0xff] %vm205, %v2302
  %2319 = vst.msk [vmem:[#allocation5 + $0x10] sm:$0xff] %vm205, %v2303
  %2320 = vst.msk [vmem:[#allocation5 + $0x18] sm:$0xff] %vm205, %v2304
  %2321 = vst.msk [vmem:[#allocation5 + $0x20] sm:$0xff] %vm205, %v2305
  %2322 = vst.msk [vmem:[#allocation5 + $0x28] sm:$0xff] %vm205, %v2306
  %2323 = vst.msk [vmem:[#allocation5 + $0x30] sm:$0xff] %vm205, %v2307
  %2324 = vst.msk [vmem:[#allocation5 + $0x38] sm:$0xff] %vm205, %v2308
  %2325 = vst.msk [vmem:[#allocation5 + $0x40] sm:$0xff] %vm205, %v2309
  %2326 = vst.msk [vmem:[#allocation5 + $0x48] sm:$0xff] %vm205, %v2310
  %2327 = vst.msk [vmem:[#allocation5 + $0x50] sm:$0xff] %vm205, %v2311
  %2328 = vst.msk [vmem:[#allocation5 + $0x58] sm:$0xff] %vm205, %v2312
  %2329 = vst.msk [vmem:[#allocation5 + $0x60] sm:$0xff] %vm205, %v2313
  %2330 = vst.msk [vmem:[#allocation5 + $0x68] sm:$0xff] %vm205, %v2314
  %2331 = vst.msk [vmem:[#allocation5 + $0x70] sm:$0xff] %vm205, %v2315
  %2332 = vst.msk [vmem:[#allocation5 + $0x78] sm:$0xff] %vm205, %v2316
  %v2333 = vld [vmem:[%s2179 + $0x1] sm:$0xff]
  %v2334 = vld [vmem:[%s2179 + $0x11] sm:$0xff]
  %v2335 = vld [vmem:[%s2179 + $0x21] sm:$0xff]
  %v2336 = vld [vmem:[%s2179 + $0x31] sm:$0xff]
  %v2337 = vld [vmem:[%s2179 + $0x41] sm:$0xff]
  %v2338 = vld [vmem:[%s2179 + $0x51] sm:$0xff]
  %v2339 = vld [vmem:[%s2179 + $0x61] sm:$0xff]
  %v2340 = vld [vmem:[%s2179 + $0x71] sm:$0xff]
  %v2341 = vld [vmem:[%s2179 + $0xa1] sm:$0xff]
  %v2342 = vld [vmem:[%s2179 + $0xb1] sm:$0xff]
  %v2343 = vld [vmem:[%s2179 + $0xc1] sm:$0xff]
  %v2344 = vld [vmem:[%s2179 + $0xd1] sm:$0xff]
  %v2345 = vld [vmem:[%s2179 + $0xe1] sm:$0xff]
  %v2346 = vld [vmem:[%s2179 + $0xf1] sm:$0xff]
  %v2347 = vld [vmem:[%s2179 + $0x101] sm:$0xff]
  %v2348 = vld [vmem:[%s2179 + $0x111] sm:$0xff]
  %v2349 = vld [vmem:[%s7 + $0x38] sm:$0xf]
  %v2350 = vld [vmem:[%s7 + $0x3c] sm:$0xf]
  %v2351 = vld [vmem:[#allocation5] sm:$0xff]
  %v2352 = vld [vmem:[#allocation5 + $0x8] sm:$0xff]
  %v2353 = vld [vmem:[#allocation5 + $0x10] sm:$0xff]
  %v2354 = vld [vmem:[#allocation5 + $0x18] sm:$0xff]
  %v2355 = vld [vmem:[#allocation5 + $0x20] sm:$0xff]
  %v2356 = vld [vmem:[#allocation5 + $0x28] sm:$0xff]
  %v2357 = vld [vmem:[#allocation5 + $0x30] sm:$0xff]
  %v2358 = vld [vmem:[#allocation5 + $0x38] sm:$0xff]
  %v2359 = vld [vmem:[#allocation5 + $0x40] sm:$0xff]
  %v2360 = vld [vmem:[#allocation5 + $0x48] sm:$0xff]
  %v2361 = vld [vmem:[#allocation5 + $0x50] sm:$0xff]
  %v2362 = vld [vmem:[#allocation5 + $0x58] sm:$0xff]
  %v2363 = vld [vmem:[#allocation5 + $0x60] sm:$0xff]
  %v2364 = vld [vmem:[#allocation5 + $0x68] sm:$0xff]
  %v2365 = vld [vmem:[#allocation5 + $0x70] sm:$0xff]
  %v2366 = vld [vmem:[#allocation5 + $0x78] sm:$0xff]
  %v2367 = vpack.c.bf16 %v2334, %v2333
  %v2368 = vpack.c.bf16 %v2336, %v2335
  %v2369 = vpack.c.bf16 %v2338, %v2337
  %v2370 = vpack.c.bf16 %v2340, %v2339
  %v2371 = vpack.c.bf16 %v2342, %v2341
  %v2372 = vpack.c.bf16 %v2344, %v2343
  %v2373 = vpack.c.bf16 %v2346, %v2345
  %v2374 = vpack.c.bf16 %v2348, %v2347
  %v2377 = vunpack.c.l.b16 %v2349
  %v2378 = vunpack.c.l.b16 %v2350
  %v2379 = vpack.c.b16 %v2378, %v2377
  %v2382 = vsel %vm205, %v2367, 0
  %v2385 = vsel %vm205, %v2368, 0
  %v2388 = vsel %vm205, %v2369, 0
  %v2391 = vsel %vm205, %v2370, 0
  %v2394 = vsel %vm205, %v2371, 0
  %v2397 = vsel %vm205, %v2372, 0
  %v2400 = vsel %vm205, %v2373, 0
  %v2403 = vsel %vm205, %v2374, 0
  %2405 = vmatpush.bf16.msra.mxu0 0
  %2406 = vmatpush.bf16.msra.mxu0 0
  %2407 = vmatpush.bf16.msra.mxu0 0
  %2408 = vmatpush.bf16.msra.mxu0 0
  %2409 = vmatpush.bf16.msra.mxu0 0
  %2410 = vmatpush.bf16.msra.mxu0 0
  %2411 = vmatpush.bf16.msra.mxu0 0
  %2412 = vmatpush.bf16.msra.mxu0 %v2379
  %2413 = vmatmul.bf16.gmra.mxu0 %v2382
  %v2414 = vpop.f32.mrf.mxu0
  %v2415 = vadd.f32 0.0, %v2414
  %v2416 = vpop.f32.mrf.mxu0
  %v2417 = vadd.f32 0.0, %v2416
  %2418 = vmatmul.bf16.gmra.mxu0 %v2385
  %v2419 = vpop.f32.mrf.mxu0
  %v2420 = vadd.f32 0.0, %v2419
  %v2421 = vpop.f32.mrf.mxu0
  %v2422 = vadd.f32 0.0, %v2421
  %2423 = vmatmul.bf16.gmra.mxu0 %v2388
  %v2424 = vpop.f32.mrf.mxu0
  %v2425 = vadd.f32 0.0, %v2424
  %v2426 = vpop.f32.mrf.mxu0
  %v2427 = vadd.f32 0.0, %v2426
  %2428 = vmatmul.bf16.gmra.mxu0 %v2391
  %v2429 = vpop.f32.mrf.mxu0
  %v2430 = vadd.f32 0.0, %v2429
  %v2431 = vpop.f32.mrf.mxu0
  %v2432 = vadd.f32 0.0, %v2431
  %2433 = vmatmul.bf16.gmra.mxu0 %v2394
  %v2434 = vpop.f32.mrf.mxu0
  %v2435 = vadd.f32 0.0, %v2434
  %v2436 = vpop.f32.mrf.mxu0
  %v2437 = vadd.f32 0.0, %v2436
  %2438 = vmatmul.bf16.gmra.mxu0 %v2397
  %v2439 = vpop.f32.mrf.mxu0
  %v2440 = vadd.f32 0.0, %v2439
  %v2441 = vpop.f32.mrf.mxu0
  %v2442 = vadd.f32 0.0, %v2441
  %2443 = vmatmul.bf16.gmra.mxu0 %v2400
  %v2444 = vpop.f32.mrf.mxu0
  %v2445 = vadd.f32 0.0, %v2444
  %v2446 = vpop.f32.mrf.mxu0
  %v2447 = vadd.f32 0.0, %v2446
  %2448 = vmatmul.bf16.gmra.mxu0 %v2403
  %v2449 = vpop.f32.mrf.mxu0
  %v2450 = vadd.f32 0.0, %v2449
  %v2451 = vpop.f32.mrf.mxu0
  %v2452 = vadd.f32 0.0, %v2451
  %2453 = vdwg.mxu0
  %v2454 = vadd.f32 %v2351, %v2415
  %v2455 = vadd.f32 %v2352, %v2417
  %v2456 = vadd.f32 %v2353, %v2420
  %v2457 = vadd.f32 %v2354, %v2422
  %v2458 = vadd.f32 %v2355, %v2425
  %v2459 = vadd.f32 %v2356, %v2427
  %v2460 = vadd.f32 %v2357, %v2430
  %v2461 = vadd.f32 %v2358, %v2432
  %v2462 = vadd.f32 %v2359, %v2435
  %v2463 = vadd.f32 %v2360, %v2437
  %v2464 = vadd.f32 %v2361, %v2440
  %v2465 = vadd.f32 %v2362, %v2442
  %v2466 = vadd.f32 %v2363, %v2445
  %v2467 = vadd.f32 %v2364, %v2447
  %v2468 = vadd.f32 %v2365, %v2450
  %v2469 = vadd.f32 %v2366, %v2452
  %2470 = vst.msk [vmem:[#allocation5] sm:$0xff] %vm205, %v2454
  %2471 = vst.msk [vmem:[#allocation5 + $0x8] sm:$0xff] %vm205, %v2455
  %2472 = vst.msk [vmem:[#allocation5 + $0x10] sm:$0xff] %vm205, %v2456
  %2473 = vst.msk [vmem:[#allocation5 + $0x18] sm:$0xff] %vm205, %v2457
  %2474 = vst.msk [vmem:[#allocation5 + $0x20] sm:$0xff] %vm205, %v2458
  %2475 = vst.msk [vmem:[#allocation5 + $0x28] sm:$0xff] %vm205, %v2459
  %2476 = vst.msk [vmem:[#allocation5 + $0x30] sm:$0xff] %vm205, %v2460
  %2477 = vst.msk [vmem:[#allocation5 + $0x38] sm:$0xff] %vm205, %v2461
  %2478 = vst.msk [vmem:[#allocation5 + $0x40] sm:$0xff] %vm205, %v2462
  %2479 = vst.msk [vmem:[#allocation5 + $0x48] sm:$0xff] %vm205, %v2463
  %2480 = vst.msk [vmem:[#allocation5 + $0x50] sm:$0xff] %vm205, %v2464
  %2481 = vst.msk [vmem:[#allocation5 + $0x58] sm:$0xff] %vm205, %v2465
  %2482 = vst.msk [vmem:[#allocation5 + $0x60] sm:$0xff] %vm205, %v2466
  %2483 = vst.msk [vmem:[#allocation5 + $0x68] sm:$0xff] %vm205, %v2467
  %2484 = vst.msk [vmem:[#allocation5 + $0x70] sm:$0xff] %vm205, %v2468
  %2485 = vst.msk [vmem:[#allocation5 + $0x78] sm:$0xff] %vm205, %v2469
  %v2486 = vld [vmem:[%s2179 + $0x2] sm:$0xff]
  %v2487 = vld [vmem:[%s2179 + $0x12] sm:$0xff]
  %v2488 = vld [vmem:[%s2179 + $0x22] sm:$0xff]
  %v2489 = vld [vmem:[%s2179 + $0x32] sm:$0xff]
  %v2490 = vld [vmem:[%s2179 + $0x42] sm:$0xff]
  %v2491 = vld [vmem:[%s2179 + $0x52] sm:$0xff]
  %v2492 = vld [vmem:[%s2179 + $0x62] sm:$0xff]
  %v2493 = vld [vmem:[%s2179 + $0x72] sm:$0xff]
  %v2494 = vld [vmem:[%s2179 + $0xa2] sm:$0xff]
  %v2495 = vld [vmem:[%s2179 + $0xb2] sm:$0xff]
  %v2496 = vld [vmem:[%s2179 + $0xc2] sm:$0xff]
  %v2497 = vld [vmem:[%s2179 + $0xd2] sm:$0xff]
  %v2498 = vld [vmem:[%s2179 + $0xe2] sm:$0xff]
  %v2499 = vld [vmem:[%s2179 + $0xf2] sm:$0xff]
  %v2500 = vld [vmem:[%s2179 + $0x102] sm:$0xff]
  %v2501 = vld [vmem:[%s2179 + $0x112] sm:$0xff]
  %v2502 = vld [vmem:[%s7 + $0x40] sm:$0xf]
  %v2503 = vld [vmem:[%s7 + $0x44] sm:$0xf]
  %v2504 = vld [vmem:[#allocation5] sm:$0xff]
  %v2505 = vld [vmem:[#allocation5 + $0x8] sm:$0xff]
  %v2506 = vld [vmem:[#allocation5 + $0x10] sm:$0xff]
  %v2507 = vld [vmem:[#allocation5 + $0x18] sm:$0xff]
  %v2508 = vld [vmem:[#allocation5 + $0x20] sm:$0xff]
  %v2509 = vld [vmem:[#allocation5 + $0x28] sm:$0xff]
  %v2510 = vld [vmem:[#allocation5 + $0x30] sm:$0xff]
  %v2511 = vld [vmem:[#allocation5 + $0x38] sm:$0xff]
  %v2512 = vld [vmem:[#allocation5 + $0x40] sm:$0xff]
  %v2513 = vld [vmem:[#allocation5 + $0x48] sm:$0xff]
  %v2514 = vld [vmem:[#allocation5 + $0x50] sm:$0xff]
  %v2515 = vld [vmem:[#allocation5 + $0x58] sm:$0xff]
  %v2516 = vld [vmem:[#allocation5 + $0x60] sm:$0xff]
  %v2517 = vld [vmem:[#allocation5 + $0x68] sm:$0xff]
  %v2518 = vld [vmem:[#allocation5 + $0x70] sm:$0xff]
  %v2519 = vld [vmem:[#allocation5 + $0x78] sm:$0xff]
  %v2520 = vpack.c.bf16 %v2487, %v2486
  %v2521 = vpack.c.bf16 %v2489, %v2488
  %v2522 = vpack.c.bf16 %v2491, %v2490
  %v2523 = vpack.c.bf16 %v2493, %v2492
  %v2524 = vpack.c.bf16 %v2495, %v2494
  %v2525 = vpack.c.bf16 %v2497, %v2496
  %v2526 = vpack.c.bf16 %v2499, %v2498
  %v2527 = vpack.c.bf16 %v2501, %v2500
  %v2530 = vunpack.c.l.b16 %v2502
  %v2531 = vunpack.c.l.b16 %v2503
  %v2532 = vpack.c.b16 %v2531, %v2530
  %v2535 = vsel %vm205, %v2520, 0
  %v2538 = vsel %vm205, %v2521, 0
  %v2541 = vsel %vm205, %v2522, 0
  %v2544 = vsel %vm205, %v2523, 0
  %v2547 = vsel %vm205, %v2524, 0
  %v2550 = vsel %vm205, %v2525, 0
  %v2553 = vsel %vm205, %v2526, 0
  %v2556 = vsel %vm205, %v2527, 0
  %2558 = vmatpush.bf16.msra.mxu0 0
  %2559 = vmatpush.bf16.msra.mxu0 0
  %2560 = vmatpush.bf16.msra.mxu0 0
  %2561 = vmatpush.bf16.msra.mxu0 0
  %2562 = vmatpush.bf16.msra.mxu0 0
  %2563 = vmatpush.bf16.msra.mxu0 0
  %2564 = vmatpush.bf16.msra.mxu0 0
  %2565 = vmatpush.bf16.msra.mxu0 %v2532
  %2566 = vmatmul.bf16.gmra.mxu0 %v2535
  %v2567 = vpop.f32.mrf.mxu0
  %v2568 = vadd.f32 0.0, %v2567
  %v2569 = vpop.f32.mrf.mxu0
  %v2570 = vadd.f32 0.0, %v2569
  %2571 = vmatmul.bf16.gmra.mxu0 %v2538
  %v2572 = vpop.f32.mrf.mxu0
  %v2573 = vadd.f32 0.0, %v2572
  %v2574 = vpop.f32.mrf.mxu0
  %v2575 = vadd.f32 0.0, %v2574
  %2576 = vmatmul.bf16.gmra.mxu0 %v2541
  %v2577 = vpop.f32.mrf.mxu0
  %v2578 = vadd.f32 0.0, %v2577
  %v2579 = vpop.f32.mrf.mxu0
  %v2580 = vadd.f32 0.0, %v2579
  %2581 = vmatmul.bf16.gmra.mxu0 %v2544
  %v2582 = vpop.f32.mrf.mxu0
  %v2583 = vadd.f32 0.0, %v2582
  %v2584 = vpop.f32.mrf.mxu0
  %v2585 = vadd.f32 0.0, %v2584
  %2586 = vmatmul.bf16.gmra.mxu0 %v2547
  %v2587 = vpop.f32.mrf.mxu0
  %v2588 = vadd.f32 0.0, %v2587
  %v2589 = vpop.f32.mrf.mxu0
  %v2590 = vadd.f32 0.0, %v2589
  %2591 = vmatmul.bf16.gmra.mxu0 %v2550
  %v2592 = vpop.f32.mrf.mxu0
  %v2593 = vadd.f32 0.0, %v2592
  %v2594 = vpop.f32.mrf.mxu0
  %v2595 = vadd.f32 0.0, %v2594
  %2596 = vmatmul.bf16.gmra.mxu0 %v2553
  %v2597 = vpop.f32.mrf.mxu0
  %v2598 = vadd.f32 0.0, %v2597
  %v2599 = vpop.f32.mrf.mxu0
  %v2600 = vadd.f32 0.0, %v2599
  %2601 = vmatmul.bf16.gmra.mxu0 %v2556
  %v2602 = vpop.f32.mrf.mxu0
  %v2603 = vadd.f32 0.0, %v2602
  %v2604 = vpop.f32.mrf.mxu0
  %v2605 = vadd.f32 0.0, %v2604
  %2606 = vdwg.mxu0
  %v2607 = vadd.f32 %v2504, %v2568
  %v2608 = vadd.f32 %v2505, %v2570
  %v2609 = vadd.f32 %v2506, %v2573
  %v2610 = vadd.f32 %v2507, %v2575
  %v2611 = vadd.f32 %v2508, %v2578
  %v2612 = vadd.f32 %v2509, %v2580
  %v2613 = vadd.f32 %v2510, %v2583
  %v2614 = vadd.f32 %v2511, %v2585
  %v2615 = vadd.f32 %v2512, %v2588
  %v2616 = vadd.f32 %v2513, %v2590
  %v2617 = vadd.f32 %v2514, %v2593
  %v2618 = vadd.f32 %v2515, %v2595
  %v2619 = vadd.f32 %v2516, %v2598
  %v2620 = vadd.f32 %v2517, %v2600
  %v2621 = vadd.f32 %v2518, %v2603
  %v2622 = vadd.f32 %v2519, %v2605
  %2623 = vst.msk [vmem:[#allocation5] sm:$0xff] %vm205, %v2607
  %2624 = vst.msk [vmem:[#allocation5 + $0x8] sm:$0xff] %vm205, %v2608
  %2625 = vst.msk [vmem:[#allocation5 + $0x10] sm:$0xff] %vm205, %v2609
  %2626 = vst.msk [vmem:[#allocation5 + $0x18] sm:$0xff] %vm205, %v2610
  %2627 = vst.msk [vmem:[#allocation5 + $0x20] sm:$0xff] %vm205, %v2611
  %2628 = vst.msk [vmem:[#allocation5 + $0x28] sm:$0xff] %vm205, %v2612
  %2629 = vst.msk [vmem:[#allocation5 + $0x30] sm:$0xff] %vm205, %v2613
  %2630 = vst.msk [vmem:[#allocation5 + $0x38] sm:$0xff] %vm205, %v2614
  %2631 = vst.msk [vmem:[#allocation5 + $0x40] sm:$0xff] %vm205, %v2615
  %2632 = vst.msk [vmem:[#allocation5 + $0x48] sm:$0xff] %vm205, %v2616
  %2633 = vst.msk [vmem:[#allocation5 + $0x50] sm:$0xff] %vm205, %v2617
  %2634 = vst.msk [vmem:[#allocation5 + $0x58] sm:$0xff] %vm205, %v2618
  %2635 = vst.msk [vmem:[#allocation5 + $0x60] sm:$0xff] %vm205, %v2619
  %2636 = vst.msk [vmem:[#allocation5 + $0x68] sm:$0xff] %vm205, %v2620
  %2637 = vst.msk [vmem:[#allocation5 + $0x70] sm:$0xff] %vm205, %v2621
  %2638 = vst.msk [vmem:[#allocation5 + $0x78] sm:$0xff] %vm205, %v2622
  %v2639 = vld [vmem:[#allocation5] sm:$0xff]
  %v2640 = vld [vmem:[#allocation5 + $0x8] sm:$0xff]
  %v2641 = vld [vmem:[#allocation5 + $0x10] sm:$0xff]
  %v2642 = vld [vmem:[#allocation5 + $0x18] sm:$0xff]
  %v2643 = vld [vmem:[#allocation5 + $0x20] sm:$0xff]
  %v2644 = vld [vmem:[#allocation5 + $0x28] sm:$0xff]
  %v2645 = vld [vmem:[#allocation5 + $0x30] sm:$0xff]
  %v2646 = vld [vmem:[#allocation5 + $0x38] sm:$0xff]
  %v2647 = vld [vmem:[#allocation5 + $0x40] sm:$0xff]
  %v2648 = vld [vmem:[#allocation5 + $0x48] sm:$0xff]
  %v2649 = vld [vmem:[#allocation5 + $0x50] sm:$0xff]
  %v2650 = vld [vmem:[#allocation5 + $0x58] sm:$0xff]
  %v2651 = vld [vmem:[#allocation5 + $0x60] sm:$0xff]
  %v2652 = vld [vmem:[#allocation5 + $0x68] sm:$0xff]
  %v2653 = vld [vmem:[#allocation5 + $0x70] sm:$0xff]
  %v2654 = vld [vmem:[#allocation5 + $0x78] sm:$0xff]
  %v2655 = vld [vmem:[%s8] sm:$0x1]
  %v2657 = vperm.slane %v2655, 0
  %v2659 = vadd.f32 %v2639, %v2657
  %v2660 = vadd.f32 %v2640, %v2657
  %v2661 = vadd.f32 %v2641, %v2657
  %v2662 = vadd.f32 %v2642, %v2657
  %v2663 = vadd.f32 %v2643, %v2657
  %v2664 = vadd.f32 %v2644, %v2657
  %v2665 = vadd.f32 %v2645, %v2657
  %v2666 = vadd.f32 %v2646, %v2657
  %v2667 = vadd.f32 %v2647, %v2657
  %v2668 = vadd.f32 %v2648, %v2657
  %v2669 = vadd.f32 %v2649, %v2657
  %v2670 = vadd.f32 %v2650, %v2657
  %v2671 = vadd.f32 %v2651, %v2657
  %v2672 = vadd.f32 %v2652, %v2657
  %v2673 = vadd.f32 %v2653, %v2657
  %v2674 = vadd.f32 %v2654, %v2657
  %v2675 = vpack.c.bf16 %v40, %v39
  %v2676 = vpack.c.bf16 %v42, %v41
  %v2677 = vpack.c.bf16 %v44, %v43
  %v2678 = vpack.c.bf16 %v46, %v45
  %v2679 = vpack.c.bf16 %v48, %v47
  %v2680 = vpack.c.bf16 %v50, %v49
  %v2681 = vpack.c.bf16 %v52, %v51
  %v2682 = vpack.c.bf16 %v54, %v53
  %v2683 = vld [vmem:[%s9] sm:$0xf]
  %v2684 = vld [vmem:[%s10] sm:$0x1]
  %v2686 = vperm.slane %v2684, 0
  %v2689 = vsel %vm203, %v2675, 0
  %v2692 = vsel %vm203, %v2676, 0
  %v2695 = vsel %vm203, %v2677, 0
  %v2698 = vsel %vm203, %v2678, 0
  %v2701 = vsel %vm203, %v2679, 0
  %v2704 = vsel %vm203, %v2680, 0
  %v2707 = vsel %vm203, %v2681, 0
  %v2710 = vsel %vm203, %v2682, 0
  %vm2712 = vcmask 1043456
  %v2714 = vsel %vm2712, %v2683, 0
  %2716 = vmatpush.bf16.msra.mxu0 0
  %2717 = vmatpush.bf16.msra.mxu0 0
  %2718 = vmatpush.bf16.msra.mxu0 0
  %2719 = vmatpush.bf16.msra.mxu0 0
  %2720 = vmatpush.bf16.msra.mxu0 0
  %2721 = vmatpush.bf16.msra.mxu0 0
  %2722 = vmatpush.bf16.msra.mxu0 0
  %2723 = vmatpush.bf16.msra.mxu0 %v2714
  %2724 = vmatmul.bf16.gmra.mxu0 %v2689
  %v2725 = vpop.f32.mrf.mxu0
  %v2726 = vadd.f32 %v2686, %v2725
  %v2727 = vpop.f32.mrf.mxu0
  %v2728 = vadd.f32 %v2686, %v2727
  %2729 = vmatmul.bf16.gmra.mxu0 %v2692
  %v2730 = vpop.f32.mrf.mxu0
  %v2731 = vadd.f32 %v2686, %v2730
  %v2732 = vpop.f32.mrf.mxu0
  %v2733 = vadd.f32 %v2686, %v2732
  %2734 = vmatmul.bf16.gmra.mxu0 %v2695
  %v2735 = vpop.f32.mrf.mxu0
  %v2736 = vadd.f32 %v2686, %v2735
  %v2737 = vpop.f32.mrf.mxu0
  %v2738 = vadd.f32 %v2686, %v2737
  %2739 = vmatmul.bf16.gmra.mxu0 %v2698
  %v2740 = vpop.f32.mrf.mxu0
  %v2741 = vadd.f32 %v2686, %v2740
  %v2742 = vpop.f32.mrf.mxu0
  %v2743 = vadd.f32 %v2686, %v2742
  %2744 = vmatmul.bf16.gmra.mxu0 %v2701
  %v2745 = vpop.f32.mrf.mxu0
  %v2746 = vadd.f32 %v2686, %v2745
  %v2747 = vpop.f32.mrf.mxu0
  %v2748 = vadd.f32 %v2686, %v2747
  %2749 = vmatmul.bf16.gmra.mxu0 %v2704
  %v2750 = vpop.f32.mrf.mxu0
  %v2751 = vadd.f32 %v2686, %v2750
  %v2752 = vpop.f32.mrf.mxu0
  %v2753 = vadd.f32 %v2686, %v2752
  %2754 = vmatmul.bf16.gmra.mxu0 %v2707
  %v2755 = vpop.f32.mrf.mxu0
  %v2756 = vadd.f32 %v2686, %v2755
  %v2757 = vpop.f32.mrf.mxu0
  %v2758 = vadd.f32 %v2686, %v2757
  %2759 = vmatmul.bf16.gmra.mxu0 %v2710
  %v2760 = vpop.f32.mrf.mxu0
  %v2761 = vadd.f32 %v2686, %v2760
  %v2762 = vpop.f32.mrf.mxu0
  %v2763 = vadd.f32 %v2686, %v2762
  %2764 = vdwg.mxu0
  %v2765 = vadd.f32 %v2659, %v2726
  %v2766 = vadd.f32 %v2660, %v2728
  %v2767 = vadd.f32 %v2661, %v2731
  %v2768 = vadd.f32 %v2662, %v2733
  %v2769 = vadd.f32 %v2663, %v2736
  %v2770 = vadd.f32 %v2664, %v2738
  %v2771 = vadd.f32 %v2665, %v2741
  %v2772 = vadd.f32 %v2666, %v2743
  %v2773 = vadd.f32 %v2667, %v2746
  %v2774 = vadd.f32 %v2668, %v2748
  %v2775 = vadd.f32 %v2669, %v2751
  %v2776 = vadd.f32 %v2670, %v2753
  %v2777 = vadd.f32 %v2671, %v2756
  %v2778 = vadd.f32 %v2672, %v2758
  %v2779 = vadd.f32 %v2673, %v2761
  %v2780 = vadd.f32 %v2674, %v2763
  %v2781 = vpack.c.bf16 %v2765, %v2765
  %v2782 = vpack.c.bf16 %v2766, %v2766
  %v2783 = vpack.c.bf16 %v2767, %v2767
  %v2784 = vpack.c.bf16 %v2768, %v2768
  %v2785 = vpack.c.bf16 %v2769, %v2769
  %v2786 = vpack.c.bf16 %v2770, %v2770
  %v2787 = vpack.c.bf16 %v2771, %v2771
  %v2788 = vpack.c.bf16 %v2772, %v2772
  %v2789 = vpack.c.bf16 %v2773, %v2773
  %v2790 = vpack.c.bf16 %v2774, %v2774
  %v2791 = vpack.c.bf16 %v2775, %v2775
  %v2792 = vpack.c.bf16 %v2776, %v2776
  %v2793 = vpack.c.bf16 %v2777, %v2777
  %v2794 = vpack.c.bf16 %v2778, %v2778
  %v2795 = vpack.c.bf16 %v2779, %v2779
  %v2796 = vpack.c.bf16 %v2780, %v2780
  %vm2797 = vcmask 125952
  %2798 = vst.msk [vmem:[%s11] sm:$0xf] %vm2797, %v2781
  %2799 = vst.msk [vmem:[%s11 + $0x4] sm:$0xf] %vm2797, %v2782
  %2800 = vst.msk [vmem:[%s11 + $0x8] sm:$0xf] %vm2797, %v2783
  %2801 = vst.msk [vmem:[%s11 + $0xc] sm:$0xf] %vm2797, %v2784
  %2802 = vst.msk [vmem:[%s11 + $0x10] sm:$0xf] %vm2797, %v2785
  %2803 = vst.msk [vmem:[%s11 + $0x14] sm:$0xf] %vm2797, %v2786
  %2804 = vst.msk [vmem:[%s11 + $0x18] sm:$0xf] %vm2797, %v2787
  %2805 = vst.msk [vmem:[%s11 + $0x1c] sm:$0xf] %vm2797, %v2788
  %2806 = vst.msk [vmem:[%s11 + $0x20] sm:$0xf] %vm2797, %v2789
  %2807 = vst.msk [vmem:[%s11 + $0x24] sm:$0xf] %vm2797, %v2790
  %2808 = vst.msk [vmem:[%s11 + $0x28] sm:$0xf] %vm2797, %v2791
  %2809 = vst.msk [vmem:[%s11 + $0x2c] sm:$0xf] %vm2797, %v2792
  %2810 = vst.msk [vmem:[%s11 + $0x30] sm:$0xf] %vm2797, %v2793
  %2811 = vst.msk [vmem:[%s11 + $0x34] sm:$0xf] %vm2797, %v2794
  %2812 = vst.msk [vmem:[%s11 + $0x38] sm:$0xf] %vm2797, %v2795
  %2813 = vst.msk [vmem:[%s11 + $0x3c] sm:$0xf] %vm2797, %v2796
  // Predicated region
  $region46: #{forward.2} parent=0 // pred_check
    _
  $region47: #{forward.2} parent=0 // pred_check_branch
    %2815 = sbr.rel (0) target = $region49
  $region48: #{forward.2} parent=0 // pred_region
    _
  $region49: #{forward.2} parent=0 // pred_fallthru
    _
  // Predicated region
  $region50: #{forward.2} parent=0 // pred_check
    _
  $region51: #{forward.2} parent=0 // pred_check_branch
    %2817 = sbr.rel (0) target = $region53
  $region52: #{forward.2} parent=0 // pred_region
    _
  $region53: #{forward.2} parent=0 // pred_fallthru
    _

// kernel: forward.3
$region0: #{forward.3}
  #allocation0 [shape = 'u32[]', space=smem, size = 0x4, offset = 0x4, fixed_abs, tag = 'smem constant byte address 0x4 - core index']
  #allocation1 [shape = 'u32[72,128]{1,0:T(1,128)}', space=vmem, size = 0x9000, scoped, tag = 'internal scratch']
  #allocation2 [shape = 'f32[2,10,10,16]{3,2,1,0:T(8,128)}', space=vmem, size = 0x28000, scoped, tag = 'scratch operand']
  #allocation3 [shape = 'f32[128,16]{1,0:T(8,128)}', space=vmem, size = 0x10000, scoped, tag = 'scratch operand']
  #allocation4 [shape = 'f32[2,10,10,16]{3,2,1,0:T(8,128)}', space=vmem, size = 0x28000, scoped, tag = 'scratch operand']
  #allocation5 [shape = 'f32[128,16]{1,0:T(8,128)}', space=vmem, size = 0x10000, scoped, tag = 'scratch operand']
  %s0 = inlined_call_operand.vmem [shape: bf16[2,8,8,16], index: 0, kind: input, shape index: {}]
  %s1 = inlined_call_operand.vmem [shape: f32[1,16], index: 1, kind: input, shape index: {}]
  %s2 = inlined_call_operand.vmem [shape: f32[1,16], index: 2, kind: input, shape index: {}]
  %s3 = inlined_call_operand.vmem [shape: bf16[144,16], index: 3, kind: input, shape index: {}]
  %s4 = inlined_call_operand.vmem [shape: f32[1,16], index: 4, kind: input, shape index: {}]
  %s5 = inlined_call_operand.vmem [shape: f32[1,16], index: 5, kind: input, shape index: {}]
  %s6 = inlined_call_operand.vmem [shape: f32[1,16], index: 6, kind: input, shape index: {}]
  %s7 = inlined_call_operand.vmem [shape: bf16[144,16], index: 7, kind: input, shape index: {}]
  %s8 = inlined_call_operand.vmem [shape: f32[1,16], index: 8, kind: input, shape index: {}]
  %s9 = inlined_call_operand.hbm [shape: f32[2,8,8,16], index: 9, kind: output, shape index: {}]
  %s10 = sld [smem:[#allocation0]]
  $region46: #{forward.3} parent=0
    _
  %s12 = ssub.s32 1, %s10
  %s13 = scalar_select 0, %s12, %s10
  $region1: #{forward.3} parent=0
    #allocation6 [shape = 'u8[65536]{0}', space=vmem, size = 0x10000, scoped, tag = 'output window, operand 0, single buffered']
    #allocation7 [shape = 's32[1]{0}', space=sflag, size = 0x4, scoped, tag = 'scoped memory for forward.3']
    %14 = vsyncpa [#allocation7], 0
    // Predicated region
    $region2: #{forward.3} parent=1 // pred_check
      _
    $region3: #{forward.3} parent=1 // pred_check_branch
      %16 = sbr.rel (0) target = $region5
    $region4: #{forward.3} parent=1 // pred_region
      _
    $region5: #{forward.3} parent=1 // pred_fallthru
      _
    // Predicated region
    $region6: #{forward.3} parent=1 // pred_check
      _
    $region7: #{forward.3} parent=1 // pred_check_branch
      %18 = sbr.rel (0) target = $region9
    $region8: #{forward.3} parent=1 // pred_region
      _
    $region9: #{forward.3} parent=1 // pred_fallthru
      _
    // Predicated region
    $region10: #{forward.3} parent=1 // pred_check
      _
    $region11: #{forward.3} parent=1 // pred_check_branch
      %20 = sbr.rel (0) target = $region13
    $region12: #{forward.3} parent=1 // pred_region
      _
    $region13: #{forward.3} parent=1 // pred_fallthru
      _
    // Predicated region
    $region14: #{forward.3} parent=1 // pred_check
      _
    $region15: #{forward.3} parent=1 // pred_check_branch
      %22 = sbr.rel (0) target = $region17
    $region16: #{forward.3} parent=1 // pred_region
      _
    $region17: #{forward.3} parent=1 // pred_fallthru
      _
    // Predicated region
    $region18: #{forward.3} parent=1 // pred_check
      _
    $region19: #{forward.3} parent=1 // pred_check_branch
      %24 = sbr.rel (0) target = $region21
    $region20: #{forward.3} parent=1 // pred_region
      _
    $region21: #{forward.3} parent=1 // pred_fallthru
      _
    // Predicated region
    $region22: #{forward.3} parent=1 // pred_check
      _
    $region23: #{forward.3} parent=1 // pred_check_branch
      %26 = sbr.rel (0) target = $region25
    $region24: #{forward.3} parent=1 // pred_region
      _
    $region25: #{forward.3} parent=1 // pred_fallthru
      _
    // Predicated region
    $region26: #{forward.3} parent=1 // pred_check
      _
    $region27: #{forward.3} parent=1 // pred_check_branch
      %28 = sbr.rel (0) target = $region29
    $region28: #{forward.3} parent=1 // pred_region
      _
    $region29: #{forward.3} parent=1 // pred_fallthru
      _
    // Predicated region
    $region30: #{forward.3} parent=1 // pred_check
      _
    $region31: #{forward.3} parent=1 // pred_check_branch
      %30 = sbr.rel (0) target = $region33
    $region32: #{forward.3} parent=1 // pred_region
      _
    $region33: #{forward.3} parent=1 // pred_fallthru
      _
    // Predicated region
    $region34: #{forward.3} parent=1 // pred_check
      _
    $region35: #{forward.3} parent=1 // pred_check_branch
      %32 = sbr.rel (0) target = $region37
    $region36: #{forward.3} parent=1 // pred_region
      _
    $region37: #{forward.3} parent=1 // pred_fallthru
      _
    %v34 = vld [vmem:[%s0] sm:$0xf]
    %v35 = vld [vmem:[%s0 + $0x4] sm:$0xf]
    %v36 = vld [vmem:[%s0 + $0x8] sm:$0xf]
    %v37 = vld [vmem:[%s0 + $0xc] sm:$0xf]
    %v38 = vld [vmem:[%s0 + $0x10] sm:$0xf]
    %v39 = vld [vmem:[%s0 + $0x14] sm:$0xf]
    %v40 = vld [vmem:[%s0 + $0x18] sm:$0xf]
    %v41 = vld [vmem:[%s0 + $0x1c] sm:$0xf]
    %v42 = vld [vmem:[%s0 + $0x20] sm:$0xf]
    %v43 = vld [vmem:[%s0 + $0x24] sm:$0xf]
    %v44 = vld [vmem:[%s0 + $0x28] sm:$0xf]
    %v45 = vld [vmem:[%s0 + $0x2c] sm:$0xf]
    %v46 = vld [vmem:[%s0 + $0x30] sm:$0xf]
    %v47 = vld [vmem:[%s0 + $0x34] sm:$0xf]
    %v48 = vld [vmem:[%s0 + $0x38] sm:$0xf]
    %v49 = vld [vmem:[%s0 + $0x3c] sm:$0xf]
    %v50 = vunpack.c.l.bf16 %v34
    %v51 = vunpack.c.l.bf16 %v35
    %v52 = vunpack.c.l.bf16 %v36
    %v53 = vunpack.c.l.bf16 %v37
    %v54 = vunpack.c.l.bf16 %v38
    %v55 = vunpack.c.l.bf16 %v39
    %v56 = vunpack.c.l.bf16 %v40
    %v57 = vunpack.c.l.bf16 %v41
    %v58 = vunpack.c.l.bf16 %v42
    %v59 = vunpack.c.l.bf16 %v43
    %v60 = vunpack.c.l.bf16 %v44
    %v61 = vunpack.c.l.bf16 %v45
    %v62 = vunpack.c.l.bf16 %v46
    %v63 = vunpack.c.l.bf16 %v47
    %v64 = vunpack.c.l.bf16 %v48
    %v65 = vunpack.c.l.bf16 %v49
    %vm66 = vcmask 130048
    %v67 = vsel %vm66, %v50, 0.0
    %v68 = vsel %vm66, %v51, 0.0
    %v69 = vadd.f32 %v67, %v68
    %v70 = vsel %vm66, %v52, 0.0
    %v71 = vadd.f32 %v69, %v70
    %v72 = vsel %vm66, %v53, 0.0
    %v73 = vadd.f32 %v71, %v72
    %v74 = vsel %vm66, %v54, 0.0
    %v75 = vadd.f32 %v73, %v74
    %v76 = vsel %vm66, %v55, 0.0
    %v77 = vadd.f32 %v75, %v76
    %v78 = vsel %vm66, %v56, 0.0
    %v79 = vadd.f32 %v77, %v78
    %v80 = vsel %vm66, %v57, 0.0
    %v81 = vadd.f32 %v79, %v80
    %v82 = vsel %vm66, %v58, 0.0
    %v83 = vadd.f32 %v81, %v82
    %v84 = vsel %vm66, %v59, 0.0
    %v85 = vadd.f32 %v83, %v84
    %v86 = vsel %vm66, %v60, 0.0
    %v87 = vadd.f32 %v85, %v86
    %v88 = vsel %vm66, %v61, 0.0
    %v89 = vadd.f32 %v87, %v88
    %v90 = vsel %vm66, %v62, 0.0
    %v91 = vadd.f32 %v89, %v90
    %v92 = vsel %vm66, %v63, 0.0
    %v93 = vadd.f32 %v91, %v92
    %v94 = vsel %vm66, %v64, 0.0
    %v95 = vadd.f32 %v93, %v94
    %v96 = vsel %vm66, %v65, 0.0
    %v97 = vadd.f32 %v95, %v96
    %v98 = vrot.slane %v97, 4
    %v99 = vadd.f32 %v97, %v98
    %v100 = vrot.slane %v99, 2
    %v101 = vadd.f32 %v99, %v100
    %v102 = vrot.slane %v101, 1
    %v103 = vadd.f32 %v101, %v102
    %v104 = vmul.f32 %v50, %v50
    %v105 = vmul.f32 %v51, %v51
    %v106 = vmul.f32 %v52, %v52
    %v107 = vmul.f32 %v53, %v53
    %v108 = vmul.f32 %v54, %v54
    %v109 = vmul.f32 %v55, %v55
    %v110 = vmul.f32 %v56, %v56
    %v111 = vmul.f32 %v57, %v57
    %v112 = vmul.f32 %v58, %v58
    %v113 = vmul.f32 %v59, %v59
    %v114 = vmul.f32 %v60, %v60
    %v115 = vmul.f32 %v61, %v61
    %v116 = vmul.f32 %v62, %v62
    %v117 = vmul.f32 %v63, %v63
    %v118 = vmul.f32 %v64, %v64
    %v119 = vmul.f32 %v65, %v65
    %v120 = vsel %vm66, %v104, 0.0
    %v121 = vsel %vm66, %v105, 0.0
    %v122 = vadd.f32 %v120, %v121
    %v123 = vsel %vm66, %v106, 0.0
    %v124 = vadd.f32 %v122, %v123
    %v125 = vsel %vm66, %v107, 0.0
    %v126 = vadd.f32 %v124, %v125
    %v127 = vsel %vm66, %v108, 0.0
    %v128 = vadd.f32 %v126, %v127
    %v129 = vsel %vm66, %v109, 0.0
    %v130 = vadd.f32 %v128, %v129
    %v131 = vsel %vm66, %v110, 0.0
    %v132 = vadd.f32 %v130, %v131
    %v133 = vsel %vm66, %v111, 0.0
    %v134 = vadd.f32 %v132, %v133
    %v135 = vsel %vm66, %v112, 0.0
    %v136 = vadd.f32 %v134, %v135
    %v137 = vsel %vm66, %v113, 0.0
    %v138 = vadd.f32 %v136, %v137
    %v139 = vsel %vm66, %v114, 0.0
    %v140 = vadd.f32 %v138, %v139
    %v141 = vsel %vm66, %v115, 0.0
    %v142 = vadd.f32 %v140, %v141
    %v143 = vsel %vm66, %v116, 0.0
    %v144 = vadd.f32 %v142, %v143
    %v145 = vsel %vm66, %v117, 0.0
    %v146 = vadd.f32 %v144, %v145
    %v147 = vsel %vm66, %v118, 0.0
    %v148 = vadd.f32 %v146, %v147
    %v149 = vsel %vm66, %v119, 0.0
    %v150 = vadd.f32 %v148, %v149
    %v151 = vrot.slane %v150, 4
    %v152 = vadd.f32 %v150, %v151
    %v153 = vrot.slane %v152, 2
    %v154 = vadd.f32 %v152, %v153
    %v155 = vrot.slane %v154, 1
    %v156 = vadd.f32 %v154, %v155
    %v157 = vmul.f32 %v103, 0.0078125
    %v158 = vmul.f32 %v156, 0.0078125
    %v159 = vmul.f32 %v157, %v157
    %v160 = vsub.f32 %v158, %v159
    %v161 = vld [vmem:[%s1] sm:$0x1]
    %v162 = vadd.f32 %v160, 1e-05
    %v163 = vrsqrt.pop %v162
    %v164 = vmul.f32 %v163, %v162
    %v165 = vmul.f32 %v164, %v163
    %v166 = vmul.f32 0.5, %v165
    %v167 = vsub.f32 1.5, %v166
    %v168 = vmul.f32 %v163, %v167
    %vm169 = vweird.f32 %v162
    %vm170 = vweird.f32 %v163
    %vm171 = vmor %vm169, %vm170
    %v172 = vsel %vm171, %v163, %v168
    %v173 = vmul.f32 %v161, %v172
    %v174 = vld [vmem:[%s2] sm:$0x1]
    %v175 = vmul.f32 %v157, %v173
    %v176 = vsub.f32 %v174, %v175
    %v178 = vperm.slane %v173, 0
    %v180 = vmul.f32 %v50, %v178
    %v181 = vmul.f32 %v51, %v178
    %v182 = vmul.f32 %v52, %v178
    %v183 = vmul.f32 %v53, %v178
    %v184 = vmul.f32 %v54, %v178
    %v185 = vmul.f32 %v55, %v178
    %v186 = vmul.f32 %v56, %v178
    %v187 = vmul.f32 %v57, %v178
    %v188 = vmul.f32 %v58, %v178
    %v189 = vmul.f32 %v59, %v178
    %v190 = vmul.f32 %v60, %v178
    %v191 = vmul.f32 %v61, %v178
    %v192 = vmul.f32 %v62, %v178
    %v193 = vmul.f32 %v63, %v178
    %v194 = vmul.f32 %v64, %v178
    %v195 = vmul.f32 %v65, %v178
    %v197 = vperm.slane %v176, 0
    %v199 = vadd.f32 %v180, %v197
    %v200 = vadd.f32 %v181, %v197
    %v201 = vadd.f32 %v182, %v197
    %v202 = vadd.f32 %v183, %v197
    %v203 = vadd.f32 %v184, %v197
    %v204 = vadd.f32 %v185, %v197
    %v205 = vadd.f32 %v186, %v197
    %v206 = vadd.f32 %v187, %v197
    %v207 = vadd.f32 %v188, %v197
    %v208 = vadd.f32 %v189, %v197
    %v209 = vadd.f32 %v190, %v197
    %v210 = vadd.f32 %v191, %v197
    %v211 = vadd.f32 %v192, %v197
    %v212 = vadd.f32 %v193, %v197
    %v213 = vadd.f32 %v194, %v197
    %v214 = vadd.f32 %v195, %v197
    %v215 = vmax.f32 %v199, 0.0
    %v216 = vmax.f32 %v200, 0.0
    %v217 = vmax.f32 %v201, 0.0
    %v218 = vmax.f32 %v202, 0.0
    %v219 = vmax.f32 %v203, 0.0
    %v220 = vmax.f32 %v204, 0.0
    %v221 = vmax.f32 %v205, 0.0
    %v222 = vmax.f32 %v206, 0.0
    %v223 = vmax.f32 %v207, 0.0
    %v224 = vmax.f32 %v208, 0.0
    %v225 = vmax.f32 %v209, 0.0
    %v226 = vmax.f32 %v210, 0.0
    %v227 = vmax.f32 %v211, 0.0
    %v228 = vmax.f32 %v212, 0.0
    %v229 = vmax.f32 %v213, 0.0
    %v230 = vmax.f32 %v214, 0.0
    %231 = vst.msk [vmem:[#allocation2] sm:$0xff] %vm66, 0.0
    %vm232 = vcmask 123904
    %233 = vst.msk [vmem:[#allocation2 + $0x8] sm:$0x3] %vm232, 0.0
    %234 = vst.msk [vmem:[#allocation2 + $0x10] sm:$0xff] %vm66, 0.0
    %235 = vst.msk [vmem:[#allocation2 + $0x18] sm:$0x3] %vm232, 0.0
    %236 = vst.msk [vmem:[#allocation2 + $0x20] sm:$0xff] %vm66, 0.0
    %237 = vst.msk [vmem:[#allocation2 + $0x28] sm:$0x3] %vm232, 0.0
    %238 = vst.msk [vmem:[#allocation2 + $0x30] sm:$0xff] %vm66, 0.0
    %239 = vst.msk [vmem:[#allocation2 + $0x38] sm:$0x3] %vm232, 0.0
    %240 = vst.msk [vmem:[#allocation2 + $0x40] sm:$0xff] %vm66, 0.0
    %241 = vst.msk [vmem:[#allocation2 + $0x48] sm:$0x3] %vm232, 0.0
    %242 = vst.msk [vmem:[#allocation2 + $0x50] sm:$0xff] %vm66, 0.0
    %243 = vst.msk [vmem:[#allocation2 + $0x58] sm:$0x3] %vm232, 0.0
    %244 = vst.msk [vmem:[#allocation2 + $0x60] sm:$0xff] %vm66, 0.0
    %245 = vst.msk [vmem:[#allocation2 + $0x68] sm:$0x3] %vm232, 0.0
    %246 = vst.msk [vmem:[#allocation2 + $0x70] sm:$0xff] %vm66, 0.0
    %247 = vst.msk [vmem:[#allocation2 + $0x78] sm:$0x3] %vm232, 0.0
    %248 = vst.msk [vmem:[#allocation2 + $0x80] sm:$0xff] %vm66, 0.0
    %249 = vst.msk [vmem:[#allocation2 + $0x88] sm:$0x3] %vm232, 0.0
    %250 = vst.msk [vmem:[#allocation2 + $0x90] sm:$0xff] %vm66, 0.0
    %251 = vst.msk [vmem:[#allocation2 + $0x98] sm:$0x3] %vm232, 0.0
    %252 = vst.msk [vmem:[#allocation2 + $0xa0] sm:$0xff] %vm66, 0.0
    %253 = vst.msk [vmem:[#allocation2 + $0xa8] sm:$0x3] %vm232, 0.0
    %254 = vst.msk [vmem:[#allocation2 + $0xb0] sm:$0xff] %vm66, 0.0
    %255 = vst.msk [vmem:[#allocation2 + $0xb8] sm:$0x3] %vm232, 0.0
    %256 = vst.msk [vmem:[#allocation2 + $0xc0] sm:$0xff] %vm66, 0.0
    %257 = vst.msk [vmem:[#allocation2 + $0xc8] sm:$0x3] %vm232, 0.0
    %258 = vst.msk [vmem:[#allocation2 + $0xd0] sm:$0xff] %vm66, 0.0
    %259 = vst.msk [vmem:[#allocation2 + $0xd8] sm:$0x3] %vm232, 0.0
    %260 = vst.msk [vmem:[#allocation2 + $0xe0] sm:$0xff] %vm66, 0.0
    %261 = vst.msk [vmem:[#allocation2 + $0xe8] sm:$0x3] %vm232, 0.0
    %262 = vst.msk [vmem:[#allocation2 + $0xf0] sm:$0xff] %vm66, 0.0
    %263 = vst.msk [vmem:[#allocation2 + $0xf8] sm:$0x3] %vm232, 0.0
    %264 = vst.msk [vmem:[#allocation2 + $0x100] sm:$0xff] %vm66, 0.0
    %265 = vst.msk [vmem:[#allocation2 + $0x108] sm:$0x3] %vm232, 0.0
    %266 = vst.msk [vmem:[#allocation2 + $0x110] sm:$0xff] %vm66, 0.0
    %267 = vst.msk [vmem:[#allocation2 + $0x118] sm:$0x3] %vm232, 0.0
    %268 = vst.msk [vmem:[#allocation2 + $0x120] sm:$0xff] %vm66, 0.0
    %269 = vst.msk [vmem:[#allocation2 + $0x128] sm:$0x3] %vm232, 0.0
    %270 = vst.msk [vmem:[#allocation2 + $0x130] sm:$0xff] %vm66, 0.0
    %271 = vst.msk [vmem:[#allocation2 + $0x138] sm:$0x3] %vm232, 0.0
    %s272 = scalar_lea.vmem [#allocation2], 16
    %273 = vst.msk [vmem:[%s272 + $0x1] sm:$0xff] %vm66, %v215
    %274 = vst.msk [vmem:[%s272 + $0x11] sm:$0xff] %vm66, %v216
    %275 = vst.msk [vmem:[%s272 + $0x21] sm:$0xff] %vm66, %v217
    %276 = vst.msk [vmem:[%s272 + $0x31] sm:$0xff] %vm66, %v218
    %277 = vst.msk [vmem:[%s272 + $0x41] sm:$0xff] %vm66, %v219
    %278 = vst.msk [vmem:[%s272 + $0x51] sm:$0xff] %vm66, %v220
    %279 = vst.msk [vmem:[%s272 + $0x61] sm:$0xff] %vm66, %v221
    %280 = vst.msk [vmem:[%s272 + $0x71] sm:$0xff] %vm66, %v222
    %281 = vst.msk [vmem:[%s272 + $0xa1] sm:$0xff] %vm66, %v223
    %282 = vst.msk [vmem:[%s272 + $0xb1] sm:$0xff] %vm66, %v224
    %283 = vst.msk [vmem:[%s272 + $0xc1] sm:$0xff] %vm66, %v225
    %284 = vst.msk [vmem:[%s272 + $0xd1] sm:$0xff] %vm66, %v226
    %285 = vst.msk [vmem:[%s272 + $0xe1] sm:$0xff] %vm66, %v227
    %286 = vst.msk [vmem:[%s272 + $0xf1] sm:$0xff] %vm66, %v228
    %287 = vst.msk [vmem:[%s272 + $0x101] sm:$0xff] %vm66, %v229
    %288 = vst.msk [vmem:[%s272 + $0x111] sm:$0xff] %vm66, %v230
    %289 = vst.msk [vmem:[#allocation3] sm:$0xff] %vm66, 0.0
    %290 = vst.msk [vmem:[#allocation3 + $0x8] sm:$0xff] %vm66, 0.0
    %291 = vst.msk [vmem:[#allocation3 + $0x10] sm:$0xff] %vm66, 0.0
    %292 = vst.msk [vmem:[#allocation3 + $0x18] sm:$0xff] %vm66, 0.0
    %293 = vst.msk [vmem:[#allocation3 + $0x20] sm:$0xff] %vm66, 0.0
    %294 = vst.msk [vmem:[#allocation3 + $0x28] sm:$0xff] %vm66, 0.0
    %295 = vst.msk [vmem:[#allocation3 + $0x30] sm:$0xff] %vm66, 0.0
    %296 = vst.msk [vmem:[#allocation3 + $0x38] sm:$0xff] %vm66, 0.0
    %297 = vst.msk [vmem:[#allocation3 + $0x40] sm:$0xff] %vm66, 0.0
    %298 = vst.msk [vmem:[#allocation3 + $0x48] sm:$0xff] %vm66, 0.0
    %299 = vst.msk [vmem:[#allocation3 + $0x50] sm:$0xff] %vm66, 0.0
    %300 = vst.msk [vmem:[#allocation3 + $0x58] sm:$0xff] %vm66, 0.0
    %301 = vst.msk [vmem:[#allocation3 + $0x60] sm:$0xff] %vm66, 0.0
    %302 = vst.msk [vmem:[#allocation3 + $0x68] sm:$0xff] %vm66, 0.0
    %303 = vst.msk [vmem:[#allocation3 + $0x70] sm:$0xff] %vm66, 0.0
    %304 = vst.msk [vmem:[#allocation3 + $0x78] sm:$0xff] %vm66, 0.0
    %v305 = vld [vmem:[#allocation2] sm:$0xff]
    %v306 = vld [vmem:[#allocation2 + $0x10] sm:$0xff]
    %v307 = vld [vmem:[#allocation2 + $0x20] sm:$0xff]
    %v308 = vld [vmem:[#allocation2 + $0x30] sm:$0xff]
    %v309 = vld [vmem:[#allocation2 + $0x40] sm:$0xff]
    %v310 = vld [vmem:[#allocation2 + $0x50] sm:$0xff]
    %v311 = vld [vmem:[#allocation2 + $0x60] sm:$0xff]
    %v312 = vld [vmem:[#allocation2 + $0x70] sm:$0xff]
    %v313 = vld [vmem:[#allocation2 + $0xa0] sm:$0xff]
    %v314 = vld [vmem:[#allocation2 + $0xb0] sm:$0xff]
    %v315 = vld [vmem:[#allocation2 + $0xc0] sm:$0xff]
    %v316 = vld [vmem:[#allocation2 + $0xd0] sm:$0xff]
    %v317 = vld [vmem:[#allocation2 + $0xe0] sm:$0xff]
    %v318 = vld [vmem:[#allocation2 + $0xf0] sm:$0xff]
    %v319 = vld [vmem:[#allocation2 + $0x100] sm:$0xff]
    %v320 = vld [vmem:[#allocation2 + $0x110] sm:$0xff]
    %v321 = vld [vmem:[%s3] sm:$0xf]
    %v322 = vld [vmem:[%s3 + $0x4] sm:$0xf]
    %v323 = vld [vmem:[#allocation3] sm:$0xff]
    %v324 = vld [vmem:[#allocation3 + $0x8] sm:$0xff]
    %v325 = vld [vmem:[#allocation3 + $0x10] sm:$0xff]
    %v326 = vld [vmem:[#allocation3 + $0x18] sm:$0xff]
    %v327 = vld [vmem:[#allocation3 + $0x20] sm:$0xff]
    %v328 = vld [vmem:[#allocation3 + $0x28] sm:$0xff]
    %v329 = vld [vmem:[#allocation3 + $0x30] sm:$0xff]
    %v330 = vld [vmem:[#allocation3 + $0x38] sm:$0xff]
    %v331 = vld [vmem:[#allocation3 + $0x40] sm:$0xff]
    %v332 = vld [vmem:[#allocation3 + $0x48] sm:$0xff]
    %v333 = vld [vmem:[#allocation3 + $0x50] sm:$0xff]
    %v334 = vld [vmem:[#allocation3 + $0x58] sm:$0xff]
    %v335 = vld [vmem:[#allocation3 + $0x60] sm:$0xff]
    %v336 = vld [vmem:[#allocation3 + $0x68] sm:$0xff]
    %v337 = vld [vmem:[#allocation3 + $0x70] sm:$0xff]
    %v338 = vld [vmem:[#allocation3 + $0x78] sm:$0xff]
    %v339 = vpack.c.bf16 %v306, %v305
    %v340 = vpack.c.bf16 %v308, %v307
    %v341 = vpack.c.bf16 %v310, %v309
    %v342 = vpack.c.bf16 %v312, %v311
    %v343 = vpack.c.bf16 %v314, %v313
    %v344 = vpack.c.bf16 %v316, %v315
    %v345 = vpack.c.bf16 %v318, %v317
    %v346 = vpack.c.bf16 %v320, %v319
    %v349 = vunpack.c.l.b16 %v321
    %v350 = vunpack.c.l.b16 %v322
    %v351 = vpack.c.b16 %v350, %v349
    %v354 = vsel %vm66, %v339, 0
    %v357 = vsel %vm66, %v340, 0
    %v360 = vsel %vm66, %v341, 0
    %v363 = vsel %vm66, %v342, 0
    %v366 = vsel %vm66, %v343, 0
    %v369 = vsel %vm66, %v344, 0
    %v372 = vsel %vm66, %v345, 0
    %v375 = vsel %vm66, %v346, 0
    %377 = vmatpush.bf16.msra.mxu0 0
    %378 = vmatpush.bf16.msra.mxu0 0
    %379 = vmatpush.bf16.msra.mxu0 0
    %380 = vmatpush.bf16.msra.mxu0 0
    %381 = vmatpush.bf16.msra.mxu0 0
    %382 = vmatpush.bf16.msra.mxu0 0
    %383 = vmatpush.bf16.msra.mxu0 0
    %384 = vmatpush.bf16.msra.mxu0 %v351
    %385 = vmatmul.bf16.gmra.mxu0 %v354
    %v386 = vpop.f32.mrf.mxu0
    %v387 = vadd.f32 0.0, %v386
    %v388 = vpop.f32.mrf.mxu0
    %v389 = vadd.f32 0.0, %v388
    %390 = vmatmul.bf16.gmra.mxu0 %v357
    %v391 = vpop.f32.mrf.mxu0
    %v392 = vadd.f32 0.0, %v391
    %v393 = vpop.f32.mrf.mxu0
    %v394 = vadd.f32 0.0, %v393
    %395 = vmatmul.bf16.gmra.mxu0 %v360
    %v396 = vpop.f32.mrf.mxu0
    %v397 = vadd.f32 0.0, %v396
    %v398 = vpop.f32.mrf.mxu0
    %v399 = vadd.f32 0.0, %v398
    %400 = vmatmul.bf16.gmra.mxu0 %v363
    %v401 = vpop.f32.mrf.mxu0
    %v402 = vadd.f32 0.0, %v401
    %v403 = vpop.f32.mrf.mxu0
    %v404 = vadd.f32 0.0, %v403
    %405 = vmatmul.bf16.gmra.mxu0 %v366
    %v406 = vpop.f32.mrf.mxu0
    %v407 = vadd.f32 0.0, %v406
    %v408 = vpop.f32.mrf.mxu0
    %v409 = vadd.f32 0.0, %v408
    %410 = vmatmul.bf16.gmra.mxu0 %v369
    %v411 = vpop.f32.mrf.mxu0
    %v412 = vadd.f32 0.0, %v411
    %v413 = vpop.f32.mrf.mxu0
    %v414 = vadd.f32 0.0, %v413
    %415 = vmatmul.bf16.gmra.mxu0 %v372
    %v416 = vpop.f32.mrf.mxu0
    %v417 = vadd.f32 0.0, %v416
    %v418 = vpop.f32.mrf.mxu0
    %v419 = vadd.f32 0.0, %v418
    %420 = vmatmul.bf16.gmra.mxu0 %v375
    %v421 = vpop.f32.mrf.mxu0
    %v422 = vadd.f32 0.0, %v421
    %v423 = vpop.f32.mrf.mxu0
    %v424 = vadd.f32 0.0, %v423
    %425 = vdwg.mxu0
    %v426 = vadd.f32 %v323, %v387
    %v427 = vadd.f32 %v324, %v389
    %v428 = vadd.f32 %v325, %v392
    %v429 = vadd.f32 %v326, %v394
    %v430 = vadd.f32 %v327, %v397
    %v431 = vadd.f32 %v328, %v399
    %v432 = vadd.f32 %v329, %v402
    %v433 = vadd.f32 %v330, %v404
    %v434 = vadd.f32 %v331, %v407
    %v435 = vadd.f32 %v332, %v409
    %v436 = vadd.f32 %v333, %v412
    %v437 = vadd.f32 %v334, %v414
    %v438 = vadd.f32 %v335, %v417
    %v439 = vadd.f32 %v336, %v419
    %v440 = vadd.f32 %v337, %v422
    %v441 = vadd.f32 %v338, %v424
    %442 = vst.msk [vmem:[#allocation3] sm:$0xff] %vm66, %v426
    %443 = vst.msk [vmem:[#allocation3 + $0x8] sm:$0xff] %vm66, %v427
    %444 = vst.msk [vmem:[#allocation3 + $0x10] sm:$0xff] %vm66, %v428
    %445 = vst.msk [vmem:[#allocation3 + $0x18] sm:$0xff] %vm66, %v429
    %446 = vst.msk [vmem:[#allocation3 + $0x20] sm:$0xff] %vm66, %v430
    %447 = vst.msk [vmem:[#allocation3 + $0x28] sm:$0xff] %vm66, %v431
    %448 = vst.msk [vmem:[#allocation3 + $0x30] sm:$0xff] %vm66, %v432
    %449 = vst.msk [vmem:[#allocation3 + $0x38] sm:$0xff] %vm66, %v433
    %450 = vst.msk [vmem:[#allocation3 + $0x40] sm:$0xff] %vm66, %v434
    %451 = vst.msk [vmem:[#allocation3 + $0x48] sm:$0xff] %vm66, %v435
    %452 = vst.msk [vmem:[#allocation3 + $0x50] sm:$0xff] %vm66, %v436
    %453 = vst.msk [vmem:[#allocation3 + $0x58] sm:$0xff] %vm66, %v437
    %454 = vst.msk [vmem:[#allocation3 + $0x60] sm:$0xff] %vm66, %v438
    %455 = vst.msk [vmem:[#allocation3 + $0x68] sm:$0xff] %vm66, %v439
    %456 = vst.msk [vmem:[#allocation3 + $0x70] sm:$0xff] %vm66, %v440
    %457 = vst.msk [vmem:[#allocation3 + $0x78] sm:$0xff] %vm66, %v441
    %v458 = vld [vmem:[#allocation2 + $0x1] sm:$0xff]
    %v459 = vld [vmem:[#allocation2 + $0x11] sm:$0xff]
    %v460 = vld [vmem:[#allocation2 + $0x21] sm:$0xff]
    %v461 = vld [vmem:[#allocation2 + $0x31] sm:$0xff]
    %v462 = vld [vmem:[#allocation2 + $0x41] sm:$0xff]
    %v463 = vld [vmem:[#allocation2 + $0x51] sm:$0xff]
    %v464 = vld [vmem:[#allocation2 + $0x61] sm:$0xff]
    %v465 = vld [vmem:[#allocation2 + $0x71] sm:$0xff]
    %v466 = vld [vmem:[#allocation2 + $0xa1] sm:$0xff]
    %v467 = vld [vmem:[#allocation2 + $0xb1] sm:$0xff]
    %v468 = vld [vmem:[#allocation2 + $0xc1] sm:$0xff]
    %v469 = vld [vmem:[#allocation2 + $0xd1] sm:$0xff]
    %v470 = vld [vmem:[#allocation2 + $0xe1] sm:$0xff]
    %v471 = vld [vmem:[#allocation2 + $0xf1] sm:$0xff]
    %v472 = vld [vmem:[#allocation2 + $0x101] sm:$0xff]
    %v473 = vld [vmem:[#allocation2 + $0x111] sm:$0xff]
    %v474 = vld [vmem:[%s3 + $0x8] sm:$0xf]
    %v475 = vld [vmem:[%s3 + $0xc] sm:$0xf]
    %v476 = vld [vmem:[#allocation3] sm:$0xff]
    %v477 = vld [vmem:[#allocation3 + $0x8] sm:$0xff]
    %v478 = vld [vmem:[#allocation3 + $0x10] sm:$0xff]
    %v479 = vld [vmem:[#allocation3 + $0x18] sm:$0xff]
    %v480 = vld [vmem:[#allocation3 + $0x20] sm:$0xff]
    %v481 = vld [vmem:[#allocation3 + $0x28] sm:$0xff]
    %v482 = vld [vmem:[#allocation3 + $0x30] sm:$0xff]
    %v483 = vld [vmem:[#allocation3 + $0x38] sm:$0xff]
    %v484 = vld [vmem:[#allocation3 + $0x40] sm:$0xff]
    %v485 = vld [vmem:[#allocation3 + $0x48] sm:$0xff]
    %v486 = vld [vmem:[#allocation3 + $0x50] sm:$0xff]
    %v487 = vld [vmem:[#allocation3 + $0x58] sm:$0xff]
    %v488 = vld [vmem:[#allocation3 + $0x60] sm:$0xff]
    %v489 = vld [vmem:[#allocation3 + $0x68] sm:$0xff]
    %v490 = vld [vmem:[#allocation3 + $0x70] sm:$0xff]
    %v491 = vld [vmem:[#allocation3 + $0x78] sm:$0xff]
    %v492 = vpack.c.bf16 %v459, %v458
    %v493 = vpack.c.bf16 %v461, %v460
    %v494 = vpack.c.bf16 %v463, %v462
    %v495 = vpack.c.bf16 %v465, %v464
    %v496 = vpack.c.bf16 %v467, %v466
    %v497 = vpack.c.bf16 %v469, %v468
    %v498 = vpack.c.bf16 %v471, %v470
    %v499 = vpack.c.bf16 %v473, %v472
    %v502 = vunpack.c.l.b16 %v474
    %v503 = vunpack.c.l.b16 %v475
    %v504 = vpack.c.b16 %v503, %v502
    %v507 = vsel %vm66, %v492, 0
    %v510 = vsel %vm66, %v493, 0
    %v513 = vsel %vm66, %v494, 0
    %v516 = vsel %vm66, %v495, 0
    %v519 = vsel %vm66, %v496, 0
    %v522 = vsel %vm66, %v497, 0
    %v525 = vsel %vm66, %v498, 0
    %v528 = vsel %vm66, %v499, 0
    %530 = vmatpush.bf16.msra.mxu0 0
    %531 = vmatpush.bf16.msra.mxu0 0
    %532 = vmatpush.bf16.msra.mxu0 0
    %533 = vmatpush.bf16.msra.mxu0 0
    %534 = vmatpush.bf16.msra.mxu0 0
    %535 = vmatpush.bf16.msra.mxu0 0
    %536 = vmatpush.bf16.msra.mxu0 0
    %537 = vmatpush.bf16.msra.mxu0 %v504
    %538 = vmatmul.bf16.gmra.mxu0 %v507
    %v539 = vpop.f32.mrf.mxu0
    %v540 = vadd.f32 0.0, %v539
    %v541 = vpop.f32.mrf.mxu0
    %v542 = vadd.f32 0.0, %v541
    %543 = vmatmul.bf16.gmra.mxu0 %v510
    %v544 = vpop.f32.mrf.mxu0
    %v545 = vadd.f32 0.0, %v544
    %v546 = vpop.f32.mrf.mxu0
    %v547 = vadd.f32 0.0, %v546
    %548 = vmatmul.bf16.gmra.mxu0 %v513
    %v549 = vpop.f32.mrf.mxu0
    %v550 = vadd.f32 0.0, %v549
    %v551 = vpop.f32.mrf.mxu0
    %v552 = vadd.f32 0.0, %v551
    %553 = vmatmul.bf16.gmra.mxu0 %v516
    %v554 = vpop.f32.mrf.mxu0
    %v555 = vadd.f32 0.0, %v554
    %v556 = vpop.f32.mrf.mxu0
    %v557 = vadd.f32 0.0, %v556
    %558 = vmatmul.bf16.gmra.mxu0 %v519
    %v559 = vpop.f32.mrf.mxu0
    %v560 = vadd.f32 0.0, %v559
    %v561 = vpop.f32.mrf.mxu0
    %v562 = vadd.f32 0.0, %v561
    %563 = vmatmul.bf16.gmra.mxu0 %v522
    %v564 = vpop.f32.mrf.mxu0
    %v565 = vadd.f32 0.0, %v564
    %v566 = vpop.f32.mrf.mxu0
    %v567 = vadd.f32 0.0, %v566
    %568 = vmatmul.bf16.gmra.mxu0 %v525
    %v569 = vpop.f32.mrf.mxu0
    %v570 = vadd.f32 0.0, %v569
    %v571 = vpop.f32.mrf.mxu0
    %v572 = vadd.f32 0.0, %v571
    %573 = vmatmul.bf16.gmra.mxu0 %v528
    %v574 = vpop.f32.mrf.mxu0
    %v575 = vadd.f32 0.0, %v574
    %v576 = vpop.f32.mrf.mxu0
    %v577 = vadd.f32 0.0, %v576
    %578 = vdwg.mxu0
    %v579 = vadd.f32 %v476, %v540
    %v580 = vadd.f32 %v477, %v542
    %v581 = vadd.f32 %v478, %v545
    %v582 = vadd.f32 %v479, %v547
    %v583 = vadd.f32 %v480, %v550
    %v584 = vadd.f32 %v481, %v552
    %v585 = vadd.f32 %v482, %v555
    %v586 = vadd.f32 %v483, %v557
    %v587 = vadd.f32 %v484, %v560
    %v588 = vadd.f32 %v485, %v562
    %v589 = vadd.f32 %v486, %v565
    %v590 = vadd.f32 %v487, %v567
    %v591 = vadd.f32 %v488, %v570
    %v592 = vadd.f32 %v489, %v572
    %v593 = vadd.f32 %v490, %v575
    %v594 = vadd.f32 %v491, %v577
    %595 = vst.msk [vmem:[#allocation3] sm:$0xff] %vm66, %v579
    %596 = vst.msk [vmem:[#allocation3 + $0x8] sm:$0xff] %vm66, %v580
    %597 = vst.msk [vmem:[#allocation3 + $0x10] sm:$0xff] %vm66, %v581
    %598 = vst.msk [vmem:[#allocation3 + $0x18] sm:$0xff] %vm66, %v582
    %599 = vst.msk [vmem:[#allocation3 + $0x20] sm:$0xff] %vm66, %v583
    %600 = vst.msk [vmem:[#allocation3 + $0x28] sm:$0xff] %vm66, %v584
    %601 = vst.msk [vmem:[#allocation3 + $0x30] sm:$0xff] %vm66, %v585
    %602 = vst.msk [vmem:[#allocation3 + $0x38] sm:$0xff] %vm66, %v586
    %603 = vst.msk [vmem:[#allocation3 + $0x40] sm:$0xff] %vm66, %v587
    %604 = vst.msk [vmem:[#allocation3 + $0x48] sm:$0xff] %vm66, %v588
    %605 = vst.msk [vmem:[#allocation3 + $0x50] sm:$0xff] %vm66, %v589
    %606 = vst.msk [vmem:[#allocation3 + $0x58] sm:$0xff] %vm66, %v590
    %607 = vst.msk [vmem:[#allocation3 + $0x60] sm:$0xff] %vm66, %v591
    %608 = vst.msk [vmem:[#allocation3 + $0x68] sm:$0xff] %vm66, %v592
    %609 = vst.msk [vmem:[#allocation3 + $0x70] sm:$0xff] %vm66, %v593
    %610 = vst.msk [vmem:[#allocation3 + $0x78] sm:$0xff] %vm66, %v594
    %v611 = vld [vmem:[#allocation2 + $0x2] sm:$0xff]
    %v612 = vld [vmem:[#allocation2 + $0x12] sm:$0xff]
    %v613 = vld [vmem:[#allocation2 + $0x22] sm:$0xff]
    %v614 = vld [vmem:[#allocation2 + $0x32] sm:$0xff]
    %v615 = vld [vmem:[#allocation2 + $0x42] sm:$0xff]
    %v616 = vld [vmem:[#allocation2 + $0x52] sm:$0xff]
    %v617 = vld [vmem:[#allocation2 + $0x62] sm:$0xff]
    %v618 = vld [vmem:[#allocation2 + $0x72] sm:$0xff]
    %v619 = vld [vmem:[#allocation2 + $0xa2] sm:$0xff]
    %v620 = vld [vmem:[#allocation2 + $0xb2] sm:$0xff]
    %v621 = vld [vmem:[#allocation2 + $0xc2] sm:$0xff]
    %v622 = vld [vmem:[#allocation2 + $0xd2] sm:$0xff]
    %v623 = vld [vmem:[#allocation2 + $0xe2] sm:$0xff]
    %v624 = vld [vmem:[#allocation2 + $0xf2] sm:$0xff]
    %v625 = vld [vmem:[#allocation2 + $0x102] sm:$0xff]
    %v626 = vld [vmem:[#allocation2 + $0x112] sm:$0xff]
    %v627 = vld [vmem:[%s3 + $0x10] sm:$0xf]
    %v628 = vld [vmem:[%s3 + $0x14] sm:$0xf]
    %v629 = vld [vmem:[#allocation3] sm:$0xff]
    %v630 = vld [vmem:[#allocation3 + $0x8] sm:$0xff]
    %v631 = vld [vmem:[#allocation3 + $0x10] sm:$0xff]
    %v632 = vld [vmem:[#allocation3 + $0x18] sm:$0xff]
    %v633 = vld [vmem:[#allocation3 + $0x20] sm:$0xff]
    %v634 = vld [vmem:[#allocation3 + $0x28] sm:$0xff]
    %v635 = vld [vmem:[#allocation3 + $0x30] sm:$0xff]
    %v636 = vld [vmem:[#allocation3 + $0x38] sm:$0xff]
    %v637 = vld [vmem:[#allocation3 + $0x40] sm:$0xff]
    %v638 = vld [vmem:[#allocation3 + $0x48] sm:$0xff]
    %v639 = vld [vmem:[#allocation3 + $0x50] sm:$0xff]
    %v640 = vld [vmem:[#allocation3 + $0x58] sm:$0xff]
    %v641 = vld [vmem:[#allocation3 + $0x60] sm:$0xff]
    %v642 = vld [vmem:[#allocation3 + $0x68] sm:$0xff]
    %v643 = vld [vmem:[#allocation3 + $0x70] sm:$0xff]
    %v644 = vld [vmem:[#allocation3 + $0x78] sm:$0xff]
    %v645 = vpack.c.bf16 %v612, %v611
    %v646 = vpack.c.bf16 %v614, %v613
    %v647 = vpack.c.bf16 %v616, %v615
    %v648 = vpack.c.bf16 %v618, %v617
    %v649 = vpack.c.bf16 %v620, %v619
    %v650 = vpack.c.bf16 %v622, %v621
    %v651 = vpack.c.bf16 %v624, %v623
    %v652 = vpack.c.bf16 %v626, %v625
    %v655 = vunpack.c.l.b16 %v627
    %v656 = vunpack.c.l.b16 %v628
    %v657 = vpack.c.b16 %v656, %v655
    %v660 = vsel %vm66, %v645, 0
    %v663 = vsel %vm66, %v646, 0
    %v666 = vsel %vm66, %v647, 0
    %v669 = vsel %vm66, %v648, 0
    %v672 = vsel %vm66, %v649, 0
    %v675 = vsel %vm66, %v650, 0
    %v678 = vsel %vm66, %v651, 0
    %v681 = vsel %vm66, %v652, 0
    %683 = vmatpush.bf16.msra.mxu0 0
    %684 = vmatpush.bf16.msra.mxu0 0
    %685 = vmatpush.bf16.msra.mxu0 0
    %686 = vmatpush.bf16.msra.mxu0 0
    %687 = vmatpush.bf16.msra.mxu0 0
    %688 = vmatpush.bf16.msra.mxu0 0
    %689 = vmatpush.bf16.msra.mxu0 0
    %690 = vmatpush.bf16.msra.mxu0 %v657
    %691 = vmatmul.bf16.gmra.mxu0 %v660
    %v692 = vpop.f32.mrf.mxu0
    %v693 = vadd.f32 0.0, %v692
    %v694 = vpop.f32.mrf.mxu0
    %v695 = vadd.f32 0.0, %v694
    %696 = vmatmul.bf16.gmra.mxu0 %v663
    %v697 = vpop.f32.mrf.mxu0
    %v698 = vadd.f32 0.0, %v697
    %v699 = vpop.f32.mrf.mxu0
    %v700 = vadd.f32 0.0, %v699
    %701 = vmatmul.bf16.gmra.mxu0 %v666
    %v702 = vpop.f32.mrf.mxu0
    %v703 = vadd.f32 0.0, %v702
    %v704 = vpop.f32.mrf.mxu0
    %v705 = vadd.f32 0.0, %v704
    %706 = vmatmul.bf16.gmra.mxu0 %v669
    %v707 = vpop.f32.mrf.mxu0
    %v708 = vadd.f32 0.0, %v707
    %v709 = vpop.f32.mrf.mxu0
    %v710 = vadd.f32 0.0, %v709
    %711 = vmatmul.bf16.gmra.mxu0 %v672
    %v712 = vpop.f32.mrf.mxu0
    %v713 = vadd.f32 0.0, %v712
    %v714 = vpop.f32.mrf.mxu0
    %v715 = vadd.f32 0.0, %v714
    %716 = vmatmul.bf16.gmra.mxu0 %v675
    %v717 = vpop.f32.mrf.mxu0
    %v718 = vadd.f32 0.0, %v717
    %v719 = vpop.f32.mrf.mxu0
    %v720 = vadd.f32 0.0, %v719
    %721 = vmatmul.bf16.gmra.mxu0 %v678
    %v722 = vpop.f32.mrf.mxu0
    %v723 = vadd.f32 0.0, %v722
    %v724 = vpop.f32.mrf.mxu0
    %v725 = vadd.f32 0.0, %v724
    %726 = vmatmul.bf16.gmra.mxu0 %v681
    %v727 = vpop.f32.mrf.mxu0
    %v728 = vadd.f32 0.0, %v727
    %v729 = vpop.f32.mrf.mxu0
    %v730 = vadd.f32 0.0, %v729
    %731 = vdwg.mxu0
    %v732 = vadd.f32 %v629, %v693
    %v733 = vadd.f32 %v630, %v695
    %v734 = vadd.f32 %v631, %v698
    %v735 = vadd.f32 %v632, %v700
    %v736 = vadd.f32 %v633, %v703
    %v737 = vadd.f32 %v634, %v705
    %v738 = vadd.f32 %v635, %v708
    %v739 = vadd.f32 %v636, %v710
    %v740 = vadd.f32 %v637, %v713
    %v741 = vadd.f32 %v638, %v715
    %v742 = vadd.f32 %v639, %v718
    %v743 = vadd.f32 %v640, %v720
    %v744 = vadd.f32 %v641, %v723
    %v745 = vadd.f32 %v642, %v725
    %v746 = vadd.f32 %v643, %v728
    %v747 = vadd.f32 %v644, %v730
    %748 = vst.msk [vmem:[#allocation3] sm:$0xff] %vm66, %v732
    %749 = vst.msk [vmem:[#allocation3 + $0x8] sm:$0xff] %vm66, %v733
    %750 = vst.msk [vmem:[#allocation3 + $0x10] sm:$0xff] %vm66, %v734
    %751 = vst.msk [vmem:[#allocation3 + $0x18] sm:$0xff] %vm66, %v735
    %752 = vst.msk [vmem:[#allocation3 + $0x20] sm:$0xff] %vm66, %v736
    %753 = vst.msk [vmem:[#allocation3 + $0x28] sm:$0xff] %vm66, %v737
    %754 = vst.msk [vmem:[#allocation3 + $0x30] sm:$0xff] %vm66, %v738
    %755 = vst.msk [vmem:[#allocation3 + $0x38] sm:$0xff] %vm66, %v739
    %756 = vst.msk [vmem:[#allocation3 + $0x40] sm:$0xff] %vm66, %v740
    %757 = vst.msk [vmem:[#allocation3 + $0x48] sm:$0xff] %vm66, %v741
    %758 = vst.msk [vmem:[#allocation3 + $0x50] sm:$0xff] %vm66, %v742
    %759 = vst.msk [vmem:[#allocation3 + $0x58] sm:$0xff] %vm66, %v743
    %760 = vst.msk [vmem:[#allocation3 + $0x60] sm:$0xff] %vm66, %v744
    %761 = vst.msk [vmem:[#allocation3 + $0x68] sm:$0xff] %vm66, %v745
    %762 = vst.msk [vmem:[#allocation3 + $0x70] sm:$0xff] %vm66, %v746
    %763 = vst.msk [vmem:[#allocation3 + $0x78] sm:$0xff] %vm66, %v747
    %v764 = vld [vmem:[%s272] sm:$0xff]
    %v765 = vld [vmem:[%s272 + $0x10] sm:$0xff]
    %v766 = vld [vmem:[%s272 + $0x20] sm:$0xff]
    %v767 = vld [vmem:[%s272 + $0x30] sm:$0xff]
    %v768 = vld [vmem:[%s272 + $0x40] sm:$0xff]
    %v769 = vld [vmem:[%s272 + $0x50] sm:$0xff]
    %v770 = vld [vmem:[%s272 + $0x60] sm:$0xff]
    %v771 = vld [vmem:[%s272 + $0x70] sm:$0xff]
    %v772 = vld [vmem:[%s272 + $0xa0] sm:$0xff]
    %v773 = vld [vmem:[%s272 + $0xb0] sm:$0xff]
    %v774 = vld [vmem:[%s272 + $0xc0] sm:$0xff]
    %v775 = vld [vmem:[%s272 + $0xd0] sm:$0xff]
    %v776 = vld [vmem:[%s272 + $0xe0] sm:$0xff]
    %v777 = vld [vmem:[%s272 + $0xf0] sm:$0xff]
    %v778 = vld [vmem:[%s272 + $0x100] sm:$0xff]
    %v779 = vld [vmem:[%s272 + $0x110] sm:$0xff]
    %v780 = vld [vmem:[%s3 + $0x18] sm:$0xf]
    %v781 = vld [vmem:[%s3 + $0x1c] sm:$0xf]
    %v782 = vld [vmem:[#allocation3] sm:$0xff]
    %v783 = vld [vmem:[#allocation3 + $0x8] sm:$0xff]
    %v784 = vld [vmem:[#allocation3 + $0x10] sm:$0xff]
    %v785 = vld [vmem:[#allocation3 + $0x18] sm:$0xff]
    %v786 = vld [vmem:[#allocation3 + $0x20] sm:$0xff]
    %v787 = vld [vmem:[#allocation3 + $0x28] sm:$0xff]
    %v788 = vld [vmem:[#allocation3 + $0x30] sm:$0xff]
    %v789 = vld [vmem:[#allocation3 + $0x38] sm:$0xff]
    %v790 = vld [vmem:[#allocation3 + $0x40] sm:$0xff]
    %v791 = vld [vmem:[#allocation3 + $0x48] sm:$0xff]
    %v792 = vld [vmem:[#allocation3 + $0x50] sm:$0xff]
    %v793 = vld [vmem:[#allocation3 + $0x58] sm:$0xff]
    %v794 = vld [vmem:[#allocation3 + $0x60] sm:$0xff]
    %v795 = vld [vmem:[#allocation3 + $0x68] sm:$0xff]
    %v796 = vld [vmem:[#allocation3 + $0x70] sm:$0xff]
    %v797 = vld [vmem:[#allocation3 + $0x78] sm:$0xff]
    %v798 = vpack.c.bf16 %v765, %v764
    %v799 = vpack.c.bf16 %v767, %v766
    %v800 = vpack.c.bf16 %v769, %v768
    %v801 = vpack.c.bf16 %v771, %v770
    %v802 = vpack.c.bf16 %v773, %v772
    %v803 = vpack.c.bf16 %v775, %v774
    %v804 = vpack.c.bf16 %v777, %v776
    %v805 = vpack.c.bf16 %v779, %v778
    %v808 = vunpack.c.l.b16 %v780
    %v809 = vunpack.c.l.b16 %v781
    %v810 = vpack.c.b16 %v809, %v808
    %v813 = vsel %vm66, %v798, 0
    %v816 = vsel %vm66, %v799, 0
    %v819 = vsel %vm66, %v800, 0
    %v822 = vsel %vm66, %v801, 0
    %v825 = vsel %vm66, %v802, 0
    %v828 = vsel %vm66, %v803, 0
    %v831 = vsel %vm66, %v804, 0
    %v834 = vsel %vm66, %v805, 0
    %836 = vmatpush.bf16.msra.mxu0 0
    %837 = vmatpush.bf16.msra.mxu0 0
    %838 = vmatpush.bf16.msra.mxu0 0
    %839 = vmatpush.bf16.msra.mxu0 0
    %840 = vmatpush.bf16.msra.mxu0 0
    %841 = vmatpush.bf16.msra.mxu0 0
    %842 = vmatpush.bf16.msra.mxu0 0
    %843 = vmatpush.bf16.msra.mxu0 %v810
    %844 = vmatmul.bf16.gmra.mxu0 %v813
    %v845 = vpop.f32.mrf.mxu0
    %v846 = vadd.f32 0.0, %v845
    %v847 = vpop.f32.mrf.mxu0
    %v848 = vadd.f32 0.0, %v847
    %849 = vmatmul.bf16.gmra.mxu0 %v816
    %v850 = vpop.f32.mrf.mxu0
    %v851 = vadd.f32 0.0, %v850
    %v852 = vpop.f32.mrf.mxu0
    %v853 = vadd.f32 0.0, %v852
    %854 = vmatmul.bf16.gmra.mxu0 %v819
    %v855 = vpop.f32.mrf.mxu0
    %v856 = vadd.f32 0.0, %v855
    %v857 = vpop.f32.mrf.mxu0
    %v858 = vadd.f32 0.0, %v857
    %859 = vmatmul.bf16.gmra.mxu0 %v822
    %v860 = vpop.f32.mrf.mxu0
    %v861 = vadd.f32 0.0, %v860
    %v862 = vpop.f32.mrf.mxu0
    %v863 = vadd.f32 0.0, %v862
    %864 = vmatmul.bf16.gmra.mxu0 %v825
    %v865 = vpop.f32.mrf.mxu0
    %v866 = vadd.f32 0.0, %v865
    %v867 = vpop.f32.mrf.mxu0
    %v868 = vadd.f32 0.0, %v867
    %869 = vmatmul.bf16.gmra.mxu0 %v828
    %v870 = vpop.f32.mrf.mxu0
    %v871 = vadd.f32 0.0, %v870
    %v872 = vpop.f32.mrf.mxu0
    %v873 = vadd.f32 0.0, %v872
    %874 = vmatmul.bf16.gmra.mxu0 %v831
    %v875 = vpop.f32.mrf.mxu0
    %v876 = vadd.f32 0.0, %v875
    %v877 = vpop.f32.mrf.mxu0
    %v878 = vadd.f32 0.0, %v877
    %879 = vmatmul.bf16.gmra.mxu0 %v834
    %v880 = vpop.f32.mrf.mxu0
    %v881 = vadd.f32 0.0, %v880
    %v882 = vpop.f32.mrf.mxu0
    %v883 = vadd.f32 0.0, %v882
    %884 = vdwg.mxu0
    %v885 = vadd.f32 %v782, %v846
    %v886 = vadd.f32 %v783, %v848
    %v887 = vadd.f32 %v784, %v851
    %v888 = vadd.f32 %v785, %v853
    %v889 = vadd.f32 %v786, %v856
    %v890 = vadd.f32 %v787, %v858
    %v891 = vadd.f32 %v788, %v861
    %v892 = vadd.f32 %v789, %v863
    %v893 = vadd.f32 %v790, %v866
    %v894 = vadd.f32 %v791, %v868
    %v895 = vadd.f32 %v792, %v871
    %v896 = vadd.f32 %v793, %v873
    %v897 = vadd.f32 %v794, %v876
    %v898 = vadd.f32 %v795, %v878
    %v899 = vadd.f32 %v796, %v881
    %v900 = vadd.f32 %v797, %v883
    %901 = vst.msk [vmem:[#allocation3] sm:$0xff] %vm66, %v885
    %902 = vst.msk [vmem:[#allocation3 + $0x8] sm:$0xff] %vm66, %v886
    %903 = vst.msk [vmem:[#allocation3 + $0x10] sm:$0xff] %vm66, %v887
    %904 = vst.msk [vmem:[#allocation3 + $0x18] sm:$0xff] %vm66, %v888
    %905 = vst.msk [vmem:[#allocation3 + $0x20] sm:$0xff] %vm66, %v889
    %906 = vst.msk [vmem:[#allocation3 + $0x28] sm:$0xff] %vm66, %v890
    %907 = vst.msk [vmem:[#allocation3 + $0x30] sm:$0xff] %vm66, %v891
    %908 = vst.msk [vmem:[#allocation3 + $0x38] sm:$0xff] %vm66, %v892
    %909 = vst.msk [vmem:[#allocation3 + $0x40] sm:$0xff] %vm66, %v893
    %910 = vst.msk [vmem:[#allocation3 + $0x48] sm:$0xff] %vm66, %v894
    %911 = vst.msk [vmem:[#allocation3 + $0x50] sm:$0xff] %vm66, %v895
    %912 = vst.msk [vmem:[#allocation3 + $0x58] sm:$0xff] %vm66, %v896
    %913 = vst.msk [vmem:[#allocation3 + $0x60] sm:$0xff] %vm66, %v897
    %914 = vst.msk [vmem:[#allocation3 + $0x68] sm:$0xff] %vm66, %v898
    %915 = vst.msk [vmem:[#allocation3 + $0x70] sm:$0xff] %vm66, %v899
    %916 = vst.msk [vmem:[#allocation3 + $0x78] sm:$0xff] %vm66, %v900
    %v917 = vld [vmem:[%s272 + $0x1] sm:$0xff]
    %v918 = vld [vmem:[%s272 + $0x11] sm:$0xff]
    %v919 = vld [vmem:[%s272 + $0x21] sm:$0xff]
    %v920 = vld [vmem:[%s272 + $0x31] sm:$0xff]
    %v921 = vld [vmem:[%s272 + $0x41] sm:$0xff]
    %v922 = vld [vmem:[%s272 + $0x51] sm:$0xff]
    %v923 = vld [vmem:[%s272 + $0x61] sm:$0xff]
    %v924 = vld [vmem:[%s272 + $0x71] sm:$0xff]
    %v925 = vld [vmem:[%s272 + $0xa1] sm:$0xff]
    %v926 = vld [vmem:[%s272 + $0xb1] sm:$0xff]
    %v927 = vld [vmem:[%s272 + $0xc1] sm:$0xff]
    %v928 = vld [vmem:[%s272 + $0xd1] sm:$0xff]
    %v929 = vld [vmem:[%s272 + $0xe1] sm:$0xff]
    %v930 = vld [vmem:[%s272 + $0xf1] sm:$0xff]
    %v931 = vld [vmem:[%s272 + $0x101] sm:$0xff]
    %v932 = vld [vmem:[%s272 + $0x111] sm:$0xff]
    %v933 = vld [vmem:[%s3 + $0x20] sm:$0xf]
    %v934 = vld [vmem:[%s3 + $0x24] sm:$0xf]
    %v935 = vld [vmem:[#allocation3] sm:$0xff]
    %v936 = vld [vmem:[#allocation3 + $0x8] sm:$0xff]
    %v937 = vld [vmem:[#allocation3 + $0x10] sm:$0xff]
    %v938 = vld [vmem:[#allocation3 + $0x18] sm:$0xff]
    %v939 = vld [vmem:[#allocation3 + $0x20] sm:$0xff]
    %v940 = vld [vmem:[#allocation3 + $0x28] sm:$0xff]
    %v941 = vld [vmem:[#allocation3 + $0x30] sm:$0xff]
    %v942 = vld [vmem:[#allocation3 + $0x38] sm:$0xff]
    %v943 = vld [vmem:[#allocation3 + $0x40] sm:$0xff]
    %v944 = vld [vmem:[#allocation3 + $0x48] sm:$0xff]
    %v945 = vld [vmem:[#allocation3 + $0x50] sm:$0xff]
    %v946 = vld [vmem:[#allocation3 + $0x58] sm:$0xff]
    %v947 = vld [vmem:[#allocation3 + $0x60] sm:$0xff]
    %v948 = vld [vmem:[#allocation3 + $0x68] sm:$0xff]
    %v949 = vld [vmem:[#allocation3 + $0x70] sm:$0xff]
    %v950 = vld [vmem:[#allocation3 + $0x78] sm:$0xff]
    %v951 = vpack.c.bf16 %v918, %v917
    %v952 = vpack.c.bf16 %v920, %v919
    %v953 = vpack.c.bf16 %v922, %v921
    %v954 = vpack.c.bf16 %v924, %v923
    %v955 = vpack.c.bf16 %v926, %v925
    %v956 = vpack.c.bf16 %v928, %v927
    %v957 = vpack.c.bf16 %v930, %v929
    %v958 = vpack.c.bf16 %v932, %v931
    %v961 = vunpack.c.l.b16 %v933
    %v962 = vunpack.c.l.b16 %v934
    %v963 = vpack.c.b16 %v962, %v961
    %v966 = vsel %vm66, %v951, 0
    %v969 = vsel %vm66, %v952, 0
    %v972 = vsel %vm66, %v953, 0
    %v975 = vsel %vm66, %v954, 0
    %v978 = vsel %vm66, %v955, 0
    %v981 = vsel %vm66, %v956, 0
    %v984 = vsel %vm66, %v957, 0
    %v987 = vsel %vm66, %v958, 0
    %989 = vmatpush.bf16.msra.mxu0 0
    %990 = vmatpush.bf16.msra.mxu0 0
    %991 = vmatpush.bf16.msra.mxu0 0
    %992 = vmatpush.bf16.msra.mxu0 0
    %993 = vmatpush.bf16.msra.mxu0 0
    %994 = vmatpush.bf16.msra.mxu0 0
    %995 = vmatpush.bf16.msra.mxu0 0
    %996 = vmatpush.bf16.msra.mxu0 %v963
    %997 = vmatmul.bf16.gmra.mxu0 %v966
    %v998 = vpop.f32.mrf.mxu0
    %v999 = vadd.f32 0.0, %v998
    %v1000 = vpop.f32.mrf.mxu0
    %v1001 = vadd.f32 0.0, %v1000
    %1002 = vmatmul.bf16.gmra.mxu0 %v969
    %v1003 = vpop.f32.mrf.mxu0
    %v1004 = vadd.f32 0.0, %v1003
    %v1005 = vpop.f32.mrf.mxu0
    %v1006 = vadd.f32 0.0, %v1005
    %1007 = vmatmul.bf16.gmra.mxu0 %v972
    %v1008 = vpop.f32.mrf.mxu0
    %v1009 = vadd.f32 0.0, %v1008
    %v1010 = vpop.f32.mrf.mxu0
    %v1011 = vadd.f32 0.0, %v1010
    %1012 = vmatmul.bf16.gmra.mxu0 %v975
    %v1013 = vpop.f32.mrf.mxu0
    %v1014 = vadd.f32 0.0, %v1013
    %v1015 = vpop.f32.mrf.mxu0
    %v1016 = vadd.f32 0.0, %v1015
    %1017 = vmatmul.bf16.gmra.mxu0 %v978
    %v1018 = vpop.f32.mrf.mxu0
    %v1019 = vadd.f32 0.0, %v1018
    %v1020 = vpop.f32.mrf.mxu0
    %v1021 = vadd.f32 0.0, %v1020
    %1022 = vmatmul.bf16.gmra.mxu0 %v981
    %v1023 = vpop.f32.mrf.mxu0
    %v1024 = vadd.f32 0.0, %v1023
    %v1025 = vpop.f32.mrf.mxu0
    %v1026 = vadd.f32 0.0, %v1025
    %1027 = vmatmul.bf16.gmra.mxu0 %v984
    %v1028 = vpop.f32.mrf.mxu0
    %v1029 = vadd.f32 0.0, %v1028
    %v1030 = vpop.f32.mrf.mxu0
    %v1031 = vadd.f32 0.0, %v1030
    %1032 = vmatmul.bf16.gmra.mxu0 %v987
    %v1033 = vpop.f32.mrf.mxu0
    %v1034 = vadd.f32 0.0, %v1033
    %v1035 = vpop.f32.mrf.mxu0
    %v1036 = vadd.f32 0.0, %v1035
    %1037 = vdwg.mxu0
    %v1038 = vadd.f32 %v935, %v999
    %v1039 = vadd.f32 %v936, %v1001
    %v1040 = vadd.f32 %v937, %v1004
    %v1041 = vadd.f32 %v938, %v1006
    %v1042 = vadd.f32 %v939, %v1009
    %v1043 = vadd.f32 %v940, %v1011
    %v1044 = vadd.f32 %v941, %v1014
    %v1045 = vadd.f32 %v942, %v1016
    %v1046 = vadd.f32 %v943, %v1019
    %v1047 = vadd.f32 %v944, %v1021
    %v1048 = vadd.f32 %v945, %v1024
    %v1049 = vadd.f32 %v946, %v1026
    %v1050 = vadd.f32 %v947, %v1029
    %v1051 = vadd.f32 %v948, %v1031
    %v1052 = vadd.f32 %v949, %v1034
    %v1053 = vadd.f32 %v950, %v1036
    %1054 = vst.msk [vmem:[#allocation3] sm:$0xff] %vm66, %v1038
    %1055 = vst.msk [vmem:[#allocation3 + $0x8] sm:$0xff] %vm66, %v1039
    %1056 = vst.msk [vmem:[#allocation3 + $0x10] sm:$0xff] %vm66, %v1040
    %1057 = vst.msk [vmem:[#allocation3 + $0x18] sm:$0xff] %vm66, %v1041
    %1058 = vst.msk [vmem:[#allocation3 + $0x20] sm:$0xff] %vm66, %v1042
    %1059 = vst.msk [vmem:[#allocation3 + $0x28] sm:$0xff] %vm66, %v1043
    %1060 = vst.msk [vmem:[#allocation3 + $0x30] sm:$0xff] %vm66, %v1044
    %1061 = vst.msk [vmem:[#allocation3 + $0x38] sm:$0xff] %vm66, %v1045
    %1062 = vst.msk [vmem:[#allocation3 + $0x40] sm:$0xff] %vm66, %v1046
    %1063 = vst.msk [vmem:[#allocation3 + $0x48] sm:$0xff] %vm66, %v1047
    %1064 = vst.msk [vmem:[#allocation3 + $0x50] sm:$0xff] %vm66, %v1048
    %1065 = vst.msk [vmem:[#allocation3 + $0x58] sm:$0xff] %vm66, %v1049
    %1066 = vst.msk [vmem:[#allocation3 + $0x60] sm:$0xff] %vm66, %v1050
    %1067 = vst.msk [vmem:[#allocation3 + $0x68] sm:$0xff] %vm66, %v1051
    %1068 = vst.msk [vmem:[#allocation3 + $0x70] sm:$0xff] %vm66, %v1052
    %1069 = vst.msk [vmem:[#allocation3 + $0x78] sm:$0xff] %vm66, %v1053
    %v1070 = vld [vmem:[%s272 + $0x2] sm:$0xff]
    %v1071 = vld [vmem:[%s272 + $0x12] sm:$0xff]
    %v1072 = vld [vmem:[%s272 + $0x22] sm:$0xff]
    %v1073 = vld [vmem:[%s272 + $0x32] sm:$0xff]
    %v1074 = vld [vmem:[%s272 + $0x42] sm:$0xff]
    %v1075 = vld [vmem:[%s272 + $0x52] sm:$0xff]
    %v1076 = vld [vmem:[%s272 + $0x62] sm:$0xff]
    %v1077 = vld [vmem:[%s272 + $0x72] sm:$0xff]
    %v1078 = vld [vmem:[%s272 + $0xa2] sm:$0xff]
    %v1079 = vld [vmem:[%s272 + $0xb2] sm:$0xff]
    %v1080 = vld [vmem:[%s272 + $0xc2] sm:$0xff]
    %v1081 = vld [vmem:[%s272 + $0xd2] sm:$0xff]
    %v1082 = vld [vmem:[%s272 + $0xe2] sm:$0xff]
    %v1083 = vld [vmem:[%s272 + $0xf2] sm:$0xff]
    %v1084 = vld [vmem:[%s272 + $0x102] sm:$0xff]
    %v1085 = vld [vmem:[%s272 + $0x112] sm:$0xff]
    %v1086 = vld [vmem:[%s3 + $0x28] sm:$0xf]
    %v1087 = vld [vmem:[%s3 + $0x2c] sm:$0xf]
    %v1088 = vld [vmem:[#allocation3] sm:$0xff]
    %v1089 = vld [vmem:[#allocation3 + $0x8] sm:$0xff]
    %v1090 = vld [vmem:[#allocation3 + $0x10] sm:$0xff]
    %v1091 = vld [vmem:[#allocation3 + $0x18] sm:$0xff]
    %v1092 = vld [vmem:[#allocation3 + $0x20] sm:$0xff]
    %v1093 = vld [vmem:[#allocation3 + $0x28] sm:$0xff]
    %v1094 = vld [vmem:[#allocation3 + $0x30] sm:$0xff]
    %v1095 = vld [vmem:[#allocation3 + $0x38] sm:$0xff]
    %v1096 = vld [vmem:[#allocation3 + $0x40] sm:$0xff]
    %v1097 = vld [vmem:[#allocation3 + $0x48] sm:$0xff]
    %v1098 = vld [vmem:[#allocation3 + $0x50] sm:$0xff]
    %v1099 = vld [vmem:[#allocation3 + $0x58] sm:$0xff]
    %v1100 = vld [vmem:[#allocation3 + $0x60] sm:$0xff]
    %v1101 = vld [vmem:[#allocation3 + $0x68] sm:$0xff]
    %v1102 = vld [vmem:[#allocation3 + $0x70] sm:$0xff]
    %v1103 = vld [vmem:[#allocation3 + $0x78] sm:$0xff]
    %v1104 = vpack.c.bf16 %v1071, %v1070
    %v1105 = vpack.c.bf16 %v1073, %v1072
    %v1106 = vpack.c.bf16 %v1075, %v1074
    %v1107 = vpack.c.bf16 %v1077, %v1076
    %v1108 = vpack.c.bf16 %v1079, %v1078
    %v1109 = vpack.c.bf16 %v1081, %v1080
    %v1110 = vpack.c.bf16 %v1083, %v1082
    %v1111 = vpack.c.bf16 %v1085, %v1084
    %v1114 = vunpack.c.l.b16 %v1086
    %v1115 = vunpack.c.l.b16 %v1087
    %v1116 = vpack.c.b16 %v1115, %v1114
    %v1119 = vsel %vm66, %v1104, 0
    %v1122 = vsel %vm66, %v1105, 0
    %v1125 = vsel %vm66, %v1106, 0
    %v1128 = vsel %vm66, %v1107, 0
    %v1131 = vsel %vm66, %v1108, 0
    %v1134 = vsel %vm66, %v1109, 0
    %v1137 = vsel %vm66, %v1110, 0
    %v1140 = vsel %vm66, %v1111, 0
    %1142 = vmatpush.bf16.msra.mxu0 0
    %1143 = vmatpush.bf16.msra.mxu0 0
    %1144 = vmatpush.bf16.msra.mxu0 0
    %1145 = vmatpush.bf16.msra.mxu0 0
    %1146 = vmatpush.bf16.msra.mxu0 0
    %1147 = vmatpush.bf16.msra.mxu0 0
    %1148 = vmatpush.bf16.msra.mxu0 0
    %1149 = vmatpush.bf16.msra.mxu0 %v1116
    %1150 = vmatmul.bf16.gmra.mxu0 %v1119
    %v1151 = vpop.f32.mrf.mxu0
    %v1152 = vadd.f32 0.0, %v1151
    %v1153 = vpop.f32.mrf.mxu0
    %v1154 = vadd.f32 0.0, %v1153
    %1155 = vmatmul.bf16.gmra.mxu0 %v1122
    %v1156 = vpop.f32.mrf.mxu0
    %v1157 = vadd.f32 0.0, %v1156
    %v1158 = vpop.f32.mrf.mxu0
    %v1159 = vadd.f32 0.0, %v1158
    %1160 = vmatmul.bf16.gmra.mxu0 %v1125
    %v1161 = vpop.f32.mrf.mxu0
    %v1162 = vadd.f32 0.0, %v1161
    %v1163 = vpop.f32.mrf.mxu0
    %v1164 = vadd.f32 0.0, %v1163
    %1165 = vmatmul.bf16.gmra.mxu0 %v1128
    %v1166 = vpop.f32.mrf.mxu0
    %v1167 = vadd.f32 0.0, %v1166
    %v1168 = vpop.f32.mrf.mxu0
    %v1169 = vadd.f32 0.0, %v1168
    %1170 = vmatmul.bf16.gmra.mxu0 %v1131
    %v1171 = vpop.f32.mrf.mxu0
    %v1172 = vadd.f32 0.0, %v1171
    %v1173 = vpop.f32.mrf.mxu0
    %v1174 = vadd.f32 0.0, %v1173
    %1175 = vmatmul.bf16.gmra.mxu0 %v1134
    %v1176 = vpop.f32.mrf.mxu0
    %v1177 = vadd.f32 0.0, %v1176
    %v1178 = vpop.f32.mrf.mxu0
    %v1179 = vadd.f32 0.0, %v1178
    %1180 = vmatmul.bf16.gmra.mxu0 %v1137
    %v1181 = vpop.f32.mrf.mxu0
    %v1182 = vadd.f32 0.0, %v1181
    %v1183 = vpop.f32.mrf.mxu0
    %v1184 = vadd.f32 0.0, %v1183
    %1185 = vmatmul.bf16.gmra.mxu0 %v1140
    %v1186 = vpop.f32.mrf.mxu0
    %v1187 = vadd.f32 0.0, %v1186
    %v1188 = vpop.f32.mrf.mxu0
    %v1189 = vadd.f32 0.0, %v1188
    %1190 = vdwg.mxu0
    %v1191 = vadd.f32 %v1088, %v1152
    %v1192 = vadd.f32 %v1089, %v1154
    %v1193 = vadd.f32 %v1090, %v1157
    %v1194 = vadd.f32 %v1091, %v1159
    %v1195 = vadd.f32 %v1092, %v1162
    %v1196 = vadd.f32 %v1093, %v1164
    %v1197 = vadd.f32 %v1094, %v1167
    %v1198 = vadd.f32 %v1095, %v1169
    %v1199 = vadd.f32 %v1096, %v1172
    %v1200 = vadd.f32 %v1097, %v1174
    %v1201 = vadd.f32 %v1098, %v1177
    %v1202 = vadd.f32 %v1099, %v1179
    %v1203 = vadd.f32 %v1100, %v1182
    %v1204 = vadd.f32 %v1101, %v1184
    %v1205 = vadd.f32 %v1102, %v1187
    %v1206 = vadd.f32 %v1103, %v1189
    %1207 = vst.msk [vmem:[#allocation3] sm:$0xff] %vm66, %v1191
    %1208 = vst.msk [vmem:[#allocation3 + $0x8] sm:$0xff] %vm66, %v1192
    %1209 = vst.msk [vmem:[#allocation3 + $0x10] sm:$0xff] %vm66, %v1193
    %1210 = vst.msk [vmem:[#allocation3 + $0x18] sm:$0xff] %vm66, %v1194
    %1211 = vst.msk [vmem:[#allocation3 + $0x20] sm:$0xff] %vm66, %v1195
    %1212 = vst.msk [vmem:[#allocation3 + $0x28] sm:$0xff] %vm66, %v1196
    %1213 = vst.msk [vmem:[#allocation3 + $0x30] sm:$0xff] %vm66, %v1197
    %1214 = vst.msk [vmem:[#allocation3 + $0x38] sm:$0xff] %vm66, %v1198
    %1215 = vst.msk [vmem:[#allocation3 + $0x40] sm:$0xff] %vm66, %v1199
    %1216 = vst.msk [vmem:[#allocation3 + $0x48] sm:$0xff] %vm66, %v1200
    %1217 = vst.msk [vmem:[#allocation3 + $0x50] sm:$0xff] %vm66, %v1201
    %1218 = vst.msk [vmem:[#allocation3 + $0x58] sm:$0xff] %vm66, %v1202
    %1219 = vst.msk [vmem:[#allocation3 + $0x60] sm:$0xff] %vm66, %v1203
    %1220 = vst.msk [vmem:[#allocation3 + $0x68] sm:$0xff] %vm66, %v1204
    %1221 = vst.msk [vmem:[#allocation3 + $0x70] sm:$0xff] %vm66, %v1205
    %1222 = vst.msk [vmem:[#allocation3 + $0x78] sm:$0xff] %vm66, %v1206
    %s1223 = scalar_lea.vmem [#allocation2], 32
    %v1224 = vld [vmem:[%s1223] sm:$0xff]
    %v1225 = vld [vmem:[%s1223 + $0x10] sm:$0xff]
    %v1226 = vld [vmem:[%s1223 + $0x20] sm:$0xff]
    %v1227 = vld [vmem:[%s1223 + $0x30] sm:$0xff]
    %v1228 = vld [vmem:[%s1223 + $0x40] sm:$0xff]
    %v1229 = vld [vmem:[%s1223 + $0x50] sm:$0xff]
    %v1230 = vld [vmem:[%s1223 + $0x60] sm:$0xff]
    %v1231 = vld [vmem:[%s1223 + $0x70] sm:$0xff]
    %v1232 = vld [vmem:[%s1223 + $0xa0] sm:$0xff]
    %v1233 = vld [vmem:[%s1223 + $0xb0] sm:$0xff]
    %v1234 = vld [vmem:[%s1223 + $0xc0] sm:$0xff]
    %v1235 = vld [vmem:[%s1223 + $0xd0] sm:$0xff]
    %v1236 = vld [vmem:[%s1223 + $0xe0] sm:$0xff]
    %v1237 = vld [vmem:[%s1223 + $0xf0] sm:$0xff]
    %v1238 = vld [vmem:[%s1223 + $0x100] sm:$0xff]
    %v1239 = vld [vmem:[%s1223 + $0x110] sm:$0xff]
    %v1240 = vld [vmem:[%s3 + $0x30] sm:$0xf]
    %v1241 = vld [vmem:[%s3 + $0x34] sm:$0xf]
    %v1242 = vld [vmem:[#allocation3] sm:$0xff]
    %v1243 = vld [vmem:[#allocation3 + $0x8] sm:$0xff]
    %v1244 = vld [vmem:[#allocation3 + $0x10] sm:$0xff]
    %v1245 = vld [vmem:[#allocation3 + $0x18] sm:$0xff]
    %v1246 = vld [vmem:[#allocation3 + $0x20] sm:$0xff]
    %v1247 = vld [vmem:[#allocation3 + $0x28] sm:$0xff]
    %v1248 = vld [vmem:[#allocation3 + $0x30] sm:$0xff]
    %v1249 = vld [vmem:[#allocation3 + $0x38] sm:$0xff]
    %v1250 = vld [vmem:[#allocation3 + $0x40] sm:$0xff]
    %v1251 = vld [vmem:[#allocation3 + $0x48] sm:$0xff]
    %v1252 = vld [vmem:[#allocation3 + $0x50] sm:$0xff]
    %v1253 = vld [vmem:[#allocation3 + $0x58] sm:$0xff]
    %v1254 = vld [vmem:[#allocation3 + $0x60] sm:$0xff]
    %v1255 = vld [vmem:[#allocation3 + $0x68] sm:$0xff]
    %v1256 = vld [vmem:[#allocation3 + $0x70] sm:$0xff]
    %v1257 = vld [vmem:[#allocation3 + $0x78] sm:$0xff]
    %v1258 = vpack.c.bf16 %v1225, %v1224
    %v1259 = vpack.c.bf16 %v1227, %v1226
    %v1260 = vpack.c.bf16 %v1229, %v1228
    %v1261 = vpack.c.bf16 %v1231, %v1230
    %v1262 = vpack.c.bf16 %v1233, %v1232
    %v1263 = vpack.c.bf16 %v1235, %v1234
    %v1264 = vpack.c.bf16 %v1237, %v1236
    %v1265 = vpack.c.bf16 %v1239, %v1238
    %v1268 = vunpack.c.l.b16 %v1240
    %v1269 = vunpack.c.l.b16 %v1241
    %v1270 = vpack.c.b16 %v1269, %v1268
    %v1273 = vsel %vm66, %v1258, 0
    %v1276 = vsel %vm66, %v1259, 0
    %v1279 = vsel %vm66, %v1260, 0
    %v1282 = vsel %vm66, %v1261, 0
    %v1285 = vsel %vm66, %v1262, 0
    %v1288 = vsel %vm66, %v1263, 0
    %v1291 = vsel %vm66, %v1264, 0
    %v1294 = vsel %vm66, %v1265, 0
    %1296 = vmatpush.bf16.msra.mxu0 0
    %1297 = vmatpush.bf16.msra.mxu0 0
    %1298 = vmatpush.bf16.msra.mxu0 0
    %1299 = vmatpush.bf16.msra.mxu0 0
    %1300 = vmatpush.bf16.msra.mxu0 0
    %1301 = vmatpush.bf16.msra.mxu0 0
    %1302 = vmatpush.bf16.msra.mxu0 0
    %1303 = vmatpush.bf16.msra.mxu0 %v1270
    %1304 = vmatmul.bf16.gmra.mxu0 %v1273
    %v1305 = vpop.f32.mrf.mxu0
    %v1306 = vadd.f32 0.0, %v1305
    %v1307 = vpop.f32.mrf.mxu0
    %v1308 = vadd.f32 0.0, %v1307
    %1309 = vmatmul.bf16.gmra.mxu0 %v1276
    %v1310 = vpop.f32.mrf.mxu0
    %v1311 = vadd.f32 0.0, %v1310
    %v1312 = vpop.f32.mrf.mxu0
    %v1313 = vadd.f32 0.0, %v1312
    %1314 = vmatmul.bf16.gmra.mxu0 %v1279
    %v1315 = vpop.f32.mrf.mxu0
    %v1316 = vadd.f32 0.0, %v1315
    %v1317 = vpop.f32.mrf.mxu0
    %v1318 = vadd.f32 0.0, %v1317
    %1319 = vmatmul.bf16.gmra.mxu0 %v1282
    %v1320 = vpop.f32.mrf.mxu0
    %v1321 = vadd.f32 0.0, %v1320
    %v1322 = vpop.f32.mrf.mxu0
    %v1323 = vadd.f32 0.0, %v1322
    %1324 = vmatmul.bf16.gmra.mxu0 %v1285
    %v1325 = vpop.f32.mrf.mxu0
    %v1326 = vadd.f32 0.0, %v1325
    %v1327 = vpop.f32.mrf.mxu0
    %v1328 = vadd.f32 0.0, %v1327
    %1329 = vmatmul.bf16.gmra.mxu0 %v1288
    %v1330 = vpop.f32.mrf.mxu0
    %v1331 = vadd.f32 0.0, %v1330
    %v1332 = vpop.f32.mrf.mxu0
    %v1333 = vadd.f32 0.0, %v1332
    %1334 = vmatmul.bf16.gmra.mxu0 %v1291
    %v1335 = vpop.f32.mrf.mxu0
    %v1336 = vadd.f32 0.0, %v1335
    %v1337 = vpop.f32.mrf.mxu0
    %v1338 = vadd.f32 0.0, %v1337
    %1339 = vmatmul.bf16.gmra.mxu0 %v1294
    %v1340 = vpop.f32.mrf.mxu0
    %v1341 = vadd.f32 0.0, %v1340
    %v1342 = vpop.f32.mrf.mxu0
    %v1343 = vadd.f32 0.0, %v1342
    %1344 = vdwg.mxu0
    %v1345 = vadd.f32 %v1242, %v1306
    %v1346 = vadd.f32 %v1243, %v1308
    %v1347 = vadd.f32 %v1244, %v1311
    %v1348 = vadd.f32 %v1245, %v1313
    %v1349 = vadd.f32 %v1246, %v1316
    %v1350 = vadd.f32 %v1247, %v1318
    %v1351 = vadd.f32 %v1248, %v1321
    %v1352 = vadd.f32 %v1249, %v1323
    %v1353 = vadd.f32 %v1250, %v1326
    %v1354 = vadd.f32 %v1251, %v1328
    %v1355 = vadd.f32 %v1252, %v1331
    %v1356 = vadd.f32 %v1253, %v1333
    %v1357 = vadd.f32 %v1254, %v1336
    %v1358 = vadd.f32 %v1255, %v1338
    %v1359 = vadd.f32 %v1256, %v1341
    %v1360 = vadd.f32 %v1257, %v1343
    %1361 = vst.msk [vmem:[#allocation3] sm:$0xff] %vm66, %v1345
    %1362 = vst.msk [vmem:[#allocation3 + $0x8] sm:$0xff] %vm66, %v1346
    %1363 = vst.msk [vmem:[#allocation3 + $0x10] sm:$0xff] %vm66, %v1347
    %1364 = vst.msk [vmem:[#allocation3 + $0x18] sm:$0xff] %vm66, %v1348
    %1365 = vst.msk [vmem:[#allocation3 + $0x20] sm:$0xff] %vm66, %v1349
    %1366 = vst.msk [vmem:[#allocation3 + $0x28] sm:$0xff] %vm66, %v1350
    %1367 = vst.msk [vmem:[#allocation3 + $0x30] sm:$0xff] %vm66, %v1351
    %1368 = vst.msk [vmem:[#allocation3 + $0x38] sm:$0xff] %vm66, %v1352
    %1369 = vst.msk [vmem:[#allocation3 + $0x40] sm:$0xff] %vm66, %v1353
    %1370 = vst.msk [vmem:[#allocation3 + $0x48] sm:$0xff] %vm66, %v1354
    %1371 = vst.msk [vmem:[#allocation3 + $0x50] sm:$0xff] %vm66, %v1355
    %1372 = vst.msk [vmem:[#allocation3 + $0x58] sm:$0xff] %vm66, %v1356
    %1373 = vst.msk [vmem:[#allocation3 + $0x60] sm:$0xff] %vm66, %v1357
    %1374 = vst.msk [vmem:[#allocation3 + $0x68] sm:$0xff] %vm66, %v1358
    %1375 = vst.msk [vmem:[#allocation3 + $0x70] sm:$0xff] %vm66, %v1359
    %1376 = vst.msk [vmem:[#allocation3 + $0x78] sm:$0xff] %vm66, %v1360
    %v1377 = vld [vmem:[%s1223 + $0x1] sm:$0xff]
    %v1378 = vld [vmem:[%s1223 + $0x11] sm:$0xff]
    %v1379 = vld [vmem:[%s1223 + $0x21] sm:$0xff]
    %v1380 = vld [vmem:[%s1223 + $0x31] sm:$0xff]
    %v1381 = vld [vmem:[%s1223 + $0x41] sm:$0xff]
    %v1382 = vld [vmem:[%s1223 + $0x51] sm:$0xff]
    %v1383 = vld [vmem:[%s1223 + $0x61] sm:$0xff]
    %v1384 = vld [vmem:[%s1223 + $0x71] sm:$0xff]
    %v1385 = vld [vmem:[%s1223 + $0xa1] sm:$0xff]
    %v1386 = vld [vmem:[%s1223 + $0xb1] sm:$0xff]
    %v1387 = vld [vmem:[%s1223 + $0xc1] sm:$0xff]
    %v1388 = vld [vmem:[%s1223 + $0xd1] sm:$0xff]
    %v1389 = vld [vmem:[%s1223 + $0xe1] sm:$0xff]
    %v1390 = vld [vmem:[%s1223 + $0xf1] sm:$0xff]
    %v1391 = vld [vmem:[%s1223 + $0x101] sm:$0xff]
    %v1392 = vld [vmem:[%s1223 + $0x111] sm:$0xff]
    %v1393 = vld [vmem:[%s3 + $0x38] sm:$0xf]
    %v1394 = vld [vmem:[%s3 + $0x3c] sm:$0xf]
    %v1395 = vld [vmem:[#allocation3] sm:$0xff]
    %v1396 = vld [vmem:[#allocation3 + $0x8] sm:$0xff]
    %v1397 = vld [vmem:[#allocation3 + $0x10] sm:$0xff]
    %v1398 = vld [vmem:[#allocation3 + $0x18] sm:$0xff]
    %v1399 = vld [vmem:[#allocation3 + $0x20] sm:$0xff]
    %v1400 = vld [vmem:[#allocation3 + $0x28] sm:$0xff]
    %v1401 = vld [vmem:[#allocation3 + $0x30] sm:$0xff]
    %v1402 = vld [vmem:[#allocation3 + $0x38] sm:$0xff]
    %v1403 = vld [vmem:[#allocation3 + $0x40] sm:$0xff]
    %v1404 = vld [vmem:[#allocation3 + $0x48] sm:$0xff]
    %v1405 = vld [vmem:[#allocation3 + $0x50] sm:$0xff]
    %v1406 = vld [vmem:[#allocation3 + $0x58] sm:$0xff]
    %v1407 = vld [vmem:[#allocation3 + $0x60] sm:$0xff]
    %v1408 = vld [vmem:[#allocation3 + $0x68] sm:$0xff]
    %v1409 = vld [vmem:[#allocation3 + $0x70] sm:$0xff]
    %v1410 = vld [vmem:[#allocation3 + $0x78] sm:$0xff]
    %v1411 = vpack.c.bf16 %v1378, %v1377
    %v1412 = vpack.c.bf16 %v1380, %v1379
    %v1413 = vpack.c.bf16 %v1382, %v1381
    %v1414 = vpack.c.bf16 %v1384, %v1383
    %v1415 = vpack.c.bf16 %v1386, %v1385
    %v1416 = vpack.c.bf16 %v1388, %v1387
    %v1417 = vpack.c.bf16 %v1390, %v1389
    %v1418 = vpack.c.bf16 %v1392, %v1391
    %v1421 = vunpack.c.l.b16 %v1393
    %v1422 = vunpack.c.l.b16 %v1394
    %v1423 = vpack.c.b16 %v1422, %v1421
    %v1426 = vsel %vm66, %v1411, 0
    %v1429 = vsel %vm66, %v1412, 0
    %v1432 = vsel %vm66, %v1413, 0
    %v1435 = vsel %vm66, %v1414, 0
    %v1438 = vsel %vm66, %v1415, 0
    %v1441 = vsel %vm66, %v1416, 0
    %v1444 = vsel %vm66, %v1417, 0
    %v1447 = vsel %vm66, %v1418, 0
    %1449 = vmatpush.bf16.msra.mxu0 0
    %1450 = vmatpush.bf16.msra.mxu0 0
    %1451 = vmatpush.bf16.msra.mxu0 0
    %1452 = vmatpush.bf16.msra.mxu0 0
    %1453 = vmatpush.bf16.msra.mxu0 0
    %1454 = vmatpush.bf16.msra.mxu0 0
    %1455 = vmatpush.bf16.msra.mxu0 0
    %1456 = vmatpush.bf16.msra.mxu0 %v1423
    %1457 = vmatmul.bf16.gmra.mxu0 %v1426
    %v1458 = vpop.f32.mrf.mxu0
    %v1459 = vadd.f32 0.0, %v1458
    %v1460 = vpop.f32.mrf.mxu0
    %v1461 = vadd.f32 0.0, %v1460
    %1462 = vmatmul.bf16.gmra.mxu0 %v1429
    %v1463 = vpop.f32.mrf.mxu0
    %v1464 = vadd.f32 0.0, %v1463
    %v1465 = vpop.f32.mrf.mxu0
    %v1466 = vadd.f32 0.0, %v1465
    %1467 = vmatmul.bf16.gmra.mxu0 %v1432
    %v1468 = vpop.f32.mrf.mxu0
    %v1469 = vadd.f32 0.0, %v1468
    %v1470 = vpop.f32.mrf.mxu0
    %v1471 = vadd.f32 0.0, %v1470
    %1472 = vmatmul.bf16.gmra.mxu0 %v1435
    %v1473 = vpop.f32.mrf.mxu0
    %v1474 = vadd.f32 0.0, %v1473
    %v1475 = vpop.f32.mrf.mxu0
    %v1476 = vadd.f32 0.0, %v1475
    %1477 = vmatmul.bf16.gmra.mxu0 %v1438
    %v1478 = vpop.f32.mrf.mxu0
    %v1479 = vadd.f32 0.0, %v1478
    %v1480 = vpop.f32.mrf.mxu0
    %v1481 = vadd.f32 0.0, %v1480
    %1482 = vmatmul.bf16.gmra.mxu0 %v1441
    %v1483 = vpop.f32.mrf.mxu0
    %v1484 = vadd.f32 0.0, %v1483
    %v1485 = vpop.f32.mrf.mxu0
    %v1486 = vadd.f32 0.0, %v1485
    %1487 = vmatmul.bf16.gmra.mxu0 %v1444
    %v1488 = vpop.f32.mrf.mxu0
    %v1489 = vadd.f32 0.0, %v1488
    %v1490 = vpop.f32.mrf.mxu0
    %v1491 = vadd.f32 0.0, %v1490
    %1492 = vmatmul.bf16.gmra.mxu0 %v1447
    %v1493 = vpop.f32.mrf.mxu0
    %v1494 = vadd.f32 0.0, %v1493
    %v1495 = vpop.f32.mrf.mxu0
    %v1496 = vadd.f32 0.0, %v1495
    %1497 = vdwg.mxu0
    %v1498 = vadd.f32 %v1395, %v1459
    %v1499 = vadd.f32 %v1396, %v1461
    %v1500 = vadd.f32 %v1397, %v1464
    %v1501 = vadd.f32 %v1398, %v1466
    %v1502 = vadd.f32 %v1399, %v1469
    %v1503 = vadd.f32 %v1400, %v1471
    %v1504 = vadd.f32 %v1401, %v1474
    %v1505 = vadd.f32 %v1402, %v1476
    %v1506 = vadd.f32 %v1403, %v1479
    %v1507 = vadd.f32 %v1404, %v1481
    %v1508 = vadd.f32 %v1405, %v1484
    %v1509 = vadd.f32 %v1406, %v1486
    %v1510 = vadd.f32 %v1407, %v1489
    %v1511 = vadd.f32 %v1408, %v1491
    %v1512 = vadd.f32 %v1409, %v1494
    %v1513 = vadd.f32 %v1410, %v1496
    %1514 = vst.msk [vmem:[#allocation3] sm:$0xff] %vm66, %v1498
    %1515 = vst.msk [vmem:[#allocation3 + $0x8] sm:$0xff] %vm66, %v1499
    %1516 = vst.msk [vmem:[#allocation3 + $0x10] sm:$0xff] %vm66, %v1500
    %1517 = vst.msk [vmem:[#allocation3 + $0x18] sm:$0xff] %vm66, %v1501
    %1518 = vst.msk [vmem:[#allocation3 + $0x20] sm:$0xff] %vm66, %v1502
    %1519 = vst.msk [vmem:[#allocation3 + $0x28] sm:$0xff] %vm66, %v1503
    %1520 = vst.msk [vmem:[#allocation3 + $0x30] sm:$0xff] %vm66, %v1504
    %1521 = vst.msk [vmem:[#allocation3 + $0x38] sm:$0xff] %vm66, %v1505
    %1522 = vst.msk [vmem:[#allocation3 + $0x40] sm:$0xff] %vm66, %v1506
    %1523 = vst.msk [vmem:[#allocation3 + $0x48] sm:$0xff] %vm66, %v1507
    %1524 = vst.msk [vmem:[#allocation3 + $0x50] sm:$0xff] %vm66, %v1508
    %1525 = vst.msk [vmem:[#allocation3 + $0x58] sm:$0xff] %vm66, %v1509
    %1526 = vst.msk [vmem:[#allocation3 + $0x60] sm:$0xff] %vm66, %v1510
    %1527 = vst.msk [vmem:[#allocation3 + $0x68] sm:$0xff] %vm66, %v1511
    %1528 = vst.msk [vmem:[#allocation3 + $0x70] sm:$0xff] %vm66, %v1512
    %1529 = vst.msk [vmem:[#allocation3 + $0x78] sm:$0xff] %vm66, %v1513
    %v1530 = vld [vmem:[%s1223 + $0x2] sm:$0xff]
    %v1531 = vld [vmem:[%s1223 + $0x12] sm:$0xff]
    %v1532 = vld [vmem:[%s1223 + $0x22] sm:$0xff]
    %v1533 = vld [vmem:[%s1223 + $0x32] sm:$0xff]
    %v1534 = vld [vmem:[%s1223 + $0x42] sm:$0xff]
    %v1535 = vld [vmem:[%s1223 + $0x52] sm:$0xff]
    %v1536 = vld [vmem:[%s1223 + $0x62] sm:$0xff]
    %v1537 = vld [vmem:[%s1223 + $0x72] sm:$0xff]
    %v1538 = vld [vmem:[%s1223 + $0xa2] sm:$0xff]
    %v1539 = vld [vmem:[%s1223 + $0xb2] sm:$0xff]
    %v1540 = vld [vmem:[%s1223 + $0xc2] sm:$0xff]
    %v1541 = vld [vmem:[%s1223 + $0xd2] sm:$0xff]
    %v1542 = vld [vmem:[%s1223 + $0xe2] sm:$0xff]
    %v1543 = vld [vmem:[%s1223 + $0xf2] sm:$0xff]
    %v1544 = vld [vmem:[%s1223 + $0x102] sm:$0xff]
    %v1545 = vld [vmem:[%s1223 + $0x112] sm:$0xff]
    %v1546 = vld [vmem:[%s3 + $0x40] sm:$0xf]
    %v1547 = vld [vmem:[%s3 + $0x44] sm:$0xf]
    %v1548 = vld [vmem:[#allocation3] sm:$0xff]
    %v1549 = vld [vmem:[#allocation3 + $0x8] sm:$0xff]
    %v1550 = vld [vmem:[#allocation3 + $0x10] sm:$0xff]
    %v1551 = vld [vmem:[#allocation3 + $0x18] sm:$0xff]
    %v1552 = vld [vmem:[#allocation3 + $0x20] sm:$0xff]
    %v1553 = vld [vmem:[#allocation3 + $0x28] sm:$0xff]
    %v1554 = vld [vmem:[#allocation3 + $0x30] sm:$0xff]
    %v1555 = vld [vmem:[#allocation3 + $0x38] sm:$0xff]
    %v1556 = vld [vmem:[#allocation3 + $0x40] sm:$0xff]
    %v1557 = vld [vmem:[#allocation3 + $0x48] sm:$0xff]
    %v1558 = vld [vmem:[#allocation3 + $0x50] sm:$0xff]
    %v1559 = vld [vmem:[#allocation3 + $0x58] sm:$0xff]
    %v1560 = vld [vmem:[#allocation3 + $0x60] sm:$0xff]
    %v1561 = vld [vmem:[#allocation3 + $0x68] sm:$0xff]
    %v1562 = vld [vmem:[#allocation3 + $0x70] sm:$0xff]
    %v1563 = vld [vmem:[#allocation3 + $0x78] sm:$0xff]
    %v1564 = vpack.c.bf16 %v1531, %v1530
    %v1565 = vpack.c.bf16 %v1533, %v1532
    %v1566 = vpack.c.bf16 %v1535, %v1534
    %v1567 = vpack.c.bf16 %v1537, %v1536
    %v1568 = vpack.c.bf16 %v1539, %v1538
    %v1569 = vpack.c.bf16 %v1541, %v1540
    %v1570 = vpack.c.bf16 %v1543, %v1542
    %v1571 = vpack.c.bf16 %v1545, %v1544
    %v1574 = vunpack.c.l.b16 %v1546
    %v1575 = vunpack.c.l.b16 %v1547
    %v1576 = vpack.c.b16 %v1575, %v1574
    %v1579 = vsel %vm66, %v1564, 0
    %v1582 = vsel %vm66, %v1565, 0
    %v1585 = vsel %vm66, %v1566, 0
    %v1588 = vsel %vm66, %v1567, 0
    %v1591 = vsel %vm66, %v1568, 0
    %v1594 = vsel %vm66, %v1569, 0
    %v1597 = vsel %vm66, %v1570, 0
    %v1600 = vsel %vm66, %v1571, 0
    %1602 = vmatpush.bf16.msra.mxu0 0
    %1603 = vmatpush.bf16.msra.mxu0 0
    %1604 = vmatpush.bf16.msra.mxu0 0
    %1605 = vmatpush.bf16.msra.mxu0 0
    %1606 = vmatpush.bf16.msra.mxu0 0
    %1607 = vmatpush.bf16.msra.mxu0 0
    %1608 = vmatpush.bf16.msra.mxu0 0
    %1609 = vmatpush.bf16.msra.mxu0 %v1576
    %1610 = vmatmul.bf16.gmra.mxu0 %v1579
    %v1611 = vpop.f32.mrf.mxu0
    %v1612 = vadd.f32 0.0, %v1611
    %v1613 = vpop.f32.mrf.mxu0
    %v1614 = vadd.f32 0.0, %v1613
    %1615 = vmatmul.bf16.gmra.mxu0 %v1582
    %v1616 = vpop.f32.mrf.mxu0
    %v1617 = vadd.f32 0.0, %v1616
    %v1618 = vpop.f32.mrf.mxu0
    %v1619 = vadd.f32 0.0, %v1618
    %1620 = vmatmul.bf16.gmra.mxu0 %v1585
    %v1621 = vpop.f32.mrf.mxu0
    %v1622 = vadd.f32 0.0, %v1621
    %v1623 = vpop.f32.mrf.mxu0
    %v1624 = vadd.f32 0.0, %v1623
    %1625 = vmatmul.bf16.gmra.mxu0 %v1588
    %v1626 = vpop.f32.mrf.mxu0
    %v1627 = vadd.f32 0.0, %v1626
    %v1628 = vpop.f32.mrf.mxu0
    %v1629 = vadd.f32 0.0, %v1628
    %1630 = vmatmul.bf16.gmra.mxu0 %v1591
    %v1631 = vpop.f32.mrf.mxu0
    %v1632 = vadd.f32 0.0, %v1631
    %v1633 = vpop.f32.mrf.mxu0
    %v1634 = vadd.f32 0.0, %v1633
    %1635 = vmatmul.bf16.gmra.mxu0 %v1594
    %v1636 = vpop.f32.mrf.mxu0
    %v1637 = vadd.f32 0.0, %v1636
    %v1638 = vpop.f32.mrf.mxu0
    %v1639 = vadd.f32 0.0, %v1638
    %1640 = vmatmul.bf16.gmra.mxu0 %v1597
    %v1641 = vpop.f32.mrf.mxu0
    %v1642 = vadd.f32 0.0, %v1641
    %v1643 = vpop.f32.mrf.mxu0
    %v1644 = vadd.f32 0.0, %v1643
    %1645 = vmatmul.bf16.gmra.mxu0 %v1600
    %v1646 = vpop.f32.mrf.mxu0
    %v1647 = vadd.f32 0.0, %v1646
    %v1648 = vpop.f32.mrf.mxu0
    %v1649 = vadd.f32 0.0, %v1648
    %1650 = vdwg.mxu0
    %v1651 = vadd.f32 %v1548, %v1612
    %v1652 = vadd.f32 %v1549, %v1614
    %v1653 = vadd.f32 %v1550, %v1617
    %v1654 = vadd.f32 %v1551, %v1619
    %v1655 = vadd.f32 %v1552, %v1622
    %v1656 = vadd.f32 %v1553, %v1624
    %v1657 = vadd.f32 %v1554, %v1627
    %v1658 = vadd.f32 %v1555, %v1629
    %v1659 = vadd.f32 %v1556, %v1632
    %v1660 = vadd.f32 %v1557, %v1634
    %v1661 = vadd.f32 %v1558, %v1637
    %v1662 = vadd.f32 %v1559, %v1639
    %v1663 = vadd.f32 %v1560, %v1642
    %v1664 = vadd.f32 %v1561, %v1644
    %v1665 = vadd.f32 %v1562, %v1647
    %v1666 = vadd.f32 %v1563, %v1649
    %1667 = vst.msk [vmem:[#allocation3] sm:$0xff] %vm66, %v1651
    %1668 = vst.msk [vmem:[#allocation3 + $0x8] sm:$0xff] %vm66, %v1652
    %1669 = vst.msk [vmem:[#allocation3 + $0x10] sm:$0xff] %vm66, %v1653
    %1670 = vst.msk [vmem:[#allocation3 + $0x18] sm:$0xff] %vm66, %v1654
    %1671 = vst.msk [vmem:[#allocation3 + $0x20] sm:$0xff] %vm66, %v1655
    %1672 = vst.msk [vmem:[#allocation3 + $0x28] sm:$0xff] %vm66, %v1656
    %1673 = vst.msk [vmem:[#allocation3 + $0x30] sm:$0xff] %vm66, %v1657
    %1674 = vst.msk [vmem:[#allocation3 + $0x38] sm:$0xff] %vm66, %v1658
    %1675 = vst.msk [vmem:[#allocation3 + $0x40] sm:$0xff] %vm66, %v1659
    %1676 = vst.msk [vmem:[#allocation3 + $0x48] sm:$0xff] %vm66, %v1660
    %1677 = vst.msk [vmem:[#allocation3 + $0x50] sm:$0xff] %vm66, %v1661
    %1678 = vst.msk [vmem:[#allocation3 + $0x58] sm:$0xff] %vm66, %v1662
    %1679 = vst.msk [vmem:[#allocation3 + $0x60] sm:$0xff] %vm66, %v1663
    %1680 = vst.msk [vmem:[#allocation3 + $0x68] sm:$0xff] %vm66, %v1664
    %1681 = vst.msk [vmem:[#allocation3 + $0x70] sm:$0xff] %vm66, %v1665
    %1682 = vst.msk [vmem:[#allocation3 + $0x78] sm:$0xff] %vm66, %v1666
    %v1683 = vld [vmem:[#allocation3] sm:$0xff]
    %v1684 = vld [vmem:[#allocation3 + $0x8] sm:$0xff]
    %v1685 = vld [vmem:[#allocation3 + $0x10] sm:$0xff]
    %v1686 = vld [vmem:[#allocation3 + $0x18] sm:$0xff]
    %v1687 = vld [vmem:[#allocation3 + $0x20] sm:$0xff]
    %v1688 = vld [vmem:[#allocation3 + $0x28] sm:$0xff]
    %v1689 = vld [vmem:[#allocation3 + $0x30] sm:$0xff]
    %v1690 = vld [vmem:[#allocation3 + $0x38] sm:$0xff]
    %v1691 = vld [vmem:[#allocation3 + $0x40] sm:$0xff]
    %v1692 = vld [vmem:[#allocation3 + $0x48] sm:$0xff]
    %v1693 = vld [vmem:[#allocation3 + $0x50] sm:$0xff]
    %v1694 = vld [vmem:[#allocation3 + $0x58] sm:$0xff]
    %v1695 = vld [vmem:[#allocation3 + $0x60] sm:$0xff]
    %v1696 = vld [vmem:[#allocation3 + $0x68] sm:$0xff]
    %v1697 = vld [vmem:[#allocation3 + $0x70] sm:$0xff]
    %v1698 = vld [vmem:[#allocation3 + $0x78] sm:$0xff]
    %v1699 = vld [vmem:[%s4] sm:$0x1]
    %v1701 = vperm.slane %v1699, 0
    %v1703 = vadd.f32 %v1683, %v1701
    %v1704 = vadd.f32 %v1684, %v1701
    %v1705 = vadd.f32 %v1685, %v1701
    %v1706 = vadd.f32 %v1686, %v1701
    %v1707 = vadd.f32 %v1687, %v1701
    %v1708 = vadd.f32 %v1688, %v1701
    %v1709 = vadd.f32 %v1689, %v1701
    %v1710 = vadd.f32 %v1690, %v1701
    %v1711 = vadd.f32 %v1691, %v1701
    %v1712 = vadd.f32 %v1692, %v1701
    %v1713 = vadd.f32 %v1693, %v1701
    %v1714 = vadd.f32 %v1694, %v1701
    %v1715 = vadd.f32 %v1695, %v1701
    %v1716 = vadd.f32 %v1696, %v1701
    %v1717 = vadd.f32 %v1697, %v1701
    %v1718 = vadd.f32 %v1698, %v1701
    %v1719 = vsel %vm66, %v1703, 0.0
    %v1720 = vsel %vm66, %v1704, 0.0
    %v1721 = vadd.f32 %v1719, %v1720
    %v1722 = vsel %vm66, %v1705, 0.0
    %v1723 = vadd.f32 %v1721, %v1722
    %v1724 = vsel %vm66, %v1706, 0.0
    %v1725 = vadd.f32 %v1723, %v1724
    %v1726 = vsel %vm66, %v1707, 0.0
    %v1727 = vadd.f32 %v1725, %v1726
    %v1728 = vsel %vm66, %v1708, 0.0
    %v1729 = vadd.f32 %v1727, %v1728
    %v1730 = vsel %vm66, %v1709, 0.0
    %v1731 = vadd.f32 %v1729, %v1730
    %v1732 = vsel %vm66, %v1710, 0.0
    %v1733 = vadd.f32 %v1731, %v1732
    %v1734 = vsel %vm66, %v1711, 0.0
    %v1735 = vadd.f32 %v1733, %v1734
    %v1736 = vsel %vm66, %v1712, 0.0
    %v1737 = vadd.f32 %v1735, %v1736
    %v1738 = vsel %vm66, %v1713, 0.0
    %v1739 = vadd.f32 %v1737, %v1738
    %v1740 = vsel %vm66, %v1714, 0.0
    %v1741 = vadd.f32 %v1739, %v1740
    %v1742 = vsel %vm66, %v1715, 0.0
    %v1743 = vadd.f32 %v1741, %v1742
    %v1744 = vsel %vm66, %v1716, 0.0
    %v1745 = vadd.f32 %v1743, %v1744
    %v1746 = vsel %vm66, %v1717, 0.0
    %v1747 = vadd.f32 %v1745, %v1746
    %v1748 = vsel %vm66, %v1718, 0.0
    %v1749 = vadd.f32 %v1747, %v1748
    %v1750 = vrot.slane %v1749, 4
    %v1751 = vadd.f32 %v1749, %v1750
    %v1752 = vrot.slane %v1751, 2
    %v1753 = vadd.f32 %v1751, %v1752
    %v1754 = vrot.slane %v1753, 1
    %v1755 = vadd.f32 %v1753, %v1754
    %v1756 = vmul.f32 %v1703, %v1703
    %v1757 = vmul.f32 %v1704, %v1704
    %v1758 = vmul.f32 %v1705, %v1705
    %v1759 = vmul.f32 %v1706, %v1706
    %v1760 = vmul.f32 %v1707, %v1707
    %v1761 = vmul.f32 %v1708, %v1708
    %v1762 = vmul.f32 %v1709, %v1709
    %v1763 = vmul.f32 %v1710, %v1710
    %v1764 = vmul.f32 %v1711, %v1711
    %v1765 = vmul.f32 %v1712, %v1712
    %v1766 = vmul.f32 %v1713, %v1713
    %v1767 = vmul.f32 %v1714, %v1714
    %v1768 = vmul.f32 %v1715, %v1715
    %v1769 = vmul.f32 %v1716, %v1716
    %v1770 = vmul.f32 %v1717, %v1717
    %v1771 = vmul.f32 %v1718, %v1718
    %v1772 = vsel %vm66, %v1756, 0.0
    %v1773 = vsel %vm66, %v1757, 0.0
    %v1774 = vadd.f32 %v1772, %v1773
    %v1775 = vsel %vm66, %v1758, 0.0
    %v1776 = vadd.f32 %v1774, %v1775
    %v1777 = vsel %vm66, %v1759, 0.0
    %v1778 = vadd.f32 %v1776, %v1777
    %v1779 = vsel %vm66, %v1760, 0.0
    %v1780 = vadd.f32 %v1778, %v1779
    %v1781 = vsel %vm66, %v1761, 0.0
    %v1782 = vadd.f32 %v1780, %v1781
    %v1783 = vsel %vm66, %v1762, 0.0
    %v1784 = vadd.f32 %v1782, %v1783
    %v1785 = vsel %vm66, %v1763, 0.0
    %v1786 = vadd.f32 %v1784, %v1785
    %v1787 = vsel %vm66, %v1764, 0.0
    %v1788 = vadd.f32 %v1786, %v1787
    %v1789 = vsel %vm66, %v1765, 0.0
    %v1790 = vadd.f32 %v1788, %v1789
    %v1791 = vsel %vm66, %v1766, 0.0
    %v1792 = vadd.f32 %v1790, %v1791
    %v1793 = vsel %vm66, %v1767, 0.0
    %v1794 = vadd.f32 %v1792, %v1793
    %v1795 = vsel %vm66, %v1768, 0.0
    %v1796 = vadd.f32 %v1794, %v1795
    %v1797 = vsel %vm66, %v1769, 0.0
    %v1798 = vadd.f32 %v1796, %v1797
    %v1799 = vsel %vm66, %v1770, 0.0
    %v1800 = vadd.f32 %v1798, %v1799
    %v1801 = vsel %vm66, %v1771, 0.0
    %v1802 = vadd.f32 %v1800, %v1801
    %v1803 = vrot.slane %v1802, 4
    %v1804 = vadd.f32 %v1802, %v1803
    %v1805 = vrot.slane %v1804, 2
    %v1806 = vadd.f32 %v1804, %v1805
    %v1807 = vrot.slane %v1806, 1
    %v1808 = vadd.f32 %v1806, %v1807
    %v1809 = vmul.f32 %v1755, 0.0078125
    %v1810 = vmul.f32 %v1808, 0.0078125
    %v1811 = vmul.f32 %v1809, %v1809
    %v1812 = vsub.f32 %v1810, %v1811
    %v1813 = vld [vmem:[%s5] sm:$0x1]
    %v1814 = vadd.f32 %v1812, 1e-05
    %v1815 = vrsqrt.pop %v1814
    %v1816 = vmul.f32 %v1815, %v1814
    %v1817 = vmul.f32 %v1816, %v1815
    %v1818 = vmul.f32 0.5, %v1817
    %v1819 = vsub.f32 1.5, %v1818
    %v1820 = vmul.f32 %v1815, %v1819
    %vm1821 = vweird.f32 %v1814
    %vm1822 = vweird.f32 %v1815
    %vm1823 = vmor %vm1821, %vm1822
    %v1824 = vsel %vm1823, %v1815, %v1820
    %v1825 = vmul.f32 %v1813, %v1824
    %v1826 = vld [vmem:[%s6] sm:$0x1]
    %v1827 = vmul.f32 %v1809, %v1825
    %v1828 = vsub.f32 %v1826, %v1827
    %v1830 = vperm.slane %v1825, 0
    %v1832 = vmul.f32 %v1703, %v1830
    %v1833 = vmul.f32 %v1704, %v1830
    %v1834 = vmul.f32 %v1705, %v1830
    %v1835 = vmul.f32 %v1706, %v1830
    %v1836 = vmul.f32 %v1707, %v1830
    %v1837 = vmul.f32 %v1708, %v1830
    %v1838 = vmul.f32 %v1709, %v1830
    %v1839 = vmul.f32 %v1710, %v1830
    %v1840 = vmul.f32 %v1711, %v1830
    %v1841 = vmul.f32 %v1712, %v1830
    %v1842 = vmul.f32 %v1713, %v1830
    %v1843 = vmul.f32 %v1714, %v1830
    %v1844 = vmul.f32 %v1715, %v1830
    %v1845 = vmul.f32 %v1716, %v1830
    %v1846 = vmul.f32 %v1717, %v1830
    %v1847 = vmul.f32 %v1718, %v1830
    %v1849 = vperm.slane %v1828, 0
    %v1851 = vadd.f32 %v1832, %v1849
    %v1852 = vadd.f32 %v1833, %v1849
    %v1853 = vadd.f32 %v1834, %v1849
    %v1854 = vadd.f32 %v1835, %v1849
    %v1855 = vadd.f32 %v1836, %v1849
    %v1856 = vadd.f32 %v1837, %v1849
    %v1857 = vadd.f32 %v1838, %v1849
    %v1858 = vadd.f32 %v1839, %v1849
    %v1859 = vadd.f32 %v1840, %v1849
    %v1860 = vadd.f32 %v1841, %v1849
    %v1861 = vadd.f32 %v1842, %v1849
    %v1862 = vadd.f32 %v1843, %v1849
    %v1863 = vadd.f32 %v1844, %v1849
    %v1864 = vadd.f32 %v1845, %v1849
    %v1865 = vadd.f32 %v1846, %v1849
    %v1866 = vadd.f32 %v1847, %v1849
    %v1867 = vmax.f32 %v1851, 0.0
    %v1868 = vmax.f32 %v1852, 0.0
    %v1869 = vmax.f32 %v1853, 0.0
    %v1870 = vmax.f32 %v1854, 0.0
    %v1871 = vmax.f32 %v1855, 0.0
    %v1872 = vmax.f32 %v1856, 0.0
    %v1873 = vmax.f32 %v1857, 0.0
    %v1874 = vmax.f32 %v1858, 0.0
    %v1875 = vmax.f32 %v1859, 0.0
    %v1876 = vmax.f32 %v1860, 0.0
    %v1877 = vmax.f32 %v1861, 0.0
    %v1878 = vmax.f32 %v1862, 0.0
    %v1879 = vmax.f32 %v1863, 0.0
    %v1880 = vmax.f32 %v1864, 0.0
    %v1881 = vmax.f32 %v1865, 0.0
    %v1882 = vmax.f32 %v1866, 0.0
    %1883 = vst.msk [vmem:[#allocation4] sm:$0xff] %vm66, 0.0
    %1884 = vst.msk [vmem:[#allocation4 + $0x8] sm:$0x3] %vm232, 0.0
    %1885 = vst.msk [vmem:[#allocation4 + $0x10] sm:$0xff] %vm66, 0.0
    %1886 = vst.msk [vmem:[#allocation4 + $0x18] sm:$0x3] %vm232, 0.0
    %1887 = vst.msk [vmem:[#allocation4 + $0x20] sm:$0xff] %vm66, 0.0
    %1888 = vst.msk [vmem:[#allocation4 + $0x28] sm:$0x3] %vm232, 0.0
    %1889 = vst.msk [vmem:[#allocation4 + $0x30] sm:$0xff] %vm66, 0.0
    %1890 = vst.msk [vmem:[#allocation4 + $0x38] sm:$0x3] %vm232, 0.0
    %1891 = vst.msk [vmem:[#allocation4 + $0x40] sm:$0xff] %vm66, 0.0
    %1892 = vst.msk [vmem:[#allocation4 + $0x48] sm:$0x3] %vm232, 0.0
    %1893 = vst.msk [vmem:[#allocation4 + $0x50] sm:$0xff] %vm66, 0.0
    %1894 = vst.msk [vmem:[#allocation4 + $0x58] sm:$0x3] %vm232, 0.0
    %1895 = vst.msk [vmem:[#allocation4 + $0x60] sm:$0xff] %vm66, 0.0
    %1896 = vst.msk [vmem:[#allocation4 + $0x68] sm:$0x3] %vm232, 0.0
    %1897 = vst.msk [vmem:[#allocation4 + $0x70] sm:$0xff] %vm66, 0.0
    %1898 = vst.msk [vmem:[#allocation4 + $0x78] sm:$0x3] %vm232, 0.0
    %1899 = vst.msk [vmem:[#allocation4 + $0x80] sm:$0xff] %vm66, 0.0
    %1900 = vst.msk [vmem:[#allocation4 + $0x88] sm:$0x3] %vm232, 0.0
    %1901 = vst.msk [vmem:[#allocation4 + $0x90] sm:$0xff] %vm66, 0.0
    %1902 = vst.msk [vmem:[#allocation4 + $0x98] sm:$0x3] %vm232, 0.0
    %1903 = vst.msk [vmem:[#allocation4 + $0xa0] sm:$0xff] %vm66, 0.0
    %1904 = vst.msk [vmem:[#allocation4 + $0xa8] sm:$0x3] %vm232, 0.0
    %1905 = vst.msk [vmem:[#allocation4 + $0xb0] sm:$0xff] %vm66, 0.0
    %1906 = vst.msk [vmem:[#allocation4 + $0xb8] sm:$0x3] %vm232, 0.0
    %1907 = vst.msk [vmem:[#allocation4 + $0xc0] sm:$0xff] %vm66, 0.0
    %1908 = vst.msk [vmem:[#allocation4 + $0xc8] sm:$0x3] %vm232, 0.0
    %1909 = vst.msk [vmem:[#allocation4 + $0xd0] sm:$0xff] %vm66, 0.0
    %1910 = vst.msk [vmem:[#allocation4 + $0xd8] sm:$0x3] %vm232, 0.0
    %1911 = vst.msk [vmem:[#allocation4 + $0xe0] sm:$0xff] %vm66, 0.0
    %1912 = vst.msk [vmem:[#allocation4 + $0xe8] sm:$0x3] %vm232, 0.0
    %1913 = vst.msk [vmem:[#allocation4 + $0xf0] sm:$0xff] %vm66, 0.0
    %1914 = vst.msk [vmem:[#allocation4 + $0xf8] sm:$0x3] %vm232, 0.0
    %1915 = vst.msk [vmem:[#allocation4 + $0x100] sm:$0xff] %vm66, 0.0
    %1916 = vst.msk [vmem:[#allocation4 + $0x108] sm:$0x3] %vm232, 0.0
    %1917 = vst.msk [vmem:[#allocation4 + $0x110] sm:$0xff] %vm66, 0.0
    %1918 = vst.msk [vmem:[#allocation4 + $0x118] sm:$0x3] %vm232, 0.0
    %1919 = vst.msk [vmem:[#allocation4 + $0x120] sm:$0xff] %vm66, 0.0
    %1920 = vst.msk [vmem:[#allocation4 + $0x128] sm:$0x3] %vm232, 0.0
    %1921 = vst.msk [vmem:[#allocation4 + $0x130] sm:$0xff] %vm66, 0.0
    %1922 = vst.msk [vmem:[#allocation4 + $0x138] sm:$0x3] %vm232, 0.0
    %s1923 = scalar_lea.vmem [#allocation4], 16
    %1924 = vst.msk [vmem:[%s1923 + $0x1] sm:$0xff] %vm66, %v1867
    %1925 = vst.msk [vmem:[%s1923 + $0x11] sm:$0xff] %vm66, %v1868
    %1926 = vst.msk [vmem:[%s1923 + $0x21] sm:$0xff] %vm66, %v1869
    %1927 = vst.msk [vmem:[%s1923 + $0x31] sm:$0xff] %vm66, %v1870
    %1928 = vst.msk [vmem:[%s1923 + $0x41] sm:$0xff] %vm66, %v1871
    %1929 = vst.msk [vmem:[%s1923 + $0x51] sm:$0xff] %vm66, %v1872
    %1930 = vst.msk [vmem:[%s1923 + $0x61] sm:$0xff] %vm66, %v1873
    %1931 = vst.msk [vmem:[%s1923 + $0x71] sm:$0xff] %vm66, %v1874
    %1932 = vst.msk [vmem:[%s1923 + $0xa1] sm:$0xff] %vm66, %v1875
    %1933 = vst.msk [vmem:[%s1923 + $0xb1] sm:$0xff] %vm66, %v1876
    %1934 = vst.msk [vmem:[%s1923 + $0xc1] sm:$0xff] %vm66, %v1877
    %1935 = vst.msk [vmem:[%s1923 + $0xd1] sm:$0xff] %vm66, %v1878
    %1936 = vst.msk [vmem:[%s1923 + $0xe1] sm:$0xff] %vm66, %v1879
    %1937 = vst.msk [vmem:[%s1923 + $0xf1] sm:$0xff] %vm66, %v1880
    %1938 = vst.msk [vmem:[%s1923 + $0x101] sm:$0xff] %vm66, %v1881
    %1939 = vst.msk [vmem:[%s1923 + $0x111] sm:$0xff] %vm66, %v1882
    %1940 = vst.msk [vmem:[#allocation5] sm:$0xff] %vm66, 0.0
    %1941 = vst.msk [vmem:[#allocation5 + $0x8] sm:$0xff] %vm66, 0.0
    %1942 = vst.msk [vmem:[#allocation5 + $0x10] sm:$0xff] %vm66, 0.0
    %1943 = vst.msk [vmem:[#allocation5 + $0x18] sm:$0xff] %vm66, 0.0
    %1944 = vst.msk [vmem:[#allocation5 + $0x20] sm:$0xff] %vm66, 0.0
    %1945 = vst.msk [vmem:[#allocation5 + $0x28] sm:$0xff] %vm66, 0.0
    %1946 = vst.msk [vmem:[#allocation5 + $0x30] sm:$0xff] %vm66, 0.0
    %1947 = vst.msk [vmem:[#allocation5 + $0x38] sm:$0xff] %vm66, 0.0
    %1948 = vst.msk [vmem:[#allocation5 + $0x40] sm:$0xff] %vm66, 0.0
    %1949 = vst.msk [vmem:[#allocation5 + $0x48] sm:$0xff] %vm66, 0.0
    %1950 = vst.msk [vmem:[#allocation5 + $0x50] sm:$0xff] %vm66, 0.0
    %1951 = vst.msk [vmem:[#allocation5 + $0x58] sm:$0xff] %vm66, 0.0
    %1952 = vst.msk [vmem:[#allocation5 + $0x60] sm:$0xff] %vm66, 0.0
    %1953 = vst.msk [vmem:[#allocation5 + $0x68] sm:$0xff] %vm66, 0.0
    %1954 = vst.msk [vmem:[#allocation5 + $0x70] sm:$0xff] %vm66, 0.0
    %1955 = vst.msk [vmem:[#allocation5 + $0x78] sm:$0xff] %vm66, 0.0
    %v1956 = vld [vmem:[#allocation4] sm:$0xff]
    %v1957 = vld [vmem:[#allocation4 + $0x10] sm:$0xff]
    %v1958 = vld [vmem:[#allocation4 + $0x20] sm:$0xff]
    %v1959 = vld [vmem:[#allocation4 + $0x30] sm:$0xff]
    %v1960 = vld [vmem:[#allocation4 + $0x40] sm:$0xff]
    %v1961 = vld [vmem:[#allocation4 + $0x50] sm:$0xff]
    %v1962 = vld [vmem:[#allocation4 + $0x60] sm:$0xff]
    %v1963 = vld [vmem:[#allocation4 + $0x70] sm:$0xff]
    %v1964 = vld [vmem:[#allocation4 + $0xa0] sm:$0xff]
    %v1965 = vld [vmem:[#allocation4 + $0xb0] sm:$0xff]
    %v1966 = vld [vmem:[#allocation4 + $0xc0] sm:$0xff]
    %v1967 = vld [vmem:[#allocation4 + $0xd0] sm:$0xff]
    %v1968 = vld [vmem:[#allocation4 + $0xe0] sm:$0xff]
    %v1969 = vld [vmem:[#allocation4 + $0xf0] sm:$0xff]
    %v1970 = vld [vmem:[#allocation4 + $0x100] sm:$0xff]
    %v1971 = vld [vmem:[#allocation4 + $0x110] sm:$0xff]
    %v1972 = vld [vmem:[%s7] sm:$0xf]
    %v1973 = vld [vmem:[%s7 + $0x4] sm:$0xf]
    %v1974 = vld [vmem:[#allocation5] sm:$0xff]
    %v1975 = vld [vmem:[#allocation5 + $0x8] sm:$0xff]
    %v1976 = vld [vmem:[#allocation5 + $0x10] sm:$0xff]
    %v1977 = vld [vmem:[#allocation5 + $0x18] sm:$0xff]
    %v1978 = vld [vmem:[#allocation5 + $0x20] sm:$0xff]
    %v1979 = vld [vmem:[#allocation5 + $0x28] sm:$0xff]
    %v1980 = vld [vmem:[#allocation5 + $0x30] sm:$0xff]
    %v1981 = vld [vmem:[#allocation5 + $0x38] sm:$0xff]
    %v1982 = vld [vmem:[#allocation5 + $0x40] sm:$0xff]
    %v1983 = vld [vmem:[#allocation5 + $0x48] sm:$0xff]
    %v1984 = vld [vmem:[#allocation5 + $0x50] sm:$0xff]
    %v1985 = vld [vmem:[#allocation5 + $0x58] sm:$0xff]
    %v1986 = vld [vmem:[#allocation5 + $0x60] sm:$0xff]
    %v1987 = vld [vmem:[#allocation5 + $0x68] sm:$0xff]
    %v1988 = vld [vmem:[#allocation5 + $0x70] sm:$0xff]
    %v1989 = vld [vmem:[#allocation5 + $0x78] sm:$0xff]
    %v1990 = vpack.c.bf16 %v1957, %v1956
    %v1991 = vpack.c.bf16 %v1959, %v1958
    %v1992 = vpack.c.bf16 %v1961, %v1960
    %v1993 = vpack.c.bf16 %v1963, %v1962
    %v1994 = vpack.c.bf16 %v1965, %v1964
    %v1995 = vpack.c.bf16 %v1967, %v1966
    %v1996 = vpack.c.bf16 %v1969, %v1968
    %v1997 = vpack.c.bf16 %v1971, %v1970
    %v2000 = vunpack.c.l.b16 %v1972
    %v2001 = vunpack.c.l.b16 %v1973
    %v2002 = vpack.c.b16 %v2001, %v2000
    %v2005 = vsel %vm66, %v1990, 0
    %v2008 = vsel %vm66, %v1991, 0
    %v2011 = vsel %vm66, %v1992, 0
    %v2014 = vsel %vm66, %v1993, 0
    %v2017 = vsel %vm66, %v1994, 0
    %v2020 = vsel %vm66, %v1995, 0
    %v2023 = vsel %vm66, %v1996, 0
    %v2026 = vsel %vm66, %v1997, 0
    %2028 = vmatpush.bf16.msra.mxu0 0
    %2029 = vmatpush.bf16.msra.mxu0 0
    %2030 = vmatpush.bf16.msra.mxu0 0
    %2031 = vmatpush.bf16.msra.mxu0 0
    %2032 = vmatpush.bf16.msra.mxu0 0
    %2033 = vmatpush.bf16.msra.mxu0 0
    %2034 = vmatpush.bf16.msra.mxu0 0
    %2035 = vmatpush.bf16.msra.mxu0 %v2002
    %2036 = vmatmul.bf16.gmra.mxu0 %v2005
    %v2037 = vpop.f32.mrf.mxu0
    %v2038 = vadd.f32 0.0, %v2037
    %v2039 = vpop.f32.mrf.mxu0
    %v2040 = vadd.f32 0.0, %v2039
    %2041 = vmatmul.bf16.gmra.mxu0 %v2008
    %v2042 = vpop.f32.mrf.mxu0
    %v2043 = vadd.f32 0.0, %v2042
    %v2044 = vpop.f32.mrf.mxu0
    %v2045 = vadd.f32 0.0, %v2044
    %2046 = vmatmul.bf16.gmra.mxu0 %v2011
    %v2047 = vpop.f32.mrf.mxu0
    %v2048 = vadd.f32 0.0, %v2047
    %v2049 = vpop.f32.mrf.mxu0
    %v2050 = vadd.f32 0.0, %v2049
    %2051 = vmatmul.bf16.gmra.mxu0 %v2014
    %v2052 = vpop.f32.mrf.mxu0
    %v2053 = vadd.f32 0.0, %v2052
    %v2054 = vpop.f32.mrf.mxu0
    %v2055 = vadd.f32 0.0, %v2054
    %2056 = vmatmul.bf16.gmra.mxu0 %v2017
    %v2057 = vpop.f32.mrf.mxu0
    %v2058 = vadd.f32 0.0, %v2057
    %v2059 = vpop.f32.mrf.mxu0
    %v2060 = vadd.f32 0.0, %v2059
    %2061 = vmatmul.bf16.gmra.mxu0 %v2020
    %v2062 = vpop.f32.mrf.mxu0
    %v2063 = vadd.f32 0.0, %v2062
    %v2064 = vpop.f32.mrf.mxu0
    %v2065 = vadd.f32 0.0, %v2064
    %2066 = vmatmul.bf16.gmra.mxu0 %v2023
    %v2067 = vpop.f32.mrf.mxu0
    %v2068 = vadd.f32 0.0, %v2067
    %v2069 = vpop.f32.mrf.mxu0
    %v2070 = vadd.f32 0.0, %v2069
    %2071 = vmatmul.bf16.gmra.mxu0 %v2026
    %v2072 = vpop.f32.mrf.mxu0
    %v2073 = vadd.f32 0.0, %v2072
    %v2074 = vpop.f32.mrf.mxu0
    %v2075 = vadd.f32 0.0, %v2074
    %2076 = vdwg.mxu0
    %v2077 = vadd.f32 %v1974, %v2038
    %v2078 = vadd.f32 %v1975, %v2040
    %v2079 = vadd.f32 %v1976, %v2043
    %v2080 = vadd.f32 %v1977, %v2045
    %v2081 = vadd.f32 %v1978, %v2048
    %v2082 = vadd.f32 %v1979, %v2050
    %v2083 = vadd.f32 %v1980, %v2053
    %v2084 = vadd.f32 %v1981, %v2055
    %v2085 = vadd.f32 %v1982, %v2058
    %v2086 = vadd.f32 %v1983, %v2060
    %v2087 = vadd.f32 %v1984, %v2063
    %v2088 = vadd.f32 %v1985, %v2065
    %v2089 = vadd.f32 %v1986, %v2068
    %v2090 = vadd.f32 %v1987, %v2070
    %v2091 = vadd.f32 %v1988, %v2073
    %v2092 = vadd.f32 %v1989, %v2075
    %2093 = vst.msk [vmem:[#allocation5] sm:$0xff] %vm66, %v2077
    %2094 = vst.msk [vmem:[#allocation5 + $0x8] sm:$0xff] %vm66, %v2078
    %2095 = vst.msk [vmem:[#allocation5 + $0x10] sm:$0xff] %vm66, %v2079
    %2096 = vst.msk [vmem:[#allocation5 + $0x18] sm:$0xff] %vm66, %v2080
    %2097 = vst.msk [vmem:[#allocation5 + $0x20] sm:$0xff] %vm66, %v2081
    %2098 = vst.msk [vmem:[#allocation5 + $0x28] sm:$0xff] %vm66, %v2082
    %2099 = vst.msk [vmem:[#allocation5 + $0x30] sm:$0xff] %vm66, %v2083
    %2100 = vst.msk [vmem:[#allocation5 + $0x38] sm:$0xff] %vm66, %v2084
    %2101 = vst.msk [vmem:[#allocation5 + $0x40] sm:$0xff] %vm66, %v2085
    %2102 = vst.msk [vmem:[#allocation5 + $0x48] sm:$0xff] %vm66, %v2086
    %2103 = vst.msk [vmem:[#allocation5 + $0x50] sm:$0xff] %vm66, %v2087
    %2104 = vst.msk [vmem:[#allocation5 + $0x58] sm:$0xff] %vm66, %v2088
    %2105 = vst.msk [vmem:[#allocation5 + $0x60] sm:$0xff] %vm66, %v2089
    %2106 = vst.msk [vmem:[#allocation5 + $0x68] sm:$0xff] %vm66, %v2090
    %2107 = vst.msk [vmem:[#allocation5 + $0x70] sm:$0xff] %vm66, %v2091
    %2108 = vst.msk [vmem:[#allocation5 + $0x78] sm:$0xff] %vm66, %v2092
    %v2109 = vld [vmem:[#allocation4 + $0x1] sm:$0xff]
    %v2110 = vld [vmem:[#allocation4 + $0x11] sm:$0xff]
    %v2111 = vld [vmem:[#allocation4 + $0x21] sm:$0xff]
    %v2112 = vld [vmem:[#allocation4 + $0x31] sm:$0xff]
    %v2113 = vld [vmem:[#allocation4 + $0x41] sm:$0xff]
    %v2114 = vld [vmem:[#allocation4 + $0x51] sm:$0xff]
    %v2115 = vld [vmem:[#allocation4 + $0x61] sm:$0xff]
    %v2116 = vld [vmem:[#allocation4 + $0x71] sm:$0xff]
    %v2117 = vld [vmem:[#allocation4 + $0xa1] sm:$0xff]
    %v2118 = vld [vmem:[#allocation4 + $0xb1] sm:$0xff]
    %v2119 = vld [vmem:[#allocation4 + $0xc1] sm:$0xff]
    %v2120 = vld [vmem:[#allocation4 + $0xd1] sm:$0xff]
    %v2121 = vld [vmem:[#allocation4 + $0xe1] sm:$0xff]
    %v2122 = vld [vmem:[#allocation4 + $0xf1] sm:$0xff]
    %v2123 = vld [vmem:[#allocation4 + $0x101] sm:$0xff]
    %v2124 = vld [vmem:[#allocation4 + $0x111] sm:$0xff]
    %v2125 = vld [vmem:[%s7 + $0x8] sm:$0xf]
    %v2126 = vld [vmem:[%s7 + $0xc] sm:$0xf]
    %v2127 = vld [vmem:[#allocation5] sm:$0xff]
    %v2128 = vld [vmem:[#allocation5 + $0x8] sm:$0xff]
    %v2129 = vld [vmem:[#allocation5 + $0x10] sm:$0xff]
    %v2130 = vld [vmem:[#allocation5 + $0x18] sm:$0xff]
    %v2131 = vld [vmem:[#allocation5 + $0x20] sm:$0xff]
    %v2132 = vld [vmem:[#allocation5 + $0x28] sm:$0xff]
    %v2133 = vld [vmem:[#allocation5 + $0x30] sm:$0xff]
    %v2134 = vld [vmem:[#allocation5 + $0x38] sm:$0xff]
    %v2135 = vld [vmem:[#allocation5 + $0x40] sm:$0xff]
    %v2136 = vld [vmem:[#allocation5 + $0x48] sm:$0xff]
    %v2137 = vld [vmem:[#allocation5 + $0x50] sm:$0xff]
    %v2138 = vld [vmem:[#allocation5 + $0x58] sm:$0xff]
    %v2139 = vld [vmem:[#allocation5 + $0x60] sm:$0xff]
    %v2140 = vld [vmem:[#allocation5 + $0x68] sm:$0xff]
    %v2141 = vld [vmem:[#allocation5 + $0x70] sm:$0xff]
    %v2142 = vld [vmem:[#allocation5 + $0x78] sm:$0xff]
    %v2143 = vpack.c.bf16 %v2110, %v2109
    %v2144 = vpack.c.bf16 %v2112, %v2111
    %v2145 = vpack.c.bf16 %v2114, %v2113
    %v2146 = vpack.c.bf16 %v2116, %v2115
    %v2147 = vpack.c.bf16 %v2118, %v2117
    %v2148 = vpack.c.bf16 %v2120, %v2119
    %v2149 = vpack.c.bf16 %v2122, %v2121
    %v2150 = vpack.c.bf16 %v2124, %v2123
    %v2153 = vunpack.c.l.b16 %v2125
    %v2154 = vunpack.c.l.b16 %v2126
    %v2155 = vpack.c.b16 %v2154, %v2153
    %v2158 = vsel %vm66, %v2143, 0
    %v2161 = vsel %vm66, %v2144, 0
    %v2164 = vsel %vm66, %v2145, 0
    %v2167 = vsel %vm66, %v2146, 0
    %v2170 = vsel %vm66, %v2147, 0
    %v2173 = vsel %vm66, %v2148, 0
    %v2176 = vsel %vm66, %v2149, 0
    %v2179 = vsel %vm66, %v2150, 0
    %2181 = vmatpush.bf16.msra.mxu0 0
    %2182 = vmatpush.bf16.msra.mxu0 0
    %2183 = vmatpush.bf16.msra.mxu0 0
    %2184 = vmatpush.bf16.msra.mxu0 0
    %2185 = vmatpush.bf16.msra.mxu0 0
    %2186 = vmatpush.bf16.msra.mxu0 0
    %2187 = vmatpush.bf16.msra.mxu0 0
    %2188 = vmatpush.bf16.msra.mxu0 %v2155
    %2189 = vmatmul.bf16.gmra.mxu0 %v2158
    %v2190 = vpop.f32.mrf.mxu0
    %v2191 = vadd.f32 0.0, %v2190
    %v2192 = vpop.f32.mrf.mxu0
    %v2193 = vadd.f32 0.0, %v2192
    %2194 = vmatmul.bf16.gmra.mxu0 %v2161
    %v2195 = vpop.f32.mrf.mxu0
    %v2196 = vadd.f32 0.0, %v2195
    %v2197 = vpop.f32.mrf.mxu0
    %v2198 = vadd.f32 0.0, %v2197
    %2199 = vmatmul.bf16.gmra.mxu0 %v2164
    %v2200 = vpop.f32.mrf.mxu0
    %v2201 = vadd.f32 0.0, %v2200
    %v2202 = vpop.f32.mrf.mxu0
    %v2203 = vadd.f32 0.0, %v2202
    %2204 = vmatmul.bf16.gmra.mxu0 %v2167
    %v2205 = vpop.f32.mrf.mxu0
    %v2206 = vadd.f32 0.0, %v2205
    %v2207 = vpop.f32.mrf.mxu0
    %v2208 = vadd.f32 0.0, %v2207
    %2209 = vmatmul.bf16.gmra.mxu0 %v2170
    %v2210 = vpop.f32.mrf.mxu0
    %v2211 = vadd.f32 0.0, %v2210
    %v2212 = vpop.f32.mrf.mxu0
    %v2213 = vadd.f32 0.0, %v2212
    %2214 = vmatmul.bf16.gmra.mxu0 %v2173
    %v2215 = vpop.f32.mrf.mxu0
    %v2216 = vadd.f32 0.0, %v2215
    %v2217 = vpop.f32.mrf.mxu0
    %v2218 = vadd.f32 0.0, %v2217
    %2219 = vmatmul.bf16.gmra.mxu0 %v2176
    %v2220 = vpop.f32.mrf.mxu0
    %v2221 = vadd.f32 0.0, %v2220
    %v2222 = vpop.f32.mrf.mxu0
    %v2223 = vadd.f32 0.0, %v2222
    %2224 = vmatmul.bf16.gmra.mxu0 %v2179
    %v2225 = vpop.f32.mrf.mxu0
    %v2226 = vadd.f32 0.0, %v2225
    %v2227 = vpop.f32.mrf.mxu0
    %v2228 = vadd.f32 0.0, %v2227
    %2229 = vdwg.mxu0
    %v2230 = vadd.f32 %v2127, %v2191
    %v2231 = vadd.f32 %v2128, %v2193
    %v2232 = vadd.f32 %v2129, %v2196
    %v2233 = vadd.f32 %v2130, %v2198
    %v2234 = vadd.f32 %v2131, %v2201
    %v2235 = vadd.f32 %v2132, %v2203
    %v2236 = vadd.f32 %v2133, %v2206
    %v2237 = vadd.f32 %v2134, %v2208
    %v2238 = vadd.f32 %v2135, %v2211
    %v2239 = vadd.f32 %v2136, %v2213
    %v2240 = vadd.f32 %v2137, %v2216
    %v2241 = vadd.f32 %v2138, %v2218
    %v2242 = vadd.f32 %v2139, %v2221
    %v2243 = vadd.f32 %v2140, %v2223
    %v2244 = vadd.f32 %v2141, %v2226
    %v2245 = vadd.f32 %v2142, %v2228
    %2246 = vst.msk [vmem:[#allocation5] sm:$0xff] %vm66, %v2230
    %2247 = vst.msk [vmem:[#allocation5 + $0x8] sm:$0xff] %vm66, %v2231
    %2248 = vst.msk [vmem:[#allocation5 + $0x10] sm:$0xff] %vm66, %v2232
    %2249 = vst.msk [vmem:[#allocation5 + $0x18] sm:$0xff] %vm66, %v2233
    %2250 = vst.msk [vmem:[#allocation5 + $0x20] sm:$0xff] %vm66, %v2234
    %2251 = vst.msk [vmem:[#allocation5 + $0x28] sm:$0xff] %vm66, %v2235
    %2252 = vst.msk [vmem:[#allocation5 + $0x30] sm:$0xff] %vm66, %v2236
    %2253 = vst.msk [vmem:[#allocation5 + $0x38] sm:$0xff] %vm66, %v2237
    %2254 = vst.msk [vmem:[#allocation5 + $0x40] sm:$0xff] %vm66, %v2238
    %2255 = vst.msk [vmem:[#allocation5 + $0x48] sm:$0xff] %vm66, %v2239
    %2256 = vst.msk [vmem:[#allocation5 + $0x50] sm:$0xff] %vm66, %v2240
    %2257 = vst.msk [vmem:[#allocation5 + $0x58] sm:$0xff] %vm66, %v2241
    %2258 = vst.msk [vmem:[#allocation5 + $0x60] sm:$0xff] %vm66, %v2242
    %2259 = vst.msk [vmem:[#allocation5 + $0x68] sm:$0xff] %vm66, %v2243
    %2260 = vst.msk [vmem:[#allocation5 + $0x70] sm:$0xff] %vm66, %v2244
    %2261 = vst.msk [vmem:[#allocation5 + $0x78] sm:$0xff] %vm66, %v2245
    %v2262 = vld [vmem:[#allocation4 + $0x2] sm:$0xff]
    %v2263 = vld [vmem:[#allocation4 + $0x12] sm:$0xff]
    %v2264 = vld [vmem:[#allocation4 + $0x22] sm:$0xff]
    %v2265 = vld [vmem:[#allocation4 + $0x32] sm:$0xff]
    %v2266 = vld [vmem:[#allocation4 + $0x42] sm:$0xff]
    %v2267 = vld [vmem:[#allocation4 + $0x52] sm:$0xff]
    %v2268 = vld [vmem:[#allocation4 + $0x62] sm:$0xff]
    %v2269 = vld [vmem:[#allocation4 + $0x72] sm:$0xff]
    %v2270 = vld [vmem:[#allocation4 + $0xa2] sm:$0xff]
    %v2271 = vld [vmem:[#allocation4 + $0xb2] sm:$0xff]
    %v2272 = vld [vmem:[#allocation4 + $0xc2] sm:$0xff]
    %v2273 = vld [vmem:[#allocation4 + $0xd2] sm:$0xff]
    %v2274 = vld [vmem:[#allocation4 + $0xe2] sm:$0xff]
    %v2275 = vld [vmem:[#allocation4 + $0xf2] sm:$0xff]
    %v2276 = vld [vmem:[#allocation4 + $0x102] sm:$0xff]
    %v2277 = vld [vmem:[#allocation4 + $0x112] sm:$0xff]
    %v2278 = vld [vmem:[%s7 + $0x10] sm:$0xf]
    %v2279 = vld [vmem:[%s7 + $0x14] sm:$0xf]
    %v2280 = vld [vmem:[#allocation5] sm:$0xff]
    %v2281 = vld [vmem:[#allocation5 + $0x8] sm:$0xff]
    %v2282 = vld [vmem:[#allocation5 + $0x10] sm:$0xff]
    %v2283 = vld [vmem:[#allocation5 + $0x18] sm:$0xff]
    %v2284 = vld [vmem:[#allocation5 + $0x20] sm:$0xff]
    %v2285 = vld [vmem:[#allocation5 + $0x28] sm:$0xff]
    %v2286 = vld [vmem:[#allocation5 + $0x30] sm:$0xff]
    %v2287 = vld [vmem:[#allocation5 + $0x38] sm:$0xff]
    %v2288 = vld [vmem:[#allocation5 + $0x40] sm:$0xff]
    %v2289 = vld [vmem:[#allocation5 + $0x48] sm:$0xff]
    %v2290 = vld [vmem:[#allocation5 + $0x50] sm:$0xff]
    %v2291 = vld [vmem:[#allocation5 + $0x58] sm:$0xff]
    %v2292 = vld [vmem:[#allocation5 + $0x60] sm:$0xff]
    %v2293 = vld [vmem:[#allocation5 + $0x68] sm:$0xff]
    %v2294 = vld [vmem:[#allocation5 + $0x70] sm:$0xff]
    %v2295 = vld [vmem:[#allocation5 + $0x78] sm:$0xff]
    %v2296 = vpack.c.bf16 %v2263, %v2262
    %v2297 = vpack.c.bf16 %v2265, %v2264
    %v2298 = vpack.c.bf16 %v2267, %v2266
    %v2299 = vpack.c.bf16 %v2269, %v2268
    %v2300 = vpack.c.bf16 %v2271, %v2270
    %v2301 = vpack.c.bf16 %v2273, %v2272
    %v2302 = vpack.c.bf16 %v2275, %v2274
    %v2303 = vpack.c.bf16 %v2277, %v2276
    %v2306 = vunpack.c.l.b16 %v2278
    %v2307 = vunpack.c.l.b16 %v2279
    %v2308 = vpack.c.b16 %v2307, %v2306
    %v2311 = vsel %vm66, %v2296, 0
    %v2314 = vsel %vm66, %v2297, 0
    %v2317 = vsel %vm66, %v2298, 0
    %v2320 = vsel %vm66, %v2299, 0
    %v2323 = vsel %vm66, %v2300, 0
    %v2326 = vsel %vm66, %v2301, 0
    %v2329 = vsel %vm66, %v2302, 0
    %v2332 = vsel %vm66, %v2303, 0
    %2334 = vmatpush.bf16.msra.mxu0 0
    %2335 = vmatpush.bf16.msra.mxu0 0
    %2336 = vmatpush.bf16.msra.mxu0 0
    %2337 = vmatpush.bf16.msra.mxu0 0
    %2338 = vmatpush.bf16.msra.mxu0 0
    %2339 = vmatpush.bf16.msra.mxu0 0
    %2340 = vmatpush.bf16.msra.mxu0 0
    %2341 = vmatpush.bf16.msra.mxu0 %v2308
    %2342 = vmatmul.bf16.gmra.mxu0 %v2311
    %v2343 = vpop.f32.mrf.mxu0
    %v2344 = vadd.f32 0.0, %v2343
    %v2345 = vpop.f32.mrf.mxu0
    %v2346 = vadd.f32 0.0, %v2345
    %2347 = vmatmul.bf16.gmra.mxu0 %v2314
    %v2348 = vpop.f32.mrf.mxu0
    %v2349 = vadd.f32 0.0, %v2348
    %v2350 = vpop.f32.mrf.mxu0
    %v2351 = vadd.f32 0.0, %v2350
    %2352 = vmatmul.bf16.gmra.mxu0 %v2317
    %v2353 = vpop.f32.mrf.mxu0
    %v2354 = vadd.f32 0.0, %v2353
    %v2355 = vpop.f32.mrf.mxu0
    %v2356 = vadd.f32 0.0, %v2355
    %2357 = vmatmul.bf16.gmra.mxu0 %v2320
    %v2358 = vpop.f32.mrf.mxu0
    %v2359 = vadd.f32 0.0, %v2358
    %v2360 = vpop.f32.mrf.mxu0
    %v2361 = vadd.f32 0.0, %v2360
    %2362 = vmatmul.bf16.gmra.mxu0 %v2323
    %v2363 = vpop.f32.mrf.mxu0
    %v2364 = vadd.f32 0.0, %v2363
    %v2365 = vpop.f32.mrf.mxu0
    %v2366 = vadd.f32 0.0, %v2365
    %2367 = vmatmul.bf16.gmra.mxu0 %v2326
    %v2368 = vpop.f32.mrf.mxu0
    %v2369 = vadd.f32 0.0, %v2368
    %v2370 = vpop.f32.mrf.mxu0
    %v2371 = vadd.f32 0.0, %v2370
    %2372 = vmatmul.bf16.gmra.mxu0 %v2329
    %v2373 = vpop.f32.mrf.mxu0
    %v2374 = vadd.f32 0.0, %v2373
    %v2375 = vpop.f32.mrf.mxu0
    %v2376 = vadd.f32 0.0, %v2375
    %2377 = vmatmul.bf16.gmra.mxu0 %v2332
    %v2378 = vpop.f32.mrf.mxu0
    %v2379 = vadd.f32 0.0, %v2378
    %v2380 = vpop.f32.mrf.mxu0
    %v2381 = vadd.f32 0.0, %v2380
    %2382 = vdwg.mxu0
    %v2383 = vadd.f32 %v2280, %v2344
    %v2384 = vadd.f32 %v2281, %v2346
    %v2385 = vadd.f32 %v2282, %v2349
    %v2386 = vadd.f32 %v2283, %v2351
    %v2387 = vadd.f32 %v2284, %v2354
    %v2388 = vadd.f32 %v2285, %v2356
    %v2389 = vadd.f32 %v2286, %v2359
    %v2390 = vadd.f32 %v2287, %v2361
    %v2391 = vadd.f32 %v2288, %v2364
    %v2392 = vadd.f32 %v2289, %v2366
    %v2393 = vadd.f32 %v2290, %v2369
    %v2394 = vadd.f32 %v2291, %v2371
    %v2395 = vadd.f32 %v2292, %v2374
    %v2396 = vadd.f32 %v2293, %v2376
    %v2397 = vadd.f32 %v2294, %v2379
    %v2398 = vadd.f32 %v2295, %v2381
    %2399 = vst.msk [vmem:[#allocation5] sm:$0xff] %vm66, %v2383
    %2400 = vst.msk [vmem:[#allocation5 + $0x8] sm:$0xff] %vm66, %v2384
    %2401 = vst.msk [vmem:[#allocation5 + $0x10] sm:$0xff] %vm66, %v2385
    %2402 = vst.msk [vmem:[#allocation5 + $0x18] sm:$0xff] %vm66, %v2386
    %2403 = vst.msk [vmem:[#allocation5 + $0x20] sm:$0xff] %vm66, %v2387
    %2404 = vst.msk [vmem:[#allocation5 + $0x28] sm:$0xff] %vm66, %v2388
    %2405 = vst.msk [vmem:[#allocation5 + $0x30] sm:$0xff] %vm66, %v2389
    %2406 = vst.msk [vmem:[#allocation5 + $0x38] sm:$0xff] %vm66, %v2390
    %2407 = vst.msk [vmem:[#allocation5 + $0x40] sm:$0xff] %vm66, %v2391
    %2408 = vst.msk [vmem:[#allocation5 + $0x48] sm:$0xff] %vm66, %v2392
    %2409 = vst.msk [vmem:[#allocation5 + $0x50] sm:$0xff] %vm66, %v2393
    %2410 = vst.msk [vmem:[#allocation5 + $0x58] sm:$0xff] %vm66, %v2394
    %2411 = vst.msk [vmem:[#allocation5 + $0x60] sm:$0xff] %vm66, %v2395
    %2412 = vst.msk [vmem:[#allocation5 + $0x68] sm:$0xff] %vm66, %v2396
    %2413 = vst.msk [vmem:[#allocation5 + $0x70] sm:$0xff] %vm66, %v2397
    %2414 = vst.msk [vmem:[#allocation5 + $0x78] sm:$0xff] %vm66, %v2398
    %v2415 = vld [vmem:[%s1923] sm:$0xff]
    %v2416 = vld [vmem:[%s1923 + $0x10] sm:$0xff]
    %v2417 = vld [vmem:[%s1923 + $0x20] sm:$0xff]
    %v2418 = vld [vmem:[%s1923 + $0x30] sm:$0xff]
    %v2419 = vld [vmem:[%s1923 + $0x40] sm:$0xff]
    %v2420 = vld [vmem:[%s1923 + $0x50] sm:$0xff]
    %v2421 = vld [vmem:[%s1923 + $0x60] sm:$0xff]
    %v2422 = vld [vmem:[%s1923 + $0x70] sm:$0xff]
    %v2423 = vld [vmem:[%s1923 + $0xa0] sm:$0xff]
    %v2424 = vld [vmem:[%s1923 + $0xb0] sm:$0xff]
    %v2425 = vld [vmem:[%s1923 + $0xc0] sm:$0xff]
    %v2426 = vld [vmem:[%s1923 + $0xd0] sm:$0xff]
    %v2427 = vld [vmem:[%s1923 + $0xe0] sm:$0xff]
    %v2428 = vld [vmem:[%s1923 + $0xf0] sm:$0xff]
    %v2429 = vld [vmem:[%s1923 + $0x100] sm:$0xff]
    %v2430 = vld [vmem:[%s1923 + $0x110] sm:$0xff]
    %v2431 = vld [vmem:[%s7 + $0x18] sm:$0xf]
    %v2432 = vld [vmem:[%s7 + $0x1c] sm:$0xf]
    %v2433 = vld [vmem:[#allocation5] sm:$0xff]
    %v2434 = vld [vmem:[#allocation5 + $0x8] sm:$0xff]
    %v2435 = vld [vmem:[#allocation5 + $0x10] sm:$0xff]
    %v2436 = vld [vmem:[#allocation5 + $0x18] sm:$0xff]
    %v2437 = vld [vmem:[#allocation5 + $0x20] sm:$0xff]
    %v2438 = vld [vmem:[#allocation5 + $0x28] sm:$0xff]
    %v2439 = vld [vmem:[#allocation5 + $0x30] sm:$0xff]
    %v2440 = vld [vmem:[#allocation5 + $0x38] sm:$0xff]
    %v2441 = vld [vmem:[#allocation5 + $0x40] sm:$0xff]
    %v2442 = vld [vmem:[#allocation5 + $0x48] sm:$0xff]
    %v2443 = vld [vmem:[#allocation5 + $0x50] sm:$0xff]
    %v2444 = vld [vmem:[#allocation5 + $0x58] sm:$0xff]
    %v2445 = vld [vmem:[#allocation5 + $0x60] sm:$0xff]
    %v2446 = vld [vmem:[#allocation5 + $0x68] sm:$0xff]
    %v2447 = vld [vmem:[#allocation5 + $0x70] sm:$0xff]
    %v2448 = vld [vmem:[#allocation5 + $0x78] sm:$0xff]
    %v2449 = vpack.c.bf16 %v2416, %v2415
    %v2450 = vpack.c.bf16 %v2418, %v2417
    %v2451 = vpack.c.bf16 %v2420, %v2419
    %v2452 = vpack.c.bf16 %v2422, %v2421
    %v2453 = vpack.c.bf16 %v2424, %v2423
    %v2454 = vpack.c.bf16 %v2426, %v2425
    %v2455 = vpack.c.bf16 %v2428, %v2427
    %v2456 = vpack.c.bf16 %v2430, %v2429
    %v2459 = vunpack.c.l.b16 %v2431
    %v2460 = vunpack.c.l.b16 %v2432
    %v2461 = vpack.c.b16 %v2460, %v2459
    %v2464 = vsel %vm66, %v2449, 0
    %v2467 = vsel %vm66, %v2450, 0
    %v2470 = vsel %vm66, %v2451, 0
    %v2473 = vsel %vm66, %v2452, 0
    %v2476 = vsel %vm66, %v2453, 0
    %v2479 = vsel %vm66, %v2454, 0
    %v2482 = vsel %vm66, %v2455, 0
    %v2485 = vsel %vm66, %v2456, 0
    %2487 = vmatpush.bf16.msra.mxu0 0
    %2488 = vmatpush.bf16.msra.mxu0 0
    %2489 = vmatpush.bf16.msra.mxu0 0
    %2490 = vmatpush.bf16.msra.mxu0 0
    %2491 = vmatpush.bf16.msra.mxu0 0
    %2492 = vmatpush.bf16.msra.mxu0 0
    %2493 = vmatpush.bf16.msra.mxu0 0
    %2494 = vmatpush.bf16.msra.mxu0 %v2461
    %2495 = vmatmul.bf16.gmra.mxu0 %v2464
    %v2496 = vpop.f32.mrf.mxu0
    %v2497 = vadd.f32 0.0, %v2496
    %v2498 = vpop.f32.mrf.mxu0
    %v2499 = vadd.f32 0.0, %v2498
    %2500 = vmatmul.bf16.gmra.mxu0 %v2467
    %v2501 = vpop.f32.mrf.mxu0
    %v2502 = vadd.f32 0.0, %v2501
    %v2503 = vpop.f32.mrf.mxu0
    %v2504 = vadd.f32 0.0, %v2503
    %2505 = vmatmul.bf16.gmra.mxu0 %v2470
    %v2506 = vpop.f32.mrf.mxu0
    %v2507 = vadd.f32 0.0, %v2506
    %v2508 = vpop.f32.mrf.mxu0
    %v2509 = vadd.f32 0.0, %v2508
    %2510 = vmatmul.bf16.gmra.mxu0 %v2473
    %v2511 = vpop.f32.mrf.mxu0
    %v2512 = vadd.f32 0.0, %v2511
    %v2513 = vpop.f32.mrf.mxu0
    %v2514 = vadd.f32 0.0, %v2513
    %2515 = vmatmul.bf16.gmra.mxu0 %v2476
    %v2516 = vpop.f32.mrf.mxu0
    %v2517 = vadd.f32 0.0, %v2516
    %v2518 = vpop.f32.mrf.mxu0
    %v2519 = vadd.f32 0.0, %v2518
    %2520 = vmatmul.bf16.gmra.mxu0 %v2479
    %v2521 = vpop.f32.mrf.mxu0
    %v2522 = vadd.f32 0.0, %v2521
    %v2523 = vpop.f32.mrf.mxu0
    %v2524 = vadd.f32 0.0, %v2523
    %2525 = vmatmul.bf16.gmra.mxu0 %v2482
    %v2526 = vpop.f32.mrf.mxu0
    %v2527 = vadd.f32 0.0, %v2526
    %v2528 = vpop.f32.mrf.mxu0
    %v2529 = vadd.f32 0.0, %v2528
    %2530 = vmatmul.bf16.gmra.mxu0 %v2485
    %v2531 = vpop.f32.mrf.mxu0
    %v2532 = vadd.f32 0.0, %v2531
    %v2533 = vpop.f32.mrf.mxu0
    %v2534 = vadd.f32 0.0, %v2533
    %2535 = vdwg.mxu0
    %v2536 = vadd.f32 %v2433, %v2497
    %v2537 = vadd.f32 %v2434, %v2499
    %v2538 = vadd.f32 %v2435, %v2502
    %v2539 = vadd.f32 %v2436, %v2504
    %v2540 = vadd.f32 %v2437, %v2507
    %v2541 = vadd.f32 %v2438, %v2509
    %v2542 = vadd.f32 %v2439, %v2512
    %v2543 = vadd.f32 %v2440, %v2514
    %v2544 = vadd.f32 %v2441, %v2517
    %v2545 = vadd.f32 %v2442, %v2519
    %v2546 = vadd.f32 %v2443, %v2522
    %v2547 = vadd.f32 %v2444, %v2524
    %v2548 = vadd.f32 %v2445, %v2527
    %v2549 = vadd.f32 %v2446, %v2529
    %v2550 = vadd.f32 %v2447, %v2532
    %v2551 = vadd.f32 %v2448, %v2534
    %2552 = vst.msk [vmem:[#allocation5] sm:$0xff] %vm66, %v2536
    %2553 = vst.msk [vmem:[#allocation5 + $0x8] sm:$0xff] %vm66, %v2537
    %2554 = vst.msk [vmem:[#allocation5 + $0x10] sm:$0xff] %vm66, %v2538
    %2555 = vst.msk [vmem:[#allocation5 + $0x18] sm:$0xff] %vm66, %v2539
    %2556 = vst.msk [vmem:[#allocation5 + $0x20] sm:$0xff] %vm66, %v2540
    %2557 = vst.msk [vmem:[#allocation5 + $0x28] sm:$0xff] %vm66, %v2541
    %2558 = vst.msk [vmem:[#allocation5 + $0x30] sm:$0xff] %vm66, %v2542
    %2559 = vst.msk [vmem:[#allocation5 + $0x38] sm:$0xff] %vm66, %v2543
    %2560 = vst.msk [vmem:[#allocation5 + $0x40] sm:$0xff] %vm66, %v2544
    %2561 = vst.msk [vmem:[#allocation5 + $0x48] sm:$0xff] %vm66, %v2545
    %2562 = vst.msk [vmem:[#allocation5 + $0x50] sm:$0xff] %vm66, %v2546
    %2563 = vst.msk [vmem:[#allocation5 + $0x58] sm:$0xff] %vm66, %v2547
    %2564 = vst.msk [vmem:[#allocation5 + $0x60] sm:$0xff] %vm66, %v2548
    %2565 = vst.msk [vmem:[#allocation5 + $0x68] sm:$0xff] %vm66, %v2549
    %2566 = vst.msk [vmem:[#allocation5 + $0x70] sm:$0xff] %vm66, %v2550
    %2567 = vst.msk [vmem:[#allocation5 + $0x78] sm:$0xff] %vm66, %v2551
    %v2568 = vld [vmem:[%s1923 + $0x1] sm:$0xff]
    %v2569 = vld [vmem:[%s1923 + $0x11] sm:$0xff]
    %v2570 = vld [vmem:[%s1923 + $0x21] sm:$0xff]
    %v2571 = vld [vmem:[%s1923 + $0x31] sm:$0xff]
    %v2572 = vld [vmem:[%s1923 + $0x41] sm:$0xff]
    %v2573 = vld [vmem:[%s1923 + $0x51] sm:$0xff]
    %v2574 = vld [vmem:[%s1923 + $0x61] sm:$0xff]
    %v2575 = vld [vmem:[%s1923 + $0x71] sm:$0xff]
    %v2576 = vld [vmem:[%s1923 + $0xa1] sm:$0xff]
    %v2577 = vld [vmem:[%s1923 + $0xb1] sm:$0xff]
    %v2578 = vld [vmem:[%s1923 + $0xc1] sm:$0xff]
    %v2579 = vld [vmem:[%s1923 + $0xd1] sm:$0xff]
    %v2580 = vld [vmem:[%s1923 + $0xe1] sm:$0xff]
    %v2581 = vld [vmem:[%s1923 + $0xf1] sm:$0xff]
    %v2582 = vld [vmem:[%s1923 + $0x101] sm:$0xff]
    %v2583 = vld [vmem:[%s1923 + $0x111] sm:$0xff]
    %v2584 = vld [vmem:[%s7 + $0x20] sm:$0xf]
    %v2585 = vld [vmem:[%s7 + $0x24] sm:$0xf]
    %v2586 = vld [vmem:[#allocation5] sm:$0xff]
    %v2587 = vld [vmem:[#allocation5 + $0x8] sm:$0xff]
    %v2588 = vld [vmem:[#allocation5 + $0x10] sm:$0xff]
    %v2589 = vld [vmem:[#allocation5 + $0x18] sm:$0xff]
    %v2590 = vld [vmem:[#allocation5 + $0x20] sm:$0xff]
    %v2591 = vld [vmem:[#allocation5 + $0x28] sm:$0xff]
    %v2592 = vld [vmem:[#allocation5 + $0x30] sm:$0xff]
    %v2593 = vld [vmem:[#allocation5 + $0x38] sm:$0xff]
    %v2594 = vld [vmem:[#allocation5 + $0x40] sm:$0xff]
    %v2595 = vld [vmem:[#allocation5 + $0x48] sm:$0xff]
    %v2596 = vld [vmem:[#allocation5 + $0x50] sm:$0xff]
    %v2597 = vld [vmem:[#allocation5 + $0x58] sm:$0xff]
    %v2598 = vld [vmem:[#allocation5 + $0x60] sm:$0xff]
    %v2599 = vld [vmem:[#allocation5 + $0x68] sm:$0xff]
    %v2600 = vld [vmem:[#allocation5 + $0x70] sm:$0xff]
    %v2601 = vld [vmem:[#allocation5 + $0x78] sm:$0xff]
    %v2602 = vpack.c.bf16 %v2569, %v2568
    %v2603 = vpack.c.bf16 %v2571, %v2570
    %v2604 = vpack.c.bf16 %v2573, %v2572
    %v2605 = vpack.c.bf16 %v2575, %v2574
    %v2606 = vpack.c.bf16 %v2577, %v2576
    %v2607 = vpack.c.bf16 %v2579, %v2578
    %v2608 = vpack.c.bf16 %v2581, %v2580
    %v2609 = vpack.c.bf16 %v2583, %v2582
    %v2612 = vunpack.c.l.b16 %v2584
    %v2613 = vunpack.c.l.b16 %v2585
    %v2614 = vpack.c.b16 %v2613, %v2612
    %v2617 = vsel %vm66, %v2602, 0
    %v2620 = vsel %vm66, %v2603, 0
    %v2623 = vsel %vm66, %v2604, 0
    %v2626 = vsel %vm66, %v2605, 0
    %v2629 = vsel %vm66, %v2606, 0
    %v2632 = vsel %vm66, %v2607, 0
    %v2635 = vsel %vm66, %v2608, 0
    %v2638 = vsel %vm66, %v2609, 0
    %2640 = vmatpush.bf16.msra.mxu0 0
    %2641 = vmatpush.bf16.msra.mxu0 0
    %2642 = vmatpush.bf16.msra.mxu0 0
    %2643 = vmatpush.bf16.msra.mxu0 0
    %2644 = vmatpush.bf16.msra.mxu0 0
    %2645 = vmatpush.bf16.msra.mxu0 0
    %2646 = vmatpush.bf16.msra.mxu0 0
    %2647 = vmatpush.bf16.msra.mxu0 %v2614
    %2648 = vmatmul.bf16.gmra.mxu0 %v2617
    %v2649 = vpop.f32.mrf.mxu0
    %v2650 = vadd.f32 0.0, %v2649
    %v2651 = vpop.f32.mrf.mxu0
    %v2652 = vadd.f32 0.0, %v2651
    %2653 = vmatmul.bf16.gmra.mxu0 %v2620
    %v2654 = vpop.f32.mrf.mxu0
    %v2655 = vadd.f32 0.0, %v2654
    %v2656 = vpop.f32.mrf.mxu0
    %v2657 = vadd.f32 0.0, %v2656
    %2658 = vmatmul.bf16.gmra.mxu0 %v2623
    %v2659 = vpop.f32.mrf.mxu0
    %v2660 = vadd.f32 0.0, %v2659
    %v2661 = vpop.f32.mrf.mxu0
    %v2662 = vadd.f32 0.0, %v2661
    %2663 = vmatmul.bf16.gmra.mxu0 %v2626
    %v2664 = vpop.f32.mrf.mxu0
    %v2665 = vadd.f32 0.0, %v2664
    %v2666 = vpop.f32.mrf.mxu0
    %v2667 = vadd.f32 0.0, %v2666
    %2668 = vmatmul.bf16.gmra.mxu0 %v2629
    %v2669 = vpop.f32.mrf.mxu0
    %v2670 = vadd.f32 0.0, %v2669
    %v2671 = vpop.f32.mrf.mxu0
    %v2672 = vadd.f32 0.0, %v2671
    %2673 = vmatmul.bf16.gmra.mxu0 %v2632
    %v2674 = vpop.f32.mrf.mxu0
    %v2675 = vadd.f32 0.0, %v2674
    %v2676 = vpop.f32.mrf.mxu0
    %v2677 = vadd.f32 0.0, %v2676
    %2678 = vmatmul.bf16.gmra.mxu0 %v2635
    %v2679 = vpop.f32.mrf.mxu0
    %v2680 = vadd.f32 0.0, %v2679
    %v2681 = vpop.f32.mrf.mxu0
    %v2682 = vadd.f32 0.0, %v2681
    %2683 = vmatmul.bf16.gmra.mxu0 %v2638
    %v2684 = vpop.f32.mrf.mxu0
    %v2685 = vadd.f32 0.0, %v2684
    %v2686 = vpop.f32.mrf.mxu0
    %v2687 = vadd.f32 0.0, %v2686
    %2688 = vdwg.mxu0
    %v2689 = vadd.f32 %v2586, %v2650
    %v2690 = vadd.f32 %v2587, %v2652
    %v2691 = vadd.f32 %v2588, %v2655
    %v2692 = vadd.f32 %v2589, %v2657
    %v2693 = vadd.f32 %v2590, %v2660
    %v2694 = vadd.f32 %v2591, %v2662
    %v2695 = vadd.f32 %v2592, %v2665
    %v2696 = vadd.f32 %v2593, %v2667
    %v2697 = vadd.f32 %v2594, %v2670
    %v2698 = vadd.f32 %v2595, %v2672
    %v2699 = vadd.f32 %v2596, %v2675
    %v2700 = vadd.f32 %v2597, %v2677
    %v2701 = vadd.f32 %v2598, %v2680
    %v2702 = vadd.f32 %v2599, %v2682
    %v2703 = vadd.f32 %v2600, %v2685
    %v2704 = vadd.f32 %v2601, %v2687
    %2705 = vst.msk [vmem:[#allocation5] sm:$0xff] %vm66, %v2689
    %2706 = vst.msk [vmem:[#allocation5 + $0x8] sm:$0xff] %vm66, %v2690
    %2707 = vst.msk [vmem:[#allocation5 + $0x10] sm:$0xff] %vm66, %v2691
    %2708 = vst.msk [vmem:[#allocation5 + $0x18] sm:$0xff] %vm66, %v2692
    %2709 = vst.msk [vmem:[#allocation5 + $0x20] sm:$0xff] %vm66, %v2693
    %2710 = vst.msk [vmem:[#allocation5 + $0x28] sm:$0xff] %vm66, %v2694
    %2711 = vst.msk [vmem:[#allocation5 + $0x30] sm:$0xff] %vm66, %v2695
    %2712 = vst.msk [vmem:[#allocation5 + $0x38] sm:$0xff] %vm66, %v2696
    %2713 = vst.msk [vmem:[#allocation5 + $0x40] sm:$0xff] %vm66, %v2697
    %2714 = vst.msk [vmem:[#allocation5 + $0x48] sm:$0xff] %vm66, %v2698
    %2715 = vst.msk [vmem:[#allocation5 + $0x50] sm:$0xff] %vm66, %v2699
    %2716 = vst.msk [vmem:[#allocation5 + $0x58] sm:$0xff] %vm66, %v2700
    %2717 = vst.msk [vmem:[#allocation5 + $0x60] sm:$0xff] %vm66, %v2701
    %2718 = vst.msk [vmem:[#allocation5 + $0x68] sm:$0xff] %vm66, %v2702
    %2719 = vst.msk [vmem:[#allocation5 + $0x70] sm:$0xff] %vm66, %v2703
    %2720 = vst.msk [vmem:[#allocation5 + $0x78] sm:$0xff] %vm66, %v2704
    %v2721 = vld [vmem:[%s1923 + $0x2] sm:$0xff]
    %v2722 = vld [vmem:[%s1923 + $0x12] sm:$0xff]
    %v2723 = vld [vmem:[%s1923 + $0x22] sm:$0xff]
    %v2724 = vld [vmem:[%s1923 + $0x32] sm:$0xff]
    %v2725 = vld [vmem:[%s1923 + $0x42] sm:$0xff]
    %v2726 = vld [vmem:[%s1923 + $0x52] sm:$0xff]
    %v2727 = vld [vmem:[%s1923 + $0x62] sm:$0xff]
    %v2728 = vld [vmem:[%s1923 + $0x72] sm:$0xff]
    %v2729 = vld [vmem:[%s1923 + $0xa2] sm:$0xff]
    %v2730 = vld [vmem:[%s1923 + $0xb2] sm:$0xff]
    %v2731 = vld [vmem:[%s1923 + $0xc2] sm:$0xff]
    %v2732 = vld [vmem:[%s1923 + $0xd2] sm:$0xff]
    %v2733 = vld [vmem:[%s1923 + $0xe2] sm:$0xff]
    %v2734 = vld [vmem:[%s1923 + $0xf2] sm:$0xff]
    %v2735 = vld [vmem:[%s1923 + $0x102] sm:$0xff]
    %v2736 = vld [vmem:[%s1923 + $0x112] sm:$0xff]
    %v2737 = vld [vmem:[%s7 + $0x28] sm:$0xf]
    %v2738 = vld [vmem:[%s7 + $0x2c] sm:$0xf]
    %v2739 = vld [vmem:[#allocation5] sm:$0xff]
    %v2740 = vld [vmem:[#allocation5 + $0x8] sm:$0xff]
    %v2741 = vld [vmem:[#allocation5 + $0x10] sm:$0xff]
    %v2742 = vld [vmem:[#allocation5 + $0x18] sm:$0xff]
    %v2743 = vld [vmem:[#allocation5 + $0x20] sm:$0xff]
    %v2744 = vld [vmem:[#allocation5 + $0x28] sm:$0xff]
    %v2745 = vld [vmem:[#allocation5 + $0x30] sm:$0xff]
    %v2746 = vld [vmem:[#allocation5 + $0x38] sm:$0xff]
    %v2747 = vld [vmem:[#allocation5 + $0x40] sm:$0xff]
    %v2748 = vld [vmem:[#allocation5 + $0x48] sm:$0xff]
    %v2749 = vld [vmem:[#allocation5 + $0x50] sm:$0xff]
    %v2750 = vld [vmem:[#allocation5 + $0x58] sm:$0xff]
    %v2751 = vld [vmem:[#allocation5 + $0x60] sm:$0xff]
    %v2752 = vld [vmem:[#allocation5 + $0x68] sm:$0xff]
    %v2753 = vld [vmem:[#allocation5 + $0x70] sm:$0xff]
    %v2754 = vld [vmem:[#allocation5 + $0x78] sm:$0xff]
    %v2755 = vpack.c.bf16 %v2722, %v2721
    %v2756 = vpack.c.bf16 %v2724, %v2723
    %v2757 = vpack.c.bf16 %v2726, %v2725
    %v2758 = vpack.c.bf16 %v2728, %v2727
    %v2759 = vpack.c.bf16 %v2730, %v2729
    %v2760 = vpack.c.bf16 %v2732, %v2731
    %v2761 = vpack.c.bf16 %v2734, %v2733
    %v2762 = vpack.c.bf16 %v2736, %v2735
    %v2765 = vunpack.c.l.b16 %v2737
    %v2766 = vunpack.c.l.b16 %v2738
    %v2767 = vpack.c.b16 %v2766, %v2765
    %v2770 = vsel %vm66, %v2755, 0
    %v2773 = vsel %vm66, %v2756, 0
    %v2776 = vsel %vm66, %v2757, 0
    %v2779 = vsel %vm66, %v2758, 0
    %v2782 = vsel %vm66, %v2759, 0
    %v2785 = vsel %vm66, %v2760, 0
    %v2788 = vsel %vm66, %v2761, 0
    %v2791 = vsel %vm66, %v2762, 0
    %2793 = vmatpush.bf16.msra.mxu0 0
    %2794 = vmatpush.bf16.msra.mxu0 0
    %2795 = vmatpush.bf16.msra.mxu0 0
    %2796 = vmatpush.bf16.msra.mxu0 0
    %2797 = vmatpush.bf16.msra.mxu0 0
    %2798 = vmatpush.bf16.msra.mxu0 0
    %2799 = vmatpush.bf16.msra.mxu0 0
    %2800 = vmatpush.bf16.msra.mxu0 %v2767
    %2801 = vmatmul.bf16.gmra.mxu0 %v2770
    %v2802 = vpop.f32.mrf.mxu0
    %v2803 = vadd.f32 0.0, %v2802
    %v2804 = vpop.f32.mrf.mxu0
    %v2805 = vadd.f32 0.0, %v2804
    %2806 = vmatmul.bf16.gmra.mxu0 %v2773
    %v2807 = vpop.f32.mrf.mxu0
    %v2808 = vadd.f32 0.0, %v2807
    %v2809 = vpop.f32.mrf.mxu0
    %v2810 = vadd.f32 0.0, %v2809
    %2811 = vmatmul.bf16.gmra.mxu0 %v2776
    %v2812 = vpop.f32.mrf.mxu0
    %v2813 = vadd.f32 0.0, %v2812
    %v2814 = vpop.f32.mrf.mxu0
    %v2815 = vadd.f32 0.0, %v2814
    %2816 = vmatmul.bf16.gmra.mxu0 %v2779
    %v2817 = vpop.f32.mrf.mxu0
    %v2818 = vadd.f32 0.0, %v2817
    %v2819 = vpop.f32.mrf.mxu0
    %v2820 = vadd.f32 0.0, %v2819
    %2821 = vmatmul.bf16.gmra.mxu0 %v2782
    %v2822 = vpop.f32.mrf.mxu0
    %v2823 = vadd.f32 0.0, %v2822
    %v2824 = vpop.f32.mrf.mxu0
    %v2825 = vadd.f32 0.0, %v2824
    %2826 = vmatmul.bf16.gmra.mxu0 %v2785
    %v2827 = vpop.f32.mrf.mxu0
    %v2828 = vadd.f32 0.0, %v2827
    %v2829 = vpop.f32.mrf.mxu0
    %v2830 = vadd.f32 0.0, %v2829
    %2831 = vmatmul.bf16.gmra.mxu0 %v2788
    %v2832 = vpop.f32.mrf.mxu0
    %v2833 = vadd.f32 0.0, %v2832
    %v2834 = vpop.f32.mrf.mxu0
    %v2835 = vadd.f32 0.0, %v2834
    %2836 = vmatmul.bf16.gmra.mxu0 %v2791
    %v2837 = vpop.f32.mrf.mxu0
    %v2838 = vadd.f32 0.0, %v2837
    %v2839 = vpop.f32.mrf.mxu0
    %v2840 = vadd.f32 0.0, %v2839
    %2841 = vdwg.mxu0
    %v2842 = vadd.f32 %v2739, %v2803
    %v2843 = vadd.f32 %v2740, %v2805
    %v2844 = vadd.f32 %v2741, %v2808
    %v2845 = vadd.f32 %v2742, %v2810
    %v2846 = vadd.f32 %v2743, %v2813
    %v2847 = vadd.f32 %v2744, %v2815
    %v2848 = vadd.f32 %v2745, %v2818
    %v2849 = vadd.f32 %v2746, %v2820
    %v2850 = vadd.f32 %v2747, %v2823
    %v2851 = vadd.f32 %v2748, %v2825
    %v2852 = vadd.f32 %v2749, %v2828
    %v2853 = vadd.f32 %v2750, %v2830
    %v2854 = vadd.f32 %v2751, %v2833
    %v2855 = vadd.f32 %v2752, %v2835
    %v2856 = vadd.f32 %v2753, %v2838
    %v2857 = vadd.f32 %v2754, %v2840
    %2858 = vst.msk [vmem:[#allocation5] sm:$0xff] %vm66, %v2842
    %2859 = vst.msk [vmem:[#allocation5 + $0x8] sm:$0xff] %vm66, %v2843
    %2860 = vst.msk [vmem:[#allocation5 + $0x10] sm:$0xff] %vm66, %v2844
    %2861 = vst.msk [vmem:[#allocation5 + $0x18] sm:$0xff] %vm66, %v2845
    %2862 = vst.msk [vmem:[#allocation5 + $0x20] sm:$0xff] %vm66, %v2846
    %2863 = vst.msk [vmem:[#allocation5 + $0x28] sm:$0xff] %vm66, %v2847
    %2864 = vst.msk [vmem:[#allocation5 + $0x30] sm:$0xff] %vm66, %v2848
    %2865 = vst.msk [vmem:[#allocation5 + $0x38] sm:$0xff] %vm66, %v2849
    %2866 = vst.msk [vmem:[#allocation5 + $0x40] sm:$0xff] %vm66, %v2850
    %2867 = vst.msk [vmem:[#allocation5 + $0x48] sm:$0xff] %vm66, %v2851
    %2868 = vst.msk [vmem:[#allocation5 + $0x50] sm:$0xff] %vm66, %v2852
    %2869 = vst.msk [vmem:[#allocation5 + $0x58] sm:$0xff] %vm66, %v2853
    %2870 = vst.msk [vmem:[#allocation5 + $0x60] sm:$0xff] %vm66, %v2854
    %2871 = vst.msk [vmem:[#allocation5 + $0x68] sm:$0xff] %vm66, %v2855
    %2872 = vst.msk [vmem:[#allocation5 + $0x70] sm:$0xff] %vm66, %v2856
    %2873 = vst.msk [vmem:[#allocation5 + $0x78] sm:$0xff] %vm66, %v2857
    %s2874 = scalar_lea.vmem [#allocation4], 32
    %v2875 = vld [vmem:[%s2874] sm:$0xff]
    %v2876 = vld [vmem:[%s2874 + $0x10] sm:$0xff]
    %v2877 = vld [vmem:[%s2874 + $0x20] sm:$0xff]
    %v2878 = vld [vmem:[%s2874 + $0x30] sm:$0xff]
    %v2879 = vld [vmem:[%s2874 + $0x40] sm:$0xff]
    %v2880 = vld [vmem:[%s2874 + $0x50] sm:$0xff]
    %v2881 = vld [vmem:[%s2874 + $0x60] sm:$0xff]
    %v2882 = vld [vmem:[%s2874 + $0x70] sm:$0xff]
    %v2883 = vld [vmem:[%s2874 + $0xa0] sm:$0xff]
    %v2884 = vld [vmem:[%s2874 + $0xb0] sm:$0xff]
    %v2885 = vld [vmem:[%s2874 + $0xc0] sm:$0xff]
    %v2886 = vld [vmem:[%s2874 + $0xd0] sm:$0xff]
    %v2887 = vld [vmem:[%s2874 + $0xe0] sm:$0xff]
    %v2888 = vld [vmem:[%s2874 + $0xf0] sm:$0xff]
    %v2889 = vld [vmem:[%s2874 + $0x100] sm:$0xff]
    %v2890 = vld [vmem:[%s2874 + $0x110] sm:$0xff]
    %v2891 = vld [vmem:[%s7 + $0x30] sm:$0xf]
    %v2892 = vld [vmem:[%s7 + $0x34] sm:$0xf]
    %v2893 = vld [vmem:[#allocation5] sm:$0xff]
    %v2894 = vld [vmem:[#allocation5 + $0x8] sm:$0xff]
    %v2895 = vld [vmem:[#allocation5 + $0x10] sm:$0xff]
    %v2896 = vld [vmem:[#allocation5 + $0x18] sm:$0xff]
    %v2897 = vld [vmem:[#allocation5 + $0x20] sm:$0xff]
    %v2898 = vld [vmem:[#allocation5 + $0x28] sm:$0xff]
    %v2899 = vld [vmem:[#allocation5 + $0x30] sm:$0xff]
    %v2900 = vld [vmem:[#allocation5 + $0x38] sm:$0xff]
    %v2901 = vld [vmem:[#allocation5 + $0x40] sm:$0xff]
    %v2902 = vld [vmem:[#allocation5 + $0x48] sm:$0xff]
    %v2903 = vld [vmem:[#allocation5 + $0x50] sm:$0xff]
    %v2904 = vld [vmem:[#allocation5 + $0x58] sm:$0xff]
    %v2905 = vld [vmem:[#allocation5 + $0x60] sm:$0xff]
    %v2906 = vld [vmem:[#allocation5 + $0x68] sm:$0xff]
    %v2907 = vld [vmem:[#allocation5 + $0x70] sm:$0xff]
    %v2908 = vld [vmem:[#allocation5 + $0x78] sm:$0xff]
    %v2909 = vpack.c.bf16 %v2876, %v2875
    %v2910 = vpack.c.bf16 %v2878, %v2877
    %v2911 = vpack.c.bf16 %v2880, %v2879
    %v2912 = vpack.c.bf16 %v2882, %v2881
    %v2913 = vpack.c.bf16 %v2884, %v2883
    %v2914 = vpack.c.bf16 %v2886, %v2885
    %v2915 = vpack.c.bf16 %v2888, %v2887
    %v2916 = vpack.c.bf16 %v2890, %v2889
    %v2919 = vunpack.c.l.b16 %v2891
    %v2920 = vunpack.c.l.b16 %v2892
    %v2921 = vpack.c.b16 %v2920, %v2919
    %v2924 = vsel %vm66, %v2909, 0
    %v2927 = vsel %vm66, %v2910, 0
    %v2930 = vsel %vm66, %v2911, 0
    %v2933 = vsel %vm66, %v2912, 0
    %v2936 = vsel %vm66, %v2913, 0
    %v2939 = vsel %vm66, %v2914, 0
    %v2942 = vsel %vm66, %v2915, 0
    %v2945 = vsel %vm66, %v2916, 0
    %2947 = vmatpush.bf16.msra.mxu0 0
    %2948 = vmatpush.bf16.msra.mxu0 0
    %2949 = vmatpush.bf16.msra.mxu0 0
    %2950 = vmatpush.bf16.msra.mxu0 0
    %2951 = vmatpush.bf16.msra.mxu0 0
    %2952 = vmatpush.bf16.msra.mxu0 0
    %2953 = vmatpush.bf16.msra.mxu0 0
    %2954 = vmatpush.bf16.msra.mxu0 %v2921
    %2955 = vmatmul.bf16.gmra.mxu0 %v2924
    %v2956 = vpop.f32.mrf.mxu0
    %v2957 = vadd.f32 0.0, %v2956
    %v2958 = vpop.f32.mrf.mxu0
    %v2959 = vadd.f32 0.0, %v2958
    %2960 = vmatmul.bf16.gmra.mxu0 %v2927
    %v2961 = vpop.f32.mrf.mxu0
    %v2962 = vadd.f32 0.0, %v2961
    %v2963 = vpop.f32.mrf.mxu0
    %v2964 = vadd.f32 0.0, %v2963
    %2965 = vmatmul.bf16.gmra.mxu0 %v2930
    %v2966 = vpop.f32.mrf.mxu0
    %v2967 = vadd.f32 0.0, %v2966
    %v2968 = vpop.f32.mrf.mxu0
    %v2969 = vadd.f32 0.0, %v2968
    %2970 = vmatmul.bf16.gmra.mxu0 %v2933
    %v2971 = vpop.f32.mrf.mxu0
    %v2972 = vadd.f32 0.0, %v2971
    %v2973 = vpop.f32.mrf.mxu0
    %v2974 = vadd.f32 0.0, %v2973
    %2975 = vmatmul.bf16.gmra.mxu0 %v2936
    %v2976 = vpop.f32.mrf.mxu0
    %v2977 = vadd.f32 0.0, %v2976
    %v2978 = vpop.f32.mrf.mxu0
    %v2979 = vadd.f32 0.0, %v2978
    %2980 = vmatmul.bf16.gmra.mxu0 %v2939
    %v2981 = vpop.f32.mrf.mxu0
    %v2982 = vadd.f32 0.0, %v2981
    %v2983 = vpop.f32.mrf.mxu0
    %v2984 = vadd.f32 0.0, %v2983
    %2985 = vmatmul.bf16.gmra.mxu0 %v2942
    %v2986 = vpop.f32.mrf.mxu0
    %v2987 = vadd.f32 0.0, %v2986
    %v2988 = vpop.f32.mrf.mxu0
    %v2989 = vadd.f32 0.0, %v2988
    %2990 = vmatmul.bf16.gmra.mxu0 %v2945
    %v2991 = vpop.f32.mrf.mxu0
    %v2992 = vadd.f32 0.0, %v2991
    %v2993 = vpop.f32.mrf.mxu0
    %v2994 = vadd.f32 0.0, %v2993
    %2995 = vdwg.mxu0
    %v2996 = vadd.f32 %v2893, %v2957
    %v2997 = vadd.f32 %v2894, %v2959
    %v2998 = vadd.f32 %v2895, %v2962
    %v2999 = vadd.f32 %v2896, %v2964
    %v3000 = vadd.f32 %v2897, %v2967
    %v3001 = vadd.f32 %v2898, %v2969
    %v3002 = vadd.f32 %v2899, %v2972
    %v3003 = vadd.f32 %v2900, %v2974
    %v3004 = vadd.f32 %v2901, %v2977
    %v3005 = vadd.f32 %v2902, %v2979
    %v3006 = vadd.f32 %v2903, %v2982
    %v3007 = vadd.f32 %v2904, %v2984
    %v3008 = vadd.f32 %v2905, %v2987
    %v3009 = vadd.f32 %v2906, %v2989
    %v3010 = vadd.f32 %v2907, %v2992
    %v3011 = vadd.f32 %v2908, %v2994
    %3012 = vst.msk [vmem:[#allocation5] sm:$0xff] %vm66, %v2996
    %3013 = vst.msk [vmem:[#allocation5 + $0x8] sm:$0xff] %vm66, %v2997
    %3014 = vst.msk [vmem:[#allocation5 + $0x10] sm:$0xff] %vm66, %v2998
    %3015 = vst.msk [vmem:[#allocation5 + $0x18] sm:$0xff] %vm66, %v2999
    %3016 = vst.msk [vmem:[#allocation5 + $0x20] sm:$0xff] %vm66, %v3000
    %3017 = vst.msk [vmem:[#allocation5 + $0x28] sm:$0xff] %vm66, %v3001
    %3018 = vst.msk [vmem:[#allocation5 + $0x30] sm:$0xff] %vm66, %v3002
    %3019 = vst.msk [vmem:[#allocation5 + $0x38] sm:$0xff] %vm66, %v3003
    %3020 = vst.msk [vmem:[#allocation5 + $0x40] sm:$0xff] %vm66, %v3004
    %3021 = vst.msk [vmem:[#allocation5 + $0x48] sm:$0xff] %vm66, %v3005
    %3022 = vst.msk [vmem:[#allocation5 + $0x50] sm:$0xff] %vm66, %v3006
    %3023 = vst.msk [vmem:[#allocation5 + $0x58] sm:$0xff] %vm66, %v3007
    %3024 = vst.msk [vmem:[#allocation5 + $0x60] sm:$0xff] %vm66, %v3008
    %3025 = vst.msk [vmem:[#allocation5 + $0x68] sm:$0xff] %vm66, %v3009
    %3026 = vst.msk [vmem:[#allocation5 + $0x70] sm:$0xff] %vm66, %v3010
    %3027 = vst.msk [vmem:[#allocation5 + $0x78] sm:$0xff] %vm66, %v3011
    %v3028 = vld [vmem:[%s2874 + $0x1] sm:$0xff]
    %v3029 = vld [vmem:[%s2874 + $0x11] sm:$0xff]
    %v3030 = vld [vmem:[%s2874 + $0x21] sm:$0xff]
    %v3031 = vld [vmem:[%s2874 + $0x31] sm:$0xff]
    %v3032 = vld [vmem:[%s2874 + $0x41] sm:$0xff]
    %v3033 = vld [vmem:[%s2874 + $0x51] sm:$0xff]
    %v3034 = vld [vmem:[%s2874 + $0x61] sm:$0xff]
    %v3035 = vld [vmem:[%s2874 + $0x71] sm:$0xff]
    %v3036 = vld [vmem:[%s2874 + $0xa1] sm:$0xff]
    %v3037 = vld [vmem:[%s2874 + $0xb1] sm:$0xff]
    %v3038 = vld [vmem:[%s2874 + $0xc1] sm:$0xff]
    %v3039 = vld [vmem:[%s2874 + $0xd1] sm:$0xff]
    %v3040 = vld [vmem:[%s2874 + $0xe1] sm:$0xff]
    %v3041 = vld [vmem:[%s2874 + $0xf1] sm:$0xff]
    %v3042 = vld [vmem:[%s2874 + $0x101] sm:$0xff]
    %v3043 = vld [vmem:[%s2874 + $0x111] sm:$0xff]
    %v3044 = vld [vmem:[%s7 + $0x38] sm:$0xf]
    %v3045 = vld [vmem:[%s7 + $0x3c] sm:$0xf]
    %v3046 = vld [vmem:[#allocation5] sm:$0xff]
    %v3047 = vld [vmem:[#allocation5 + $0x8] sm:$0xff]
    %v3048 = vld [vmem:[#allocation5 + $0x10] sm:$0xff]
    %v3049 = vld [vmem:[#allocation5 + $0x18] sm:$0xff]
    %v3050 = vld [vmem:[#allocation5 + $0x20] sm:$0xff]
    %v3051 = vld [vmem:[#allocation5 + $0x28] sm:$0xff]
    %v3052 = vld [vmem:[#allocation5 + $0x30] sm:$0xff]
    %v3053 = vld [vmem:[#allocation5 + $0x38] sm:$0xff]
    %v3054 = vld [vmem:[#allocation5 + $0x40] sm:$0xff]
    %v3055 = vld [vmem:[#allocation5 + $0x48] sm:$0xff]
    %v3056 = vld [vmem:[#allocation5 + $0x50] sm:$0xff]
    %v3057 = vld [vmem:[#allocation5 + $0x58] sm:$0xff]
    %v3058 = vld [vmem:[#allocation5 + $0x60] sm:$0xff]
    %v3059 = vld [vmem:[#allocation5 + $0x68] sm:$0xff]
    %v3060 = vld [vmem:[#allocation5 + $0x70] sm:$0xff]
    %v3061 = vld [vmem:[#allocation5 + $0x78] sm:$0xff]
    %v3062 = vpack.c.bf16 %v3029, %v3028
    %v3063 = vpack.c.bf16 %v3031, %v3030
    %v3064 = vpack.c.bf16 %v3033, %v3032
    %v3065 = vpack.c.bf16 %v3035, %v3034
    %v3066 = vpack.c.bf16 %v3037, %v3036
    %v3067 = vpack.c.bf16 %v3039, %v3038
    %v3068 = vpack.c.bf16 %v3041, %v3040
    %v3069 = vpack.c.bf16 %v3043, %v3042
    %v3072 = vunpack.c.l.b16 %v3044
    %v3073 = vunpack.c.l.b16 %v3045
    %v3074 = vpack.c.b16 %v3073, %v3072
    %v3077 = vsel %vm66, %v3062, 0
    %v3080 = vsel %vm66, %v3063, 0
    %v3083 = vsel %vm66, %v3064, 0
    %v3086 = vsel %vm66, %v3065, 0
    %v3089 = vsel %vm66, %v3066, 0
    %v3092 = vsel %vm66, %v3067, 0
    %v3095 = vsel %vm66, %v3068, 0
    %v3098 = vsel %vm66, %v3069, 0
    %3100 = vmatpush.bf16.msra.mxu0 0
    %3101 = vmatpush.bf16.msra.mxu0 0
    %3102 = vmatpush.bf16.msra.mxu0 0
    %3103 = vmatpush.bf16.msra.mxu0 0
    %3104 = vmatpush.bf16.msra.mxu0 0
    %3105 = vmatpush.bf16.msra.mxu0 0
    %3106 = vmatpush.bf16.msra.mxu0 0
    %3107 = vmatpush.bf16.msra.mxu0 %v3074
    %3108 = vmatmul.bf16.gmra.mxu0 %v3077
    %v3109 = vpop.f32.mrf.mxu0
    %v3110 = vadd.f32 0.0, %v3109
    %v3111 = vpop.f32.mrf.mxu0
    %v3112 = vadd.f32 0.0, %v3111
    %3113 = vmatmul.bf16.gmra.mxu0 %v3080
    %v3114 = vpop.f32.mrf.mxu0
    %v3115 = vadd.f32 0.0, %v3114
    %v3116 = vpop.f32.mrf.mxu0
    %v3117 = vadd.f32 0.0, %v3116
    %3118 = vmatmul.bf16.gmra.mxu0 %v3083
    %v3119 = vpop.f32.mrf.mxu0
    %v3120 = vadd.f32 0.0, %v3119
    %v3121 = vpop.f32.mrf.mxu0
    %v3122 = vadd.f32 0.0, %v3121
    %3123 = vmatmul.bf16.gmra.mxu0 %v3086
    %v3124 = vpop.f32.mrf.mxu0
    %v3125 = vadd.f32 0.0, %v3124
    %v3126 = vpop.f32.mrf.mxu0
    %v3127 = vadd.f32 0.0, %v3126
    %3128 = vmatmul.bf16.gmra.mxu0 %v3089
    %v3129 = vpop.f32.mrf.mxu0
    %v3130 = vadd.f32 0.0, %v3129
    %v3131 = vpop.f32.mrf.mxu0
    %v3132 = vadd.f32 0.0, %v3131
    %3133 = vmatmul.bf16.gmra.mxu0 %v3092
    %v3134 = vpop.f32.mrf.mxu0
    %v3135 = vadd.f32 0.0, %v3134
    %v3136 = vpop.f32.mrf.mxu0
    %v3137 = vadd.f32 0.0, %v3136
    %3138 = vmatmul.bf16.gmra.mxu0 %v3095
    %v3139 = vpop.f32.mrf.mxu0
    %v3140 = vadd.f32 0.0, %v3139
    %v3141 = vpop.f32.mrf.mxu0
    %v3142 = vadd.f32 0.0, %v3141
    %3143 = vmatmul.bf16.gmra.mxu0 %v3098
    %v3144 = vpop.f32.mrf.mxu0
    %v3145 = vadd.f32 0.0, %v3144
    %v3146 = vpop.f32.mrf.mxu0
    %v3147 = vadd.f32 0.0, %v3146
    %3148 = vdwg.mxu0
    %v3149 = vadd.f32 %v3046, %v3110
    %v3150 = vadd.f32 %v3047, %v3112
    %v3151 = vadd.f32 %v3048, %v3115
    %v3152 = vadd.f32 %v3049, %v3117
    %v3153 = vadd.f32 %v3050, %v3120
    %v3154 = vadd.f32 %v3051, %v3122
    %v3155 = vadd.f32 %v3052, %v3125
    %v3156 = vadd.f32 %v3053, %v3127
    %v3157 = vadd.f32 %v3054, %v3130
    %v3158 = vadd.f32 %v3055, %v3132
    %v3159 = vadd.f32 %v3056, %v3135
    %v3160 = vadd.f32 %v3057, %v3137
    %v3161 = vadd.f32 %v3058, %v3140
    %v3162 = vadd.f32 %v3059, %v3142
    %v3163 = vadd.f32 %v3060, %v3145
    %v3164 = vadd.f32 %v3061, %v3147
    %3165 = vst.msk [vmem:[#allocation5] sm:$0xff] %vm66, %v3149
    %3166 = vst.msk [vmem:[#allocation5 + $0x8] sm:$0xff] %vm66, %v3150
    %3167 = vst.msk [vmem:[#allocation5 + $0x10] sm:$0xff] %vm66, %v3151
    %3168 = vst.msk [vmem:[#allocation5 + $0x18] sm:$0xff] %vm66, %v3152
    %3169 = vst.msk [vmem:[#allocation5 + $0x20] sm:$0xff] %vm66, %v3153
    %3170 = vst.msk [vmem:[#allocation5 + $0x28] sm:$0xff] %vm66, %v3154
    %3171 = vst.msk [vmem:[#allocation5 + $0x30] sm:$0xff] %vm66, %v3155
    %3172 = vst.msk [vmem:[#allocation5 + $0x38] sm:$0xff] %vm66, %v3156
    %3173 = vst.msk [vmem:[#allocation5 + $0x40] sm:$0xff] %vm66, %v3157
    %3174 = vst.msk [vmem:[#allocation5 + $0x48] sm:$0xff] %vm66, %v3158
    %3175 = vst.msk [vmem:[#allocation5 + $0x50] sm:$0xff] %vm66, %v3159
    %3176 = vst.msk [vmem:[#allocation5 + $0x58] sm:$0xff] %vm66, %v3160
    %3177 = vst.msk [vmem:[#allocation5 + $0x60] sm:$0xff] %vm66, %v3161
    %3178 = vst.msk [vmem:[#allocation5 + $0x68] sm:$0xff] %vm66, %v3162
    %3179 = vst.msk [vmem:[#allocation5 + $0x70] sm:$0xff] %vm66, %v3163
    %3180 = vst.msk [vmem:[#allocation5 + $0x78] sm:$0xff] %vm66, %v3164
    %v3181 = vld [vmem:[%s2874 + $0x2] sm:$0xff]
    %v3182 = vld [vmem:[%s2874 + $0x12] sm:$0xff]
    %v3183 = vld [vmem:[%s2874 + $0x22] sm:$0xff]
    %v3184 = vld [vmem:[%s2874 + $0x32] sm:$0xff]
    %v3185 = vld [vmem:[%s2874 + $0x42] sm:$0xff]
    %v3186 = vld [vmem:[%s2874 + $0x52] sm:$0xff]
    %v3187 = vld [vmem:[%s2874 + $0x62] sm:$0xff]
    %v3188 = vld [vmem:[%s2874 + $0x72] sm:$0xff]
    %v3189 = vld [vmem:[%s2874 + $0xa2] sm:$0xff]
    %v3190 = vld [vmem:[%s2874 + $0xb2] sm:$0xff]
    %v3191 = vld [vmem:[%s2874 + $0xc2] sm:$0xff]
    %v3192 = vld [vmem:[%s2874 + $0xd2] sm:$0xff]
    %v3193 = vld [vmem:[%s2874 + $0xe2] sm:$0xff]
    %v3194 = vld [vmem:[%s2874 + $0xf2] sm:$0xff]
    %v3195 = vld [vmem:[%s2874 + $0x102] sm:$0xff]
    %v3196 = vld [vmem:[%s2874 + $0x112] sm:$0xff]
    %v3197 = vld [vmem:[%s7 + $0x40] sm:$0xf]
    %v3198 = vld [vmem:[%s7 + $0x44] sm:$0xf]
    %v3199 = vld [vmem:[#allocation5] sm:$0xff]
    %v3200 = vld [vmem:[#allocation5 + $0x8] sm:$0xff]
    %v3201 = vld [vmem:[#allocation5 + $0x10] sm:$0xff]
    %v3202 = vld [vmem:[#allocation5 + $0x18] sm:$0xff]
    %v3203 = vld [vmem:[#allocation5 + $0x20] sm:$0xff]
    %v3204 = vld [vmem:[#allocation5 + $0x28] sm:$0xff]
    %v3205 = vld [vmem:[#allocation5 + $0x30] sm:$0xff]
    %v3206 = vld [vmem:[#allocation5 + $0x38] sm:$0xff]
    %v3207 = vld [vmem:[#allocation5 + $0x40] sm:$0xff]
    %v3208 = vld [vmem:[#allocation5 + $0x48] sm:$0xff]
    %v3209 = vld [vmem:[#allocation5 + $0x50] sm:$0xff]
    %v3210 = vld [vmem:[#allocation5 + $0x58] sm:$0xff]
    %v3211 = vld [vmem:[#allocation5 + $0x60] sm:$0xff]
    %v3212 = vld [vmem:[#allocation5 + $0x68] sm:$0xff]
    %v3213 = vld [vmem:[#allocation5 + $0x70] sm:$0xff]
    %v3214 = vld [vmem:[#allocation5 + $0x78] sm:$0xff]
    %v3215 = vpack.c.bf16 %v3182, %v3181
    %v3216 = vpack.c.bf16 %v3184, %v3183
    %v3217 = vpack.c.bf16 %v3186, %v3185
    %v3218 = vpack.c.bf16 %v3188, %v3187
    %v3219 = vpack.c.bf16 %v3190, %v3189
    %v3220 = vpack.c.bf16 %v3192, %v3191
    %v3221 = vpack.c.bf16 %v3194, %v3193
    %v3222 = vpack.c.bf16 %v3196, %v3195
    %v3225 = vunpack.c.l.b16 %v3197
    %v3226 = vunpack.c.l.b16 %v3198
    %v3227 = vpack.c.b16 %v3226, %v3225
    %v3230 = vsel %vm66, %v3215, 0
    %v3233 = vsel %vm66, %v3216, 0
    %v3236 = vsel %vm66, %v3217, 0
    %v3239 = vsel %vm66, %v3218, 0
    %v3242 = vsel %vm66, %v3219, 0
    %v3245 = vsel %vm66, %v3220, 0
    %v3248 = vsel %vm66, %v3221, 0
    %v3251 = vsel %vm66, %v3222, 0
    %3253 = vmatpush.bf16.msra.mxu0 0
    %3254 = vmatpush.bf16.msra.mxu0 0
    %3255 = vmatpush.bf16.msra.mxu0 0
    %3256 = vmatpush.bf16.msra.mxu0 0
    %3257 = vmatpush.bf16.msra.mxu0 0
    %3258 = vmatpush.bf16.msra.mxu0 0
    %3259 = vmatpush.bf16.msra.mxu0 0
    %3260 = vmatpush.bf16.msra.mxu0 %v3227
    %3261 = vmatmul.bf16.gmra.mxu0 %v3230
    %v3262 = vpop.f32.mrf.mxu0
    %v3263 = vadd.f32 0.0, %v3262
    %v3264 = vpop.f32.mrf.mxu0
    %v3265 = vadd.f32 0.0, %v3264
    %3266 = vmatmul.bf16.gmra.mxu0 %v3233
    %v3267 = vpop.f32.mrf.mxu0
    %v3268 = vadd.f32 0.0, %v3267
    %v3269 = vpop.f32.mrf.mxu0
    %v3270 = vadd.f32 0.0, %v3269
    %3271 = vmatmul.bf16.gmra.mxu0 %v3236
    %v3272 = vpop.f32.mrf.mxu0
    %v3273 = vadd.f32 0.0, %v3272
    %v3274 = vpop.f32.mrf.mxu0
    %v3275 = vadd.f32 0.0, %v3274
    %3276 = vmatmul.bf16.gmra.mxu0 %v3239
    %v3277 = vpop.f32.mrf.mxu0
    %v3278 = vadd.f32 0.0, %v3277
    %v3279 = vpop.f32.mrf.mxu0
    %v3280 = vadd.f32 0.0, %v3279
    %3281 = vmatmul.bf16.gmra.mxu0 %v3242
    %v3282 = vpop.f32.mrf.mxu0
    %v3283 = vadd.f32 0.0, %v3282
    %v3284 = vpop.f32.mrf.mxu0
    %v3285 = vadd.f32 0.0, %v3284
    %3286 = vmatmul.bf16.gmra.mxu0 %v3245
    %v3287 = vpop.f32.mrf.mxu0
    %v3288 = vadd.f32 0.0, %v3287
    %v3289 = vpop.f32.mrf.mxu0
    %v3290 = vadd.f32 0.0, %v3289
    %3291 = vmatmul.bf16.gmra.mxu0 %v3248
    %v3292 = vpop.f32.mrf.mxu0
    %v3293 = vadd.f32 0.0, %v3292
    %v3294 = vpop.f32.mrf.mxu0
    %v3295 = vadd.f32 0.0, %v3294
    %3296 = vmatmul.bf16.gmra.mxu0 %v3251
    %v3297 = vpop.f32.mrf.mxu0
    %v3298 = vadd.f32 0.0, %v3297
    %v3299 = vpop.f32.mrf.mxu0
    %v3300 = vadd.f32 0.0, %v3299
    %3301 = vdwg.mxu0
    %v3302 = vadd.f32 %v3199, %v3263
    %v3303 = vadd.f32 %v3200, %v3265
    %v3304 = vadd.f32 %v3201, %v3268
    %v3305 = vadd.f32 %v3202, %v3270
    %v3306 = vadd.f32 %v3203, %v3273
    %v3307 = vadd.f32 %v3204, %v3275
    %v3308 = vadd.f32 %v3205, %v3278
    %v3309 = vadd.f32 %v3206, %v3280
    %v3310 = vadd.f32 %v3207, %v3283
    %v3311 = vadd.f32 %v3208, %v3285
    %v3312 = vadd.f32 %v3209, %v3288
    %v3313 = vadd.f32 %v3210, %v3290
    %v3314 = vadd.f32 %v3211, %v3293
    %v3315 = vadd.f32 %v3212, %v3295
    %v3316 = vadd.f32 %v3213, %v3298
    %v3317 = vadd.f32 %v3214, %v3300
    %3318 = vst.msk [vmem:[#allocation5] sm:$0xff] %vm66, %v3302
    %3319 = vst.msk [vmem:[#allocation5 + $0x8] sm:$0xff] %vm66, %v3303
    %3320 = vst.msk [vmem:[#allocation5 + $0x10] sm:$0xff] %vm66, %v3304
    %3321 = vst.msk [vmem:[#allocation5 + $0x18] sm:$0xff] %vm66, %v3305
    %3322 = vst.msk [vmem:[#allocation5 + $0x20] sm:$0xff] %vm66, %v3306
    %3323 = vst.msk [vmem:[#allocation5 + $0x28] sm:$0xff] %vm66, %v3307
    %3324 = vst.msk [vmem:[#allocation5 + $0x30] sm:$0xff] %vm66, %v3308
    %3325 = vst.msk [vmem:[#allocation5 + $0x38] sm:$0xff] %vm66, %v3309
    %3326 = vst.msk [vmem:[#allocation5 + $0x40] sm:$0xff] %vm66, %v3310
    %3327 = vst.msk [vmem:[#allocation5 + $0x48] sm:$0xff] %vm66, %v3311
    %3328 = vst.msk [vmem:[#allocation5 + $0x50] sm:$0xff] %vm66, %v3312
    %3329 = vst.msk [vmem:[#allocation5 + $0x58] sm:$0xff] %vm66, %v3313
    %3330 = vst.msk [vmem:[#allocation5 + $0x60] sm:$0xff] %vm66, %v3314
    %3331 = vst.msk [vmem:[#allocation5 + $0x68] sm:$0xff] %vm66, %v3315
    %3332 = vst.msk [vmem:[#allocation5 + $0x70] sm:$0xff] %vm66, %v3316
    %3333 = vst.msk [vmem:[#allocation5 + $0x78] sm:$0xff] %vm66, %v3317
    %v3334 = vld [vmem:[#allocation5] sm:$0xff]
    %v3335 = vld [vmem:[#allocation5 + $0x8] sm:$0xff]
    %v3336 = vld [vmem:[#allocation5 + $0x10] sm:$0xff]
    %v3337 = vld [vmem:[#allocation5 + $0x18] sm:$0xff]
    %v3338 = vld [vmem:[#allocation5 + $0x20] sm:$0xff]
    %v3339 = vld [vmem:[#allocation5 + $0x28] sm:$0xff]
    %v3340 = vld [vmem:[#allocation5 + $0x30] sm:$0xff]
    %v3341 = vld [vmem:[#allocation5 + $0x38] sm:$0xff]
    %v3342 = vld [vmem:[#allocation5 + $0x40] sm:$0xff]
    %v3343 = vld [vmem:[#allocation5 + $0x48] sm:$0xff]
    %v3344 = vld [vmem:[#allocation5 + $0x50] sm:$0xff]
    %v3345 = vld [vmem:[#allocation5 + $0x58] sm:$0xff]
    %v3346 = vld [vmem:[#allocation5 + $0x60] sm:$0xff]
    %v3347 = vld [vmem:[#allocation5 + $0x68] sm:$0xff]
    %v3348 = vld [vmem:[#allocation5 + $0x70] sm:$0xff]
    %v3349 = vld [vmem:[#allocation5 + $0x78] sm:$0xff]
    %v3350 = vld [vmem:[%s8] sm:$0x1]
    %v3352 = vperm.slane %v3350, 0
    %v3354 = vadd.f32 %v3334, %v3352
    %v3355 = vadd.f32 %v3335, %v3352
    %v3356 = vadd.f32 %v3336, %v3352
    %v3357 = vadd.f32 %v3337, %v3352
    %v3358 = vadd.f32 %v3338, %v3352
    %v3359 = vadd.f32 %v3339, %v3352
    %v3360 = vadd.f32 %v3340, %v3352
    %v3361 = vadd.f32 %v3341, %v3352
    %v3362 = vadd.f32 %v3342, %v3352
    %v3363 = vadd.f32 %v3343, %v3352
    %v3364 = vadd.f32 %v3344, %v3352
    %v3365 = vadd.f32 %v3345, %v3352
    %v3366 = vadd.f32 %v3346, %v3352
    %v3367 = vadd.f32 %v3347, %v3352
    %v3368 = vadd.f32 %v3348, %v3352
    %v3369 = vadd.f32 %v3349, %v3352
    %v3370 = vadd.f32 %v3354, %v50
    %v3371 = vadd.f32 %v3355, %v51
    %v3372 = vadd.f32 %v3356, %v52
    %v3373 = vadd.f32 %v3357, %v53
    %v3374 = vadd.f32 %v3358, %v54
    %v3375 = vadd.f32 %v3359, %v55
    %v3376 = vadd.f32 %v3360, %v56
    %v3377 = vadd.f32 %v3361, %v57
    %v3378 = vadd.f32 %v3362, %v58
    %v3379 = vadd.f32 %v3363, %v59
    %v3380 = vadd.f32 %v3364, %v60
    %v3381 = vadd.f32 %v3365, %v61
    %v3382 = vadd.f32 %v3366, %v62
    %v3383 = vadd.f32 %v3367, %v63
    %v3384 = vadd.f32 %v3368, %v64
    %v3385 = vadd.f32 %v3369, %v65
    %3386 = vst.msk [vmem:[#allocation6] sm:$0xff] %vm66, %v3370
    %3387 = vst.msk [vmem:[#allocation6 + $0x8] sm:$0xff] %vm66, %v3371
    %3388 = vst.msk [vmem:[#allocation6 + $0x10] sm:$0xff] %vm66, %v3372
    %3389 = vst.msk [vmem:[#allocation6 + $0x18] sm:$0xff] %vm66, %v3373
    %3390 = vst.msk [vmem:[#allocation6 + $0x20] sm:$0xff] %vm66, %v3374
    %3391 = vst.msk [vmem:[#allocation6 + $0x28] sm:$0xff] %vm66, %v3375
    %3392 = vst.msk [vmem:[#allocation6 + $0x30] sm:$0xff] %vm66, %v3376
    %3393 = vst.msk [vmem:[#allocation6 + $0x38] sm:$0xff] %vm66, %v3377
    %3394 = vst.msk [vmem:[#allocation6 + $0x40] sm:$0xff] %vm66, %v3378
    %3395 = vst.msk [vmem:[#allocation6 + $0x48] sm:$0xff] %vm66, %v3379
    %3396 = vst.msk [vmem:[#allocation6 + $0x50] sm:$0xff] %vm66, %v3380
    %3397 = vst.msk [vmem:[#allocation6 + $0x58] sm:$0xff] %vm66, %v3381
    %3398 = vst.msk [vmem:[#allocation6 + $0x60] sm:$0xff] %vm66, %v3382
    %3399 = vst.msk [vmem:[#allocation6 + $0x68] sm:$0xff] %vm66, %v3383
    %3400 = vst.msk [vmem:[#allocation6 + $0x70] sm:$0xff] %vm66, %v3384
    %3401 = vst.msk [vmem:[#allocation6 + $0x78] sm:$0xff] %vm66, %v3385
    // Predicated region
    $region38: #{forward.3} parent=1 // pred_check
      _
    $region39: #{forward.3} parent=1 // pred_check_branch
      %3403 = sbr.rel (0) target = $region41
    $region40: #{forward.3} parent=1 // pred_region
      %3405 = vsyncadd [#allocation7], 0
      %s3406 = sshll.u32 [#allocation6], 4
      %s3407 = int_to_ptr.vmem [resolvable:$true] %s3406
      %s3408 = sshll.u32 %s9, 4
      %s3409 = int_to_ptr.hbm [resolvable:$true] %s3408
      %3414 = dma.vmem_to_hbm [thread:$0]  %s3407, 2048, %s3409, [#allocation7], 128, 128, 8
    $region41: #{forward.3} parent=1 // pred_fallthru
      _
    // Predicated region
    $region42: #{forward.3} parent=1 // pred_check
      _
    $region43: #{forward.3} parent=1 // pred_check_branch
      %3416 = sbr.rel (0) target = $region45
    $region44: #{forward.3} parent=1 // pred_region
      %3418 = dma.done [#allocation7], 2048
    $region45: #{forward.3} parent=1 // pred_fallthru
      _
    %3419 = vsyncpa [#allocation7], 1

</llo_original>
